<compile_context>
chip_gen: v7x
topology: tpu7x:2x2x1
jax: 0.10.0
libtpu: 0.0.40
codegen_flags: <defaults>
</compile_context>

<pallas_src>
import functools

import jax
import jax.numpy as jnp
from jax import lax
from jax.experimental import pallas as pl
from jax.experimental.pallas import tpu as pltpu


# ---------------------------------------------------------------------------
# Kernel 1: pointwise (1x1) conv == tiled matmul + bias.
# ---------------------------------------------------------------------------
def _pw_conv_kernel(x_ref, w_ref, b_ref, o_ref):
    x = x_ref[...].astype(jnp.float32)
    w = w_ref[...].astype(jnp.float32)
    o = jnp.dot(x, w, preferred_element_type=jnp.float32)
    o = o + b_ref[...].astype(jnp.float32)
    o_ref[...] = o.astype(o_ref.dtype)


def pointwise_conv(x2, w, b, *, tm=256):
    """x2: (N, Cin) rows of pixels; w: (Cin, Cout); b: (Cout,)."""
    N, Cin = x2.shape
    Cout = w.shape[1]
    nb = pl.cdiv(N, tm)
    Np = nb * tm
    if Np != N:  # pad the row dim instead of asserting divisibility
        x2 = jnp.pad(x2, ((0, Np - N), (0, 0)))
    cost = pl.CostEstimate(
        flops=2 * Np * Cin * Cout,
        transcendentals=0,
        bytes_accessed=4 * (Np * Cin + Np * Cout + Cin * Cout + Cout),
    )
    out = pl.pallas_call(
        _pw_conv_kernel,
        out_shape=jax.ShapeDtypeStruct((Np, Cout), x2.dtype),
        grid=(nb,),
        in_specs=[
            pl.BlockSpec((tm, Cin), lambda i: (i, 0)),
            pl.BlockSpec((Cin, Cout), lambda i: (0, 0)),
            pl.BlockSpec((1, Cout), lambda i: (0, 0)),
        ],
        out_specs=pl.BlockSpec((tm, Cout), lambda i: (i, 0)),
        compiler_params=pltpu.CompilerParams(dimension_semantics=("parallel",)),
        cost_estimate=cost,
    )(x2, w, b.reshape(1, Cout))
    return out[:N] if Np != N else out


# ---------------------------------------------------------------------------
# Kernel 2: depthwise 3x3 conv, stride 1, SAME padding (+ optional fused ELU).
# ---------------------------------------------------------------------------
def _dwconv3x3_kernel(x_ref, w_ref, b_ref, o_ref, *, H, W, apply_elu):
    x = x_ref[...].astype(jnp.float32)          # (H+2, W+2, C)
    w = w_ref[...].astype(jnp.float32)          # (3, 3, C)
    C = x.shape[-1]
    acc = jnp.zeros((H, W, C), jnp.float32)
    for dy in range(3):                          # static 3x3 unroll, VPU only
        for dx in range(3):
            acc = acc + x[dy:dy + H, dx:dx + W, :] * w[dy, dx, :]
    acc = acc + b_ref[...].astype(jnp.float32)   # (1, C) broadcasts over (H, W, C)
    if apply_elu:                                # GELU class in SSTNet is actually F.elu
        acc = jnp.where(acc > 0, acc, jnp.exp(acc) - 1.0)
    o_ref[...] = acc.astype(o_ref.dtype)


def dwconv3x3(x, w, b=None, *, apply_elu=False):
    """x: (B, H, W, C); w: (3, 3, C); b: (C,) or None."""
    # NOTE: whole (H+2, W+2, C) image per grid step; for large images this would be
    # tiled spatially with halos, but the 16x16 window geometry keeps it tiny here.
    B, H, W, C = x.shape
    xp = jnp.pad(x, ((0, 0), (1, 1), (1, 1), (0, 0)))
    b2 = jnp.zeros((1, C), x.dtype) if b is None else b.reshape(1, C)
    kern = functools.partial(_dwconv3x3_kernel, H=H, W=W, apply_elu=apply_elu)
    return pl.pallas_call(
        kern,
        out_shape=jax.ShapeDtypeStruct((B, H, W, C), x.dtype),
        grid=(B,),
        in_specs=[
            pl.BlockSpec((None, H + 2, W + 2, C), lambda i: (i, 0, 0, 0)),
            pl.BlockSpec((3, 3, C), lambda i: (0, 0, 0)),
            pl.BlockSpec((1, C), lambda i: (0, 0)),
        ],
        out_specs=pl.BlockSpec((None, H, W, C), lambda i: (i, 0, 0, 0)),
        compiler_params=pltpu.CompilerParams(dimension_semantics=("parallel",)),
    )(xp, w, b2)


# ---------------------------------------------------------------------------
# Kernel 3: window spatial attention per (window, head), fused softmax.
# ---------------------------------------------------------------------------
def _window_attn_kernel(q_ref, k_ref, v_ref, pos_ref, o_ref, *, scale):
    q = q_ref[...].astype(jnp.float32) * scale                 # (n, d)
    k = k_ref[...].astype(jnp.float32)
    v = v_ref[...].astype(jnp.float32)
    sim = lax.dot_general(q, k, (((1,), (1,)), ((), ())),      # q @ k^T on the MXU
                          preferred_element_type=jnp.float32)
    sim = sim + pos_ref[...].astype(jnp.float32)               # learned pos bias
    sim = sim - jnp.max(sim, axis=-1, keepdims=True)           # stable f32 softmax
    p = jnp.exp(sim)
    attn = p / jnp.sum(p, axis=-1, keepdims=True)
    out = jnp.dot(attn, v, preferred_element_type=jnp.float32)
    o_ref[...] = out.astype(o_ref.dtype)


def window_attention(q, k, v, pos_emb, *, scale):
    """q, k, v: (NW, heads, n, d); pos_emb: (heads, n, n)."""
    NW, Hn, n, d = q.shape
    qkv_spec = pl.BlockSpec((None, None, n, d), lambda wi, hi: (wi, hi, 0, 0))
    cost = pl.CostEstimate(
        flops=4 * NW * Hn * n * n * d,
        transcendentals=NW * Hn * n * n,
        bytes_accessed=4 * (4 * NW * Hn * n * d + Hn * n * n),
    )
    kern = functools.partial(_window_attn_kernel, scale=scale)
    return pl.pallas_call(
        kern,
        out_shape=jax.ShapeDtypeStruct((NW, Hn, n, d), q.dtype),
        grid=(NW, Hn),
        in_specs=[
            qkv_spec, qkv_spec, qkv_spec,
            pl.BlockSpec((None, n, n), lambda wi, hi: (hi, 0, 0)),
        ],
        out_specs=qkv_spec,
        compiler_params=pltpu.CompilerParams(
            dimension_semantics=("parallel", "parallel")),
        cost_estimate=cost,
    )(q, k, v, pos_emb)


# ---------------------------------------------------------------------------
# Kernel 4: transposed channel attention per (batch, head), fused softmax.
# ---------------------------------------------------------------------------
def _channel_attn_kernel(q_ref, k_ref, v_ref, t_ref, o_ref):
    q = q_ref[...].astype(jnp.float32)                         # (dh, L)
    k = k_ref[...].astype(jnp.float32)
    v = v_ref[...].astype(jnp.float32)
    qn = q / jnp.maximum(jnp.sqrt(jnp.sum(q * q, axis=-1, keepdims=True)), 1e-12)
    kn = k / jnp.maximum(jnp.sqrt(jnp.sum(k * k, axis=-1, keepdims=True)), 1e-12)
    attn = lax.dot_general(qn, kn, (((1,), (1,)), ((), ())),   # (dh, dh)
                           preferred_element_type=jnp.float32)
    attn = attn * t_ref[...].astype(jnp.float32)               # temperature (1, 1)
    attn = attn - jnp.max(attn, axis=-1, keepdims=True)
    p = jnp.exp(attn)
    attn = p / jnp.sum(p, axis=-1, keepdims=True)
    out = jnp.dot(attn, v, preferred_element_type=jnp.float32)
    o_ref[...] = out.astype(o_ref.dtype)


def channel_attention(q, k, v, temperature):
    """q, k, v: (B, heads, dh, L); temperature: (heads, 1, 1)."""
    B, Hn, dh, L = q.shape
    qkv_spec = pl.BlockSpec((None, None, dh, L), lambda bi, hi: (bi, hi, 0, 0))
    return pl.pallas_call(
        _channel_attn_kernel,
        out_shape=jax.ShapeDtypeStruct((B, Hn, dh, L), q.dtype),
        grid=(B, Hn),
        in_specs=[
            qkv_spec, qkv_spec, qkv_spec,
            pl.BlockSpec((None, 1, 1), lambda bi, hi: (hi, 0, 0)),
        ],
        out_specs=qkv_spec,
        compiler_params=pltpu.CompilerParams(
            dimension_semantics=("parallel", "parallel")),
    )(q, k, v, temperature)


# ---------------------------------------------------------------------------
# Kernel 5: fused epilogue: project_out1 + ZM_bn + project_out + residual adds.
# ---------------------------------------------------------------------------
def _fuse_out_kernel(x1_ref, xc_ref, pe_ref, w1_ref, b1_ref, w0_ref, b0_ref, o_ref):
    x1 = x1_ref[...].astype(jnp.float32)                       # window-attn branch (HW, C)
    y1 = jnp.dot(x1, w1_ref[...].astype(jnp.float32),
                 preferred_element_type=jnp.float32) + b1_ref[...].astype(jnp.float32)
    y1 = y1 - jnp.mean(y1, axis=0, keepdims=True)              # ZM_bn: subtract spatial mean
    xc = xc_ref[...].astype(jnp.float32)                       # channel-attn branch (HW, C)
    y0 = jnp.dot(xc, w0_ref[...].astype(jnp.float32),
                 preferred_element_type=jnp.float32) + b0_ref[...].astype(jnp.float32)
    out = y0 + pe_ref[...].astype(jnp.float32) + y1            # + pos_emb2(v)
    o_ref[...] = out.astype(o_ref.dtype)


def fuse_output(out1, ch, pe, w1, b1, w0, b0):
    """out1 / ch / pe: (B, HW, C). Returns (B, HW, C)."""
    B, HW, C = out1.shape
    row_spec = pl.BlockSpec((None, HW, C), lambda bi: (bi, 0, 0))
    w_spec = pl.BlockSpec((C, C), lambda bi: (0, 0))
    b_spec = pl.BlockSpec((1, C), lambda bi: (0, 0))
    cost = pl.CostEstimate(
        flops=4 * B * HW * C * C,
        transcendentals=0,
        bytes_accessed=4 * (4 * B * HW * C + 2 * C * C + 2 * C),
    )
    return pl.pallas_call(
        _fuse_out_kernel,
        out_shape=jax.ShapeDtypeStruct((B, HW, C), out1.dtype),
        grid=(B,),
        in_specs=[row_spec, row_spec, row_spec, w_spec, b_spec, w_spec, b_spec],
        out_specs=row_spec,
        compiler_params=pltpu.CompilerParams(dimension_semantics=("parallel",)),
        cost_estimate=cost,
    )(out1, ch, pe, w1, b1.reshape(1, C), w0, b0.reshape(1, C))


# ---------------------------------------------------------------------------
# Full Attention forward (matches the PyTorch module's semantics).
# ---------------------------------------------------------------------------
def attention_forward(x, params, *, num_heads, window_size=(16, 16)):
    """x: (B, C, H, W) float32, like the PyTorch module. Returns (B, C, H, W)."""
    B, C, H, W = x.shape
    ws0, ws1 = window_size
    dh = C // num_heads
    scale = dh ** -0.5
    nh, nw = H // ws0, W // ws1
    n = ws0 * ws1

    x_nhwc = jnp.transpose(x, (0, 2, 3, 1))

    # qkv = qkv_dwconv(qkv(x))
    qkv = pointwise_conv(x_nhwc.reshape(B * H * W, C), params["w_qkv"], params["b_qkv"])
    qkv = qkv.reshape(B, H, W, 3 * C)
    qkv = dwconv3x3(qkv, params["w_dw"], params["b_dw"])
    q, k, v = jnp.split(qkv, 3, axis=-1)

    # --- branch 1: window spatial attention (+ learned positional bias) ---
    def to_windows(t):
        t = t.reshape(B, nh, ws0, nw, ws1, C)
        t = jnp.transpose(t, (0, 1, 3, 2, 4, 5))
        t = t.reshape(B * nh * nw, n, num_heads, dh)
        return jnp.transpose(t, (0, 2, 1, 3))                  # (NW, heads, n, dh)

    o1 = window_attention(to_windows(q), to_windows(k), to_windows(v),
                          params["pos_emb"], scale=scale)
    o1 = jnp.transpose(o1, (0, 2, 1, 3)).reshape(B, nh, nw, ws0, ws1, C)
    o1 = jnp.transpose(o1, (0, 1, 3, 2, 4, 5)).reshape(B, H * W, C)

    # --- branch 2: transposed channel attention ---
    def to_chan(t):
        return jnp.transpose(t, (0, 3, 1, 2)).reshape(B, num_heads, dh, H * W)

    oc = channel_attention(to_chan(q), to_chan(k), to_chan(v), params["temperature"])
    oc = jnp.transpose(oc.reshape(B, C, H, W), (0, 2, 3, 1)).reshape(B, H * W, C)

    # --- branch 3: pos_emb2(v) = dwconv3x3 -> ELU -> dwconv3x3 (no bias) ---
    pe = dwconv3x3(v, params["w_pe1"], None, apply_elu=True)
    pe = dwconv3x3(pe, params["w_pe2"], None)
    pe = pe.reshape(B, H * W, C)

    # --- fused epilogue: project_out1 + ZM_bn + project_out + residual adds ---
    out = fuse_output(o1, oc, pe,
                      params["w_po1"], params["b_po1"],
                      params["w_po"], params["b_po"])
    out = out.reshape(B, H, W, C)
    return jnp.transpose(out, (0, 3, 1, 2))


# ---------------------------------------------------------------------------
# Pure-JAX reference (follows the PyTorch forward op-by-op).
# ---------------------------------------------------------------------------
def _dwconv_ref(x, w):
    C = x.shape[-1]
    return lax.conv_general_dilated(
        x, w.reshape(3, 3, 1, C), window_strides=(1, 1), padding="SAME",
        dimension_numbers=("NHWC", "HWIO", "NHWC"), feature_group_count=C)


def attention_reference(x, p, *, num_heads, window_size=(16, 16)):
    B, C, H, W = x.shape
    ws0, ws1 = window_size
    dh = C // num_heads
    scale = dh ** -0.5
    nh, nw = H // ws0, W // ws1
    n = ws0 * ws1

    xh = jnp.transpose(x, (0, 2, 3, 1))
    qkv = jnp.einsum("bhwc,cd->bhwd", xh, p["w_qkv"]) + p["b_qkv"]
    qkv = _dwconv_ref(qkv, p["w_dw"]) + p["b_dw"]
    q, k, v = jnp.split(qkv, 3, axis=-1)

    def win(t):
        t = t.reshape(B, nh, ws0, nw, ws1, C).transpose(0, 1, 3, 2, 4, 5)
        return t.reshape(B * nh * nw, n, num_heads, dh).transpose(0, 2, 1, 3)

    q1, k1, v1 = win(q), win(k), win(v)
    sim = jnp.einsum("bhid,bhjd->bhij", q1 * scale, k1) + p["pos_emb"][None]
    attn1 = jax.nn.softmax(sim, axis=-1)
    o1 = jnp.einsum("bhij,bhjd->bhid", attn1, v1)
    o1 = o1.transpose(0, 2, 1, 3).reshape(B, nh, nw, ws0, ws1, C)
    o1 = o1.transpose(0, 1, 3, 2, 4, 5).reshape(B, H, W, C)
    o1 = jnp.einsum("bhwc,cd->bhwd", o1, p["w_po1"]) + p["b_po1"]
    o1 = o1 - jnp.mean(o1, axis=(1, 2), keepdims=True)          # ZM_bn

    def chan(t):
        return t.transpose(0, 3, 1, 2).reshape(B, num_heads, dh, H * W)

    qc, kc, vc = chan(q), chan(k), chan(v)
    qc = qc / jnp.maximum(jnp.linalg.norm(qc, axis=-1, keepdims=True), 1e-12)
    kc = kc / jnp.maximum(jnp.linalg.norm(kc, axis=-1, keepdims=True), 1e-12)
    a = jnp.einsum("bhcd,bhed->bhce", qc, kc) * p["temperature"][None]
    a = jax.nn.softmax(a, axis=-1)
    oc = jnp.einsum("bhce,bhed->bhcd", a, vc)
    oc = oc.reshape(B, C, H, W).transpose(0, 2, 3, 1)
    oc = jnp.einsum("bhwc,cd->bhwd", oc, p["w_po"]) + p["b_po"]

    pe = jax.nn.elu(_dwconv_ref(v, p["w_pe1"]))
    pe = _dwconv_ref(pe, p["w_pe2"])

    out = oc + pe + o1
    return jnp.transpose(out, (0, 3, 1, 2))


if __name__ == "__main__":
    key = jax.random.PRNGKey(0)
    B, dim, H, W = 2, 32, 16, 16            # small demo; H, W match the 16x16 window
    num_heads = 2
    window_size = (16, 16)
    seq_l = window_size[0] * window_size[1]

    ks = jax.random.split(key, 12)
    x = jax.random.normal(ks[0], (B, dim, H, W), jnp.float32)

    params = dict(
        w_qkv=jax.random.normal(ks[1], (dim, 3 * dim), jnp.float32) / jnp.sqrt(dim),
        b_qkv=0.02 * jax.random.normal(ks[2], (3 * dim,), jnp.float32),
        w_dw=jax.random.normal(ks[3], (3, 3, 3 * dim), jnp.float32) / 3.0,
        b_dw=0.02 * jax.random.normal(ks[4], (3 * dim,), jnp.float32),
        w_po1=jax.random.normal(ks[5], (dim, dim), jnp.float32) / jnp.sqrt(dim),
        b_po1=0.02 * jax.random.normal(ks[6], (dim,), jnp.float32),
        w_po=jax.random.normal(ks[7], (dim, dim), jnp.float32) / jnp.sqrt(dim),
        b_po=0.02 * jax.random.normal(ks[8], (dim,), jnp.float32),
        w_pe1=jax.random.normal(ks[9], (3, 3, dim), jnp.float32) / 3.0,
        w_pe2=jax.random.normal(ks[10], (3, 3, dim), jnp.float32) / 3.0,
        pos_emb=0.02 * jax.random.normal(ks[11], (num_heads, seq_l, seq_l), jnp.float32),
        temperature=jnp.ones((num_heads, 1, 1), jnp.float32),   # nn.Parameter(torch.ones)
    )

    fwd = jax.jit(functools.partial(attention_forward,
                                    num_heads=num_heads, window_size=window_size))
    out = jax.block_until_ready(fwd(x, params))

    ref = attention_reference(x, params, num_heads=num_heads, window_size=window_size)
    assert out.shape == (B, dim, H, W)
    assert bool(jnp.allclose(out, ref, atol=2e-2, rtol=2e-2)), (
        "mismatch vs reference: max abs err = "
        f"{float(jnp.max(jnp.abs(out - ref)))}")
    print("KERNEL_OK")
</pallas_src>

<mosaic_0001>
module attributes {stable_mosaic.version = 11 : i64} {
  func.func @_dwconv3x3_kernel(%arg0: i32, %arg1: memref<1x18x18x96xf32, #tpu.memory_space<vmem>>, %arg2: memref<3x3x96xf32, #tpu.memory_space<vmem>>, %arg3: memref<1x96xf32, #tpu.memory_space<vmem>>, %arg4: memref<1x16x16x96xf32, #tpu.memory_space<vmem>>) attributes {dimension_semantics = [#tpu.dimension_semantics<parallel>], iteration_bounds = array<i64: 2>, scalar_prefetch = 0 : i64, scratch_operands = 0 : i64, tpu.core_type = #tpu.core_type<tc>, window_params = [{transform_indices = @transform_0, window_bounds = array<i64: 1, 18, 18, 96>}, {pipeline_mode = #tpu.pipeline_mode<synchronous>, transform_indices = @transform_1, window_bounds = array<i64: 3, 3, 96>}, {pipeline_mode = #tpu.pipeline_mode<synchronous>, transform_indices = @transform_2, window_bounds = array<i64: 1, 96>}, {transform_indices = @transform_3, window_bounds = array<i64: 1, 16, 16, 96>}]} {
    %c0 = arith.constant 0 : index
    %c0_0 = arith.constant 0 : index
    %c0_1 = arith.constant 0 : index
    %c0_2 = arith.constant 0 : index
    %0 = vector.load %arg1[%c0, %c0_0, %c0_1, %c0_2] : memref<1x18x18x96xf32, #tpu.memory_space<vmem>>, vector<1x18x18x96xf32>
    %1 = vector.shape_cast %0 : vector<1x18x18x96xf32> to vector<18x18x96xf32>
    %c0_3 = arith.constant 0 : index
    %c0_4 = arith.constant 0 : index
    %c0_5 = arith.constant 0 : index
    %2 = vector.load %arg2[%c0_3, %c0_4, %c0_5] : memref<3x3x96xf32, #tpu.memory_space<vmem>>, vector<3x3x96xf32>
    %cst = arith.constant 0.000000e+00 : f32
    %3 = vector.broadcast %cst : f32 to vector<16x16x96xf32>
    %4 = vector.extract_strided_slice %1 {offsets = [0, 0, 0], sizes = [16, 16, 96], strides = [1, 1, 1]} : vector<18x18x96xf32> to vector<16x16x96xf32>
    %5 = vector.extract_strided_slice %2 {offsets = [0, 0, 0], sizes = [1, 1, 96], strides = [1, 1, 1]} : vector<3x3x96xf32> to vector<1x1x96xf32>
    %6 = vector.shape_cast %5 : vector<1x1x96xf32> to vector<96xf32>
    %7 = vector.shape_cast %6 : vector<96xf32> to vector<1x1x96xf32>
    %8 = vector.broadcast %7 : vector<1x1x96xf32> to vector<16x16x96xf32>
    %9 = arith.mulf %4, %8 : vector<16x16x96xf32>
    %10 = arith.addf %3, %9 : vector<16x16x96xf32>
    %11 = vector.extract_strided_slice %1 {offsets = [0, 1, 0], sizes = [16, 16, 96], strides = [1, 1, 1]} : vector<18x18x96xf32> to vector<16x16x96xf32>
    %12 = vector.extract_strided_slice %2 {offsets = [0, 1, 0], sizes = [1, 1, 96], strides = [1, 1, 1]} : vector<3x3x96xf32> to vector<1x1x96xf32>
    %13 = vector.shape_cast %12 : vector<1x1x96xf32> to vector<96xf32>
    %14 = vector.shape_cast %13 : vector<96xf32> to vector<1x1x96xf32>
    %15 = vector.broadcast %14 : vector<1x1x96xf32> to vector<16x16x96xf32>
    %16 = arith.mulf %11, %15 : vector<16x16x96xf32>
    %17 = arith.addf %10, %16 : vector<16x16x96xf32>
    %18 = vector.extract_strided_slice %1 {offsets = [0, 2, 0], sizes = [16, 16, 96], strides = [1, 1, 1]} : vector<18x18x96xf32> to vector<16x16x96xf32>
    %19 = vector.extract_strided_slice %2 {offsets = [0, 2, 0], sizes = [1, 1, 96], strides = [1, 1, 1]} : vector<3x3x96xf32> to vector<1x1x96xf32>
    %20 = vector.shape_cast %19 : vector<1x1x96xf32> to vector<96xf32>
    %21 = vector.shape_cast %20 : vector<96xf32> to vector<1x1x96xf32>
    %22 = vector.broadcast %21 : vector<1x1x96xf32> to vector<16x16x96xf32>
    %23 = arith.mulf %18, %22 : vector<16x16x96xf32>
    %24 = arith.addf %17, %23 : vector<16x16x96xf32>
    %25 = vector.extract_strided_slice %1 {offsets = [1, 0, 0], sizes = [16, 16, 96], strides = [1, 1, 1]} : vector<18x18x96xf32> to vector<16x16x96xf32>
    %26 = vector.extract_strided_slice %2 {offsets = [1, 0, 0], sizes = [1, 1, 96], strides = [1, 1, 1]} : vector<3x3x96xf32> to vector<1x1x96xf32>
    %27 = vector.shape_cast %26 : vector<1x1x96xf32> to vector<96xf32>
    %28 = vector.shape_cast %27 : vector<96xf32> to vector<1x1x96xf32>
    %29 = vector.broadcast %28 : vector<1x1x96xf32> to vector<16x16x96xf32>
    %30 = arith.mulf %25, %29 : vector<16x16x96xf32>
    %31 = arith.addf %24, %30 : vector<16x16x96xf32>
    %32 = vector.extract_strided_slice %1 {offsets = [1, 1, 0], sizes = [16, 16, 96], strides = [1, 1, 1]} : vector<18x18x96xf32> to vector<16x16x96xf32>
    %33 = vector.extract_strided_slice %2 {offsets = [1, 1, 0], sizes = [1, 1, 96], strides = [1, 1, 1]} : vector<3x3x96xf32> to vector<1x1x96xf32>
    %34 = vector.shape_cast %33 : vector<1x1x96xf32> to vector<96xf32>
    %35 = vector.shape_cast %34 : vector<96xf32> to vector<1x1x96xf32>
    %36 = vector.broadcast %35 : vector<1x1x96xf32> to vector<16x16x96xf32>
    %37 = arith.mulf %32, %36 : vector<16x16x96xf32>
    %38 = arith.addf %31, %37 : vector<16x16x96xf32>
    %39 = vector.extract_strided_slice %1 {offsets = [1, 2, 0], sizes = [16, 16, 96], strides = [1, 1, 1]} : vector<18x18x96xf32> to vector<16x16x96xf32>
    %40 = vector.extract_strided_slice %2 {offsets = [1, 2, 0], sizes = [1, 1, 96], strides = [1, 1, 1]} : vector<3x3x96xf32> to vector<1x1x96xf32>
    %41 = vector.shape_cast %40 : vector<1x1x96xf32> to vector<96xf32>
    %42 = vector.shape_cast %41 : vector<96xf32> to vector<1x1x96xf32>
    %43 = vector.broadcast %42 : vector<1x1x96xf32> to vector<16x16x96xf32>
    %44 = arith.mulf %39, %43 : vector<16x16x96xf32>
    %45 = arith.addf %38, %44 : vector<16x16x96xf32>
    %46 = vector.extract_strided_slice %1 {offsets = [2, 0, 0], sizes = [16, 16, 96], strides = [1, 1, 1]} : vector<18x18x96xf32> to vector<16x16x96xf32>
    %47 = vector.extract_strided_slice %2 {offsets = [2, 0, 0], sizes = [1, 1, 96], strides = [1, 1, 1]} : vector<3x3x96xf32> to vector<1x1x96xf32>
    %48 = vector.shape_cast %47 : vector<1x1x96xf32> to vector<96xf32>
    %49 = vector.shape_cast %48 : vector<96xf32> to vector<1x1x96xf32>
    %50 = vector.broadcast %49 : vector<1x1x96xf32> to vector<16x16x96xf32>
    %51 = arith.mulf %46, %50 : vector<16x16x96xf32>
    %52 = arith.addf %45, %51 : vector<16x16x96xf32>
    %53 = vector.extract_strided_slice %1 {offsets = [2, 1, 0], sizes = [16, 16, 96], strides = [1, 1, 1]} : vector<18x18x96xf32> to vector<16x16x96xf32>
    %54 = vector.extract_strided_slice %2 {offsets = [2, 1, 0], sizes = [1, 1, 96], strides = [1, 1, 1]} : vector<3x3x96xf32> to vector<1x1x96xf32>
    %55 = vector.shape_cast %54 : vector<1x1x96xf32> to vector<96xf32>
    %56 = vector.shape_cast %55 : vector<96xf32> to vector<1x1x96xf32>
    %57 = vector.broadcast %56 : vector<1x1x96xf32> to vector<16x16x96xf32>
    %58 = arith.mulf %53, %57 : vector<16x16x96xf32>
    %59 = arith.addf %52, %58 : vector<16x16x96xf32>
    %60 = vector.extract_strided_slice %1 {offsets = [2, 2, 0], sizes = [16, 16, 96], strides = [1, 1, 1]} : vector<18x18x96xf32> to vector<16x16x96xf32>
    %61 = vector.extract_strided_slice %2 {offsets = [2, 2, 0], sizes = [1, 1, 96], strides = [1, 1, 1]} : vector<3x3x96xf32> to vector<1x1x96xf32>
    %62 = vector.shape_cast %61 : vector<1x1x96xf32> to vector<96xf32>
    %63 = vector.shape_cast %62 : vector<96xf32> to vector<1x1x96xf32>
    %64 = vector.broadcast %63 : vector<1x1x96xf32> to vector<16x16x96xf32>
    %65 = arith.mulf %60, %64 : vector<16x16x96xf32>
    %66 = arith.addf %59, %65 : vector<16x16x96xf32>
    %c0_6 = arith.constant 0 : index
    %c0_7 = arith.constant 0 : index
    %67 = vector.load %arg3[%c0_6, %c0_7] : memref<1x96xf32, #tpu.memory_space<vmem>>, vector<1x96xf32>
    %68 = vector.shape_cast %67 : vector<1x96xf32> to vector<1x1x96xf32>
    %69 = vector.broadcast %68 : vector<1x1x96xf32> to vector<16x16x96xf32>
    %70 = arith.addf %66, %69 : vector<16x16x96xf32>
    %c0_8 = arith.constant 0 : index
    %c0_9 = arith.constant 0 : index
    %c0_10 = arith.constant 0 : index
    %c0_11 = arith.constant 0 : index
    %71 = vector.load %arg4[%c0_8, %c0_9, %c0_10, %c0_11] : memref<1x16x16x96xf32, #tpu.memory_space<vmem>>, vector<1x16x16x96xf32>
    %72 = vector.shape_cast %71 : vector<1x16x16x96xf32> to vector<16x16x96xf32>
    %73 = vector.shape_cast %70 : vector<16x16x96xf32> to vector<1x16x16x96xf32>
    tpu.vector_store %arg4[%c0_8, %c0_9, %c0_10, %c0_11], %73 {strides = array<i32>} : memref<1x16x16x96xf32, #tpu.memory_space<vmem>>, vector<1x16x16x96xf32>,
    return
  }
  func.func @transform_0(%arg0: i32) -> (i32, i32, i32, i32) {
    %c0_i32 = arith.constant 0 : i32
    %c0_i32_0 = arith.constant 0 : i32
    %c0_i32_1 = arith.constant 0 : i32
    %c0_i32_2 = arith.constant 0 : i32
    return %arg0, %c0_i32, %c0_i32_0, %c0_i32_1 : i32, i32, i32, i32
  }
  func.func @transform_1(%arg0: i32) -> (i32, i32, i32) {
    %c0_i32 = arith.constant 0 : i32
    %c0_i32_0 = arith.constant 0 : i32
    %c0_i32_1 = arith.constant 0 : i32
    %c0_i32_2 = arith.constant 0 : i32
    return %c0_i32, %c0_i32_0, %c0_i32_1 : i32, i32, i32
  }
  func.func @transform_2(%arg0: i32) -> (i32, i32) {
    %c0_i32 = arith.constant 0 : i32
    %c0_i32_0 = arith.constant 0 : i32
    %c0_i32_1 = arith.constant 0 : i32
    return %c0_i32, %c0_i32_0 : i32, i32
  }
  func.func @transform_3(%arg0: i32) -> (i32, i32, i32, i32) {
    %c0_i32 = arith.constant 0 : i32
    %c0_i32_0 = arith.constant 0 : i32
    %c0_i32_1 = arith.constant 0 : i32
    %c0_i32_2 = arith.constant 0 : i32
    return %arg0, %c0_i32, %c0_i32_0, %c0_i32_1 : i32, i32, i32, i32
  }
}

module attributes {stable_mosaic.version = 11 : i64} {
  func.func @_pw_conv_kernel(%arg0: i32, %arg1: memref<256x32xf32, #tpu.memory_space<vmem>>, %arg2: memref<32x96xf32, #tpu.memory_space<vmem>>, %arg3: memref<1x96xf32, #tpu.memory_space<vmem>>, %arg4: memref<256x96xf32, #tpu.memory_space<vmem>>) attributes {dimension_semantics = [#tpu.dimension_semantics<parallel>], iteration_bounds = array<i64: 2>, scalar_prefetch = 0 : i64, scratch_operands = 0 : i64, tpu.core_type = #tpu.core_type<tc>, window_params = [{transform_indices = @transform_0, window_bounds = array<i64: 256, 32>}, {pipeline_mode = #tpu.pipeline_mode<synchronous>, transform_indices = @transform_1, window_bounds = array<i64: 32, 96>}, {pipeline_mode = #tpu.pipeline_mode<synchronous>, transform_indices = @transform_2, window_bounds = array<i64: 1, 96>}, {transform_indices = @transform_3, window_bounds = array<i64: 256, 96>}]} {
    %c0 = arith.constant 0 : index
    %c0_0 = arith.constant 0 : index
    %0 = vector.load %arg1[%c0, %c0_0] : memref<256x32xf32, #tpu.memory_space<vmem>>, vector<256x32xf32>
    %c0_1 = arith.constant 0 : index
    %c0_2 = arith.constant 0 : index
    %1 = vector.load %arg2[%c0_1, %c0_2] : memref<32x96xf32, #tpu.memory_space<vmem>>, vector<32x96xf32>
    %cst = arith.constant dense<0.000000e+00> : vector<256x96xf32>
    %2 = tpu.matmul %0, %1, %cst {dimension_numbers = #tpu.dot_dimension_numbers<[1], [0], [0], [1], [0, 0, 1, 1], [], []>} : vector<256x32xf32>, vector<32x96xf32>, vector<256x96xf32> -> vector<256x96xf32>
    %c0_3 = arith.constant 0 : index
    %c0_4 = arith.constant 0 : index
    %3 = vector.load %arg3[%c0_3, %c0_4] : memref<1x96xf32, #tpu.memory_space<vmem>>, vector<1x96xf32>
    %4 = vector.broadcast %3 : vector<1x96xf32> to vector<256x96xf32>
    %5 = arith.addf %2, %4 : vector<256x96xf32>
    %c0_5 = arith.constant 0 : index
    %c0_6 = arith.constant 0 : index
    %6 = vector.load %arg4[%c0_5, %c0_6] : memref<256x96xf32, #tpu.memory_space<vmem>>, vector<256x96xf32>
    tpu.vector_store %arg4[%c0_5, %c0_6], %5 {strides = array<i32>} : memref<256x96xf32, #tpu.memory_space<vmem>>, vector<256x96xf32>,
    return
  }
  func.func @transform_0(%arg0: i32) -> (i32, i32) {
    %c0_i32 = arith.constant 0 : i32
    %c0_i32_0 = arith.constant 0 : i32
    return %arg0, %c0_i32 : i32, i32
  }
  func.func @transform_1(%arg0: i32) -> (i32, i32) {
    %c0_i32 = arith.constant 0 : i32
    %c0_i32_0 = arith.constant 0 : i32
    %c0_i32_1 = arith.constant 0 : i32
    return %c0_i32, %c0_i32_0 : i32, i32
  }
  func.func @transform_2(%arg0: i32) -> (i32, i32) {
    %c0_i32 = arith.constant 0 : i32
    %c0_i32_0 = arith.constant 0 : i32
    %c0_i32_1 = arith.constant 0 : i32
    return %c0_i32, %c0_i32_0 : i32, i32
  }
  func.func @transform_3(%arg0: i32) -> (i32, i32) {
    %c0_i32 = arith.constant 0 : i32
    %c0_i32_0 = arith.constant 0 : i32
    return %arg0, %c0_i32 : i32, i32
  }
}

module attributes {stable_mosaic.version = 11 : i64} {
  func.func @_dwconv3x3_kernel(%arg0: i32, %arg1: memref<1x18x18x32xf32, #tpu.memory_space<vmem>>, %arg2: memref<3x3x32xf32, #tpu.memory_space<vmem>>, %arg3: memref<1x32xf32, #tpu.memory_space<vmem>>, %arg4: memref<1x16x16x32xf32, #tpu.memory_space<vmem>>) attributes {dimension_semantics = [#tpu.dimension_semantics<parallel>], iteration_bounds = array<i64: 2>, scalar_prefetch = 0 : i64, scratch_operands = 0 : i64, tpu.core_type = #tpu.core_type<tc>, window_params = [{transform_indices = @transform_0, window_bounds = array<i64: 1, 18, 18, 32>}, {pipeline_mode = #tpu.pipeline_mode<synchronous>, transform_indices = @transform_1, window_bounds = array<i64: 3, 3, 32>}, {pipeline_mode = #tpu.pipeline_mode<synchronous>, transform_indices = @transform_2, window_bounds = array<i64: 1, 32>}, {transform_indices = @transform_3, window_bounds = array<i64: 1, 16, 16, 32>}]} {
    %c0 = arith.constant 0 : index
    %c0_0 = arith.constant 0 : index
    %c0_1 = arith.constant 0 : index
    %c0_2 = arith.constant 0 : index
    %0 = vector.load %arg1[%c0, %c0_0, %c0_1, %c0_2] : memref<1x18x18x32xf32, #tpu.memory_space<vmem>>, vector<1x18x18x32xf32>
    %1 = vector.shape_cast %0 : vector<1x18x18x32xf32> to vector<18x18x32xf32>
    %c0_3 = arith.constant 0 : index
    %c0_4 = arith.constant 0 : index
    %c0_5 = arith.constant 0 : index
    %2 = vector.load %arg2[%c0_3, %c0_4, %c0_5] : memref<3x3x32xf32, #tpu.memory_space<vmem>>, vector<3x3x32xf32>
    %cst = arith.constant 0.000000e+00 : f32
    %3 = vector.broadcast %cst : f32 to vector<16x16x32xf32>
    %4 = vector.extract_strided_slice %1 {offsets = [0, 0, 0], sizes = [16, 16, 32], strides = [1, 1, 1]} : vector<18x18x32xf32> to vector<16x16x32xf32>
    %5 = vector.extract_strided_slice %2 {offsets = [0, 0, 0], sizes = [1, 1, 32], strides = [1, 1, 1]} : vector<3x3x32xf32> to vector<1x1x32xf32>
    %6 = vector.shape_cast %5 : vector<1x1x32xf32> to vector<32xf32>
    %7 = vector.shape_cast %6 : vector<32xf32> to vector<1x1x32xf32>
    %8 = vector.broadcast %7 : vector<1x1x32xf32> to vector<16x16x32xf32>
    %9 = arith.mulf %4, %8 : vector<16x16x32xf32>
    %10 = arith.addf %3, %9 : vector<16x16x32xf32>
    %11 = vector.extract_strided_slice %1 {offsets = [0, 1, 0], sizes = [16, 16, 32], strides = [1, 1, 1]} : vector<18x18x32xf32> to vector<16x16x32xf32>
    %12 = vector.extract_strided_slice %2 {offsets = [0, 1, 0], sizes = [1, 1, 32], strides = [1, 1, 1]} : vector<3x3x32xf32> to vector<1x1x32xf32>
    %13 = vector.shape_cast %12 : vector<1x1x32xf32> to vector<32xf32>
    %14 = vector.shape_cast %13 : vector<32xf32> to vector<1x1x32xf32>
    %15 = vector.broadcast %14 : vector<1x1x32xf32> to vector<16x16x32xf32>
    %16 = arith.mulf %11, %15 : vector<16x16x32xf32>
    %17 = arith.addf %10, %16 : vector<16x16x32xf32>
    %18 = vector.extract_strided_slice %1 {offsets = [0, 2, 0], sizes = [16, 16, 32], strides = [1, 1, 1]} : vector<18x18x32xf32> to vector<16x16x32xf32>
    %19 = vector.extract_strided_slice %2 {offsets = [0, 2, 0], sizes = [1, 1, 32], strides = [1, 1, 1]} : vector<3x3x32xf32> to vector<1x1x32xf32>
    %20 = vector.shape_cast %19 : vector<1x1x32xf32> to vector<32xf32>
    %21 = vector.shape_cast %20 : vector<32xf32> to vector<1x1x32xf32>
    %22 = vector.broadcast %21 : vector<1x1x32xf32> to vector<16x16x32xf32>
    %23 = arith.mulf %18, %22 : vector<16x16x32xf32>
    %24 = arith.addf %17, %23 : vector<16x16x32xf32>
    %25 = vector.extract_strided_slice %1 {offsets = [1, 0, 0], sizes = [16, 16, 32], strides = [1, 1, 1]} : vector<18x18x32xf32> to vector<16x16x32xf32>
    %26 = vector.extract_strided_slice %2 {offsets = [1, 0, 0], sizes = [1, 1, 32], strides = [1, 1, 1]} : vector<3x3x32xf32> to vector<1x1x32xf32>
    %27 = vector.shape_cast %26 : vector<1x1x32xf32> to vector<32xf32>
    %28 = vector.shape_cast %27 : vector<32xf32> to vector<1x1x32xf32>
    %29 = vector.broadcast %28 : vector<1x1x32xf32> to vector<16x16x32xf32>
    %30 = arith.mulf %25, %29 : vector<16x16x32xf32>
    %31 = arith.addf %24, %30 : vector<16x16x32xf32>
    %32 = vector.extract_strided_slice %1 {offsets = [1, 1, 0], sizes = [16, 16, 32], strides = [1, 1, 1]} : vector<18x18x32xf32> to vector<16x16x32xf32>
    %33 = vector.extract_strided_slice %2 {offsets = [1, 1, 0], sizes = [1, 1, 32], strides = [1, 1, 1]} : vector<3x3x32xf32> to vector<1x1x32xf32>
    %34 = vector.shape_cast %33 : vector<1x1x32xf32> to vector<32xf32>
    %35 = vector.shape_cast %34 : vector<32xf32> to vector<1x1x32xf32>
    %36 = vector.broadcast %35 : vector<1x1x32xf32> to vector<16x16x32xf32>
    %37 = arith.mulf %32, %36 : vector<16x16x32xf32>
    %38 = arith.addf %31, %37 : vector<16x16x32xf32>
    %39 = vector.extract_strided_slice %1 {offsets = [1, 2, 0], sizes = [16, 16, 32], strides = [1, 1, 1]} : vector<18x18x32xf32> to vector<16x16x32xf32>
    %40 = vector.extract_strided_slice %2 {offsets = [1, 2, 0], sizes = [1, 1, 32], strides = [1, 1, 1]} : vector<3x3x32xf32> to vector<1x1x32xf32>
    %41 = vector.shape_cast %40 : vector<1x1x32xf32> to vector<32xf32>
    %42 = vector.shape_cast %41 : vector<32xf32> to vector<1x1x32xf32>
    %43 = vector.broadcast %42 : vector<1x1x32xf32> to vector<16x16x32xf32>
    %44 = arith.mulf %39, %43 : vector<16x16x32xf32>
    %45 = arith.addf %38, %44 : vector<16x16x32xf32>
    %46 = vector.extract_strided_slice %1 {offsets = [2, 0, 0], sizes = [16, 16, 32], strides = [1, 1, 1]} : vector<18x18x32xf32> to vector<16x16x32xf32>
    %47 = vector.extract_strided_slice %2 {offsets = [2, 0, 0], sizes = [1, 1, 32], strides = [1, 1, 1]} : vector<3x3x32xf32> to vector<1x1x32xf32>
    %48 = vector.shape_cast %47 : vector<1x1x32xf32> to vector<32xf32>
    %49 = vector.shape_cast %48 : vector<32xf32> to vector<1x1x32xf32>
    %50 = vector.broadcast %49 : vector<1x1x32xf32> to vector<16x16x32xf32>
    %51 = arith.mulf %46, %50 : vector<16x16x32xf32>
    %52 = arith.addf %45, %51 : vector<16x16x32xf32>
    %53 = vector.extract_strided_slice %1 {offsets = [2, 1, 0], sizes = [16, 16, 32], strides = [1, 1, 1]} : vector<18x18x32xf32> to vector<16x16x32xf32>
    %54 = vector.extract_strided_slice %2 {offsets = [2, 1, 0], sizes = [1, 1, 32], strides = [1, 1, 1]} : vector<3x3x32xf32> to vector<1x1x32xf32>
    %55 = vector.shape_cast %54 : vector<1x1x32xf32> to vector<32xf32>
    %56 = vector.shape_cast %55 : vector<32xf32> to vector<1x1x32xf32>
    %57 = vector.broadcast %56 : vector<1x1x32xf32> to vector<16x16x32xf32>
    %58 = arith.mulf %53, %57 : vector<16x16x32xf32>
    %59 = arith.addf %52, %58 : vector<16x16x32xf32>
    %60 = vector.extract_strided_slice %1 {offsets = [2, 2, 0], sizes = [16, 16, 32], strides = [1, 1, 1]} : vector<18x18x32xf32> to vector<16x16x32xf32>
    %61 = vector.extract_strided_slice %2 {offsets = [2, 2, 0], sizes = [1, 1, 32], strides = [1, 1, 1]} : vector<3x3x32xf32> to vector<1x1x32xf32>
    %62 = vector.shape_cast %61 : vector<1x1x32xf32> to vector<32xf32>
    %63 = vector.shape_cast %62 : vector<32xf32> to vector<1x1x32xf32>
    %64 = vector.broadcast %63 : vector<1x1x32xf32> to vector<16x16x32xf32>
    %65 = arith.mulf %60, %64 : vector<16x16x32xf32>
    %66 = arith.addf %59, %65 : vector<16x16x32xf32>
    %c0_6 = arith.constant 0 : index
    %c0_7 = arith.constant 0 : index
    %67 = vector.load %arg3[%c0_6, %c0_7] : memref<1x32xf32, #tpu.memory_space<vmem>>, vector<1x32xf32>
    %68 = vector.shape_cast %67 : vector<1x32xf32> to vector<1x1x32xf32>
    %69 = vector.broadcast %68 : vector<1x1x32xf32> to vector<16x16x32xf32>
    %70 = arith.addf %66, %69 : vector<16x16x32xf32>
    %c0_8 = arith.constant 0 : index
    %c0_9 = arith.constant 0 : index
    %c0_10 = arith.constant 0 : index
    %c0_11 = arith.constant 0 : index
    %71 = vector.load %arg4[%c0_8, %c0_9, %c0_10, %c0_11] : memref<1x16x16x32xf32, #tpu.memory_space<vmem>>, vector<1x16x16x32xf32>
    %72 = vector.shape_cast %71 : vector<1x16x16x32xf32> to vector<16x16x32xf32>
    %73 = vector.shape_cast %70 : vector<16x16x32xf32> to vector<1x16x16x32xf32>
    tpu.vector_store %arg4[%c0_8, %c0_9, %c0_10, %c0_11], %73 {strides = array<i32>} : memref<1x16x16x32xf32, #tpu.memory_space<vmem>>, vector<1x16x16x32xf32>,
    return
  }
  func.func @transform_0(%arg0: i32) -> (i32, i32, i32, i32) {
    %c0_i32 = arith.constant 0 : i32
    %c0_i32_0 = arith.constant 0 : i32
    %c0_i32_1 = arith.constant 0 : i32
    %c0_i32_2 = arith.constant 0 : i32
    return %arg0, %c0_i32, %c0_i32_0, %c0_i32_1 : i32, i32, i32, i32
  }
  func.func @transform_1(%arg0: i32) -> (i32, i32, i32) {
    %c0_i32 = arith.constant 0 : i32
    %c0_i32_0 = arith.constant 0 : i32
    %c0_i32_1 = arith.constant 0 : i32
    %c0_i32_2 = arith.constant 0 : i32
    return %c0_i32, %c0_i32_0, %c0_i32_1 : i32, i32, i32
  }
  func.func @transform_2(%arg0: i32) -> (i32, i32) {
    %c0_i32 = arith.constant 0 : i32
    %c0_i32_0 = arith.constant 0 : i32
    %c0_i32_1 = arith.constant 0 : i32
    return %c0_i32, %c0_i32_0 : i32, i32
  }
  func.func @transform_3(%arg0: i32) -> (i32, i32, i32, i32) {
    %c0_i32 = arith.constant 0 : i32
    %c0_i32_0 = arith.constant 0 : i32
    %c0_i32_1 = arith.constant 0 : i32
    %c0_i32_2 = arith.constant 0 : i32
    return %arg0, %c0_i32, %c0_i32_0, %c0_i32_1 : i32, i32, i32, i32
  }
}

module attributes {stable_mosaic.version = 11 : i64} {
  func.func @_dwconv3x3_kernel(%arg0: i32, %arg1: memref<1x18x18x32xf32, #tpu.memory_space<vmem>>, %arg2: memref<3x3x32xf32, #tpu.memory_space<vmem>>, %arg3: memref<1x32xf32, #tpu.memory_space<vmem>>, %arg4: memref<1x16x16x32xf32, #tpu.memory_space<vmem>>) attributes {dimension_semantics = [#tpu.dimension_semantics<parallel>], iteration_bounds = array<i64: 2>, scalar_prefetch = 0 : i64, scratch_operands = 0 : i64, tpu.core_type = #tpu.core_type<tc>, window_params = [{transform_indices = @transform_0, window_bounds = array<i64: 1, 18, 18, 32>}, {pipeline_mode = #tpu.pipeline_mode<synchronous>, transform_indices = @transform_1, window_bounds = array<i64: 3, 3, 32>}, {pipeline_mode = #tpu.pipeline_mode<synchronous>, transform_indices = @transform_2, window_bounds = array<i64: 1, 32>}, {transform_indices = @transform_3, window_bounds = array<i64: 1, 16, 16, 32>}]} {
    %c0 = arith.constant 0 : index
    %c0_0 = arith.constant 0 : index
    %c0_1 = arith.constant 0 : index
    %c0_2 = arith.constant 0 : index
    %0 = vector.load %arg1[%c0, %c0_0, %c0_1, %c0_2] : memref<1x18x18x32xf32, #tpu.memory_space<vmem>>, vector<1x18x18x32xf32>
    %1 = vector.shape_cast %0 : vector<1x18x18x32xf32> to vector<18x18x32xf32>
    %c0_3 = arith.constant 0 : index
    %c0_4 = arith.constant 0 : index
    %c0_5 = arith.constant 0 : index
    %2 = vector.load %arg2[%c0_3, %c0_4, %c0_5] : memref<3x3x32xf32, #tpu.memory_space<vmem>>, vector<3x3x32xf32>
    %cst = arith.constant 0.000000e+00 : f32
    %3 = vector.broadcast %cst : f32 to vector<16x16x32xf32>
    %4 = vector.extract_strided_slice %1 {offsets = [0, 0, 0], sizes = [16, 16, 32], strides = [1, 1, 1]} : vector<18x18x32xf32> to vector<16x16x32xf32>
    %5 = vector.extract_strided_slice %2 {offsets = [0, 0, 0], sizes = [1, 1, 32], strides = [1, 1, 1]} : vector<3x3x32xf32> to vector<1x1x32xf32>
    %6 = vector.shape_cast %5 : vector<1x1x32xf32> to vector<32xf32>
    %7 = vector.shape_cast %6 : vector<32xf32> to vector<1x1x32xf32>
    %8 = vector.broadcast %7 : vector<1x1x32xf32> to vector<16x16x32xf32>
    %9 = arith.mulf %4, %8 : vector<16x16x32xf32>
    %10 = arith.addf %3, %9 : vector<16x16x32xf32>
    %11 = vector.extract_strided_slice %1 {offsets = [0, 1, 0], sizes = [16, 16, 32], strides = [1, 1, 1]} : vector<18x18x32xf32> to vector<16x16x32xf32>
    %12 = vector.extract_strided_slice %2 {offsets = [0, 1, 0], sizes = [1, 1, 32], strides = [1, 1, 1]} : vector<3x3x32xf32> to vector<1x1x32xf32>
    %13 = vector.shape_cast %12 : vector<1x1x32xf32> to vector<32xf32>
    %14 = vector.shape_cast %13 : vector<32xf32> to vector<1x1x32xf32>
    %15 = vector.broadcast %14 : vector<1x1x32xf32> to vector<16x16x32xf32>
    %16 = arith.mulf %11, %15 : vector<16x16x32xf32>
    %17 = arith.addf %10, %16 : vector<16x16x32xf32>
    %18 = vector.extract_strided_slice %1 {offsets = [0, 2, 0], sizes = [16, 16, 32], strides = [1, 1, 1]} : vector<18x18x32xf32> to vector<16x16x32xf32>
    %19 = vector.extract_strided_slice %2 {offsets = [0, 2, 0], sizes = [1, 1, 32], strides = [1, 1, 1]} : vector<3x3x32xf32> to vector<1x1x32xf32>
    %20 = vector.shape_cast %19 : vector<1x1x32xf32> to vector<32xf32>
    %21 = vector.shape_cast %20 : vector<32xf32> to vector<1x1x32xf32>
    %22 = vector.broadcast %21 : vector<1x1x32xf32> to vector<16x16x32xf32>
    %23 = arith.mulf %18, %22 : vector<16x16x32xf32>
    %24 = arith.addf %17, %23 : vector<16x16x32xf32>
    %25 = vector.extract_strided_slice %1 {offsets = [1, 0, 0], sizes = [16, 16, 32], strides = [1, 1, 1]} : vector<18x18x32xf32> to vector<16x16x32xf32>
    %26 = vector.extract_strided_slice %2 {offsets = [1, 0, 0], sizes = [1, 1, 32], strides = [1, 1, 1]} : vector<3x3x32xf32> to vector<1x1x32xf32>
    %27 = vector.shape_cast %26 : vector<1x1x32xf32> to vector<32xf32>
    %28 = vector.shape_cast %27 : vector<32xf32> to vector<1x1x32xf32>
    %29 = vector.broadcast %28 : vector<1x1x32xf32> to vector<16x16x32xf32>
    %30 = arith.mulf %25, %29 : vector<16x16x32xf32>
    %31 = arith.addf %24, %30 : vector<16x16x32xf32>
    %32 = vector.extract_strided_slice %1 {offsets = [1, 1, 0], sizes = [16, 16, 32], strides = [1, 1, 1]} : vector<18x18x32xf32> to vector<16x16x32xf32>
    %33 = vector.extract_strided_slice %2 {offsets = [1, 1, 0], sizes = [1, 1, 32], strides = [1, 1, 1]} : vector<3x3x32xf32> to vector<1x1x32xf32>
    %34 = vector.shape_cast %33 : vector<1x1x32xf32> to vector<32xf32>
    %35 = vector.shape_cast %34 : vector<32xf32> to vector<1x1x32xf32>
    %36 = vector.broadcast %35 : vector<1x1x32xf32> to vector<16x16x32xf32>
    %37 = arith.mulf %32, %36 : vector<16x16x32xf32>
    %38 = arith.addf %31, %37 : vector<16x16x32xf32>
    %39 = vector.extract_strided_slice %1 {offsets = [1, 2, 0], sizes = [16, 16, 32], strides = [1, 1, 1]} : vector<18x18x32xf32> to vector<16x16x32xf32>
    %40 = vector.extract_strided_slice %2 {offsets = [1, 2, 0], sizes = [1, 1, 32], strides = [1, 1, 1]} : vector<3x3x32xf32> to vector<1x1x32xf32>
    %41 = vector.shape_cast %40 : vector<1x1x32xf32> to vector<32xf32>
    %42 = vector.shape_cast %41 : vector<32xf32> to vector<1x1x32xf32>
    %43 = vector.broadcast %42 : vector<1x1x32xf32> to vector<16x16x32xf32>
    %44 = arith.mulf %39, %43 : vector<16x16x32xf32>
    %45 = arith.addf %38, %44 : vector<16x16x32xf32>
    %46 = vector.extract_strided_slice %1 {offsets = [2, 0, 0], sizes = [16, 16, 32], strides = [1, 1, 1]} : vector<18x18x32xf32> to vector<16x16x32xf32>
    %47 = vector.extract_strided_slice %2 {offsets = [2, 0, 0], sizes = [1, 1, 32], strides = [1, 1, 1]} : vector<3x3x32xf32> to vector<1x1x32xf32>
    %48 = vector.shape_cast %47 : vector<1x1x32xf32> to vector<32xf32>
    %49 = vector.shape_cast %48 : vector<32xf32> to vector<1x1x32xf32>
    %50 = vector.broadcast %49 : vector<1x1x32xf32> to vector<16x16x32xf32>
    %51 = arith.mulf %46, %50 : vector<16x16x32xf32>
    %52 = arith.addf %45, %51 : vector<16x16x32xf32>
    %53 = vector.extract_strided_slice %1 {offsets = [2, 1, 0], sizes = [16, 16, 32], strides = [1, 1, 1]} : vector<18x18x32xf32> to vector<16x16x32xf32>
    %54 = vector.extract_strided_slice %2 {offsets = [2, 1, 0], sizes = [1, 1, 32], strides = [1, 1, 1]} : vector<3x3x32xf32> to vector<1x1x32xf32>
    %55 = vector.shape_cast %54 : vector<1x1x32xf32> to vector<32xf32>
    %56 = vector.shape_cast %55 : vector<32xf32> to vector<1x1x32xf32>
    %57 = vector.broadcast %56 : vector<1x1x32xf32> to vector<16x16x32xf32>
    %58 = arith.mulf %53, %57 : vector<16x16x32xf32>
    %59 = arith.addf %52, %58 : vector<16x16x32xf32>
    %60 = vector.extract_strided_slice %1 {offsets = [2, 2, 0], sizes = [16, 16, 32], strides = [1, 1, 1]} : vector<18x18x32xf32> to vector<16x16x32xf32>
    %61 = vector.extract_strided_slice %2 {offsets = [2, 2, 0], sizes = [1, 1, 32], strides = [1, 1, 1]} : vector<3x3x32xf32> to vector<1x1x32xf32>
    %62 = vector.shape_cast %61 : vector<1x1x32xf32> to vector<32xf32>
    %63 = vector.shape_cast %62 : vector<32xf32> to vector<1x1x32xf32>
    %64 = vector.broadcast %63 : vector<1x1x32xf32> to vector<16x16x32xf32>
    %65 = arith.mulf %60, %64 : vector<16x16x32xf32>
    %66 = arith.addf %59, %65 : vector<16x16x32xf32>
    %c0_6 = arith.constant 0 : index
    %c0_7 = arith.constant 0 : index
    %67 = vector.load %arg3[%c0_6, %c0_7] : memref<1x32xf32, #tpu.memory_space<vmem>>, vector<1x32xf32>
    %68 = vector.shape_cast %67 : vector<1x32xf32> to vector<1x1x32xf32>
    %69 = vector.broadcast %68 : vector<1x1x32xf32> to vector<16x16x32xf32>
    %70 = arith.addf %66, %69 : vector<16x16x32xf32>
    %cst_8 = arith.constant 0.000000e+00 : f32
    %71 = vector.broadcast %cst_8 : f32 to vector<16x16x32xf32>
    %72 = arith.cmpf ogt, %70, %71 : vector<16x16x32xf32>
    %73 = math.exp %70 : vector<16x16x32xf32>
    %cst_9 = arith.constant 1.000000e+00 : f32
    %74 = vector.broadcast %cst_9 : f32 to vector<16x16x32xf32>
    %75 = arith.subf %73, %74 : vector<16x16x32xf32>
    %76 = arith.select %72, %70, %75 : vector<16x16x32xi1>, vector<16x16x32xf32>
    %c0_10 = arith.constant 0 : index
    %c0_11 = arith.constant 0 : index
    %c0_12 = arith.constant 0 : index
    %c0_13 = arith.constant 0 : index
    %77 = vector.load %arg4[%c0_10, %c0_11, %c0_12, %c0_13] : memref<1x16x16x32xf32, #tpu.memory_space<vmem>>, vector<1x16x16x32xf32>
    %78 = vector.shape_cast %77 : vector<1x16x16x32xf32> to vector<16x16x32xf32>
    %79 = vector.shape_cast %76 : vector<16x16x32xf32> to vector<1x16x16x32xf32>
    tpu.vector_store %arg4[%c0_10, %c0_11, %c0_12, %c0_13], %79 {strides = array<i32>} : memref<1x16x16x32xf32, #tpu.memory_space<vmem>>, vector<1x16x16x32xf32>,
    return
  }
  func.func @transform_0(%arg0: i32) -> (i32, i32, i32, i32) {
    %c0_i32 = arith.constant 0 : i32
    %c0_i32_0 = arith.constant 0 : i32
    %c0_i32_1 = arith.constant 0 : i32
    %c0_i32_2 = arith.constant 0 : i32
    return %arg0, %c0_i32, %c0_i32_0, %c0_i32_1 : i32, i32, i32, i32
  }
  func.func @transform_1(%arg0: i32) -> (i32, i32, i32) {
    %c0_i32 = arith.constant 0 : i32
    %c0_i32_0 = arith.constant 0 : i32
    %c0_i32_1 = arith.constant 0 : i32
    %c0_i32_2 = arith.constant 0 : i32
    return %c0_i32, %c0_i32_0, %c0_i32_1 : i32, i32, i32
  }
  func.func @transform_2(%arg0: i32) -> (i32, i32) {
    %c0_i32 = arith.constant 0 : i32
    %c0_i32_0 = arith.constant 0 : i32
    %c0_i32_1 = arith.constant 0 : i32
    return %c0_i32, %c0_i32_0 : i32, i32
  }
  func.func @transform_3(%arg0: i32) -> (i32, i32, i32, i32) {
    %c0_i32 = arith.constant 0 : i32
    %c0_i32_0 = arith.constant 0 : i32
    %c0_i32_1 = arith.constant 0 : i32
    %c0_i32_2 = arith.constant 0 : i32
    return %arg0, %c0_i32, %c0_i32_0, %c0_i32_1 : i32, i32, i32, i32
  }
}

module attributes {stable_mosaic.version = 11 : i64} {
  func.func @_channel_attn_kernel(%arg0: i32, %arg1: i32, %arg2: memref<1x1x16x256xf32, #tpu.memory_space<vmem>>, %arg3: memref<1x1x16x256xf32, #tpu.memory_space<vmem>>, %arg4: memref<1x1x16x256xf32, #tpu.memory_space<vmem>>, %arg5: memref<1x1x1xf32, #tpu.memory_space<vmem>>, %arg6: memref<1x1x16x256xf32, #tpu.memory_space<vmem>>) attributes {dimension_semantics = [#tpu.dimension_semantics<parallel>, #tpu.dimension_semantics<parallel>], iteration_bounds = array<i64: 2, 2>, scalar_prefetch = 0 : i64, scratch_operands = 0 : i64, tpu.core_type = #tpu.core_type<tc>, window_params = [{transform_indices = @transform_0, window_bounds = array<i64: 1, 1, 16, 256>}, {transform_indices = @transform_1, window_bounds = array<i64: 1, 1, 16, 256>}, {transform_indices = @transform_2, window_bounds = array<i64: 1, 1, 16, 256>}, {transform_indices = @transform_3, window_bounds = array<i64: 1, 1, 1>}, {transform_indices = @transform_4, window_bounds = array<i64: 1, 1, 16, 256>}]} {
    %c0 = arith.constant 0 : index
    %c0_0 = arith.constant 0 : index
    %c0_1 = arith.constant 0 : index
    %c0_2 = arith.constant 0 : index
    %0 = vector.load %arg2[%c0, %c0_0, %c0_1, %c0_2] : memref<1x1x16x256xf32, #tpu.memory_space<vmem>>, vector<1x1x16x256xf32>
    %1 = vector.shape_cast %0 : vector<1x1x16x256xf32> to vector<16x256xf32>
    %c0_3 = arith.constant 0 : index
    %c0_4 = arith.constant 0 : index
    %c0_5 = arith.constant 0 : index
    %c0_6 = arith.constant 0 : index
    %2 = vector.load %arg3[%c0_3, %c0_4, %c0_5, %c0_6] : memref<1x1x16x256xf32, #tpu.memory_space<vmem>>, vector<1x1x16x256xf32>
    %3 = vector.shape_cast %2 : vector<1x1x16x256xf32> to vector<16x256xf32>
    %c0_7 = arith.constant 0 : index
    %c0_8 = arith.constant 0 : index
    %c0_9 = arith.constant 0 : index
    %c0_10 = arith.constant 0 : index
    %4 = vector.load %arg4[%c0_7, %c0_8, %c0_9, %c0_10] : memref<1x1x16x256xf32, #tpu.memory_space<vmem>>, vector<1x1x16x256xf32>
    %5 = vector.shape_cast %4 : vector<1x1x16x256xf32> to vector<16x256xf32>
    %6 = arith.mulf %1, %1 : vector<16x256xf32>
    %cst = arith.constant dense<0.000000e+00> : vector<16xf32>
    %7 = vector.multi_reduction <add>, %6, %cst [1] : vector<16x256xf32> to vector<16xf32>
    %8 = vector.shape_cast %7 : vector<16xf32> to vector<16x1xf32>
    %9 = math.sqrt %8 : vector<16x1xf32>
    %cst_11 = arith.constant 9.99999996E-13 : f32
    %10 = vector.broadcast %cst_11 : f32 to vector<16x1xf32>
    %11 = arith.maximumf %9, %10 : vector<16x1xf32>
    %12 = vector.broadcast %11 : vector<16x1xf32> to vector<16x256xf32>
    %13 = arith.divf %1, %12 : vector<16x256xf32>
    %14 = arith.mulf %3, %3 : vector<16x256xf32>
    %cst_12 = arith.constant dense<0.000000e+00> : vector<16xf32>
    %15 = vector.multi_reduction <add>, %14, %cst_12 [1] : vector<16x256xf32> to vector<16xf32>
    %16 = vector.shape_cast %15 : vector<16xf32> to vector<16x1xf32>
    %17 = math.sqrt %16 : vector<16x1xf32>
    %cst_13 = arith.constant 9.99999996E-13 : f32
    %18 = vector.broadcast %cst_13 : f32 to vector<16x1xf32>
    %19 = arith.maximumf %17, %18 : vector<16x1xf32>
    %20 = vector.broadcast %19 : vector<16x1xf32> to vector<16x256xf32>
    %21 = arith.divf %3, %20 : vector<16x256xf32>
    %cst_14 = arith.constant dense<0.000000e+00> : vector<16x16xf32>
    %22 = tpu.matmul %13, %21, %cst_14 {dimension_numbers = #tpu.dot_dimension_numbers<[1], [1], [0], [0], [0, 0, 1, 0], [], []>} : vector<16x256xf32>, vector<16x256xf32>, vector<16x16xf32> -> vector<16x16xf32>
    %c0_15 = arith.constant 0 : index
    %c0_16 = arith.constant 0 : index
    %c0_17 = arith.constant 0 : index
    %23 = vector.load %arg5[%c0_15, %c0_16, %c0_17] : memref<1x1x1xf32, #tpu.memory_space<vmem>>, vector<1x1x1xf32>
    %24 = vector.shape_cast %23 : vector<1x1x1xf32> to vector<1x1xf32>
    %25 = vector.broadcast %24 : vector<1x1xf32> to vector<16x16xf32>
    %26 = arith.mulf %22, %25 : vector<16x16xf32>
    %cst_18 = arith.constant dense<0xFF800000> : vector<16xf32>
    %27 = vector.multi_reduction <maximumf>, %26, %cst_18 [1] : vector<16x16xf32> to vector<16xf32>
    %28 = vector.shape_cast %27 : vector<16xf32> to vector<16x1xf32>
    %29 = vector.broadcast %28 : vector<16x1xf32> to vector<16x16xf32>
    %30 = arith.subf %26, %29 : vector<16x16xf32>
    %31 = math.exp %30 : vector<16x16xf32>
    %cst_19 = arith.constant dense<0.000000e+00> : vector<16xf32>
    %32 = vector.multi_reduction <add>, %31, %cst_19 [1] : vector<16x16xf32> to vector<16xf32>
    %33 = vector.shape_cast %32 : vector<16xf32> to vector<16x1xf32>
    %34 = vector.broadcast %33 : vector<16x1xf32> to vector<16x16xf32>
    %35 = arith.divf %31, %34 : vector<16x16xf32>
    %cst_20 = arith.constant dense<0.000000e+00> : vector<16x256xf32>
    %36 = tpu.matmul %35, %5, %cst_20 {dimension_numbers = #tpu.dot_dimension_numbers<[1], [0], [0], [1], [0, 0, 1, 1], [], []>} : vector<16x16xf32>, vector<16x256xf32>, vector<16x256xf32> -> vector<16x256xf32>
    %c0_21 = arith.constant 0 : index
    %c0_22 = arith.constant 0 : index
    %c0_23 = arith.constant 0 : index
    %c0_24 = arith.constant 0 : index
    %37 = vector.load %arg6[%c0_21, %c0_22, %c0_23, %c0_24] : memref<1x1x16x256xf32, #tpu.memory_space<vmem>>, vector<1x1x16x256xf32>
    %38 = vector.shape_cast %37 : vector<1x1x16x256xf32> to vector<16x256xf32>
    %39 = vector.shape_cast %36 : vector<16x256xf32> to vector<1x1x16x256xf32>
    tpu.vector_store %arg6[%c0_21, %c0_22, %c0_23, %c0_24], %39 {strides = array<i32>} : memref<1x1x16x256xf32, #tpu.memory_space<vmem>>, vector<1x1x16x256xf32>,
    return
  }
  func.func @transform_0(%arg0: i32, %arg1: i32) -> (i32, i32, i32, i32) {
    %c0_i32 = arith.constant 0 : i32
    %c0_i32_0 = arith.constant 0 : i32
    %c0_i32_1 = arith.constant 0 : i32
    return %arg0, %arg1, %c0_i32, %c0_i32_0 : i32, i32, i32, i32
  }
  func.func @transform_1(%arg0: i32, %arg1: i32) -> (i32, i32, i32, i32) {
    %c0_i32 = arith.constant 0 : i32
    %c0_i32_0 = arith.constant 0 : i32
    %c0_i32_1 = arith.constant 0 : i32
    return %arg0, %arg1, %c0_i32, %c0_i32_0 : i32, i32, i32, i32
  }
  func.func @transform_2(%arg0: i32, %arg1: i32) -> (i32, i32, i32, i32) {
    %c0_i32 = arith.constant 0 : i32
    %c0_i32_0 = arith.constant 0 : i32
    %c0_i32_1 = arith.constant 0 : i32
    return %arg0, %arg1, %c0_i32, %c0_i32_0 : i32, i32, i32, i32
  }
  func.func @transform_3(%arg0: i32, %arg1: i32) -> (i32, i32, i32) {
    %c0_i32 = arith.constant 0 : i32
    %c0_i32_0 = arith.constant 0 : i32
    %c0_i32_1 = arith.constant 0 : i32
    return %arg1, %c0_i32, %c0_i32_0 : i32, i32, i32
  }
  func.func @transform_4(%arg0: i32, %arg1: i32) -> (i32, i32, i32, i32) {
    %c0_i32 = arith.constant 0 : i32
    %c0_i32_0 = arith.constant 0 : i32
    %c0_i32_1 = arith.constant 0 : i32
    return %arg0, %arg1, %c0_i32, %c0_i32_0 : i32, i32, i32, i32
  }
}

module attributes {stable_mosaic.version = 11 : i64} {
  func.func @_window_attn_kernel(%arg0: i32, %arg1: i32, %arg2: memref<1x1x256x16xf32, #tpu.memory_space<vmem>>, %arg3: memref<1x1x256x16xf32, #tpu.memory_space<vmem>>, %arg4: memref<1x1x256x16xf32, #tpu.memory_space<vmem>>, %arg5: memref<1x256x256xf32, #tpu.memory_space<vmem>>, %arg6: memref<1x1x256x16xf32, #tpu.memory_space<vmem>>) attributes {dimension_semantics = [#tpu.dimension_semantics<parallel>, #tpu.dimension_semantics<parallel>], iteration_bounds = array<i64: 2, 2>, scalar_prefetch = 0 : i64, scratch_operands = 0 : i64, tpu.core_type = #tpu.core_type<tc>, window_params = [{transform_indices = @transform_0, window_bounds = array<i64: 1, 1, 256, 16>}, {transform_indices = @transform_1, window_bounds = array<i64: 1, 1, 256, 16>}, {transform_indices = @transform_2, window_bounds = array<i64: 1, 1, 256, 16>}, {transform_indices = @transform_3, window_bounds = array<i64: 1, 256, 256>}, {transform_indices = @transform_4, window_bounds = array<i64: 1, 1, 256, 16>}]} {
    %c0 = arith.constant 0 : index
    %c0_0 = arith.constant 0 : index
    %c0_1 = arith.constant 0 : index
    %c0_2 = arith.constant 0 : index
    %0 = vector.load %arg2[%c0, %c0_0, %c0_1, %c0_2] : memref<1x1x256x16xf32, #tpu.memory_space<vmem>>, vector<1x1x256x16xf32>
    %1 = vector.shape_cast %0 : vector<1x1x256x16xf32> to vector<256x16xf32>
    %cst = arith.constant 2.500000e-01 : f32
    %2 = vector.broadcast %cst : f32 to vector<256x16xf32>
    %3 = arith.mulf %1, %2 : vector<256x16xf32>
    %c0_3 = arith.constant 0 : index
    %c0_4 = arith.constant 0 : index
    %c0_5 = arith.constant 0 : index
    %c0_6 = arith.constant 0 : index
    %4 = vector.load %arg3[%c0_3, %c0_4, %c0_5, %c0_6] : memref<1x1x256x16xf32, #tpu.memory_space<vmem>>, vector<1x1x256x16xf32>
    %5 = vector.shape_cast %4 : vector<1x1x256x16xf32> to vector<256x16xf32>
    %c0_7 = arith.constant 0 : index
    %c0_8 = arith.constant 0 : index
    %c0_9 = arith.constant 0 : index
    %c0_10 = arith.constant 0 : index
    %6 = vector.load %arg4[%c0_7, %c0_8, %c0_9, %c0_10] : memref<1x1x256x16xf32, #tpu.memory_space<vmem>>, vector<1x1x256x16xf32>
    %7 = vector.shape_cast %6 : vector<1x1x256x16xf32> to vector<256x16xf32>
    %cst_11 = arith.constant dense<0.000000e+00> : vector<256x256xf32>
    %8 = tpu.matmul %3, %5, %cst_11 {dimension_numbers = #tpu.dot_dimension_numbers<[1], [1], [0], [0], [0, 0, 1, 0], [], []>} : vector<256x16xf32>, vector<256x16xf32>, vector<256x256xf32> -> vector<256x256xf32>
    %c0_12 = arith.constant 0 : index
    %c0_13 = arith.constant 0 : index
    %c0_14 = arith.constant 0 : index
    %9 = vector.load %arg5[%c0_12, %c0_13, %c0_14] : memref<1x256x256xf32, #tpu.memory_space<vmem>>, vector<1x256x256xf32>
    %10 = vector.shape_cast %9 : vector<1x256x256xf32> to vector<256x256xf32>
    %11 = arith.addf %8, %10 : vector<256x256xf32>
    %cst_15 = arith.constant dense<0xFF800000> : vector<256xf32>
    %12 = vector.multi_reduction <maximumf>, %11, %cst_15 [1] : vector<256x256xf32> to vector<256xf32>
    %13 = vector.shape_cast %12 : vector<256xf32> to vector<256x1xf32>
    %14 = vector.broadcast %13 : vector<256x1xf32> to vector<256x256xf32>
    %15 = arith.subf %11, %14 : vector<256x256xf32>
    %16 = math.exp %15 : vector<256x256xf32>
    %cst_16 = arith.constant dense<0.000000e+00> : vector<256xf32>
    %17 = vector.multi_reduction <add>, %16, %cst_16 [1] : vector<256x256xf32> to vector<256xf32>
    %18 = vector.shape_cast %17 : vector<256xf32> to vector<256x1xf32>
    %19 = vector.broadcast %18 : vector<256x1xf32> to vector<256x256xf32>
    %20 = arith.divf %16, %19 : vector<256x256xf32>
    %cst_17 = arith.constant dense<0.000000e+00> : vector<256x16xf32>
    %21 = tpu.matmul %20, %7, %cst_17 {dimension_numbers = #tpu.dot_dimension_numbers<[1], [0], [0], [1], [0, 0, 1, 1], [], []>} : vector<256x256xf32>, vector<256x16xf32>, vector<256x16xf32> -> vector<256x16xf32>
    %c0_18 = arith.constant 0 : index
    %c0_19 = arith.constant 0 : index
    %c0_20 = arith.constant 0 : index
    %c0_21 = arith.constant 0 : index
    %22 = vector.load %arg6[%c0_18, %c0_19, %c0_20, %c0_21] : memref<1x1x256x16xf32, #tpu.memory_space<vmem>>, vector<1x1x256x16xf32>
    %23 = vector.shape_cast %22 : vector<1x1x256x16xf32> to vector<256x16xf32>
    %24 = vector.shape_cast %21 : vector<256x16xf32> to vector<1x1x256x16xf32>
    tpu.vector_store %arg6[%c0_18, %c0_19, %c0_20, %c0_21], %24 {strides = array<i32>} : memref<1x1x256x16xf32, #tpu.memory_space<vmem>>, vector<1x1x256x16xf32>,
    return
  }
  func.func @transform_0(%arg0: i32, %arg1: i32) -> (i32, i32, i32, i32) {
    %c0_i32 = arith.constant 0 : i32
    %c0_i32_0 = arith.constant 0 : i32
    %c0_i32_1 = arith.constant 0 : i32
    return %arg0, %arg1, %c0_i32, %c0_i32_0 : i32, i32, i32, i32
  }
  func.func @transform_1(%arg0: i32, %arg1: i32) -> (i32, i32, i32, i32) {
    %c0_i32 = arith.constant 0 : i32
    %c0_i32_0 = arith.constant 0 : i32
    %c0_i32_1 = arith.constant 0 : i32
    return %arg0, %arg1, %c0_i32, %c0_i32_0 : i32, i32, i32, i32
  }
  func.func @transform_2(%arg0: i32, %arg1: i32) -> (i32, i32, i32, i32) {
    %c0_i32 = arith.constant 0 : i32
    %c0_i32_0 = arith.constant 0 : i32
    %c0_i32_1 = arith.constant 0 : i32
    return %arg0, %arg1, %c0_i32, %c0_i32_0 : i32, i32, i32, i32
  }
  func.func @transform_3(%arg0: i32, %arg1: i32) -> (i32, i32, i32) {
    %c0_i32 = arith.constant 0 : i32
    %c0_i32_0 = arith.constant 0 : i32
    %c0_i32_1 = arith.constant 0 : i32
    return %arg1, %c0_i32, %c0_i32_0 : i32, i32, i32
  }
  func.func @transform_4(%arg0: i32, %arg1: i32) -> (i32, i32, i32, i32) {
    %c0_i32 = arith.constant 0 : i32
    %c0_i32_0 = arith.constant 0 : i32
    %c0_i32_1 = arith.constant 0 : i32
    return %arg0, %arg1, %c0_i32, %c0_i32_0 : i32, i32, i32, i32
  }
}

module attributes {stable_mosaic.version = 11 : i64} {
  func.func @_fuse_out_kernel(%arg0: i32, %arg1: memref<1x256x32xf32, #tpu.memory_space<vmem>>, %arg2: memref<1x256x32xf32, #tpu.memory_space<vmem>>, %arg3: memref<1x256x32xf32, #tpu.memory_space<vmem>>, %arg4: memref<32x32xf32, #tpu.memory_space<vmem>>, %arg5: memref<1x32xf32, #tpu.memory_space<vmem>>, %arg6: memref<32x32xf32, #tpu.memory_space<vmem>>, %arg7: memref<1x32xf32, #tpu.memory_space<vmem>>, %arg8: memref<1x256x32xf32, #tpu.memory_space<vmem>>) attributes {dimension_semantics = [#tpu.dimension_semantics<parallel>], iteration_bounds = array<i64: 2>, scalar_prefetch = 0 : i64, scratch_operands = 0 : i64, tpu.core_type = #tpu.core_type<tc>, window_params = [{transform_indices = @transform_0, window_bounds = array<i64: 1, 256, 32>}, {transform_indices = @transform_1, window_bounds = array<i64: 1, 256, 32>}, {transform_indices = @transform_2, window_bounds = array<i64: 1, 256, 32>}, {pipeline_mode = #tpu.pipeline_mode<synchronous>, transform_indices = @transform_3, window_bounds = array<i64: 32, 32>}, {pipeline_mode = #tpu.pipeline_mode<synchronous>, transform_indices = @transform_4, window_bounds = array<i64: 1, 32>}, {pipeline_mode = #tpu.pipeline_mode<synchronous>, transform_indices = @transform_5, window_bounds = array<i64: 32, 32>}, {pipeline_mode = #tpu.pipeline_mode<synchronous>, transform_indices = @transform_6, window_bounds = array<i64: 1, 32>}, {transform_indices = @transform_7, window_bounds = array<i64: 1, 256, 32>}]} {
    %c0 = arith.constant 0 : index
    %c0_0 = arith.constant 0 : index
    %c0_1 = arith.constant 0 : index
    %0 = vector.load %arg1[%c0, %c0_0, %c0_1] : memref<1x256x32xf32, #tpu.memory_space<vmem>>, vector<1x256x32xf32>
    %1 = vector.shape_cast %0 : vector<1x256x32xf32> to vector<256x32xf32>
    %c0_2 = arith.constant 0 : index
    %c0_3 = arith.constant 0 : index
    %2 = vector.load %arg4[%c0_2, %c0_3] : memref<32x32xf32, #tpu.memory_space<vmem>>, vector<32x32xf32>
    %cst = arith.constant dense<0.000000e+00> : vector<256x32xf32>
    %3 = tpu.matmul %1, %2, %cst {dimension_numbers = #tpu.dot_dimension_numbers<[1], [0], [0], [1], [0, 0, 1, 1], [], []>} : vector<256x32xf32>, vector<32x32xf32>, vector<256x32xf32> -> vector<256x32xf32>
    %c0_4 = arith.constant 0 : index
    %c0_5 = arith.constant 0 : index
    %4 = vector.load %arg5[%c0_4, %c0_5] : memref<1x32xf32, #tpu.memory_space<vmem>>, vector<1x32xf32>
    %5 = vector.broadcast %4 : vector<1x32xf32> to vector<256x32xf32>
    %6 = arith.addf %3, %5 : vector<256x32xf32>
    %cst_6 = arith.constant dense<0.000000e+00> : vector<32xf32>
    %7 = vector.multi_reduction <add>, %6, %cst_6 [0] : vector<256x32xf32> to vector<32xf32>
    %8 = vector.shape_cast %7 : vector<32xf32> to vector<1x32xf32>
    %cst_7 = arith.constant 2.560000e+02 : f32
    %9 = vector.broadcast %cst_7 : f32 to vector<1x32xf32>
    %10 = arith.divf %8, %9 : vector<1x32xf32>
    %11 = vector.broadcast %10 : vector<1x32xf32> to vector<256x32xf32>
    %12 = arith.subf %6, %11 : vector<256x32xf32>
    %c0_8 = arith.constant 0 : index
    %c0_9 = arith.constant 0 : index
    %c0_10 = arith.constant 0 : index
    %13 = vector.load %arg2[%c0_8, %c0_9, %c0_10] : memref<1x256x32xf32, #tpu.memory_space<vmem>>, vector<1x256x32xf32>
    %14 = vector.shape_cast %13 : vector<1x256x32xf32> to vector<256x32xf32>
    %c0_11 = arith.constant 0 : index
    %c0_12 = arith.constant 0 : index
    %15 = vector.load %arg6[%c0_11, %c0_12] : memref<32x32xf32, #tpu.memory_space<vmem>>, vector<32x32xf32>
    %cst_13 = arith.constant dense<0.000000e+00> : vector<256x32xf32>
    %16 = tpu.matmul %14, %15, %cst_13 {dimension_numbers = #tpu.dot_dimension_numbers<[1], [0], [0], [1], [0, 0, 1, 1], [], []>} : vector<256x32xf32>, vector<32x32xf32>, vector<256x32xf32> -> vector<256x32xf32>
    %c0_14 = arith.constant 0 : index
    %c0_15 = arith.constant 0 : index
    %17 = vector.load %arg7[%c0_14, %c0_15] : memref<1x32xf32, #tpu.memory_space<vmem>>, vector<1x32xf32>
    %18 = vector.broadcast %17 : vector<1x32xf32> to vector<256x32xf32>
    %19 = arith.addf %16, %18 : vector<256x32xf32>
    %c0_16 = arith.constant 0 : index
    %c0_17 = arith.constant 0 : index
    %c0_18 = arith.constant 0 : index
    %20 = vector.load %arg3[%c0_16, %c0_17, %c0_18] : memref<1x256x32xf32, #tpu.memory_space<vmem>>, vector<1x256x32xf32>
    %21 = vector.shape_cast %20 : vector<1x256x32xf32> to vector<256x32xf32>
    %22 = arith.addf %19, %21 : vector<256x32xf32>
    %23 = arith.addf %22, %12 : vector<256x32xf32>
    %c0_19 = arith.constant 0 : index
    %c0_20 = arith.constant 0 : index
    %c0_21 = arith.constant 0 : index
    %24 = vector.load %arg8[%c0_19, %c0_20, %c0_21] : memref<1x256x32xf32, #tpu.memory_space<vmem>>, vector<1x256x32xf32>
    %25 = vector.shape_cast %24 : vector<1x256x32xf32> to vector<256x32xf32>
    %26 = vector.shape_cast %23 : vector<256x32xf32> to vector<1x256x32xf32>
    tpu.vector_store %arg8[%c0_19, %c0_20, %c0_21], %26 {strides = array<i32>} : memref<1x256x32xf32, #tpu.memory_space<vmem>>, vector<1x256x32xf32>,
    return
  }
  func.func @transform_0(%arg0: i32) -> (i32, i32, i32) {
    %c0_i32 = arith.constant 0 : i32
    %c0_i32_0 = arith.constant 0 : i32
    %c0_i32_1 = arith.constant 0 : i32
    return %arg0, %c0_i32, %c0_i32_0 : i32, i32, i32
  }
  func.func @transform_1(%arg0: i32) -> (i32, i32, i32) {
    %c0_i32 = arith.constant 0 : i32
    %c0_i32_0 = arith.constant 0 : i32
    %c0_i32_1 = arith.constant 0 : i32
    return %arg0, %c0_i32, %c0_i32_0 : i32, i32, i32
  }
  func.func @transform_2(%arg0: i32) -> (i32, i32, i32) {
    %c0_i32 = arith.constant 0 : i32
    %c0_i32_0 = arith.constant 0 : i32
    %c0_i32_1 = arith.constant 0 : i32
    return %arg0, %c0_i32, %c0_i32_0 : i32, i32, i32
  }
  func.func @transform_3(%arg0: i32) -> (i32, i32) {
    %c0_i32 = arith.constant 0 : i32
    %c0_i32_0 = arith.constant 0 : i32
    %c0_i32_1 = arith.constant 0 : i32
    return %c0_i32, %c0_i32_0 : i32, i32
  }
  func.func @transform_4(%arg0: i32) -> (i32, i32) {
    %c0_i32 = arith.constant 0 : i32
    %c0_i32_0 = arith.constant 0 : i32
    %c0_i32_1 = arith.constant 0 : i32
    return %c0_i32, %c0_i32_0 : i32, i32
  }
  func.func @transform_5(%arg0: i32) -> (i32, i32) {
    %c0_i32 = arith.constant 0 : i32
    %c0_i32_0 = arith.constant 0 : i32
    %c0_i32_1 = arith.constant 0 : i32
    return %c0_i32, %c0_i32_0 : i32, i32
  }
  func.func @transform_6(%arg0: i32) -> (i32, i32) {
    %c0_i32 = arith.constant 0 : i32
    %c0_i32_0 = arith.constant 0 : i32
    %c0_i32_1 = arith.constant 0 : i32
    return %c0_i32, %c0_i32_0 : i32, i32
  }
  func.func @transform_7(%arg0: i32) -> (i32, i32, i32) {
    %c0_i32 = arith.constant 0 : i32
    %c0_i32_0 = arith.constant 0 : i32
    %c0_i32_1 = arith.constant 0 : i32
    return %arg0, %c0_i32, %c0_i32_0 : i32, i32, i32
  }
}

</mosaic_0001>

<llo_original>
// kernel: attention_forward.7
$region0: #{attention_forward.7}
  #allocation0 [shape = 'u32[]', space=smem, size = 0x4, offset = 0x4, fixed_abs, tag = 'smem constant byte address 0x4 - core index']
  #allocation1 [shape = 'u32[144,128]{1,0:T(1,128)}', space=vmem, size = 0x12000, scoped, tag = 'internal scratch']
  %s0 = inlined_call_operand.hbm [shape: f32[512,32], index: 0, kind: input, shape index: {}]
  %s1 = inlined_call_operand.vmem [shape: f32[32,96], index: 1, kind: input, shape index: {}]
  %s2 = inlined_call_operand.vmem [shape: f32[1,96], index: 2, kind: input, shape index: {}]
  %s3 = inlined_call_operand.vmem [shape: f32[512,96], index: 3, kind: output, shape index: {}]
  %s4 = sld [smem:[#allocation0]]
  $region49: #{attention_forward.7} parent=0
    _
  %s6 = ssub.s32 1, %s4
  %s7 = scalar_select 0, %s6, %s4
  $region1: #{attention_forward.7} parent=0
    #allocation2 [shape = 'u8[262144]{0}', space=vmem, size = 0x40000, scoped, tag = 'input window, operand 0']
    #allocation3 [shape = 's32[2]{0}', space=sflag, size = 0x8, scoped, tag = 'scoped memory for attention_forward.7']
    %8 = vsyncpa [#allocation3], 0
    %s9 = scalar_lea.sflag [#allocation3], 1
    %10 = vsyncpa %s9, 0
    loop: start=0, step=1, limit=4
    $region2: #{attention_forward.7} parent=1 // loop_pre_header
      _
    $region3: #{attention_forward.7} parent=1 // loop_header
      %s12 = sphi 0, %s16
      %p13 = scmp.ge.s32.totalorder %s12, 4
      %s22 = sphi 0, %s24
      %s25 = sphi 0, %s22
      %s26 = sphi 0, %s25
      %s42 = sphi 0, %s26
      %s46 = sphi 0, %s46
      %s48 = sphi 0, %s46
      %s49 = sphi 0, %s48
      %s63 = sphi 0, %s49
      %s67 = sphi 0, %s67
      %s69 = sphi 0, %s67
      %s70 = sphi 0, %s69
      %s84 = sphi 0, %s70
      %s90 = sphi 0, %s92
      %s93 = sphi 0, %s90
      %s94 = sphi 0, %s93
      %s110 = sphi 0, %s94
    $region4: #{attention_forward.7} parent=1 // loop_header_branch
      %15 = sbr.rel (%p13) target = $region8
    $region5: #{attention_forward.7} parent=1 // loop_body
      %s17 = ssub.s32 %s12, 1
      %s18 = ssub.s32 %s12, 2
      %s19 = sadd.s32 %s12, 1
      %s20 = ssub.s32 %s12, %s19
      %p21 = scmp.eq.s32.totalorder %s20, 0
      %s23 = sadd.s32 %s22, 1
      %s24 = scalar_select %p21, %s22, %s23
      %p27 = pneg %p21
      %p28 = scmp.eq.s32.totalorder %s12, 1
      %p29 = por %p27, %p28
      %p30 = scmp.ne.s32.totalorder %s22, %s25
      %p31 = scmp.eq.s32.totalorder %s12, 0
      %p32 = por %p30, %p31
      %p33 = scmp.ne.s32.totalorder %s22, %s25
      %p34 = scmp.eq.s32.totalorder %s17, 1
      %p35 = por %p33, %p34
      %p36 = scmp.ne.s32.totalorder %s25, %s26
      %p37 = scmp.eq.s32.totalorder %s17, 0
      %p38 = por %p36, %p37
      %p39 = scmp.ne.s32.totalorder %s25, %s26
      %p40 = scmp.eq.s32.totalorder %s18, 1
      %p41 = por %p39, %p40
      %p43 = scmp.ne.s32.totalorder %s26, %s42
      %p44 = scmp.eq.s32.totalorder %s18, 0
      %p45 = por %p43, %p44
      %s47 = sadd.s32 %s46, 1
      %p50 = scmp.eq.s32.totalorder %s12, 1
      %p51 = scmp.ne.s32.totalorder %s46, %s48
      %p52 = scmp.eq.s32.totalorder %s12, 0
      %p53 = por %p51, %p52
      %p54 = scmp.ne.s32.totalorder %s46, %s48
      %p55 = scmp.eq.s32.totalorder %s17, 1
      %p56 = por %p54, %p55
      %p57 = scmp.ne.s32.totalorder %s48, %s49
      %p58 = scmp.eq.s32.totalorder %s17, 0
      %p59 = por %p57, %p58
      %p60 = scmp.ne.s32.totalorder %s48, %s49
      %p61 = scmp.eq.s32.totalorder %s18, 1
      %p62 = por %p60, %p61
      %p64 = scmp.ne.s32.totalorder %s49, %s63
      %p65 = scmp.eq.s32.totalorder %s18, 0
      %p66 = por %p64, %p65
      %s68 = sadd.s32 %s67, 1
      %p71 = scmp.eq.s32.totalorder %s12, 1
      %p72 = scmp.ne.s32.totalorder %s67, %s69
      %p73 = scmp.eq.s32.totalorder %s12, 0
      %p74 = por %p72, %p73
      %p75 = scmp.ne.s32.totalorder %s67, %s69
      %p76 = scmp.eq.s32.totalorder %s17, 1
      %p77 = por %p75, %p76
      %p78 = scmp.ne.s32.totalorder %s69, %s70
      %p79 = scmp.eq.s32.totalorder %s17, 0
      %p80 = por %p78, %p79
      %p81 = scmp.ne.s32.totalorder %s69, %s70
      %p82 = scmp.eq.s32.totalorder %s18, 1
      %p83 = por %p81, %p82
      %p85 = scmp.ne.s32.totalorder %s70, %s84
      %p86 = scmp.eq.s32.totalorder %s18, 0
      %p87 = por %p85, %p86
      %s88 = ssub.s32 %s12, %s19
      %p89 = scmp.eq.s32.totalorder %s88, 0
      %s91 = sadd.s32 %s90, 1
      %s92 = scalar_select %p89, %s90, %s91
      %p95 = pneg %p89
      %p96 = scmp.eq.s32.totalorder %s12, 1
      %p97 = por %p95, %p96
      %p98 = scmp.ne.s32.totalorder %s90, %s93
      %p99 = scmp.eq.s32.totalorder %s12, 0
      %p100 = por %p98, %p99
      %p101 = scmp.ne.s32.totalorder %s90, %s93
      %p102 = scmp.eq.s32.totalorder %s17, 1
      %p103 = por %p101, %p102
      %p104 = scmp.ne.s32.totalorder %s93, %s94
      %p105 = scmp.eq.s32.totalorder %s17, 0
      %p106 = por %p104, %p105
      %p107 = scmp.ne.s32.totalorder %s93, %s94
      %p108 = scmp.eq.s32.totalorder %s18, 1
      %p109 = por %p107, %p108
      %p111 = scmp.ne.s32.totalorder %s94, %s110
      %p112 = scmp.eq.s32.totalorder %s18, 0
      %p113 = por %p111, %p112
      %p114 = scmp.le.s32.totalorder 1, %s12
      %p115 = scmp.lt.s32.totalorder %s12, 3
      %p116 = pnand %p114, %p115
      %p117 = pneg %p116
      // Predicated region
      $region9: #{attention_forward.7} parent=5 // pred_check
        _
      $region10: #{attention_forward.7} parent=5 // pred_check_branch
        %119 = sbr.rel (%p116) target = $region12
      $region11: #{attention_forward.7} parent=5 // pred_region
        %s120 = ssub.s32 %s12, 1
        // Predicated region
        $region13: #{attention_forward.7} parent=11 // pred_check
          %p121 = pneg %p59
        $region14: #{attention_forward.7} parent=11 // pred_check_branch
          %123 = sbr.rel (%p121) target = $region16
        $region15: #{attention_forward.7} parent=11 // pred_region
          _
        $region16: #{attention_forward.7} parent=11 // pred_fallthru
          _
        // Predicated region
        $region17: #{attention_forward.7} parent=11 // pred_check
          %p124 = pneg %p80
        $region18: #{attention_forward.7} parent=11 // pred_check_branch
          %126 = sbr.rel (%p124) target = $region20
        $region19: #{attention_forward.7} parent=11 // pred_region
          _
        $region20: #{attention_forward.7} parent=11 // pred_fallthru
          _
      $region12: #{attention_forward.7} parent=5 // pred_fallthru
        _
      %p127 = scmp.lt.s32.totalorder %s12, 2
      // Predicated region
      $region21: #{attention_forward.7} parent=5 // pred_check
        %p128 = pneg %p127
      $region22: #{attention_forward.7} parent=5 // pred_check_branch
        %130 = sbr.rel (%p128) target = $region24
      $region23: #{attention_forward.7} parent=5 // pred_region
        // Predicated region
        $region25: #{attention_forward.7} parent=23 // pred_check
          %p131 = pneg %p32
        $region26: #{attention_forward.7} parent=23 // pred_check_branch
          %133 = sbr.rel (%p131) target = $region28
        $region27: #{attention_forward.7} parent=23 // pred_region
          %s134 = sand.u32 %s22, 1
          %s135 = scalar_lea.sflag [#allocation3], %s134
          %s136 = sand.u32 %s22, 1
          %s137 = smul.addr %s136, 256
          %s138 = scalar_lea.vmem [#allocation2], %s137
          %s139 = smul.u32 32, %s12
          %s141 = ssub.s32 4096, 4096
          %142 = vsyncadd %s135, %s141
          %s143 = smul.addr %s139, 128
          %s144 = scalar_lea.hbm %s0, %s143
          %s145 = sshll.u32 %s138, 4
          %s146 = int_to_ptr.vmem [resolvable:$true] %s145
          %151 = dma.hbm_to_vmem [thread:$0]  %s144, 4096, %s146, %s135, 128, 128, 8
        $region28: #{attention_forward.7} parent=23 // pred_fallthru
          _
      $region24: #{attention_forward.7} parent=5 // pred_fallthru
        _
      %p152 = scmp.le.s32.totalorder 1, %s12
      %p153 = scmp.lt.s32.totalorder %s12, 3
      %p154 = pnand %p152, %p153
      %p155 = pneg %p154
      // Predicated region
      $region29: #{attention_forward.7} parent=5 // pred_check
        _
      $region30: #{attention_forward.7} parent=5 // pred_check_branch
        %157 = sbr.rel (%p154) target = $region32
      $region31: #{attention_forward.7} parent=5 // pred_region
        %s158 = ssub.s32 %s12, 1
        %s159 = sand.u32 %s25, 1
        %s160 = scalar_lea.sflag [#allocation3], %s159
        %s161 = sand.u32 %s25, 1
        %s162 = smul.addr %s161, 256
        %s163 = scalar_lea.vmem [#allocation2], %s162
        // Predicated region
        $region33: #{attention_forward.7} parent=31 // pred_check
          %p164 = pneg %p38
        $region34: #{attention_forward.7} parent=31 // pred_check_branch
          %166 = sbr.rel (%p164) target = $region36
        $region35: #{attention_forward.7} parent=31 // pred_region
          %167 = dma.done %s160, 4096
        $region36: #{attention_forward.7} parent=31 // pred_fallthru
          _
        %s168 = sand.u32 %s25, 1
        %s169 = scalar_lea.sflag [#allocation3], %s168
        %s170 = sand.u32 %s25, 1
        %s171 = smul.addr %s170, 256
        %s172 = scalar_lea.vmem [#allocation2], %s171
        %p173 = pneg %p38
        %p174 = pneg %p35
        %p175 = pneg %p59
        %p176 = pneg %p56
        %p177 = pneg %p80
        %p178 = pneg %p77
        %p179 = pneg %p106
        %p180 = pneg %p103
        %s181 = smul.u32 32, %s17
        %p182 = scmp.lt.s32.totalorder %s181, 63
        %s183 = scalar_select %p182, %s181, 63
        %s184 = smul.addr %s183, 8
        %s185 = scalar_lea.vmem %s3, %s184
        %s186 = smul.u32 32, %s17
        %s187 = smul.u32 32, %s17
        %p188 = scmp.lt.s32.totalorder %s187, 63
        %s189 = scalar_select %p188, %s187, 63
        %s190 = smul.addr %s189, 8
        %s191 = scalar_lea.vmem %s3, %s190
        %s192 = smul.u32 32, %s17
        %v193 = vld [vmem:[%s163] sm:$0xff]
        %v194 = vld [vmem:[%s163 + $0x8] sm:$0xff]
        %v195 = vld [vmem:[%s163 + $0x10] sm:$0xff]
        %v196 = vld [vmem:[%s163 + $0x18] sm:$0xff]
        %v197 = vld [vmem:[%s163 + $0x20] sm:$0xff]
        %v198 = vld [vmem:[%s163 + $0x28] sm:$0xff]
        %v199 = vld [vmem:[%s163 + $0x30] sm:$0xff]
        %v200 = vld [vmem:[%s163 + $0x38] sm:$0xff]
        %v201 = vld [vmem:[%s163 + $0x40] sm:$0xff]
        %v202 = vld [vmem:[%s163 + $0x48] sm:$0xff]
        %v203 = vld [vmem:[%s163 + $0x50] sm:$0xff]
        %v204 = vld [vmem:[%s163 + $0x58] sm:$0xff]
        %v205 = vld [vmem:[%s163 + $0x60] sm:$0xff]
        %v206 = vld [vmem:[%s163 + $0x68] sm:$0xff]
        %v207 = vld [vmem:[%s163 + $0x70] sm:$0xff]
        %v208 = vld [vmem:[%s163 + $0x78] sm:$0xff]
        %v209 = vld [vmem:[%s163 + $0x80] sm:$0xff]
        %v210 = vld [vmem:[%s163 + $0x88] sm:$0xff]
        %v211 = vld [vmem:[%s163 + $0x90] sm:$0xff]
        %v212 = vld [vmem:[%s163 + $0x98] sm:$0xff]
        %v213 = vld [vmem:[%s163 + $0xa0] sm:$0xff]
        %v214 = vld [vmem:[%s163 + $0xa8] sm:$0xff]
        %v215 = vld [vmem:[%s163 + $0xb0] sm:$0xff]
        %v216 = vld [vmem:[%s163 + $0xb8] sm:$0xff]
        %v217 = vld [vmem:[%s163 + $0xc0] sm:$0xff]
        %v218 = vld [vmem:[%s163 + $0xc8] sm:$0xff]
        %v219 = vld [vmem:[%s163 + $0xd0] sm:$0xff]
        %v220 = vld [vmem:[%s163 + $0xd8] sm:$0xff]
        %v221 = vld [vmem:[%s163 + $0xe0] sm:$0xff]
        %v222 = vld [vmem:[%s163 + $0xe8] sm:$0xff]
        %v223 = vld [vmem:[%s163 + $0xf0] sm:$0xff]
        %v224 = vld [vmem:[%s163 + $0xf8] sm:$0xff]
        %v225 = vld [vmem:[%s1] sm:$0xff]
        %v226 = vld [vmem:[%s1 + $0x8] sm:$0xff]
        %v227 = vld [vmem:[%s1 + $0x10] sm:$0xff]
        %v228 = vld [vmem:[%s1 + $0x18] sm:$0xff]
        %v229 = vld [vmem:[%s2] sm:$0x1]
        %v231 = vlaneseq
        %v232 = vshrl.u32 %v231, 7
        %v233 = vsub.s32 0, %v232
        %v234 = vrot.slane %v229, %v233
        %vm236 = vcmask 261120
        %v238 = vsel %vm236, %v193, 0
        %v241 = vsel %vm236, %v194, 0
        %v244 = vsel %vm236, %v195, 0
        %v247 = vsel %vm236, %v196, 0
        %v250 = vsel %vm236, %v197, 0
        %v253 = vsel %vm236, %v198, 0
        %v256 = vsel %vm236, %v199, 0
        %v259 = vsel %vm236, %v200, 0
        %v262 = vsel %vm236, %v201, 0
        %v265 = vsel %vm236, %v202, 0
        %v268 = vsel %vm236, %v203, 0
        %v271 = vsel %vm236, %v204, 0
        %v274 = vsel %vm236, %v205, 0
        %v277 = vsel %vm236, %v206, 0
        %v280 = vsel %vm236, %v207, 0
        %v283 = vsel %vm236, %v208, 0
        %v286 = vsel %vm236, %v209, 0
        %v289 = vsel %vm236, %v210, 0
        %v292 = vsel %vm236, %v211, 0
        %v295 = vsel %vm236, %v212, 0
        %v298 = vsel %vm236, %v213, 0
        %v301 = vsel %vm236, %v214, 0
        %v304 = vsel %vm236, %v215, 0
        %v307 = vsel %vm236, %v216, 0
        %v310 = vsel %vm236, %v217, 0
        %v313 = vsel %vm236, %v218, 0
        %v316 = vsel %vm236, %v219, 0
        %v319 = vsel %vm236, %v220, 0
        %v322 = vsel %vm236, %v221, 0
        %v325 = vsel %vm236, %v222, 0
        %v328 = vsel %vm236, %v223, 0
        %v331 = vsel %vm236, %v224, 0
        %333 = vmatprep.subr.mxu0 0.0
        %334 = vmatpush1.msra.mxu0 %v225
        %335 = vmatprep.subr.mxu0 0.0
        %336 = vmatpush1.msra.mxu0 %v226
        %337 = vmatprep.subr.mxu0 0.0
        %338 = vmatpush1.msra.mxu0 %v227
        %339 = vmatprep.subr.mxu0 0.0
        %340 = vmatpush1.msra.mxu0 %v228
        %341 = vmatprep.subr.mxu0 0.0
        %342 = vmatpush1.msra.mxu0 0.0
        %343 = vmatprep.subr.mxu0 0.0
        %344 = vmatpush1.msra.mxu0 0.0
        %345 = vmatprep.subr.mxu0 0.0
        %346 = vmatpush1.msra.mxu0 0.0
        %347 = vmatprep.subr.mxu0 0.0
        %348 = vmatpush1.msra.mxu0 0.0
        %349 = vmatprep.subr.mxu0 0.0
        %350 = vmatpush1.msra.mxu0 0.0
        %351 = vmatprep.subr.mxu0 0.0
        %352 = vmatpush1.msra.mxu0 0.0
        %353 = vmatprep.subr.mxu0 0.0
        %354 = vmatpush1.msra.mxu0 0.0
        %355 = vmatprep.subr.mxu0 0.0
        %356 = vmatpush1.msra.mxu0 0.0
        %357 = vmatprep.subr.mxu0 0.0
        %358 = vmatpush1.msra.mxu0 0.0
        %359 = vmatprep.subr.mxu0 0.0
        %360 = vmatpush1.msra.mxu0 0.0
        %361 = vmatprep.subr.mxu0 0.0
        %362 = vmatpush1.msra.mxu0 0.0
        %363 = vmatprep.subr.mxu0 0.0
        %364 = vmatpush1.msra.mxu0 0.0
        %365 = vmatprep.subr.mxu0 0.0
        %366 = vmatpush1.msra.mxu0 0.0
        %367 = vmatprep.subr.mxu0 0.0
        %368 = vmatpush1.msra.mxu0 0.0
        %369 = vmatprep.subr.mxu0 0.0
        %370 = vmatpush1.msra.mxu0 0.0
        %371 = vmatprep.subr.mxu0 0.0
        %372 = vmatpush1.msra.mxu0 0.0
        %373 = vmatprep.subr.mxu0 0.0
        %374 = vmatpush1.msra.mxu0 0.0
        %375 = vmatprep.subr.mxu0 0.0
        %376 = vmatpush1.msra.mxu0 0.0
        %377 = vmatprep.subr.mxu0 0.0
        %378 = vmatpush1.msra.mxu0 0.0
        %379 = vmatprep.subr.mxu0 0.0
        %380 = vmatpush1.msra.mxu0 0.0
        %381 = vmatprep.subr.mxu0 0.0
        %382 = vmatpush1.msra.mxu0 0.0
        %383 = vmatprep.subr.mxu0 0.0
        %384 = vmatpush1.msra.mxu0 0.0
        %385 = vmatprep.subr.mxu0 0.0
        %386 = vmatpush1.msra.mxu0 0.0
        %387 = vmatprep.subr.mxu0 0.0
        %388 = vmatpush1.msra.mxu0 0.0
        %389 = vmatprep.subr.mxu0 0.0
        %390 = vmatpush1.msra.mxu0 0.0
        %391 = vmatprep.subr.mxu0 0.0
        %392 = vmatpush1.msra.mxu0 0.0
        %393 = vmatprep.subr.mxu0 0.0
        %394 = vmatpush1.msra.mxu0 0.0
        %395 = vmatprep.subr.mxu0 0.0
        %396 = vmatpush1.msra.mxu0 0.0
        %397 = vmatprep.mubr.f32.mxu0 0.0
        %398 = vmatmul.mubr.f32.gmra.mrb[0].mxu0 %v238
        %v399 = vpop.f32.mrb[0].mxu0
        %v400 = vadd.f32 %v234, %v399
        %v401 = vpop.f32.mrb[0].mxu0
        %402 = vmatprep.mubr.f32.mxu0 0.0
        %403 = vmatmul.mubr.f32.gmra.mrb[0].mxu0 %v241
        %v404 = vpop.f32.mrb[0].mxu0
        %v405 = vadd.f32 %v234, %v404
        %v406 = vpop.f32.mrb[0].mxu0
        %407 = vmatprep.mubr.f32.mxu0 0.0
        %408 = vmatmul.mubr.f32.gmra.mrb[0].mxu0 %v244
        %v409 = vpop.f32.mrb[0].mxu0
        %v410 = vadd.f32 %v234, %v409
        %v411 = vpop.f32.mrb[0].mxu0
        %412 = vmatprep.mubr.f32.mxu0 0.0
        %413 = vmatmul.mubr.f32.gmra.mrb[0].mxu0 %v247
        %v414 = vpop.f32.mrb[0].mxu0
        %v415 = vadd.f32 %v234, %v414
        %v416 = vpop.f32.mrb[0].mxu0
        %417 = vmatprep.mubr.f32.mxu0 0.0
        %418 = vmatmul.mubr.f32.gmra.mrb[0].mxu0 %v250
        %v419 = vpop.f32.mrb[0].mxu0
        %v420 = vadd.f32 %v234, %v419
        %v421 = vpop.f32.mrb[0].mxu0
        %422 = vmatprep.mubr.f32.mxu0 0.0
        %423 = vmatmul.mubr.f32.gmra.mrb[0].mxu0 %v253
        %v424 = vpop.f32.mrb[0].mxu0
        %v425 = vadd.f32 %v234, %v424
        %v426 = vpop.f32.mrb[0].mxu0
        %427 = vmatprep.mubr.f32.mxu0 0.0
        %428 = vmatmul.mubr.f32.gmra.mrb[0].mxu0 %v256
        %v429 = vpop.f32.mrb[0].mxu0
        %v430 = vadd.f32 %v234, %v429
        %v431 = vpop.f32.mrb[0].mxu0
        %432 = vmatprep.mubr.f32.mxu0 0.0
        %433 = vmatmul.mubr.f32.gmra.mrb[0].mxu0 %v259
        %v434 = vpop.f32.mrb[0].mxu0
        %v435 = vadd.f32 %v234, %v434
        %v436 = vpop.f32.mrb[0].mxu0
        %437 = vmatprep.mubr.f32.mxu0 0.0
        %438 = vmatmul.mubr.f32.gmra.mrb[0].mxu0 %v262
        %v439 = vpop.f32.mrb[0].mxu0
        %v440 = vadd.f32 %v234, %v439
        %v441 = vpop.f32.mrb[0].mxu0
        %442 = vmatprep.mubr.f32.mxu0 0.0
        %443 = vmatmul.mubr.f32.gmra.mrb[0].mxu0 %v265
        %v444 = vpop.f32.mrb[0].mxu0
        %v445 = vadd.f32 %v234, %v444
        %v446 = vpop.f32.mrb[0].mxu0
        %447 = vmatprep.mubr.f32.mxu0 0.0
        %448 = vmatmul.mubr.f32.gmra.mrb[0].mxu0 %v268
        %v449 = vpop.f32.mrb[0].mxu0
        %v450 = vadd.f32 %v234, %v449
        %v451 = vpop.f32.mrb[0].mxu0
        %452 = vmatprep.mubr.f32.mxu0 0.0
        %453 = vmatmul.mubr.f32.gmra.mrb[0].mxu0 %v271
        %v454 = vpop.f32.mrb[0].mxu0
        %v455 = vadd.f32 %v234, %v454
        %v456 = vpop.f32.mrb[0].mxu0
        %457 = vmatprep.mubr.f32.mxu0 0.0
        %458 = vmatmul.mubr.f32.gmra.mrb[0].mxu0 %v274
        %v459 = vpop.f32.mrb[0].mxu0
        %v460 = vadd.f32 %v234, %v459
        %v461 = vpop.f32.mrb[0].mxu0
        %462 = vmatprep.mubr.f32.mxu0 0.0
        %463 = vmatmul.mubr.f32.gmra.mrb[0].mxu0 %v277
        %v464 = vpop.f32.mrb[0].mxu0
        %v465 = vadd.f32 %v234, %v464
        %v466 = vpop.f32.mrb[0].mxu0
        %467 = vmatprep.mubr.f32.mxu0 0.0
        %468 = vmatmul.mubr.f32.gmra.mrb[0].mxu0 %v280
        %v469 = vpop.f32.mrb[0].mxu0
        %v470 = vadd.f32 %v234, %v469
        %v471 = vpop.f32.mrb[0].mxu0
        %472 = vmatprep.mubr.f32.mxu0 0.0
        %473 = vmatmul.mubr.f32.gmra.mrb[0].mxu0 %v283
        %v474 = vpop.f32.mrb[0].mxu0
        %v475 = vadd.f32 %v234, %v474
        %v476 = vpop.f32.mrb[0].mxu0
        %477 = vmatprep.mubr.f32.mxu0 0.0
        %478 = vmatmul.mubr.f32.gmra.mrb[0].mxu0 %v286
        %v479 = vpop.f32.mrb[0].mxu0
        %v480 = vadd.f32 %v234, %v479
        %v481 = vpop.f32.mrb[0].mxu0
        %482 = vmatprep.mubr.f32.mxu0 0.0
        %483 = vmatmul.mubr.f32.gmra.mrb[0].mxu0 %v289
        %v484 = vpop.f32.mrb[0].mxu0
        %v485 = vadd.f32 %v234, %v484
        %v486 = vpop.f32.mrb[0].mxu0
        %487 = vmatprep.mubr.f32.mxu0 0.0
        %488 = vmatmul.mubr.f32.gmra.mrb[0].mxu0 %v292
        %v489 = vpop.f32.mrb[0].mxu0
        %v490 = vadd.f32 %v234, %v489
        %v491 = vpop.f32.mrb[0].mxu0
        %492 = vmatprep.mubr.f32.mxu0 0.0
        %493 = vmatmul.mubr.f32.gmra.mrb[0].mxu0 %v295
        %v494 = vpop.f32.mrb[0].mxu0
        %v495 = vadd.f32 %v234, %v494
        %v496 = vpop.f32.mrb[0].mxu0
        %497 = vmatprep.mubr.f32.mxu0 0.0
        %498 = vmatmul.mubr.f32.gmra.mrb[0].mxu0 %v298
        %v499 = vpop.f32.mrb[0].mxu0
        %v500 = vadd.f32 %v234, %v499
        %v501 = vpop.f32.mrb[0].mxu0
        %502 = vmatprep.mubr.f32.mxu0 0.0
        %503 = vmatmul.mubr.f32.gmra.mrb[0].mxu0 %v301
        %v504 = vpop.f32.mrb[0].mxu0
        %v505 = vadd.f32 %v234, %v504
        %v506 = vpop.f32.mrb[0].mxu0
        %507 = vmatprep.mubr.f32.mxu0 0.0
        %508 = vmatmul.mubr.f32.gmra.mrb[0].mxu0 %v304
        %v509 = vpop.f32.mrb[0].mxu0
        %v510 = vadd.f32 %v234, %v509
        %v511 = vpop.f32.mrb[0].mxu0
        %512 = vmatprep.mubr.f32.mxu0 0.0
        %513 = vmatmul.mubr.f32.gmra.mrb[0].mxu0 %v307
        %v514 = vpop.f32.mrb[0].mxu0
        %v515 = vadd.f32 %v234, %v514
        %v516 = vpop.f32.mrb[0].mxu0
        %517 = vmatprep.mubr.f32.mxu0 0.0
        %518 = vmatmul.mubr.f32.gmra.mrb[0].mxu0 %v310
        %v519 = vpop.f32.mrb[0].mxu0
        %v520 = vadd.f32 %v234, %v519
        %v521 = vpop.f32.mrb[0].mxu0
        %522 = vmatprep.mubr.f32.mxu0 0.0
        %523 = vmatmul.mubr.f32.gmra.mrb[0].mxu0 %v313
        %v524 = vpop.f32.mrb[0].mxu0
        %v525 = vadd.f32 %v234, %v524
        %v526 = vpop.f32.mrb[0].mxu0
        %527 = vmatprep.mubr.f32.mxu0 0.0
        %528 = vmatmul.mubr.f32.gmra.mrb[0].mxu0 %v316
        %v529 = vpop.f32.mrb[0].mxu0
        %v530 = vadd.f32 %v234, %v529
        %v531 = vpop.f32.mrb[0].mxu0
        %532 = vmatprep.mubr.f32.mxu0 0.0
        %533 = vmatmul.mubr.f32.gmra.mrb[0].mxu0 %v319
        %v534 = vpop.f32.mrb[0].mxu0
        %v535 = vadd.f32 %v234, %v534
        %v536 = vpop.f32.mrb[0].mxu0
        %537 = vmatprep.mubr.f32.mxu0 0.0
        %538 = vmatmul.mubr.f32.gmra.mrb[0].mxu0 %v322
        %v539 = vpop.f32.mrb[0].mxu0
        %v540 = vadd.f32 %v234, %v539
        %v541 = vpop.f32.mrb[0].mxu0
        %542 = vmatprep.mubr.f32.mxu0 0.0
        %543 = vmatmul.mubr.f32.gmra.mrb[0].mxu0 %v325
        %v544 = vpop.f32.mrb[0].mxu0
        %v545 = vadd.f32 %v234, %v544
        %v546 = vpop.f32.mrb[0].mxu0
        %547 = vmatprep.mubr.f32.mxu0 0.0
        %548 = vmatmul.mubr.f32.gmra.mrb[0].mxu0 %v328
        %v549 = vpop.f32.mrb[0].mxu0
        %v550 = vadd.f32 %v234, %v549
        %v551 = vpop.f32.mrb[0].mxu0
        %552 = vmatprep.mubr.f32.mxu0 0.0
        %553 = vmatmul.mubr.f32.gmra.mrb[0].mxu0 %v331
        %v554 = vpop.f32.mrb[0].mxu0
        %v555 = vadd.f32 %v234, %v554
        %v556 = vpop.f32.mrb[0].mxu0
        %557 = vdwg.mxu0
        %vm558 = vcmask 785408
        %559 = vst.msk [vmem:[%s191] sm:$0xff] %vm558, %v400
        %560 = vst.msk [vmem:[%s191 + $0x8] sm:$0xff] %vm558, %v405
        %561 = vst.msk [vmem:[%s191 + $0x10] sm:$0xff] %vm558, %v410
        %562 = vst.msk [vmem:[%s191 + $0x18] sm:$0xff] %vm558, %v415
        %563 = vst.msk [vmem:[%s191 + $0x20] sm:$0xff] %vm558, %v420
        %564 = vst.msk [vmem:[%s191 + $0x28] sm:$0xff] %vm558, %v425
        %565 = vst.msk [vmem:[%s191 + $0x30] sm:$0xff] %vm558, %v430
        %566 = vst.msk [vmem:[%s191 + $0x38] sm:$0xff] %vm558, %v435
        %567 = vst.msk [vmem:[%s191 + $0x40] sm:$0xff] %vm558, %v440
        %568 = vst.msk [vmem:[%s191 + $0x48] sm:$0xff] %vm558, %v445
        %569 = vst.msk [vmem:[%s191 + $0x50] sm:$0xff] %vm558, %v450
        %570 = vst.msk [vmem:[%s191 + $0x58] sm:$0xff] %vm558, %v455
        %571 = vst.msk [vmem:[%s191 + $0x60] sm:$0xff] %vm558, %v460
        %572 = vst.msk [vmem:[%s191 + $0x68] sm:$0xff] %vm558, %v465
        %573 = vst.msk [vmem:[%s191 + $0x70] sm:$0xff] %vm558, %v470
        %574 = vst.msk [vmem:[%s191 + $0x78] sm:$0xff] %vm558, %v475
        %575 = vst.msk [vmem:[%s191 + $0x80] sm:$0xff] %vm558, %v480
        %576 = vst.msk [vmem:[%s191 + $0x88] sm:$0xff] %vm558, %v485
        %577 = vst.msk [vmem:[%s191 + $0x90] sm:$0xff] %vm558, %v490
        %578 = vst.msk [vmem:[%s191 + $0x98] sm:$0xff] %vm558, %v495
        %579 = vst.msk [vmem:[%s191 + $0xa0] sm:$0xff] %vm558, %v500
        %580 = vst.msk [vmem:[%s191 + $0xa8] sm:$0xff] %vm558, %v505
        %581 = vst.msk [vmem:[%s191 + $0xb0] sm:$0xff] %vm558, %v510
        %582 = vst.msk [vmem:[%s191 + $0xb8] sm:$0xff] %vm558, %v515
        %583 = vst.msk [vmem:[%s191 + $0xc0] sm:$0xff] %vm558, %v520
        %584 = vst.msk [vmem:[%s191 + $0xc8] sm:$0xff] %vm558, %v525
        %585 = vst.msk [vmem:[%s191 + $0xd0] sm:$0xff] %vm558, %v530
        %586 = vst.msk [vmem:[%s191 + $0xd8] sm:$0xff] %vm558, %v535
        %587 = vst.msk [vmem:[%s191 + $0xe0] sm:$0xff] %vm558, %v540
        %588 = vst.msk [vmem:[%s191 + $0xe8] sm:$0xff] %vm558, %v545
        %589 = vst.msk [vmem:[%s191 + $0xf0] sm:$0xff] %vm558, %v550
        %590 = vst.msk [vmem:[%s191 + $0xf8] sm:$0xff] %vm558, %v555
        %s591 = smul.u32 32, %s17
        %p592 = scmp.lt.s32.totalorder %s591, 63
        %s593 = scalar_select %p592, %s591, 63
        %s594 = smul.addr %s593, 8
        %s595 = scalar_lea.vmem %s3, %s594
        // Predicated region
        $region37: #{attention_forward.7} parent=31 // pred_check
          %p596 = pneg %p103
        $region38: #{attention_forward.7} parent=31 // pred_check_branch
          %598 = sbr.rel (%p596) target = $region40
        $region39: #{attention_forward.7} parent=31 // pred_region
          %s599 = smul.u32 32, %s17
        $region40: #{attention_forward.7} parent=31 // pred_fallthru
          _
      $region32: #{attention_forward.7} parent=5 // pred_fallthru
        _
      %p600 = scmp.le.s32.totalorder 2, %s12
      // Predicated region
      $region41: #{attention_forward.7} parent=5 // pred_check
        %p601 = pneg %p600
      $region42: #{attention_forward.7} parent=5 // pred_check_branch
        %603 = sbr.rel (%p601) target = $region44
      $region43: #{attention_forward.7} parent=5 // pred_region
        %s604 = ssub.s32 %s12, 2
        // Predicated region
        $region45: #{attention_forward.7} parent=43 // pred_check
          %p605 = pneg %p109
        $region46: #{attention_forward.7} parent=43 // pred_check_branch
          %607 = sbr.rel (%p605) target = $region48
        $region47: #{attention_forward.7} parent=43 // pred_region
          %s608 = smul.u32 32, %s18
          %p609 = scmp.lt.s32.totalorder %s608, 63
          %s610 = scalar_select %p609, %s608, 63
          %s611 = smul.addr %s610, 8
          %s612 = scalar_lea.vmem %s3, %s611
        $region48: #{attention_forward.7} parent=43 // pred_fallthru
          _
      $region44: #{attention_forward.7} parent=5 // pred_fallthru
        _
    $region6: #{attention_forward.7} parent=1 // loop_footer
      %s16 = sadd.s32 1, %s12
    $region7: #{attention_forward.7} parent=1 // loop_footer_branch
      %11 = sbr.rel target = $region3
    $region8: #{attention_forward.7} parent=1 // loop_exit
      _
    %613 = vsyncpa [#allocation3], 1
    %s614 = scalar_lea.sflag [#allocation3], 1
    %615 = vsyncpa %s614, 1

// kernel: attention_forward.8
$region0: #{attention_forward.8}
  #allocation0 [shape = 'u32[]', space=smem, size = 0x4, offset = 0x4, fixed_abs, tag = 'smem constant byte address 0x4 - core index']
  #allocation1 [shape = 'u32[144,128]{1,0:T(1,128)}', space=vmem, size = 0x12000, scoped, tag = 'internal scratch']
  %s0 = inlined_call_operand.vmem [shape: f32[2,18,18,96], index: 0, kind: input, shape index: {}]
  %s1 = inlined_call_operand.vmem [shape: f32[3,3,96], index: 1, kind: input, shape index: {}]
  %s2 = inlined_call_operand.vmem [shape: f32[1,96], index: 2, kind: input, shape index: {}]
  %s3 = inlined_call_operand.vmem [shape: f32[2,16,16,96], index: 3, kind: output, shape index: {}]
  %s4 = sld [smem:[#allocation0]]
  $region45: #{attention_forward.8} parent=0
    _
  %s6 = ssub.s32 1, %s4
  %s7 = scalar_select 0, %s6, %s4
  loop: start=0, step=1, limit=4
  $region2: #{attention_forward.8} parent=0 // loop_pre_header
    _
  $region3: #{attention_forward.8} parent=0 // loop_header
    %s9 = sphi 0, %s13
    %p10 = scmp.ge.s32.totalorder %s9, 4
    %s19 = sphi 0, %s21
    %s22 = sphi 0, %s19
    %s23 = sphi 0, %s22
    %s39 = sphi 0, %s23
    %s43 = sphi 0, %s43
    %s45 = sphi 0, %s43
    %s46 = sphi 0, %s45
    %s60 = sphi 0, %s46
    %s64 = sphi 0, %s64
    %s66 = sphi 0, %s64
    %s67 = sphi 0, %s66
    %s81 = sphi 0, %s67
    %s87 = sphi 0, %s89
    %s90 = sphi 0, %s87
    %s91 = sphi 0, %s90
    %s107 = sphi 0, %s91
  $region4: #{attention_forward.8} parent=0 // loop_header_branch
    %12 = sbr.rel (%p10) target = $region8
  $region5: #{attention_forward.8} parent=0 // loop_body
    %s14 = ssub.s32 %s9, 1
    %s15 = ssub.s32 %s9, 2
    %s16 = sadd.s32 %s9, 1
    %s17 = ssub.s32 %s9, %s16
    %p18 = scmp.eq.s32.totalorder %s17, 0
    %s20 = sadd.s32 %s19, 1
    %s21 = scalar_select %p18, %s19, %s20
    %p24 = pneg %p18
    %p25 = scmp.eq.s32.totalorder %s9, 1
    %p26 = por %p24, %p25
    %p27 = scmp.ne.s32.totalorder %s19, %s22
    %p28 = scmp.eq.s32.totalorder %s9, 0
    %p29 = por %p27, %p28
    %p30 = scmp.ne.s32.totalorder %s19, %s22
    %p31 = scmp.eq.s32.totalorder %s14, 1
    %p32 = por %p30, %p31
    %p33 = scmp.ne.s32.totalorder %s22, %s23
    %p34 = scmp.eq.s32.totalorder %s14, 0
    %p35 = por %p33, %p34
    %p36 = scmp.ne.s32.totalorder %s22, %s23
    %p37 = scmp.eq.s32.totalorder %s15, 1
    %p38 = por %p36, %p37
    %p40 = scmp.ne.s32.totalorder %s23, %s39
    %p41 = scmp.eq.s32.totalorder %s15, 0
    %p42 = por %p40, %p41
    %s44 = sadd.s32 %s43, 1
    %p47 = scmp.eq.s32.totalorder %s9, 1
    %p48 = scmp.ne.s32.totalorder %s43, %s45
    %p49 = scmp.eq.s32.totalorder %s9, 0
    %p50 = por %p48, %p49
    %p51 = scmp.ne.s32.totalorder %s43, %s45
    %p52 = scmp.eq.s32.totalorder %s14, 1
    %p53 = por %p51, %p52
    %p54 = scmp.ne.s32.totalorder %s45, %s46
    %p55 = scmp.eq.s32.totalorder %s14, 0
    %p56 = por %p54, %p55
    %p57 = scmp.ne.s32.totalorder %s45, %s46
    %p58 = scmp.eq.s32.totalorder %s15, 1
    %p59 = por %p57, %p58
    %p61 = scmp.ne.s32.totalorder %s46, %s60
    %p62 = scmp.eq.s32.totalorder %s15, 0
    %p63 = por %p61, %p62
    %s65 = sadd.s32 %s64, 1
    %p68 = scmp.eq.s32.totalorder %s9, 1
    %p69 = scmp.ne.s32.totalorder %s64, %s66
    %p70 = scmp.eq.s32.totalorder %s9, 0
    %p71 = por %p69, %p70
    %p72 = scmp.ne.s32.totalorder %s64, %s66
    %p73 = scmp.eq.s32.totalorder %s14, 1
    %p74 = por %p72, %p73
    %p75 = scmp.ne.s32.totalorder %s66, %s67
    %p76 = scmp.eq.s32.totalorder %s14, 0
    %p77 = por %p75, %p76
    %p78 = scmp.ne.s32.totalorder %s66, %s67
    %p79 = scmp.eq.s32.totalorder %s15, 1
    %p80 = por %p78, %p79
    %p82 = scmp.ne.s32.totalorder %s67, %s81
    %p83 = scmp.eq.s32.totalorder %s15, 0
    %p84 = por %p82, %p83
    %s85 = ssub.s32 %s9, %s16
    %p86 = scmp.eq.s32.totalorder %s85, 0
    %s88 = sadd.s32 %s87, 1
    %s89 = scalar_select %p86, %s87, %s88
    %p92 = pneg %p86
    %p93 = scmp.eq.s32.totalorder %s9, 1
    %p94 = por %p92, %p93
    %p95 = scmp.ne.s32.totalorder %s87, %s90
    %p96 = scmp.eq.s32.totalorder %s9, 0
    %p97 = por %p95, %p96
    %p98 = scmp.ne.s32.totalorder %s87, %s90
    %p99 = scmp.eq.s32.totalorder %s14, 1
    %p100 = por %p98, %p99
    %p101 = scmp.ne.s32.totalorder %s90, %s91
    %p102 = scmp.eq.s32.totalorder %s14, 0
    %p103 = por %p101, %p102
    %p104 = scmp.ne.s32.totalorder %s90, %s91
    %p105 = scmp.eq.s32.totalorder %s15, 1
    %p106 = por %p104, %p105
    %p108 = scmp.ne.s32.totalorder %s91, %s107
    %p109 = scmp.eq.s32.totalorder %s15, 0
    %p110 = por %p108, %p109
    %p111 = scmp.le.s32.totalorder 1, %s9
    %p112 = scmp.lt.s32.totalorder %s9, 3
    %p113 = pnand %p111, %p112
    %p114 = pneg %p113
    // Predicated region
    $region9: #{attention_forward.8} parent=5 // pred_check
      _
    $region10: #{attention_forward.8} parent=5 // pred_check_branch
      %116 = sbr.rel (%p113) target = $region12
    $region11: #{attention_forward.8} parent=5 // pred_region
      %s117 = ssub.s32 %s9, 1
      // Predicated region
      $region13: #{attention_forward.8} parent=11 // pred_check
        %p118 = pneg %p56
      $region14: #{attention_forward.8} parent=11 // pred_check_branch
        %120 = sbr.rel (%p118) target = $region16
      $region15: #{attention_forward.8} parent=11 // pred_region
        _
      $region16: #{attention_forward.8} parent=11 // pred_fallthru
        _
      // Predicated region
      $region17: #{attention_forward.8} parent=11 // pred_check
        %p121 = pneg %p77
      $region18: #{attention_forward.8} parent=11 // pred_check_branch
        %123 = sbr.rel (%p121) target = $region20
      $region19: #{attention_forward.8} parent=11 // pred_region
        _
      $region20: #{attention_forward.8} parent=11 // pred_fallthru
        _
    $region12: #{attention_forward.8} parent=5 // pred_fallthru
      _
    %p124 = scmp.lt.s32.totalorder %s9, 2
    // Predicated region
    $region21: #{attention_forward.8} parent=5 // pred_check
      %p125 = pneg %p124
    $region22: #{attention_forward.8} parent=5 // pred_check_branch
      %127 = sbr.rel (%p125) target = $region24
    $region23: #{attention_forward.8} parent=5 // pred_region
      // Predicated region
      $region25: #{attention_forward.8} parent=23 // pred_check
        %p128 = pneg %p29
      $region26: #{attention_forward.8} parent=23 // pred_check_branch
        %130 = sbr.rel (%p128) target = $region28
      $region27: #{attention_forward.8} parent=23 // pred_region
        %p131 = scmp.lt.s32.totalorder %s9, 1
        %s132 = scalar_select %p131, %s9, 1
        %s133 = smul.addr %s132, 54
        %s134 = smul.addr %s133, 8
        %s135 = scalar_lea.vmem %s0, %s134
      $region28: #{attention_forward.8} parent=23 // pred_fallthru
        _
    $region24: #{attention_forward.8} parent=5 // pred_fallthru
      _
    %p136 = scmp.le.s32.totalorder 1, %s9
    %p137 = scmp.lt.s32.totalorder %s9, 3
    %p138 = pnand %p136, %p137
    %p139 = pneg %p138
    // Predicated region
    $region29: #{attention_forward.8} parent=5 // pred_check
      _
    $region30: #{attention_forward.8} parent=5 // pred_check_branch
      %141 = sbr.rel (%p138) target = $region32
    $region31: #{attention_forward.8} parent=5 // pred_region
      %s142 = ssub.s32 %s9, 1
      %p143 = scmp.lt.s32.totalorder %s14, 1
      %s144 = scalar_select %p143, %s14, 1
      %s145 = smul.addr %s144, 54
      %s146 = smul.addr %s145, 8
      %s147 = scalar_lea.vmem %s0, %s146
      %p148 = pneg %p35
      %p149 = pneg %p32
      %p150 = pneg %p56
      %p151 = pneg %p53
      %p152 = pneg %p77
      %p153 = pneg %p74
      %p154 = pneg %p103
      %p155 = pneg %p100
      %p156 = scmp.lt.s32.totalorder %s14, 1
      %s157 = scalar_select %p156, %s14, 1
      %s158 = smul.addr %s157, 32
      %s159 = smul.addr %s158, 8
      %s160 = scalar_lea.vmem %s3, %s159
      %p161 = scmp.lt.s32.totalorder %s14, 1
      %s162 = scalar_select %p161, %s14, 1
      %s163 = smul.addr %s162, 54
      %s164 = smul.addr %s163, 8
      %s165 = scalar_lea.vmem %s0, %s164
      %p166 = scmp.lt.s32.totalorder %s14, 1
      %s167 = scalar_select %p166, %s14, 1
      %s168 = smul.addr %s167, 32
      %s169 = smul.addr %s168, 8
      %s170 = scalar_lea.vmem %s3, %s169
      %v171 = vld [vmem:[%s165] sm:$0xff]
      %v172 = vld [vmem:[%s165 + $0x8] sm:$0xff]
      %v173 = vld [vmem:[%s165 + $0x10] sm:$0x3]
      %v174 = vld [vmem:[%s165 + $0x18] sm:$0xff]
      %v175 = vld [vmem:[%s165 + $0x20] sm:$0xff]
      %v176 = vld [vmem:[%s165 + $0x28] sm:$0x3]
      %v177 = vld [vmem:[%s165 + $0x30] sm:$0xff]
      %v178 = vld [vmem:[%s165 + $0x38] sm:$0xff]
      %v179 = vld [vmem:[%s165 + $0x40] sm:$0x3]
      %v180 = vld [vmem:[%s165 + $0x48] sm:$0xff]
      %v181 = vld [vmem:[%s165 + $0x50] sm:$0xff]
      %v182 = vld [vmem:[%s165 + $0x58] sm:$0x3]
      %v183 = vld [vmem:[%s165 + $0x60] sm:$0xff]
      %v184 = vld [vmem:[%s165 + $0x68] sm:$0xff]
      %v185 = vld [vmem:[%s165 + $0x70] sm:$0x3]
      %v186 = vld [vmem:[%s165 + $0x78] sm:$0xff]
      %v187 = vld [vmem:[%s165 + $0x80] sm:$0xff]
      %v188 = vld [vmem:[%s165 + $0x88] sm:$0x3]
      %v189 = vld [vmem:[%s165 + $0x90] sm:$0xff]
      %v190 = vld [vmem:[%s165 + $0x98] sm:$0xff]
      %v191 = vld [vmem:[%s165 + $0xa0] sm:$0x3]
      %v192 = vld [vmem:[%s165 + $0xa8] sm:$0xff]
      %v193 = vld [vmem:[%s165 + $0xb0] sm:$0xff]
      %v194 = vld [vmem:[%s165 + $0xb8] sm:$0x3]
      %v195 = vld [vmem:[%s165 + $0xc0] sm:$0xff]
      %v196 = vld [vmem:[%s165 + $0xc8] sm:$0xff]
      %v197 = vld [vmem:[%s165 + $0xd0] sm:$0x3]
      %v198 = vld [vmem:[%s165 + $0xd8] sm:$0xff]
      %v199 = vld [vmem:[%s165 + $0xe0] sm:$0xff]
      %v200 = vld [vmem:[%s165 + $0xe8] sm:$0x3]
      %v201 = vld [vmem:[%s165 + $0xf0] sm:$0xff]
      %v202 = vld [vmem:[%s165 + $0xf8] sm:$0xff]
      %v203 = vld [vmem:[%s165 + $0x100] sm:$0x3]
      %v204 = vld [vmem:[%s165 + $0x108] sm:$0xff]
      %v205 = vld [vmem:[%s165 + $0x110] sm:$0xff]
      %v206 = vld [vmem:[%s165 + $0x118] sm:$0x3]
      %v207 = vld [vmem:[%s165 + $0x120] sm:$0xff]
      %v208 = vld [vmem:[%s165 + $0x128] sm:$0xff]
      %v209 = vld [vmem:[%s165 + $0x130] sm:$0x3]
      %v210 = vld [vmem:[%s165 + $0x138] sm:$0xff]
      %v211 = vld [vmem:[%s165 + $0x140] sm:$0xff]
      %v212 = vld [vmem:[%s165 + $0x148] sm:$0x3]
      %v213 = vld [vmem:[%s165 + $0x150] sm:$0xff]
      %v214 = vld [vmem:[%s165 + $0x158] sm:$0xff]
      %v215 = vld [vmem:[%s165 + $0x160] sm:$0x3]
      %v216 = vld [vmem:[%s165 + $0x168] sm:$0xff]
      %v217 = vld [vmem:[%s165 + $0x170] sm:$0xff]
      %v218 = vld [vmem:[%s165 + $0x178] sm:$0x3]
      %v219 = vld [vmem:[%s165 + $0x180] sm:$0xff]
      %v220 = vld [vmem:[%s165 + $0x188] sm:$0xff]
      %v221 = vld [vmem:[%s165 + $0x190] sm:$0x3]
      %v222 = vld [vmem:[%s165 + $0x198] sm:$0xff]
      %v223 = vld [vmem:[%s165 + $0x1a0] sm:$0xff]
      %v224 = vld [vmem:[%s165 + $0x1a8] sm:$0x3]
      %v225 = vld [vmem:[%s1] sm:$0x7]
      %v226 = vld [vmem:[%s1 + $0x4] sm:$0x7]
      %v227 = vld [vmem:[%s1 + $0x8] sm:$0x7]
      %v228 = vlaneseq
      %v229 = vshrl.u32 %v228, 7
      %v230 = vsub.s32 0, %v229
      %v231 = vrot.slane %v225, %v230
      %v232 = vmul.f32 %v171, %v231
      %v233 = vmul.f32 %v172, %v231
      %v234 = vmul.f32 %v174, %v231
      %v235 = vmul.f32 %v175, %v231
      %v236 = vmul.f32 %v177, %v231
      %v237 = vmul.f32 %v178, %v231
      %v238 = vmul.f32 %v180, %v231
      %v239 = vmul.f32 %v181, %v231
      %v240 = vmul.f32 %v183, %v231
      %v241 = vmul.f32 %v184, %v231
      %v242 = vmul.f32 %v186, %v231
      %v243 = vmul.f32 %v187, %v231
      %v244 = vmul.f32 %v189, %v231
      %v245 = vmul.f32 %v190, %v231
      %v246 = vmul.f32 %v192, %v231
      %v247 = vmul.f32 %v193, %v231
      %v248 = vmul.f32 %v195, %v231
      %v249 = vmul.f32 %v196, %v231
      %v250 = vmul.f32 %v198, %v231
      %v251 = vmul.f32 %v199, %v231
      %v252 = vmul.f32 %v201, %v231
      %v253 = vmul.f32 %v202, %v231
      %v254 = vmul.f32 %v204, %v231
      %v255 = vmul.f32 %v205, %v231
      %v256 = vmul.f32 %v207, %v231
      %v257 = vmul.f32 %v208, %v231
      %v258 = vmul.f32 %v210, %v231
      %v259 = vmul.f32 %v211, %v231
      %v260 = vmul.f32 %v213, %v231
      %v261 = vmul.f32 %v214, %v231
      %v262 = vmul.f32 %v216, %v231
      %v263 = vmul.f32 %v217, %v231
      %v264 = vadd.f32 %v232, 0.0
      %v265 = vadd.f32 %v233, 0.0
      %v266 = vadd.f32 %v234, 0.0
      %v267 = vadd.f32 %v235, 0.0
      %v268 = vadd.f32 %v236, 0.0
      %v269 = vadd.f32 %v237, 0.0
      %v270 = vadd.f32 %v238, 0.0
      %v271 = vadd.f32 %v239, 0.0
      %v272 = vadd.f32 %v240, 0.0
      %v273 = vadd.f32 %v241, 0.0
      %v274 = vadd.f32 %v242, 0.0
      %v275 = vadd.f32 %v243, 0.0
      %v276 = vadd.f32 %v244, 0.0
      %v277 = vadd.f32 %v245, 0.0
      %v278 = vadd.f32 %v246, 0.0
      %v279 = vadd.f32 %v247, 0.0
      %v280 = vadd.f32 %v248, 0.0
      %v281 = vadd.f32 %v249, 0.0
      %v282 = vadd.f32 %v250, 0.0
      %v283 = vadd.f32 %v251, 0.0
      %v284 = vadd.f32 %v252, 0.0
      %v285 = vadd.f32 %v253, 0.0
      %v286 = vadd.f32 %v254, 0.0
      %v287 = vadd.f32 %v255, 0.0
      %v288 = vadd.f32 %v256, 0.0
      %v289 = vadd.f32 %v257, 0.0
      %v290 = vadd.f32 %v258, 0.0
      %v291 = vadd.f32 %v259, 0.0
      %v292 = vadd.f32 %v260, 0.0
      %v293 = vadd.f32 %v261, 0.0
      %v294 = vadd.f32 %v262, 0.0
      %v295 = vadd.f32 %v263, 0.0
      %v296 = vlaneseq
      %v297 = vshrl.u32 %v296, 7
      %v298 = vsub.s32 1, %v297
      %v299 = vrot.slane %v225, %v298
      %v300 = vmul.f32 %v171, %v299
      %v301 = vmul.f32 %v172, %v299
      %v302 = vmul.f32 %v173, %v299
      %v303 = vmul.f32 %v174, %v299
      %v304 = vmul.f32 %v175, %v299
      %v305 = vmul.f32 %v176, %v299
      %v306 = vmul.f32 %v177, %v299
      %v307 = vmul.f32 %v178, %v299
      %v308 = vmul.f32 %v179, %v299
      %v309 = vmul.f32 %v180, %v299
      %v310 = vmul.f32 %v181, %v299
      %v311 = vmul.f32 %v182, %v299
      %v312 = vmul.f32 %v183, %v299
      %v313 = vmul.f32 %v184, %v299
      %v314 = vmul.f32 %v185, %v299
      %v315 = vmul.f32 %v186, %v299
      %v316 = vmul.f32 %v187, %v299
      %v317 = vmul.f32 %v188, %v299
      %v318 = vmul.f32 %v189, %v299
      %v319 = vmul.f32 %v190, %v299
      %v320 = vmul.f32 %v191, %v299
      %v321 = vmul.f32 %v192, %v299
      %v322 = vmul.f32 %v193, %v299
      %v323 = vmul.f32 %v194, %v299
      %v324 = vmul.f32 %v195, %v299
      %v325 = vmul.f32 %v196, %v299
      %v326 = vmul.f32 %v197, %v299
      %v327 = vmul.f32 %v198, %v299
      %v328 = vmul.f32 %v199, %v299
      %v329 = vmul.f32 %v200, %v299
      %v330 = vmul.f32 %v201, %v299
      %v331 = vmul.f32 %v202, %v299
      %v332 = vmul.f32 %v203, %v299
      %v333 = vmul.f32 %v204, %v299
      %v334 = vmul.f32 %v205, %v299
      %v335 = vmul.f32 %v206, %v299
      %v336 = vmul.f32 %v207, %v299
      %v337 = vmul.f32 %v208, %v299
      %v338 = vmul.f32 %v209, %v299
      %v339 = vmul.f32 %v210, %v299
      %v340 = vmul.f32 %v211, %v299
      %v341 = vmul.f32 %v212, %v299
      %v342 = vmul.f32 %v213, %v299
      %v343 = vmul.f32 %v214, %v299
      %v344 = vmul.f32 %v215, %v299
      %v345 = vmul.f32 %v216, %v299
      %v346 = vmul.f32 %v217, %v299
      %v347 = vmul.f32 %v218, %v299
      %vm396 = vcmask 1046528
      %v397 = vrot.slane %v300, 1
      %v398 = vrot.slane %v301, 1
      %v399 = vsel %vm396, %v397, %v398
      %v400 = vrot.slane %v302, 1
      %v401 = vsel %vm396, %v398, %v400
      %v402 = vrot.slane %v303, 1
      %v403 = vrot.slane %v304, 1
      %v404 = vsel %vm396, %v402, %v403
      %v405 = vrot.slane %v305, 1
      %v406 = vsel %vm396, %v403, %v405
      %v407 = vrot.slane %v306, 1
      %v408 = vrot.slane %v307, 1
      %v409 = vsel %vm396, %v407, %v408
      %v410 = vrot.slane %v308, 1
      %v411 = vsel %vm396, %v408, %v410
      %v412 = vrot.slane %v309, 1
      %v413 = vrot.slane %v310, 1
      %v414 = vsel %vm396, %v412, %v413
      %v415 = vrot.slane %v311, 1
      %v416 = vsel %vm396, %v413, %v415
      %v417 = vrot.slane %v312, 1
      %v418 = vrot.slane %v313, 1
      %v419 = vsel %vm396, %v417, %v418
      %v420 = vrot.slane %v314, 1
      %v421 = vsel %vm396, %v418, %v420
      %v422 = vrot.slane %v315, 1
      %v423 = vrot.slane %v316, 1
      %v424 = vsel %vm396, %v422, %v423
      %v425 = vrot.slane %v317, 1
      %v426 = vsel %vm396, %v423, %v425
      %v427 = vrot.slane %v318, 1
      %v428 = vrot.slane %v319, 1
      %v429 = vsel %vm396, %v427, %v428
      %v430 = vrot.slane %v320, 1
      %v431 = vsel %vm396, %v428, %v430
      %v432 = vrot.slane %v321, 1
      %v433 = vrot.slane %v322, 1
      %v434 = vsel %vm396, %v432, %v433
      %v435 = vrot.slane %v323, 1
      %v436 = vsel %vm396, %v433, %v435
      %v437 = vrot.slane %v324, 1
      %v438 = vrot.slane %v325, 1
      %v439 = vsel %vm396, %v437, %v438
      %v440 = vrot.slane %v326, 1
      %v441 = vsel %vm396, %v438, %v440
      %v442 = vrot.slane %v327, 1
      %v443 = vrot.slane %v328, 1
      %v444 = vsel %vm396, %v442, %v443
      %v445 = vrot.slane %v329, 1
      %v446 = vsel %vm396, %v443, %v445
      %v447 = vrot.slane %v330, 1
      %v448 = vrot.slane %v331, 1
      %v449 = vsel %vm396, %v447, %v448
      %v450 = vrot.slane %v332, 1
      %v451 = vsel %vm396, %v448, %v450
      %v452 = vrot.slane %v333, 1
      %v453 = vrot.slane %v334, 1
      %v454 = vsel %vm396, %v452, %v453
      %v455 = vrot.slane %v335, 1
      %v456 = vsel %vm396, %v453, %v455
      %v457 = vrot.slane %v336, 1
      %v458 = vrot.slane %v337, 1
      %v459 = vsel %vm396, %v457, %v458
      %v460 = vrot.slane %v338, 1
      %v461 = vsel %vm396, %v458, %v460
      %v462 = vrot.slane %v339, 1
      %v463 = vrot.slane %v340, 1
      %v464 = vsel %vm396, %v462, %v463
      %v465 = vrot.slane %v341, 1
      %v466 = vsel %vm396, %v463, %v465
      %v467 = vrot.slane %v342, 1
      %v468 = vrot.slane %v343, 1
      %v469 = vsel %vm396, %v467, %v468
      %v470 = vrot.slane %v344, 1
      %v471 = vsel %vm396, %v468, %v470
      %v472 = vrot.slane %v345, 1
      %v473 = vrot.slane %v346, 1
      %v474 = vsel %vm396, %v472, %v473
      %v475 = vrot.slane %v347, 1
      %v476 = vsel %vm396, %v473, %v475
      %v509 = vadd.f32 %v264, %v399
      %v510 = vadd.f32 %v265, %v401
      %v511 = vadd.f32 %v266, %v404
      %v512 = vadd.f32 %v267, %v406
      %v513 = vadd.f32 %v268, %v409
      %v514 = vadd.f32 %v269, %v411
      %v515 = vadd.f32 %v270, %v414
      %v516 = vadd.f32 %v271, %v416
      %v517 = vadd.f32 %v272, %v419
      %v518 = vadd.f32 %v273, %v421
      %v519 = vadd.f32 %v274, %v424
      %v520 = vadd.f32 %v275, %v426
      %v521 = vadd.f32 %v276, %v429
      %v522 = vadd.f32 %v277, %v431
      %v523 = vadd.f32 %v278, %v434
      %v524 = vadd.f32 %v279, %v436
      %v525 = vadd.f32 %v280, %v439
      %v526 = vadd.f32 %v281, %v441
      %v527 = vadd.f32 %v282, %v444
      %v528 = vadd.f32 %v283, %v446
      %v529 = vadd.f32 %v284, %v449
      %v530 = vadd.f32 %v285, %v451
      %v531 = vadd.f32 %v286, %v454
      %v532 = vadd.f32 %v287, %v456
      %v533 = vadd.f32 %v288, %v459
      %v534 = vadd.f32 %v289, %v461
      %v535 = vadd.f32 %v290, %v464
      %v536 = vadd.f32 %v291, %v466
      %v537 = vadd.f32 %v292, %v469
      %v538 = vadd.f32 %v293, %v471
      %v539 = vadd.f32 %v294, %v474
      %v540 = vadd.f32 %v295, %v476
      %v541 = vlaneseq
      %v542 = vshrl.u32 %v541, 7
      %v543 = vsub.s32 2, %v542
      %v544 = vrot.slane %v225, %v543
      %v545 = vmul.f32 %v171, %v544
      %v546 = vmul.f32 %v172, %v544
      %v547 = vmul.f32 %v173, %v544
      %v548 = vmul.f32 %v174, %v544
      %v549 = vmul.f32 %v175, %v544
      %v550 = vmul.f32 %v176, %v544
      %v551 = vmul.f32 %v177, %v544
      %v552 = vmul.f32 %v178, %v544
      %v553 = vmul.f32 %v179, %v544
      %v554 = vmul.f32 %v180, %v544
      %v555 = vmul.f32 %v181, %v544
      %v556 = vmul.f32 %v182, %v544
      %v557 = vmul.f32 %v183, %v544
      %v558 = vmul.f32 %v184, %v544
      %v559 = vmul.f32 %v185, %v544
      %v560 = vmul.f32 %v186, %v544
      %v561 = vmul.f32 %v187, %v544
      %v562 = vmul.f32 %v188, %v544
      %v563 = vmul.f32 %v189, %v544
      %v564 = vmul.f32 %v190, %v544
      %v565 = vmul.f32 %v191, %v544
      %v566 = vmul.f32 %v192, %v544
      %v567 = vmul.f32 %v193, %v544
      %v568 = vmul.f32 %v194, %v544
      %v569 = vmul.f32 %v195, %v544
      %v570 = vmul.f32 %v196, %v544
      %v571 = vmul.f32 %v197, %v544
      %v572 = vmul.f32 %v198, %v544
      %v573 = vmul.f32 %v199, %v544
      %v574 = vmul.f32 %v200, %v544
      %v575 = vmul.f32 %v201, %v544
      %v576 = vmul.f32 %v202, %v544
      %v577 = vmul.f32 %v203, %v544
      %v578 = vmul.f32 %v204, %v544
      %v579 = vmul.f32 %v205, %v544
      %v580 = vmul.f32 %v206, %v544
      %v581 = vmul.f32 %v207, %v544
      %v582 = vmul.f32 %v208, %v544
      %v583 = vmul.f32 %v209, %v544
      %v584 = vmul.f32 %v210, %v544
      %v585 = vmul.f32 %v211, %v544
      %v586 = vmul.f32 %v212, %v544
      %v587 = vmul.f32 %v213, %v544
      %v588 = vmul.f32 %v214, %v544
      %v589 = vmul.f32 %v215, %v544
      %v590 = vmul.f32 %v216, %v544
      %v591 = vmul.f32 %v217, %v544
      %v592 = vmul.f32 %v218, %v544
      %vm641 = vcmask 1045504
      %v642 = vrot.slane %v545, 2
      %v643 = vrot.slane %v546, 2
      %v644 = vsel %vm641, %v642, %v643
      %v645 = vrot.slane %v547, 2
      %v646 = vsel %vm641, %v643, %v645
      %v647 = vrot.slane %v548, 2
      %v648 = vrot.slane %v549, 2
      %v649 = vsel %vm641, %v647, %v648
      %v650 = vrot.slane %v550, 2
      %v651 = vsel %vm641, %v648, %v650
      %v652 = vrot.slane %v551, 2
      %v653 = vrot.slane %v552, 2
      %v654 = vsel %vm641, %v652, %v653
      %v655 = vrot.slane %v553, 2
      %v656 = vsel %vm641, %v653, %v655
      %v657 = vrot.slane %v554, 2
      %v658 = vrot.slane %v555, 2
      %v659 = vsel %vm641, %v657, %v658
      %v660 = vrot.slane %v556, 2
      %v661 = vsel %vm641, %v658, %v660
      %v662 = vrot.slane %v557, 2
      %v663 = vrot.slane %v558, 2
      %v664 = vsel %vm641, %v662, %v663
      %v665 = vrot.slane %v559, 2
      %v666 = vsel %vm641, %v663, %v665
      %v667 = vrot.slane %v560, 2
      %v668 = vrot.slane %v561, 2
      %v669 = vsel %vm641, %v667, %v668
      %v670 = vrot.slane %v562, 2
      %v671 = vsel %vm641, %v668, %v670
      %v672 = vrot.slane %v563, 2
      %v673 = vrot.slane %v564, 2
      %v674 = vsel %vm641, %v672, %v673
      %v675 = vrot.slane %v565, 2
      %v676 = vsel %vm641, %v673, %v675
      %v677 = vrot.slane %v566, 2
      %v678 = vrot.slane %v567, 2
      %v679 = vsel %vm641, %v677, %v678
      %v680 = vrot.slane %v568, 2
      %v681 = vsel %vm641, %v678, %v680
      %v682 = vrot.slane %v569, 2
      %v683 = vrot.slane %v570, 2
      %v684 = vsel %vm641, %v682, %v683
      %v685 = vrot.slane %v571, 2
      %v686 = vsel %vm641, %v683, %v685
      %v687 = vrot.slane %v572, 2
      %v688 = vrot.slane %v573, 2
      %v689 = vsel %vm641, %v687, %v688
      %v690 = vrot.slane %v574, 2
      %v691 = vsel %vm641, %v688, %v690
      %v692 = vrot.slane %v575, 2
      %v693 = vrot.slane %v576, 2
      %v694 = vsel %vm641, %v692, %v693
      %v695 = vrot.slane %v577, 2
      %v696 = vsel %vm641, %v693, %v695
      %v697 = vrot.slane %v578, 2
      %v698 = vrot.slane %v579, 2
      %v699 = vsel %vm641, %v697, %v698
      %v700 = vrot.slane %v580, 2
      %v701 = vsel %vm641, %v698, %v700
      %v702 = vrot.slane %v581, 2
      %v703 = vrot.slane %v582, 2
      %v704 = vsel %vm641, %v702, %v703
      %v705 = vrot.slane %v583, 2
      %v706 = vsel %vm641, %v703, %v705
      %v707 = vrot.slane %v584, 2
      %v708 = vrot.slane %v585, 2
      %v709 = vsel %vm641, %v707, %v708
      %v710 = vrot.slane %v586, 2
      %v711 = vsel %vm641, %v708, %v710
      %v712 = vrot.slane %v587, 2
      %v713 = vrot.slane %v588, 2
      %v714 = vsel %vm641, %v712, %v713
      %v715 = vrot.slane %v589, 2
      %v716 = vsel %vm641, %v713, %v715
      %v717 = vrot.slane %v590, 2
      %v718 = vrot.slane %v591, 2
      %v719 = vsel %vm641, %v717, %v718
      %v720 = vrot.slane %v592, 2
      %v721 = vsel %vm641, %v718, %v720
      %v754 = vadd.f32 %v509, %v644
      %v755 = vadd.f32 %v510, %v646
      %v756 = vadd.f32 %v511, %v649
      %v757 = vadd.f32 %v512, %v651
      %v758 = vadd.f32 %v513, %v654
      %v759 = vadd.f32 %v514, %v656
      %v760 = vadd.f32 %v515, %v659
      %v761 = vadd.f32 %v516, %v661
      %v762 = vadd.f32 %v517, %v664
      %v763 = vadd.f32 %v518, %v666
      %v764 = vadd.f32 %v519, %v669
      %v765 = vadd.f32 %v520, %v671
      %v766 = vadd.f32 %v521, %v674
      %v767 = vadd.f32 %v522, %v676
      %v768 = vadd.f32 %v523, %v679
      %v769 = vadd.f32 %v524, %v681
      %v770 = vadd.f32 %v525, %v684
      %v771 = vadd.f32 %v526, %v686
      %v772 = vadd.f32 %v527, %v689
      %v773 = vadd.f32 %v528, %v691
      %v774 = vadd.f32 %v529, %v694
      %v775 = vadd.f32 %v530, %v696
      %v776 = vadd.f32 %v531, %v699
      %v777 = vadd.f32 %v532, %v701
      %v778 = vadd.f32 %v533, %v704
      %v779 = vadd.f32 %v534, %v706
      %v780 = vadd.f32 %v535, %v709
      %v781 = vadd.f32 %v536, %v711
      %v782 = vadd.f32 %v537, %v714
      %v783 = vadd.f32 %v538, %v716
      %v784 = vadd.f32 %v539, %v719
      %v785 = vadd.f32 %v540, %v721
      %v786 = vlaneseq
      %v787 = vshrl.u32 %v786, 7
      %v788 = vsub.s32 0, %v787
      %v789 = vrot.slane %v226, %v788
      %v790 = vmul.f32 %v174, %v789
      %v791 = vmul.f32 %v175, %v789
      %v792 = vmul.f32 %v177, %v789
      %v793 = vmul.f32 %v178, %v789
      %v794 = vmul.f32 %v180, %v789
      %v795 = vmul.f32 %v181, %v789
      %v796 = vmul.f32 %v183, %v789
      %v797 = vmul.f32 %v184, %v789
      %v798 = vmul.f32 %v186, %v789
      %v799 = vmul.f32 %v187, %v789
      %v800 = vmul.f32 %v189, %v789
      %v801 = vmul.f32 %v190, %v789
      %v802 = vmul.f32 %v192, %v789
      %v803 = vmul.f32 %v193, %v789
      %v804 = vmul.f32 %v195, %v789
      %v805 = vmul.f32 %v196, %v789
      %v806 = vmul.f32 %v198, %v789
      %v807 = vmul.f32 %v199, %v789
      %v808 = vmul.f32 %v201, %v789
      %v809 = vmul.f32 %v202, %v789
      %v810 = vmul.f32 %v204, %v789
      %v811 = vmul.f32 %v205, %v789
      %v812 = vmul.f32 %v207, %v789
      %v813 = vmul.f32 %v208, %v789
      %v814 = vmul.f32 %v210, %v789
      %v815 = vmul.f32 %v211, %v789
      %v816 = vmul.f32 %v213, %v789
      %v817 = vmul.f32 %v214, %v789
      %v818 = vmul.f32 %v216, %v789
      %v819 = vmul.f32 %v217, %v789
      %v820 = vmul.f32 %v219, %v789
      %v821 = vmul.f32 %v220, %v789
      %v822 = vadd.f32 %v754, %v790
      %v823 = vadd.f32 %v755, %v791
      %v824 = vadd.f32 %v756, %v792
      %v825 = vadd.f32 %v757, %v793
      %v826 = vadd.f32 %v758, %v794
      %v827 = vadd.f32 %v759, %v795
      %v828 = vadd.f32 %v760, %v796
      %v829 = vadd.f32 %v761, %v797
      %v830 = vadd.f32 %v762, %v798
      %v831 = vadd.f32 %v763, %v799
      %v832 = vadd.f32 %v764, %v800
      %v833 = vadd.f32 %v765, %v801
      %v834 = vadd.f32 %v766, %v802
      %v835 = vadd.f32 %v767, %v803
      %v836 = vadd.f32 %v768, %v804
      %v837 = vadd.f32 %v769, %v805
      %v838 = vadd.f32 %v770, %v806
      %v839 = vadd.f32 %v771, %v807
      %v840 = vadd.f32 %v772, %v808
      %v841 = vadd.f32 %v773, %v809
      %v842 = vadd.f32 %v774, %v810
      %v843 = vadd.f32 %v775, %v811
      %v844 = vadd.f32 %v776, %v812
      %v845 = vadd.f32 %v777, %v813
      %v846 = vadd.f32 %v778, %v814
      %v847 = vadd.f32 %v779, %v815
      %v848 = vadd.f32 %v780, %v816
      %v849 = vadd.f32 %v781, %v817
      %v850 = vadd.f32 %v782, %v818
      %v851 = vadd.f32 %v783, %v819
      %v852 = vadd.f32 %v784, %v820
      %v853 = vadd.f32 %v785, %v821
      %v854 = vlaneseq
      %v855 = vshrl.u32 %v854, 7
      %v856 = vsub.s32 1, %v855
      %v857 = vrot.slane %v226, %v856
      %v858 = vmul.f32 %v174, %v857
      %v859 = vmul.f32 %v175, %v857
      %v860 = vmul.f32 %v176, %v857
      %v861 = vmul.f32 %v177, %v857
      %v862 = vmul.f32 %v178, %v857
      %v863 = vmul.f32 %v179, %v857
      %v864 = vmul.f32 %v180, %v857
      %v865 = vmul.f32 %v181, %v857
      %v866 = vmul.f32 %v182, %v857
      %v867 = vmul.f32 %v183, %v857
      %v868 = vmul.f32 %v184, %v857
      %v869 = vmul.f32 %v185, %v857
      %v870 = vmul.f32 %v186, %v857
      %v871 = vmul.f32 %v187, %v857
      %v872 = vmul.f32 %v188, %v857
      %v873 = vmul.f32 %v189, %v857
      %v874 = vmul.f32 %v190, %v857
      %v875 = vmul.f32 %v191, %v857
      %v876 = vmul.f32 %v192, %v857
      %v877 = vmul.f32 %v193, %v857
      %v878 = vmul.f32 %v194, %v857
      %v879 = vmul.f32 %v195, %v857
      %v880 = vmul.f32 %v196, %v857
      %v881 = vmul.f32 %v197, %v857
      %v882 = vmul.f32 %v198, %v857
      %v883 = vmul.f32 %v199, %v857
      %v884 = vmul.f32 %v200, %v857
      %v885 = vmul.f32 %v201, %v857
      %v886 = vmul.f32 %v202, %v857
      %v887 = vmul.f32 %v203, %v857
      %v888 = vmul.f32 %v204, %v857
      %v889 = vmul.f32 %v205, %v857
      %v890 = vmul.f32 %v206, %v857
      %v891 = vmul.f32 %v207, %v857
      %v892 = vmul.f32 %v208, %v857
      %v893 = vmul.f32 %v209, %v857
      %v894 = vmul.f32 %v210, %v857
      %v895 = vmul.f32 %v211, %v857
      %v896 = vmul.f32 %v212, %v857
      %v897 = vmul.f32 %v213, %v857
      %v898 = vmul.f32 %v214, %v857
      %v899 = vmul.f32 %v215, %v857
      %v900 = vmul.f32 %v216, %v857
      %v901 = vmul.f32 %v217, %v857
      %v902 = vmul.f32 %v218, %v857
      %v903 = vmul.f32 %v219, %v857
      %v904 = vmul.f32 %v220, %v857
      %v905 = vmul.f32 %v221, %v857
      %v954 = vrot.slane %v858, 1
      %v955 = vrot.slane %v859, 1
      %v956 = vsel %vm396, %v954, %v955
      %v957 = vrot.slane %v860, 1
      %v958 = vsel %vm396, %v955, %v957
      %v959 = vrot.slane %v861, 1
      %v960 = vrot.slane %v862, 1
      %v961 = vsel %vm396, %v959, %v960
      %v962 = vrot.slane %v863, 1
      %v963 = vsel %vm396, %v960, %v962
      %v964 = vrot.slane %v864, 1
      %v965 = vrot.slane %v865, 1
      %v966 = vsel %vm396, %v964, %v965
      %v967 = vrot.slane %v866, 1
      %v968 = vsel %vm396, %v965, %v967
      %v969 = vrot.slane %v867, 1
      %v970 = vrot.slane %v868, 1
      %v971 = vsel %vm396, %v969, %v970
      %v972 = vrot.slane %v869, 1
      %v973 = vsel %vm396, %v970, %v972
      %v974 = vrot.slane %v870, 1
      %v975 = vrot.slane %v871, 1
      %v976 = vsel %vm396, %v974, %v975
      %v977 = vrot.slane %v872, 1
      %v978 = vsel %vm396, %v975, %v977
      %v979 = vrot.slane %v873, 1
      %v980 = vrot.slane %v874, 1
      %v981 = vsel %vm396, %v979, %v980
      %v982 = vrot.slane %v875, 1
      %v983 = vsel %vm396, %v980, %v982
      %v984 = vrot.slane %v876, 1
      %v985 = vrot.slane %v877, 1
      %v986 = vsel %vm396, %v984, %v985
      %v987 = vrot.slane %v878, 1
      %v988 = vsel %vm396, %v985, %v987
      %v989 = vrot.slane %v879, 1
      %v990 = vrot.slane %v880, 1
      %v991 = vsel %vm396, %v989, %v990
      %v992 = vrot.slane %v881, 1
      %v993 = vsel %vm396, %v990, %v992
      %v994 = vrot.slane %v882, 1
      %v995 = vrot.slane %v883, 1
      %v996 = vsel %vm396, %v994, %v995
      %v997 = vrot.slane %v884, 1
      %v998 = vsel %vm396, %v995, %v997
      %v999 = vrot.slane %v885, 1
      %v1000 = vrot.slane %v886, 1
      %v1001 = vsel %vm396, %v999, %v1000
      %v1002 = vrot.slane %v887, 1
      %v1003 = vsel %vm396, %v1000, %v1002
      %v1004 = vrot.slane %v888, 1
      %v1005 = vrot.slane %v889, 1
      %v1006 = vsel %vm396, %v1004, %v1005
      %v1007 = vrot.slane %v890, 1
      %v1008 = vsel %vm396, %v1005, %v1007
      %v1009 = vrot.slane %v891, 1
      %v1010 = vrot.slane %v892, 1
      %v1011 = vsel %vm396, %v1009, %v1010
      %v1012 = vrot.slane %v893, 1
      %v1013 = vsel %vm396, %v1010, %v1012
      %v1014 = vrot.slane %v894, 1
      %v1015 = vrot.slane %v895, 1
      %v1016 = vsel %vm396, %v1014, %v1015
      %v1017 = vrot.slane %v896, 1
      %v1018 = vsel %vm396, %v1015, %v1017
      %v1019 = vrot.slane %v897, 1
      %v1020 = vrot.slane %v898, 1
      %v1021 = vsel %vm396, %v1019, %v1020
      %v1022 = vrot.slane %v899, 1
      %v1023 = vsel %vm396, %v1020, %v1022
      %v1024 = vrot.slane %v900, 1
      %v1025 = vrot.slane %v901, 1
      %v1026 = vsel %vm396, %v1024, %v1025
      %v1027 = vrot.slane %v902, 1
      %v1028 = vsel %vm396, %v1025, %v1027
      %v1029 = vrot.slane %v903, 1
      %v1030 = vrot.slane %v904, 1
      %v1031 = vsel %vm396, %v1029, %v1030
      %v1032 = vrot.slane %v905, 1
      %v1033 = vsel %vm396, %v1030, %v1032
      %v1066 = vadd.f32 %v822, %v956
      %v1067 = vadd.f32 %v823, %v958
      %v1068 = vadd.f32 %v824, %v961
      %v1069 = vadd.f32 %v825, %v963
      %v1070 = vadd.f32 %v826, %v966
      %v1071 = vadd.f32 %v827, %v968
      %v1072 = vadd.f32 %v828, %v971
      %v1073 = vadd.f32 %v829, %v973
      %v1074 = vadd.f32 %v830, %v976
      %v1075 = vadd.f32 %v831, %v978
      %v1076 = vadd.f32 %v832, %v981
      %v1077 = vadd.f32 %v833, %v983
      %v1078 = vadd.f32 %v834, %v986
      %v1079 = vadd.f32 %v835, %v988
      %v1080 = vadd.f32 %v836, %v991
      %v1081 = vadd.f32 %v837, %v993
      %v1082 = vadd.f32 %v838, %v996
      %v1083 = vadd.f32 %v839, %v998
      %v1084 = vadd.f32 %v840, %v1001
      %v1085 = vadd.f32 %v841, %v1003
      %v1086 = vadd.f32 %v842, %v1006
      %v1087 = vadd.f32 %v843, %v1008
      %v1088 = vadd.f32 %v844, %v1011
      %v1089 = vadd.f32 %v845, %v1013
      %v1090 = vadd.f32 %v846, %v1016
      %v1091 = vadd.f32 %v847, %v1018
      %v1092 = vadd.f32 %v848, %v1021
      %v1093 = vadd.f32 %v849, %v1023
      %v1094 = vadd.f32 %v850, %v1026
      %v1095 = vadd.f32 %v851, %v1028
      %v1096 = vadd.f32 %v852, %v1031
      %v1097 = vadd.f32 %v853, %v1033
      %v1098 = vlaneseq
      %v1099 = vshrl.u32 %v1098, 7
      %v1100 = vsub.s32 2, %v1099
      %v1101 = vrot.slane %v226, %v1100
      %v1102 = vmul.f32 %v174, %v1101
      %v1103 = vmul.f32 %v175, %v1101
      %v1104 = vmul.f32 %v176, %v1101
      %v1105 = vmul.f32 %v177, %v1101
      %v1106 = vmul.f32 %v178, %v1101
      %v1107 = vmul.f32 %v179, %v1101
      %v1108 = vmul.f32 %v180, %v1101
      %v1109 = vmul.f32 %v181, %v1101
      %v1110 = vmul.f32 %v182, %v1101
      %v1111 = vmul.f32 %v183, %v1101
      %v1112 = vmul.f32 %v184, %v1101
      %v1113 = vmul.f32 %v185, %v1101
      %v1114 = vmul.f32 %v186, %v1101
      %v1115 = vmul.f32 %v187, %v1101
      %v1116 = vmul.f32 %v188, %v1101
      %v1117 = vmul.f32 %v189, %v1101
      %v1118 = vmul.f32 %v190, %v1101
      %v1119 = vmul.f32 %v191, %v1101
      %v1120 = vmul.f32 %v192, %v1101
      %v1121 = vmul.f32 %v193, %v1101
      %v1122 = vmul.f32 %v194, %v1101
      %v1123 = vmul.f32 %v195, %v1101
      %v1124 = vmul.f32 %v196, %v1101
      %v1125 = vmul.f32 %v197, %v1101
      %v1126 = vmul.f32 %v198, %v1101
      %v1127 = vmul.f32 %v199, %v1101
      %v1128 = vmul.f32 %v200, %v1101
      %v1129 = vmul.f32 %v201, %v1101
      %v1130 = vmul.f32 %v202, %v1101
      %v1131 = vmul.f32 %v203, %v1101
      %v1132 = vmul.f32 %v204, %v1101
      %v1133 = vmul.f32 %v205, %v1101
      %v1134 = vmul.f32 %v206, %v1101
      %v1135 = vmul.f32 %v207, %v1101
      %v1136 = vmul.f32 %v208, %v1101
      %v1137 = vmul.f32 %v209, %v1101
      %v1138 = vmul.f32 %v210, %v1101
      %v1139 = vmul.f32 %v211, %v1101
      %v1140 = vmul.f32 %v212, %v1101
      %v1141 = vmul.f32 %v213, %v1101
      %v1142 = vmul.f32 %v214, %v1101
      %v1143 = vmul.f32 %v215, %v1101
      %v1144 = vmul.f32 %v216, %v1101
      %v1145 = vmul.f32 %v217, %v1101
      %v1146 = vmul.f32 %v218, %v1101
      %v1147 = vmul.f32 %v219, %v1101
      %v1148 = vmul.f32 %v220, %v1101
      %v1149 = vmul.f32 %v221, %v1101
      %v1198 = vrot.slane %v1102, 2
      %v1199 = vrot.slane %v1103, 2
      %v1200 = vsel %vm641, %v1198, %v1199
      %v1201 = vrot.slane %v1104, 2
      %v1202 = vsel %vm641, %v1199, %v1201
      %v1203 = vrot.slane %v1105, 2
      %v1204 = vrot.slane %v1106, 2
      %v1205 = vsel %vm641, %v1203, %v1204
      %v1206 = vrot.slane %v1107, 2
      %v1207 = vsel %vm641, %v1204, %v1206
      %v1208 = vrot.slane %v1108, 2
      %v1209 = vrot.slane %v1109, 2
      %v1210 = vsel %vm641, %v1208, %v1209
      %v1211 = vrot.slane %v1110, 2
      %v1212 = vsel %vm641, %v1209, %v1211
      %v1213 = vrot.slane %v1111, 2
      %v1214 = vrot.slane %v1112, 2
      %v1215 = vsel %vm641, %v1213, %v1214
      %v1216 = vrot.slane %v1113, 2
      %v1217 = vsel %vm641, %v1214, %v1216
      %v1218 = vrot.slane %v1114, 2
      %v1219 = vrot.slane %v1115, 2
      %v1220 = vsel %vm641, %v1218, %v1219
      %v1221 = vrot.slane %v1116, 2
      %v1222 = vsel %vm641, %v1219, %v1221
      %v1223 = vrot.slane %v1117, 2
      %v1224 = vrot.slane %v1118, 2
      %v1225 = vsel %vm641, %v1223, %v1224
      %v1226 = vrot.slane %v1119, 2
      %v1227 = vsel %vm641, %v1224, %v1226
      %v1228 = vrot.slane %v1120, 2
      %v1229 = vrot.slane %v1121, 2
      %v1230 = vsel %vm641, %v1228, %v1229
      %v1231 = vrot.slane %v1122, 2
      %v1232 = vsel %vm641, %v1229, %v1231
      %v1233 = vrot.slane %v1123, 2
      %v1234 = vrot.slane %v1124, 2
      %v1235 = vsel %vm641, %v1233, %v1234
      %v1236 = vrot.slane %v1125, 2
      %v1237 = vsel %vm641, %v1234, %v1236
      %v1238 = vrot.slane %v1126, 2
      %v1239 = vrot.slane %v1127, 2
      %v1240 = vsel %vm641, %v1238, %v1239
      %v1241 = vrot.slane %v1128, 2
      %v1242 = vsel %vm641, %v1239, %v1241
      %v1243 = vrot.slane %v1129, 2
      %v1244 = vrot.slane %v1130, 2
      %v1245 = vsel %vm641, %v1243, %v1244
      %v1246 = vrot.slane %v1131, 2
      %v1247 = vsel %vm641, %v1244, %v1246
      %v1248 = vrot.slane %v1132, 2
      %v1249 = vrot.slane %v1133, 2
      %v1250 = vsel %vm641, %v1248, %v1249
      %v1251 = vrot.slane %v1134, 2
      %v1252 = vsel %vm641, %v1249, %v1251
      %v1253 = vrot.slane %v1135, 2
      %v1254 = vrot.slane %v1136, 2
      %v1255 = vsel %vm641, %v1253, %v1254
      %v1256 = vrot.slane %v1137, 2
      %v1257 = vsel %vm641, %v1254, %v1256
      %v1258 = vrot.slane %v1138, 2
      %v1259 = vrot.slane %v1139, 2
      %v1260 = vsel %vm641, %v1258, %v1259
      %v1261 = vrot.slane %v1140, 2
      %v1262 = vsel %vm641, %v1259, %v1261
      %v1263 = vrot.slane %v1141, 2
      %v1264 = vrot.slane %v1142, 2
      %v1265 = vsel %vm641, %v1263, %v1264
      %v1266 = vrot.slane %v1143, 2
      %v1267 = vsel %vm641, %v1264, %v1266
      %v1268 = vrot.slane %v1144, 2
      %v1269 = vrot.slane %v1145, 2
      %v1270 = vsel %vm641, %v1268, %v1269
      %v1271 = vrot.slane %v1146, 2
      %v1272 = vsel %vm641, %v1269, %v1271
      %v1273 = vrot.slane %v1147, 2
      %v1274 = vrot.slane %v1148, 2
      %v1275 = vsel %vm641, %v1273, %v1274
      %v1276 = vrot.slane %v1149, 2
      %v1277 = vsel %vm641, %v1274, %v1276
      %v1310 = vadd.f32 %v1066, %v1200
      %v1311 = vadd.f32 %v1067, %v1202
      %v1312 = vadd.f32 %v1068, %v1205
      %v1313 = vadd.f32 %v1069, %v1207
      %v1314 = vadd.f32 %v1070, %v1210
      %v1315 = vadd.f32 %v1071, %v1212
      %v1316 = vadd.f32 %v1072, %v1215
      %v1317 = vadd.f32 %v1073, %v1217
      %v1318 = vadd.f32 %v1074, %v1220
      %v1319 = vadd.f32 %v1075, %v1222
      %v1320 = vadd.f32 %v1076, %v1225
      %v1321 = vadd.f32 %v1077, %v1227
      %v1322 = vadd.f32 %v1078, %v1230
      %v1323 = vadd.f32 %v1079, %v1232
      %v1324 = vadd.f32 %v1080, %v1235
      %v1325 = vadd.f32 %v1081, %v1237
      %v1326 = vadd.f32 %v1082, %v1240
      %v1327 = vadd.f32 %v1083, %v1242
      %v1328 = vadd.f32 %v1084, %v1245
      %v1329 = vadd.f32 %v1085, %v1247
      %v1330 = vadd.f32 %v1086, %v1250
      %v1331 = vadd.f32 %v1087, %v1252
      %v1332 = vadd.f32 %v1088, %v1255
      %v1333 = vadd.f32 %v1089, %v1257
      %v1334 = vadd.f32 %v1090, %v1260
      %v1335 = vadd.f32 %v1091, %v1262
      %v1336 = vadd.f32 %v1092, %v1265
      %v1337 = vadd.f32 %v1093, %v1267
      %v1338 = vadd.f32 %v1094, %v1270
      %v1339 = vadd.f32 %v1095, %v1272
      %v1340 = vadd.f32 %v1096, %v1275
      %v1341 = vadd.f32 %v1097, %v1277
      %v1342 = vlaneseq
      %v1343 = vshrl.u32 %v1342, 7
      %v1344 = vsub.s32 0, %v1343
      %v1345 = vrot.slane %v227, %v1344
      %v1346 = vmul.f32 %v177, %v1345
      %v1347 = vmul.f32 %v178, %v1345
      %v1348 = vmul.f32 %v180, %v1345
      %v1349 = vmul.f32 %v181, %v1345
      %v1350 = vmul.f32 %v183, %v1345
      %v1351 = vmul.f32 %v184, %v1345
      %v1352 = vmul.f32 %v186, %v1345
      %v1353 = vmul.f32 %v187, %v1345
      %v1354 = vmul.f32 %v189, %v1345
      %v1355 = vmul.f32 %v190, %v1345
      %v1356 = vmul.f32 %v192, %v1345
      %v1357 = vmul.f32 %v193, %v1345
      %v1358 = vmul.f32 %v195, %v1345
      %v1359 = vmul.f32 %v196, %v1345
      %v1360 = vmul.f32 %v198, %v1345
      %v1361 = vmul.f32 %v199, %v1345
      %v1362 = vmul.f32 %v201, %v1345
      %v1363 = vmul.f32 %v202, %v1345
      %v1364 = vmul.f32 %v204, %v1345
      %v1365 = vmul.f32 %v205, %v1345
      %v1366 = vmul.f32 %v207, %v1345
      %v1367 = vmul.f32 %v208, %v1345
      %v1368 = vmul.f32 %v210, %v1345
      %v1369 = vmul.f32 %v211, %v1345
      %v1370 = vmul.f32 %v213, %v1345
      %v1371 = vmul.f32 %v214, %v1345
      %v1372 = vmul.f32 %v216, %v1345
      %v1373 = vmul.f32 %v217, %v1345
      %v1374 = vmul.f32 %v219, %v1345
      %v1375 = vmul.f32 %v220, %v1345
      %v1376 = vmul.f32 %v222, %v1345
      %v1377 = vmul.f32 %v223, %v1345
      %v1378 = vadd.f32 %v1310, %v1346
      %v1379 = vadd.f32 %v1311, %v1347
      %v1380 = vadd.f32 %v1312, %v1348
      %v1381 = vadd.f32 %v1313, %v1349
      %v1382 = vadd.f32 %v1314, %v1350
      %v1383 = vadd.f32 %v1315, %v1351
      %v1384 = vadd.f32 %v1316, %v1352
      %v1385 = vadd.f32 %v1317, %v1353
      %v1386 = vadd.f32 %v1318, %v1354
      %v1387 = vadd.f32 %v1319, %v1355
      %v1388 = vadd.f32 %v1320, %v1356
      %v1389 = vadd.f32 %v1321, %v1357
      %v1390 = vadd.f32 %v1322, %v1358
      %v1391 = vadd.f32 %v1323, %v1359
      %v1392 = vadd.f32 %v1324, %v1360
      %v1393 = vadd.f32 %v1325, %v1361
      %v1394 = vadd.f32 %v1326, %v1362
      %v1395 = vadd.f32 %v1327, %v1363
      %v1396 = vadd.f32 %v1328, %v1364
      %v1397 = vadd.f32 %v1329, %v1365
      %v1398 = vadd.f32 %v1330, %v1366
      %v1399 = vadd.f32 %v1331, %v1367
      %v1400 = vadd.f32 %v1332, %v1368
      %v1401 = vadd.f32 %v1333, %v1369
      %v1402 = vadd.f32 %v1334, %v1370
      %v1403 = vadd.f32 %v1335, %v1371
      %v1404 = vadd.f32 %v1336, %v1372
      %v1405 = vadd.f32 %v1337, %v1373
      %v1406 = vadd.f32 %v1338, %v1374
      %v1407 = vadd.f32 %v1339, %v1375
      %v1408 = vadd.f32 %v1340, %v1376
      %v1409 = vadd.f32 %v1341, %v1377
      %v1410 = vlaneseq
      %v1411 = vshrl.u32 %v1410, 7
      %v1412 = vsub.s32 1, %v1411
      %v1413 = vrot.slane %v227, %v1412
      %v1414 = vmul.f32 %v177, %v1413
      %v1415 = vmul.f32 %v178, %v1413
      %v1416 = vmul.f32 %v179, %v1413
      %v1417 = vmul.f32 %v180, %v1413
      %v1418 = vmul.f32 %v181, %v1413
      %v1419 = vmul.f32 %v182, %v1413
      %v1420 = vmul.f32 %v183, %v1413
      %v1421 = vmul.f32 %v184, %v1413
      %v1422 = vmul.f32 %v185, %v1413
      %v1423 = vmul.f32 %v186, %v1413
      %v1424 = vmul.f32 %v187, %v1413
      %v1425 = vmul.f32 %v188, %v1413
      %v1426 = vmul.f32 %v189, %v1413
      %v1427 = vmul.f32 %v190, %v1413
      %v1428 = vmul.f32 %v191, %v1413
      %v1429 = vmul.f32 %v192, %v1413
      %v1430 = vmul.f32 %v193, %v1413
      %v1431 = vmul.f32 %v194, %v1413
      %v1432 = vmul.f32 %v195, %v1413
      %v1433 = vmul.f32 %v196, %v1413
      %v1434 = vmul.f32 %v197, %v1413
      %v1435 = vmul.f32 %v198, %v1413
      %v1436 = vmul.f32 %v199, %v1413
      %v1437 = vmul.f32 %v200, %v1413
      %v1438 = vmul.f32 %v201, %v1413
      %v1439 = vmul.f32 %v202, %v1413
      %v1440 = vmul.f32 %v203, %v1413
      %v1441 = vmul.f32 %v204, %v1413
      %v1442 = vmul.f32 %v205, %v1413
      %v1443 = vmul.f32 %v206, %v1413
      %v1444 = vmul.f32 %v207, %v1413
      %v1445 = vmul.f32 %v208, %v1413
      %v1446 = vmul.f32 %v209, %v1413
      %v1447 = vmul.f32 %v210, %v1413
      %v1448 = vmul.f32 %v211, %v1413
      %v1449 = vmul.f32 %v212, %v1413
      %v1450 = vmul.f32 %v213, %v1413
      %v1451 = vmul.f32 %v214, %v1413
      %v1452 = vmul.f32 %v215, %v1413
      %v1453 = vmul.f32 %v216, %v1413
      %v1454 = vmul.f32 %v217, %v1413
      %v1455 = vmul.f32 %v218, %v1413
      %v1456 = vmul.f32 %v219, %v1413
      %v1457 = vmul.f32 %v220, %v1413
      %v1458 = vmul.f32 %v221, %v1413
      %v1459 = vmul.f32 %v222, %v1413
      %v1460 = vmul.f32 %v223, %v1413
      %v1461 = vmul.f32 %v224, %v1413
      %v1510 = vrot.slane %v1414, 1
      %v1511 = vrot.slane %v1415, 1
      %v1512 = vsel %vm396, %v1510, %v1511
      %v1513 = vrot.slane %v1416, 1
      %v1514 = vsel %vm396, %v1511, %v1513
      %v1515 = vrot.slane %v1417, 1
      %v1516 = vrot.slane %v1418, 1
      %v1517 = vsel %vm396, %v1515, %v1516
      %v1518 = vrot.slane %v1419, 1
      %v1519 = vsel %vm396, %v1516, %v1518
      %v1520 = vrot.slane %v1420, 1
      %v1521 = vrot.slane %v1421, 1
      %v1522 = vsel %vm396, %v1520, %v1521
      %v1523 = vrot.slane %v1422, 1
      %v1524 = vsel %vm396, %v1521, %v1523
      %v1525 = vrot.slane %v1423, 1
      %v1526 = vrot.slane %v1424, 1
      %v1527 = vsel %vm396, %v1525, %v1526
      %v1528 = vrot.slane %v1425, 1
      %v1529 = vsel %vm396, %v1526, %v1528
      %v1530 = vrot.slane %v1426, 1
      %v1531 = vrot.slane %v1427, 1
      %v1532 = vsel %vm396, %v1530, %v1531
      %v1533 = vrot.slane %v1428, 1
      %v1534 = vsel %vm396, %v1531, %v1533
      %v1535 = vrot.slane %v1429, 1
      %v1536 = vrot.slane %v1430, 1
      %v1537 = vsel %vm396, %v1535, %v1536
      %v1538 = vrot.slane %v1431, 1
      %v1539 = vsel %vm396, %v1536, %v1538
      %v1540 = vrot.slane %v1432, 1
      %v1541 = vrot.slane %v1433, 1
      %v1542 = vsel %vm396, %v1540, %v1541
      %v1543 = vrot.slane %v1434, 1
      %v1544 = vsel %vm396, %v1541, %v1543
      %v1545 = vrot.slane %v1435, 1
      %v1546 = vrot.slane %v1436, 1
      %v1547 = vsel %vm396, %v1545, %v1546
      %v1548 = vrot.slane %v1437, 1
      %v1549 = vsel %vm396, %v1546, %v1548
      %v1550 = vrot.slane %v1438, 1
      %v1551 = vrot.slane %v1439, 1
      %v1552 = vsel %vm396, %v1550, %v1551
      %v1553 = vrot.slane %v1440, 1
      %v1554 = vsel %vm396, %v1551, %v1553
      %v1555 = vrot.slane %v1441, 1
      %v1556 = vrot.slane %v1442, 1
      %v1557 = vsel %vm396, %v1555, %v1556
      %v1558 = vrot.slane %v1443, 1
      %v1559 = vsel %vm396, %v1556, %v1558
      %v1560 = vrot.slane %v1444, 1
      %v1561 = vrot.slane %v1445, 1
      %v1562 = vsel %vm396, %v1560, %v1561
      %v1563 = vrot.slane %v1446, 1
      %v1564 = vsel %vm396, %v1561, %v1563
      %v1565 = vrot.slane %v1447, 1
      %v1566 = vrot.slane %v1448, 1
      %v1567 = vsel %vm396, %v1565, %v1566
      %v1568 = vrot.slane %v1449, 1
      %v1569 = vsel %vm396, %v1566, %v1568
      %v1570 = vrot.slane %v1450, 1
      %v1571 = vrot.slane %v1451, 1
      %v1572 = vsel %vm396, %v1570, %v1571
      %v1573 = vrot.slane %v1452, 1
      %v1574 = vsel %vm396, %v1571, %v1573
      %v1575 = vrot.slane %v1453, 1
      %v1576 = vrot.slane %v1454, 1
      %v1577 = vsel %vm396, %v1575, %v1576
      %v1578 = vrot.slane %v1455, 1
      %v1579 = vsel %vm396, %v1576, %v1578
      %v1580 = vrot.slane %v1456, 1
      %v1581 = vrot.slane %v1457, 1
      %v1582 = vsel %vm396, %v1580, %v1581
      %v1583 = vrot.slane %v1458, 1
      %v1584 = vsel %vm396, %v1581, %v1583
      %v1585 = vrot.slane %v1459, 1
      %v1586 = vrot.slane %v1460, 1
      %v1587 = vsel %vm396, %v1585, %v1586
      %v1588 = vrot.slane %v1461, 1
      %v1589 = vsel %vm396, %v1586, %v1588
      %v1622 = vadd.f32 %v1378, %v1512
      %v1623 = vadd.f32 %v1379, %v1514
      %v1624 = vadd.f32 %v1380, %v1517
      %v1625 = vadd.f32 %v1381, %v1519
      %v1626 = vadd.f32 %v1382, %v1522
      %v1627 = vadd.f32 %v1383, %v1524
      %v1628 = vadd.f32 %v1384, %v1527
      %v1629 = vadd.f32 %v1385, %v1529
      %v1630 = vadd.f32 %v1386, %v1532
      %v1631 = vadd.f32 %v1387, %v1534
      %v1632 = vadd.f32 %v1388, %v1537
      %v1633 = vadd.f32 %v1389, %v1539
      %v1634 = vadd.f32 %v1390, %v1542
      %v1635 = vadd.f32 %v1391, %v1544
      %v1636 = vadd.f32 %v1392, %v1547
      %v1637 = vadd.f32 %v1393, %v1549
      %v1638 = vadd.f32 %v1394, %v1552
      %v1639 = vadd.f32 %v1395, %v1554
      %v1640 = vadd.f32 %v1396, %v1557
      %v1641 = vadd.f32 %v1397, %v1559
      %v1642 = vadd.f32 %v1398, %v1562
      %v1643 = vadd.f32 %v1399, %v1564
      %v1644 = vadd.f32 %v1400, %v1567
      %v1645 = vadd.f32 %v1401, %v1569
      %v1646 = vadd.f32 %v1402, %v1572
      %v1647 = vadd.f32 %v1403, %v1574
      %v1648 = vadd.f32 %v1404, %v1577
      %v1649 = vadd.f32 %v1405, %v1579
      %v1650 = vadd.f32 %v1406, %v1582
      %v1651 = vadd.f32 %v1407, %v1584
      %v1652 = vadd.f32 %v1408, %v1587
      %v1653 = vadd.f32 %v1409, %v1589
      %v1654 = vlaneseq
      %v1655 = vshrl.u32 %v1654, 7
      %v1656 = vsub.s32 2, %v1655
      %v1657 = vrot.slane %v227, %v1656
      %v1658 = vmul.f32 %v177, %v1657
      %v1659 = vmul.f32 %v178, %v1657
      %v1660 = vmul.f32 %v179, %v1657
      %v1661 = vmul.f32 %v180, %v1657
      %v1662 = vmul.f32 %v181, %v1657
      %v1663 = vmul.f32 %v182, %v1657
      %v1664 = vmul.f32 %v183, %v1657
      %v1665 = vmul.f32 %v184, %v1657
      %v1666 = vmul.f32 %v185, %v1657
      %v1667 = vmul.f32 %v186, %v1657
      %v1668 = vmul.f32 %v187, %v1657
      %v1669 = vmul.f32 %v188, %v1657
      %v1670 = vmul.f32 %v189, %v1657
      %v1671 = vmul.f32 %v190, %v1657
      %v1672 = vmul.f32 %v191, %v1657
      %v1673 = vmul.f32 %v192, %v1657
      %v1674 = vmul.f32 %v193, %v1657
      %v1675 = vmul.f32 %v194, %v1657
      %v1676 = vmul.f32 %v195, %v1657
      %v1677 = vmul.f32 %v196, %v1657
      %v1678 = vmul.f32 %v197, %v1657
      %v1679 = vmul.f32 %v198, %v1657
      %v1680 = vmul.f32 %v199, %v1657
      %v1681 = vmul.f32 %v200, %v1657
      %v1682 = vmul.f32 %v201, %v1657
      %v1683 = vmul.f32 %v202, %v1657
      %v1684 = vmul.f32 %v203, %v1657
      %v1685 = vmul.f32 %v204, %v1657
      %v1686 = vmul.f32 %v205, %v1657
      %v1687 = vmul.f32 %v206, %v1657
      %v1688 = vmul.f32 %v207, %v1657
      %v1689 = vmul.f32 %v208, %v1657
      %v1690 = vmul.f32 %v209, %v1657
      %v1691 = vmul.f32 %v210, %v1657
      %v1692 = vmul.f32 %v211, %v1657
      %v1693 = vmul.f32 %v212, %v1657
      %v1694 = vmul.f32 %v213, %v1657
      %v1695 = vmul.f32 %v214, %v1657
      %v1696 = vmul.f32 %v215, %v1657
      %v1697 = vmul.f32 %v216, %v1657
      %v1698 = vmul.f32 %v217, %v1657
      %v1699 = vmul.f32 %v218, %v1657
      %v1700 = vmul.f32 %v219, %v1657
      %v1701 = vmul.f32 %v220, %v1657
      %v1702 = vmul.f32 %v221, %v1657
      %v1703 = vmul.f32 %v222, %v1657
      %v1704 = vmul.f32 %v223, %v1657
      %v1705 = vmul.f32 %v224, %v1657
      %v1754 = vrot.slane %v1658, 2
      %v1755 = vrot.slane %v1659, 2
      %v1756 = vsel %vm641, %v1754, %v1755
      %v1757 = vrot.slane %v1660, 2
      %v1758 = vsel %vm641, %v1755, %v1757
      %v1759 = vrot.slane %v1661, 2
      %v1760 = vrot.slane %v1662, 2
      %v1761 = vsel %vm641, %v1759, %v1760
      %v1762 = vrot.slane %v1663, 2
      %v1763 = vsel %vm641, %v1760, %v1762
      %v1764 = vrot.slane %v1664, 2
      %v1765 = vrot.slane %v1665, 2
      %v1766 = vsel %vm641, %v1764, %v1765
      %v1767 = vrot.slane %v1666, 2
      %v1768 = vsel %vm641, %v1765, %v1767
      %v1769 = vrot.slane %v1667, 2
      %v1770 = vrot.slane %v1668, 2
      %v1771 = vsel %vm641, %v1769, %v1770
      %v1772 = vrot.slane %v1669, 2
      %v1773 = vsel %vm641, %v1770, %v1772
      %v1774 = vrot.slane %v1670, 2
      %v1775 = vrot.slane %v1671, 2
      %v1776 = vsel %vm641, %v1774, %v1775
      %v1777 = vrot.slane %v1672, 2
      %v1778 = vsel %vm641, %v1775, %v1777
      %v1779 = vrot.slane %v1673, 2
      %v1780 = vrot.slane %v1674, 2
      %v1781 = vsel %vm641, %v1779, %v1780
      %v1782 = vrot.slane %v1675, 2
      %v1783 = vsel %vm641, %v1780, %v1782
      %v1784 = vrot.slane %v1676, 2
      %v1785 = vrot.slane %v1677, 2
      %v1786 = vsel %vm641, %v1784, %v1785
      %v1787 = vrot.slane %v1678, 2
      %v1788 = vsel %vm641, %v1785, %v1787
      %v1789 = vrot.slane %v1679, 2
      %v1790 = vrot.slane %v1680, 2
      %v1791 = vsel %vm641, %v1789, %v1790
      %v1792 = vrot.slane %v1681, 2
      %v1793 = vsel %vm641, %v1790, %v1792
      %v1794 = vrot.slane %v1682, 2
      %v1795 = vrot.slane %v1683, 2
      %v1796 = vsel %vm641, %v1794, %v1795
      %v1797 = vrot.slane %v1684, 2
      %v1798 = vsel %vm641, %v1795, %v1797
      %v1799 = vrot.slane %v1685, 2
      %v1800 = vrot.slane %v1686, 2
      %v1801 = vsel %vm641, %v1799, %v1800
      %v1802 = vrot.slane %v1687, 2
      %v1803 = vsel %vm641, %v1800, %v1802
      %v1804 = vrot.slane %v1688, 2
      %v1805 = vrot.slane %v1689, 2
      %v1806 = vsel %vm641, %v1804, %v1805
      %v1807 = vrot.slane %v1690, 2
      %v1808 = vsel %vm641, %v1805, %v1807
      %v1809 = vrot.slane %v1691, 2
      %v1810 = vrot.slane %v1692, 2
      %v1811 = vsel %vm641, %v1809, %v1810
      %v1812 = vrot.slane %v1693, 2
      %v1813 = vsel %vm641, %v1810, %v1812
      %v1814 = vrot.slane %v1694, 2
      %v1815 = vrot.slane %v1695, 2
      %v1816 = vsel %vm641, %v1814, %v1815
      %v1817 = vrot.slane %v1696, 2
      %v1818 = vsel %vm641, %v1815, %v1817
      %v1819 = vrot.slane %v1697, 2
      %v1820 = vrot.slane %v1698, 2
      %v1821 = vsel %vm641, %v1819, %v1820
      %v1822 = vrot.slane %v1699, 2
      %v1823 = vsel %vm641, %v1820, %v1822
      %v1824 = vrot.slane %v1700, 2
      %v1825 = vrot.slane %v1701, 2
      %v1826 = vsel %vm641, %v1824, %v1825
      %v1827 = vrot.slane %v1702, 2
      %v1828 = vsel %vm641, %v1825, %v1827
      %v1829 = vrot.slane %v1703, 2
      %v1830 = vrot.slane %v1704, 2
      %v1831 = vsel %vm641, %v1829, %v1830
      %v1832 = vrot.slane %v1705, 2
      %v1833 = vsel %vm641, %v1830, %v1832
      %v1866 = vadd.f32 %v1622, %v1756
      %v1867 = vadd.f32 %v1623, %v1758
      %v1868 = vadd.f32 %v1624, %v1761
      %v1869 = vadd.f32 %v1625, %v1763
      %v1870 = vadd.f32 %v1626, %v1766
      %v1871 = vadd.f32 %v1627, %v1768
      %v1872 = vadd.f32 %v1628, %v1771
      %v1873 = vadd.f32 %v1629, %v1773
      %v1874 = vadd.f32 %v1630, %v1776
      %v1875 = vadd.f32 %v1631, %v1778
      %v1876 = vadd.f32 %v1632, %v1781
      %v1877 = vadd.f32 %v1633, %v1783
      %v1878 = vadd.f32 %v1634, %v1786
      %v1879 = vadd.f32 %v1635, %v1788
      %v1880 = vadd.f32 %v1636, %v1791
      %v1881 = vadd.f32 %v1637, %v1793
      %v1882 = vadd.f32 %v1638, %v1796
      %v1883 = vadd.f32 %v1639, %v1798
      %v1884 = vadd.f32 %v1640, %v1801
      %v1885 = vadd.f32 %v1641, %v1803
      %v1886 = vadd.f32 %v1642, %v1806
      %v1887 = vadd.f32 %v1643, %v1808
      %v1888 = vadd.f32 %v1644, %v1811
      %v1889 = vadd.f32 %v1645, %v1813
      %v1890 = vadd.f32 %v1646, %v1816
      %v1891 = vadd.f32 %v1647, %v1818
      %v1892 = vadd.f32 %v1648, %v1821
      %v1893 = vadd.f32 %v1649, %v1823
      %v1894 = vadd.f32 %v1650, %v1826
      %v1895 = vadd.f32 %v1651, %v1828
      %v1896 = vadd.f32 %v1652, %v1831
      %v1897 = vadd.f32 %v1653, %v1833
      %v1898 = vld [vmem:[%s2] sm:$0x1]
      %v1900 = vlaneseq
      %v1901 = vshrl.u32 %v1900, 7
      %v1902 = vsub.s32 0, %v1901
      %v1903 = vrot.slane %v1898, %v1902
      %v1905 = vadd.f32 %v1866, %v1903
      %v1906 = vadd.f32 %v1867, %v1903
      %v1907 = vadd.f32 %v1868, %v1903
      %v1908 = vadd.f32 %v1869, %v1903
      %v1909 = vadd.f32 %v1870, %v1903
      %v1910 = vadd.f32 %v1871, %v1903
      %v1911 = vadd.f32 %v1872, %v1903
      %v1912 = vadd.f32 %v1873, %v1903
      %v1913 = vadd.f32 %v1874, %v1903
      %v1914 = vadd.f32 %v1875, %v1903
      %v1915 = vadd.f32 %v1876, %v1903
      %v1916 = vadd.f32 %v1877, %v1903
      %v1917 = vadd.f32 %v1878, %v1903
      %v1918 = vadd.f32 %v1879, %v1903
      %v1919 = vadd.f32 %v1880, %v1903
      %v1920 = vadd.f32 %v1881, %v1903
      %v1921 = vadd.f32 %v1882, %v1903
      %v1922 = vadd.f32 %v1883, %v1903
      %v1923 = vadd.f32 %v1884, %v1903
      %v1924 = vadd.f32 %v1885, %v1903
      %v1925 = vadd.f32 %v1886, %v1903
      %v1926 = vadd.f32 %v1887, %v1903
      %v1927 = vadd.f32 %v1888, %v1903
      %v1928 = vadd.f32 %v1889, %v1903
      %v1929 = vadd.f32 %v1890, %v1903
      %v1930 = vadd.f32 %v1891, %v1903
      %v1931 = vadd.f32 %v1892, %v1903
      %v1932 = vadd.f32 %v1893, %v1903
      %v1933 = vadd.f32 %v1894, %v1903
      %v1934 = vadd.f32 %v1895, %v1903
      %v1935 = vadd.f32 %v1896, %v1903
      %v1936 = vadd.f32 %v1897, %v1903
      %vm1937 = vcmask 785408
      %1938 = vst.msk [vmem:[%s170] sm:$0xff] %vm1937, %v1905
      %1939 = vst.msk [vmem:[%s170 + $0x8] sm:$0xff] %vm1937, %v1906
      %1940 = vst.msk [vmem:[%s170 + $0x10] sm:$0xff] %vm1937, %v1907
      %1941 = vst.msk [vmem:[%s170 + $0x18] sm:$0xff] %vm1937, %v1908
      %1942 = vst.msk [vmem:[%s170 + $0x20] sm:$0xff] %vm1937, %v1909
      %1943 = vst.msk [vmem:[%s170 + $0x28] sm:$0xff] %vm1937, %v1910
      %1944 = vst.msk [vmem:[%s170 + $0x30] sm:$0xff] %vm1937, %v1911
      %1945 = vst.msk [vmem:[%s170 + $0x38] sm:$0xff] %vm1937, %v1912
      %1946 = vst.msk [vmem:[%s170 + $0x40] sm:$0xff] %vm1937, %v1913
      %1947 = vst.msk [vmem:[%s170 + $0x48] sm:$0xff] %vm1937, %v1914
      %1948 = vst.msk [vmem:[%s170 + $0x50] sm:$0xff] %vm1937, %v1915
      %1949 = vst.msk [vmem:[%s170 + $0x58] sm:$0xff] %vm1937, %v1916
      %1950 = vst.msk [vmem:[%s170 + $0x60] sm:$0xff] %vm1937, %v1917
      %1951 = vst.msk [vmem:[%s170 + $0x68] sm:$0xff] %vm1937, %v1918
      %1952 = vst.msk [vmem:[%s170 + $0x70] sm:$0xff] %vm1937, %v1919
      %1953 = vst.msk [vmem:[%s170 + $0x78] sm:$0xff] %vm1937, %v1920
      %1954 = vst.msk [vmem:[%s170 + $0x80] sm:$0xff] %vm1937, %v1921
      %1955 = vst.msk [vmem:[%s170 + $0x88] sm:$0xff] %vm1937, %v1922
      %1956 = vst.msk [vmem:[%s170 + $0x90] sm:$0xff] %vm1937, %v1923
      %1957 = vst.msk [vmem:[%s170 + $0x98] sm:$0xff] %vm1937, %v1924
      %1958 = vst.msk [vmem:[%s170 + $0xa0] sm:$0xff] %vm1937, %v1925
      %1959 = vst.msk [vmem:[%s170 + $0xa8] sm:$0xff] %vm1937, %v1926
      %1960 = vst.msk [vmem:[%s170 + $0xb0] sm:$0xff] %vm1937, %v1927
      %1961 = vst.msk [vmem:[%s170 + $0xb8] sm:$0xff] %vm1937, %v1928
      %1962 = vst.msk [vmem:[%s170 + $0xc0] sm:$0xff] %vm1937, %v1929
      %1963 = vst.msk [vmem:[%s170 + $0xc8] sm:$0xff] %vm1937, %v1930
      %1964 = vst.msk [vmem:[%s170 + $0xd0] sm:$0xff] %vm1937, %v1931
      %1965 = vst.msk [vmem:[%s170 + $0xd8] sm:$0xff] %vm1937, %v1932
      %1966 = vst.msk [vmem:[%s170 + $0xe0] sm:$0xff] %vm1937, %v1933
      %1967 = vst.msk [vmem:[%s170 + $0xe8] sm:$0xff] %vm1937, %v1934
      %1968 = vst.msk [vmem:[%s170 + $0xf0] sm:$0xff] %vm1937, %v1935
      %1969 = vst.msk [vmem:[%s170 + $0xf8] sm:$0xff] %vm1937, %v1936
      %p1970 = scmp.lt.s32.totalorder %s14, 1
      %s1971 = scalar_select %p1970, %s14, 1
      %s1972 = smul.addr %s1971, 32
      %s1973 = smul.addr %s1972, 8
      %s1974 = scalar_lea.vmem %s3, %s1973
      // Predicated region
      $region33: #{attention_forward.8} parent=31 // pred_check
        %p1975 = pneg %p100
      $region34: #{attention_forward.8} parent=31 // pred_check_branch
        %1977 = sbr.rel (%p1975) target = $region36
      $region35: #{attention_forward.8} parent=31 // pred_region
        _
      $region36: #{attention_forward.8} parent=31 // pred_fallthru
        _
    $region32: #{attention_forward.8} parent=5 // pred_fallthru
      _
    %p1978 = scmp.le.s32.totalorder 2, %s9
    // Predicated region
    $region37: #{attention_forward.8} parent=5 // pred_check
      %p1979 = pneg %p1978
    $region38: #{attention_forward.8} parent=5 // pred_check_branch
      %1981 = sbr.rel (%p1979) target = $region40
    $region39: #{attention_forward.8} parent=5 // pred_region
      %s1982 = ssub.s32 %s9, 2
      // Predicated region
      $region41: #{attention_forward.8} parent=39 // pred_check
        %p1983 = pneg %p106
      $region42: #{attention_forward.8} parent=39 // pred_check_branch
        %1985 = sbr.rel (%p1983) target = $region44
      $region43: #{attention_forward.8} parent=39 // pred_region
        %p1986 = scmp.lt.s32.totalorder %s15, 1
        %s1987 = scalar_select %p1986, %s15, 1
        %s1988 = smul.addr %s1987, 32
        %s1989 = smul.addr %s1988, 8
        %s1990 = scalar_lea.vmem %s3, %s1989
      $region44: #{attention_forward.8} parent=39 // pred_fallthru
        _
    $region40: #{attention_forward.8} parent=5 // pred_fallthru
      _
  $region6: #{attention_forward.8} parent=0 // loop_footer
    %s13 = sadd.s32 1, %s9
  $region7: #{attention_forward.8} parent=0 // loop_footer_branch
    %8 = sbr.rel target = $region3
  $region8: #{attention_forward.8} parent=0 // loop_exit
    _

// kernel: attention_forward.10
$region0: #{attention_forward.10}
  #allocation0 [shape = 'u32[]', space=smem, size = 0x4, offset = 0x4, fixed_abs, tag = 'smem constant byte address 0x4 - core index']
  #allocation1 [shape = 'u32[144,128]{1,0:T(1,128)}', space=vmem, size = 0x12000, scoped, tag = 'internal scratch']
  %s0 = inlined_call_operand.vmem [shape: f32[2,2,16,256], index: 0, kind: input, shape index: {}]
  %s1 = inlined_call_operand.vmem [shape: f32[2,2,16,256], index: 1, kind: input, shape index: {}]
  %s2 = inlined_call_operand.vmem [shape: f32[2,2,16,256], index: 2, kind: input, shape index: {}]
  %s3 = inlined_call_operand.vmem [shape: f32[2,1,1], index: 3, kind: input, shape index: {}]
  %s4 = inlined_call_operand.vmem [shape: f32[2,2,16,256], index: 4, kind: output, shape index: {}]
  %s5 = sld [smem:[#allocation0]]
  $region49: #{attention_forward.10} parent=0
    _
  %s7 = ssub.s32 1, %s5
  %s8 = scalar_select 0, %s7, %s5
  loop: start=0, step=1, limit=6
  $region2: #{attention_forward.10} parent=0 // loop_pre_header
    _
  $region3: #{attention_forward.10} parent=0 // loop_header
    %s10 = sphi 0, %s14
    %p11 = scmp.ge.s32.totalorder %s10, 6
    %s17 = sphi 0, %s29
    %s18 = sphi 0, %s25
    %s19 = sphi 0, %s17
    %s20 = sphi 0, %s18
    %s21 = sphi 0, %s19
    %s22 = sphi 0, %s20
    %s34 = sphi 0, %s36
    %s37 = sphi 0, %s34
    %s38 = sphi 0, %s37
    %s54 = sphi 0, %s38
    %s62 = sphi 0, %s64
    %s65 = sphi 0, %s62
    %s66 = sphi 0, %s65
    %s82 = sphi 0, %s66
    %s90 = sphi 0, %s92
    %s93 = sphi 0, %s90
    %s94 = sphi 0, %s93
    %s110 = sphi 0, %s94
    %s116 = sphi 0, %s118
    %s119 = sphi 0, %s116
    %s120 = sphi 0, %s119
    %s136 = sphi 0, %s120
    %s144 = sphi 0, %s146
    %s147 = sphi 0, %s144
    %s148 = sphi 0, %s147
    %s164 = sphi 0, %s148
  $region4: #{attention_forward.10} parent=0 // loop_header_branch
    %13 = sbr.rel (%p11) target = $region8
  $region5: #{attention_forward.10} parent=0 // loop_body
    %s15 = ssub.s32 %s10, 1
    %s16 = ssub.s32 %s10, 2
    %s23 = sadd.s32 1, %s18
    %p24 = scmp.ge.s32.totalorder %s23, 2
    %s25 = scalar_select %p24, 0, %s23
    %s26 = sadd.s32 1, %s17
    %s27 = scalar_select %p24, %s26, %s17
    %p28 = scmp.ge.s32.totalorder %s27, 2
    %s29 = scalar_select %p28, 0, %s27
    %s30 = ssub.s32 %s17, %s29
    %s31 = ssub.s32 %s18, %s25
    %s32 = sor.u32 %s30, %s31
    %p33 = scmp.eq.s32.totalorder %s32, 0
    %s35 = sadd.s32 %s34, 1
    %s36 = scalar_select %p33, %s34, %s35
    %p39 = pneg %p33
    %p40 = scmp.eq.s32.totalorder %s10, 3
    %p41 = por %p39, %p40
    %p42 = scmp.ne.s32.totalorder %s34, %s37
    %p43 = scmp.eq.s32.totalorder %s10, 0
    %p44 = por %p42, %p43
    %p45 = scmp.ne.s32.totalorder %s34, %s37
    %p46 = scmp.eq.s32.totalorder %s15, 3
    %p47 = por %p45, %p46
    %p48 = scmp.ne.s32.totalorder %s37, %s38
    %p49 = scmp.eq.s32.totalorder %s15, 0
    %p50 = por %p48, %p49
    %p51 = scmp.ne.s32.totalorder %s37, %s38
    %p52 = scmp.eq.s32.totalorder %s16, 3
    %p53 = por %p51, %p52
    %p55 = scmp.ne.s32.totalorder %s38, %s54
    %p56 = scmp.eq.s32.totalorder %s16, 0
    %p57 = por %p55, %p56
    %s58 = ssub.s32 %s17, %s29
    %s59 = ssub.s32 %s18, %s25
    %s60 = sor.u32 %s58, %s59
    %p61 = scmp.eq.s32.totalorder %s60, 0
    %s63 = sadd.s32 %s62, 1
    %s64 = scalar_select %p61, %s62, %s63
    %p67 = pneg %p61
    %p68 = scmp.eq.s32.totalorder %s10, 3
    %p69 = por %p67, %p68
    %p70 = scmp.ne.s32.totalorder %s62, %s65
    %p71 = scmp.eq.s32.totalorder %s10, 0
    %p72 = por %p70, %p71
    %p73 = scmp.ne.s32.totalorder %s62, %s65
    %p74 = scmp.eq.s32.totalorder %s15, 3
    %p75 = por %p73, %p74
    %p76 = scmp.ne.s32.totalorder %s65, %s66
    %p77 = scmp.eq.s32.totalorder %s15, 0
    %p78 = por %p76, %p77
    %p79 = scmp.ne.s32.totalorder %s65, %s66
    %p80 = scmp.eq.s32.totalorder %s16, 3
    %p81 = por %p79, %p80
    %p83 = scmp.ne.s32.totalorder %s66, %s82
    %p84 = scmp.eq.s32.totalorder %s16, 0
    %p85 = por %p83, %p84
    %s86 = ssub.s32 %s17, %s29
    %s87 = ssub.s32 %s18, %s25
    %s88 = sor.u32 %s86, %s87
    %p89 = scmp.eq.s32.totalorder %s88, 0
    %s91 = sadd.s32 %s90, 1
    %s92 = scalar_select %p89, %s90, %s91
    %p95 = pneg %p89
    %p96 = scmp.eq.s32.totalorder %s10, 3
    %p97 = por %p95, %p96
    %p98 = scmp.ne.s32.totalorder %s90, %s93
    %p99 = scmp.eq.s32.totalorder %s10, 0
    %p100 = por %p98, %p99
    %p101 = scmp.ne.s32.totalorder %s90, %s93
    %p102 = scmp.eq.s32.totalorder %s15, 3
    %p103 = por %p101, %p102
    %p104 = scmp.ne.s32.totalorder %s93, %s94
    %p105 = scmp.eq.s32.totalorder %s15, 0
    %p106 = por %p104, %p105
    %p107 = scmp.ne.s32.totalorder %s93, %s94
    %p108 = scmp.eq.s32.totalorder %s16, 3
    %p109 = por %p107, %p108
    %p111 = scmp.ne.s32.totalorder %s94, %s110
    %p112 = scmp.eq.s32.totalorder %s16, 0
    %p113 = por %p111, %p112
    %s114 = ssub.s32 %s18, %s25
    %p115 = scmp.eq.s32.totalorder %s114, 0
    %s117 = sadd.s32 %s116, 1
    %s118 = scalar_select %p115, %s116, %s117
    %p121 = pneg %p115
    %p122 = scmp.eq.s32.totalorder %s10, 3
    %p123 = por %p121, %p122
    %p124 = scmp.ne.s32.totalorder %s116, %s119
    %p125 = scmp.eq.s32.totalorder %s10, 0
    %p126 = por %p124, %p125
    %p127 = scmp.ne.s32.totalorder %s116, %s119
    %p128 = scmp.eq.s32.totalorder %s15, 3
    %p129 = por %p127, %p128
    %p130 = scmp.ne.s32.totalorder %s119, %s120
    %p131 = scmp.eq.s32.totalorder %s15, 0
    %p132 = por %p130, %p131
    %p133 = scmp.ne.s32.totalorder %s119, %s120
    %p134 = scmp.eq.s32.totalorder %s16, 3
    %p135 = por %p133, %p134
    %p137 = scmp.ne.s32.totalorder %s120, %s136
    %p138 = scmp.eq.s32.totalorder %s16, 0
    %p139 = por %p137, %p138
    %s140 = ssub.s32 %s17, %s29
    %s141 = ssub.s32 %s18, %s25
    %s142 = sor.u32 %s140, %s141
    %p143 = scmp.eq.s32.totalorder %s142, 0
    %s145 = sadd.s32 %s144, 1
    %s146 = scalar_select %p143, %s144, %s145
    %p149 = pneg %p143
    %p150 = scmp.eq.s32.totalorder %s10, 3
    %p151 = por %p149, %p150
    %p152 = scmp.ne.s32.totalorder %s144, %s147
    %p153 = scmp.eq.s32.totalorder %s10, 0
    %p154 = por %p152, %p153
    %p155 = scmp.ne.s32.totalorder %s144, %s147
    %p156 = scmp.eq.s32.totalorder %s15, 3
    %p157 = por %p155, %p156
    %p158 = scmp.ne.s32.totalorder %s147, %s148
    %p159 = scmp.eq.s32.totalorder %s15, 0
    %p160 = por %p158, %p159
    %p161 = scmp.ne.s32.totalorder %s147, %s148
    %p162 = scmp.eq.s32.totalorder %s16, 3
    %p163 = por %p161, %p162
    %p165 = scmp.ne.s32.totalorder %s148, %s164
    %p166 = scmp.eq.s32.totalorder %s16, 0
    %p167 = por %p165, %p166
    %p168 = scmp.le.s32.totalorder 1, %s10
    %p169 = scmp.lt.s32.totalorder %s10, 5
    %p170 = pnand %p168, %p169
    %p171 = pneg %p170
    // Predicated region
    $region9: #{attention_forward.10} parent=5 // pred_check
      _
    $region10: #{attention_forward.10} parent=5 // pred_check_branch
      %173 = sbr.rel (%p170) target = $region12
    $region11: #{attention_forward.10} parent=5 // pred_region
      %s174 = ssub.s32 %s10, 1
    $region12: #{attention_forward.10} parent=5 // pred_fallthru
      _
    %p175 = scmp.lt.s32.totalorder %s10, 4
    // Predicated region
    $region13: #{attention_forward.10} parent=5 // pred_check
      %p176 = pneg %p175
    $region14: #{attention_forward.10} parent=5 // pred_check_branch
      %178 = sbr.rel (%p176) target = $region16
    $region15: #{attention_forward.10} parent=5 // pred_region
      // Predicated region
      $region17: #{attention_forward.10} parent=15 // pred_check
        %p179 = pneg %p44
      $region18: #{attention_forward.10} parent=15 // pred_check_branch
        %181 = sbr.rel (%p179) target = $region20
      $region19: #{attention_forward.10} parent=15 // pred_region
        %p182 = scmp.lt.s32.totalorder %s17, 1
        %s183 = scalar_select %p182, %s17, 1
        %p184 = scmp.lt.s32.totalorder %s18, 1
        %s185 = scalar_select %p184, %s18, 1
        %s186 = smul.addr %s185, 4
        %s187 = smul.addr %s183, 8
        %s188 = sadd.s32 %s186, %s187
        %s189 = smul.addr %s188, 8
        %s190 = scalar_lea.vmem %s0, %s189
      $region20: #{attention_forward.10} parent=15 // pred_fallthru
        _
      // Predicated region
      $region21: #{attention_forward.10} parent=15 // pred_check
        %p191 = pneg %p72
      $region22: #{attention_forward.10} parent=15 // pred_check_branch
        %193 = sbr.rel (%p191) target = $region24
      $region23: #{attention_forward.10} parent=15 // pred_region
        %p194 = scmp.lt.s32.totalorder %s17, 1
        %s195 = scalar_select %p194, %s17, 1
        %p196 = scmp.lt.s32.totalorder %s18, 1
        %s197 = scalar_select %p196, %s18, 1
        %s198 = smul.addr %s197, 4
        %s199 = smul.addr %s195, 8
        %s200 = sadd.s32 %s198, %s199
        %s201 = smul.addr %s200, 8
        %s202 = scalar_lea.vmem %s1, %s201
      $region24: #{attention_forward.10} parent=15 // pred_fallthru
        _
      // Predicated region
      $region25: #{attention_forward.10} parent=15 // pred_check
        %p203 = pneg %p100
      $region26: #{attention_forward.10} parent=15 // pred_check_branch
        %205 = sbr.rel (%p203) target = $region28
      $region27: #{attention_forward.10} parent=15 // pred_region
        %p206 = scmp.lt.s32.totalorder %s17, 1
        %s207 = scalar_select %p206, %s17, 1
        %p208 = scmp.lt.s32.totalorder %s18, 1
        %s209 = scalar_select %p208, %s18, 1
        %s210 = smul.addr %s209, 4
        %s211 = smul.addr %s207, 8
        %s212 = sadd.s32 %s210, %s211
        %s213 = smul.addr %s212, 8
        %s214 = scalar_lea.vmem %s2, %s213
      $region28: #{attention_forward.10} parent=15 // pred_fallthru
        _
      // Predicated region
      $region29: #{attention_forward.10} parent=15 // pred_check
        %p215 = pneg %p126
      $region30: #{attention_forward.10} parent=15 // pred_check_branch
        %217 = sbr.rel (%p215) target = $region32
      $region31: #{attention_forward.10} parent=15 // pred_region
        %p218 = scmp.lt.s32.totalorder %s18, 1
        %s219 = scalar_select %p218, %s18, 1
        %s220 = scalar_lea.vmem %s3, %s219
      $region32: #{attention_forward.10} parent=15 // pred_fallthru
        _
    $region16: #{attention_forward.10} parent=5 // pred_fallthru
      _
    %p221 = scmp.le.s32.totalorder 1, %s10
    %p222 = scmp.lt.s32.totalorder %s10, 5
    %p223 = pnand %p221, %p222
    %p224 = pneg %p223
    // Predicated region
    $region33: #{attention_forward.10} parent=5 // pred_check
      _
    $region34: #{attention_forward.10} parent=5 // pred_check_branch
      %226 = sbr.rel (%p223) target = $region36
    $region35: #{attention_forward.10} parent=5 // pred_region
      %s227 = ssub.s32 %s10, 1
      %p228 = scmp.lt.s32.totalorder %s19, 1
      %s229 = scalar_select %p228, %s19, 1
      %p230 = scmp.lt.s32.totalorder %s20, 1
      %s231 = scalar_select %p230, %s20, 1
      %s232 = smul.addr %s231, 4
      %s233 = smul.addr %s229, 8
      %s234 = sadd.s32 %s232, %s233
      %s235 = smul.addr %s234, 8
      %s236 = scalar_lea.vmem %s0, %s235
      %p237 = pneg %p50
      %p238 = pneg %p47
      %p239 = scmp.lt.s32.totalorder %s19, 1
      %s240 = scalar_select %p239, %s19, 1
      %p241 = scmp.lt.s32.totalorder %s20, 1
      %s242 = scalar_select %p241, %s20, 1
      %s243 = smul.addr %s242, 4
      %s244 = smul.addr %s240, 8
      %s245 = sadd.s32 %s243, %s244
      %s246 = smul.addr %s245, 8
      %s247 = scalar_lea.vmem %s1, %s246
      %p248 = pneg %p78
      %p249 = pneg %p75
      %p250 = scmp.lt.s32.totalorder %s19, 1
      %s251 = scalar_select %p250, %s19, 1
      %p252 = scmp.lt.s32.totalorder %s20, 1
      %s253 = scalar_select %p252, %s20, 1
      %s254 = smul.addr %s253, 4
      %s255 = smul.addr %s251, 8
      %s256 = sadd.s32 %s254, %s255
      %s257 = smul.addr %s256, 8
      %s258 = scalar_lea.vmem %s2, %s257
      %p259 = pneg %p106
      %p260 = pneg %p103
      %p261 = scmp.lt.s32.totalorder %s20, 1
      %s262 = scalar_select %p261, %s20, 1
      %s263 = scalar_lea.vmem %s3, %s262
      %p264 = pneg %p132
      %p265 = pneg %p129
      %p266 = pneg %p160
      %p267 = pneg %p157
      %p268 = scmp.lt.s32.totalorder %s19, 1
      %s269 = scalar_select %p268, %s19, 1
      %p270 = scmp.lt.s32.totalorder %s20, 1
      %s271 = scalar_select %p270, %s20, 1
      %s272 = smul.addr %s271, 4
      %s273 = smul.addr %s269, 8
      %s274 = sadd.s32 %s272, %s273
      %s275 = smul.addr %s274, 8
      %s276 = scalar_lea.vmem %s4, %s275
      %p277 = scmp.lt.s32.totalorder %s19, 1
      %s278 = scalar_select %p277, %s19, 1
      %p279 = scmp.lt.s32.totalorder %s20, 1
      %s280 = scalar_select %p279, %s20, 1
      %s281 = smul.addr %s280, 4
      %s282 = smul.addr %s278, 8
      %s283 = sadd.s32 %s281, %s282
      %s284 = smul.addr %s283, 8
      %s285 = scalar_lea.vmem %s0, %s284
      %p286 = scmp.lt.s32.totalorder %s19, 1
      %s287 = scalar_select %p286, %s19, 1
      %p288 = scmp.lt.s32.totalorder %s20, 1
      %s289 = scalar_select %p288, %s20, 1
      %s290 = smul.addr %s289, 4
      %s291 = smul.addr %s287, 8
      %s292 = sadd.s32 %s290, %s291
      %s293 = smul.addr %s292, 8
      %s294 = scalar_lea.vmem %s1, %s293
      %p295 = scmp.lt.s32.totalorder %s19, 1
      %s296 = scalar_select %p295, %s19, 1
      %p297 = scmp.lt.s32.totalorder %s20, 1
      %s298 = scalar_select %p297, %s20, 1
      %s299 = smul.addr %s298, 4
      %s300 = smul.addr %s296, 8
      %s301 = sadd.s32 %s299, %s300
      %s302 = smul.addr %s301, 8
      %s303 = scalar_lea.vmem %s2, %s302
      %p304 = scmp.lt.s32.totalorder %s20, 1
      %s305 = scalar_select %p304, %s20, 1
      %s306 = scalar_lea.vmem %s3, %s305
      %p307 = scmp.lt.s32.totalorder %s19, 1
      %s308 = scalar_select %p307, %s19, 1
      %p309 = scmp.lt.s32.totalorder %s20, 1
      %s310 = scalar_select %p309, %s20, 1
      %s311 = smul.addr %s310, 4
      %s312 = smul.addr %s308, 8
      %s313 = sadd.s32 %s311, %s312
      %s314 = smul.addr %s313, 8
      %s315 = scalar_lea.vmem %s4, %s314
      %v316 = vld [vmem:[%s285] sm:$0xff]
      %v317 = vld [vmem:[%s285 + $0x8] sm:$0xff]
      %v318 = vld [vmem:[%s285 + $0x10] sm:$0xff]
      %v319 = vld [vmem:[%s285 + $0x18] sm:$0xff]
      %v320 = vld [vmem:[%s294] sm:$0xff]
      %v321 = vld [vmem:[%s294 + $0x8] sm:$0xff]
      %v322 = vld [vmem:[%s294 + $0x10] sm:$0xff]
      %v323 = vld [vmem:[%s294 + $0x18] sm:$0xff]
      %v324 = vld [vmem:[%s303] sm:$0xff]
      %v325 = vld [vmem:[%s303 + $0x8] sm:$0xff]
      %v326 = vld [vmem:[%s303 + $0x10] sm:$0xff]
      %v327 = vld [vmem:[%s303 + $0x18] sm:$0xff]
      %v328 = vmul.f32 %v316, %v316
      %v329 = vmul.f32 %v317, %v317
      %v330 = vmul.f32 %v318, %v318
      %v331 = vmul.f32 %v319, %v319
      %v332 = vadd.f32 %v328, %v329
      %333 = vadd.xlane.f32.xlu0 %v332
      %v334 = vpop.xlane.xlu0 %333
      %v335 = vadd.f32 %v330, %v331
      %336 = vadd.xlane.f32.xlu0 %v335
      %v337 = vpop.xlane.xlu0 %336
      %v338 = vrsqrt.pop %v334
      %v339 = vmul.f32 %v334, %v338
      %vm340 = vcmp.eq.f32.partialorder %v334, inf
      %v341 = vsel %vm340, %v334, %v339
      %vm342 = vcmp.eq.f32.partialorder %v334, 0.0
      %v343 = vand.u32 %v334, 2147483648
      %v344 = vsel %vm342, %v343, %v341
      %v345 = vrsqrt.pop %v337
      %v346 = vmul.f32 %v337, %v345
      %vm347 = vcmp.eq.f32.partialorder %v337, inf
      %v348 = vsel %vm347, %v337, %v346
      %vm349 = vcmp.eq.f32.partialorder %v337, 0.0
      %v350 = vand.u32 %v337, 2147483648
      %v351 = vsel %vm349, %v350, %v348
      %v352 = vmax.f32 %v344, 1e-12
      %v353 = vmax.f32 %v351, 1e-12
      %v354 = vrcp.pop %v352
      %v355 = vmul.f32 %v316, %v354
      %v356 = vmul.f32 %v317, %v354
      %v357 = vrcp.pop %v353
      %v358 = vmul.f32 %v318, %v357
      %v359 = vmul.f32 %v319, %v357
      %v360 = vmul.f32 %v320, %v320
      %v361 = vmul.f32 %v321, %v321
      %v362 = vmul.f32 %v322, %v322
      %v363 = vmul.f32 %v323, %v323
      %v364 = vadd.f32 %v360, %v361
      %365 = vadd.xlane.f32.xlu0 %v364
      %v366 = vpop.xlane.xlu0 %365
      %v367 = vadd.f32 %v362, %v363
      %368 = vadd.xlane.f32.xlu0 %v367
      %v369 = vpop.xlane.xlu0 %368
      %v370 = vrsqrt.pop %v366
      %v371 = vmul.f32 %v366, %v370
      %vm372 = vcmp.eq.f32.partialorder %v366, inf
      %v373 = vsel %vm372, %v366, %v371
      %vm374 = vcmp.eq.f32.partialorder %v366, 0.0
      %v375 = vand.u32 %v366, 2147483648
      %v376 = vsel %vm374, %v375, %v373
      %v377 = vrsqrt.pop %v369
      %v378 = vmul.f32 %v369, %v377
      %vm379 = vcmp.eq.f32.partialorder %v369, inf
      %v380 = vsel %vm379, %v369, %v378
      %vm381 = vcmp.eq.f32.partialorder %v369, 0.0
      %v382 = vand.u32 %v369, 2147483648
      %v383 = vsel %vm381, %v382, %v380
      %v384 = vmax.f32 %v376, 1e-12
      %v385 = vmax.f32 %v383, 1e-12
      %v386 = vrcp.pop %v384
      %v387 = vmul.f32 %v320, %v386
      %v388 = vmul.f32 %v321, %v386
      %v389 = vrcp.pop %v385
      %v390 = vmul.f32 %v322, %v389
      %v391 = vmul.f32 %v323, %v389
      %392 = vmatprep.subr.mxu0 %v388
      %393 = vmatpush1.xpose.msra.mxu0 %v387
      %394 = vmatprep.subr.mxu0 %v391
      %395 = vmatpush1.xpose.msra.mxu0 %v390
      %396 = vmatprep.subr.mxu0 0.0
      %397 = vmatpush1.xpose.msra.mxu0 0.0
      %398 = vmatprep.subr.mxu0 0.0
      %399 = vmatpush1.xpose.msra.mxu0 0.0
      %400 = vmatprep.subr.mxu0 0.0
      %401 = vmatpush1.xpose.msra.mxu0 0.0
      %402 = vmatprep.subr.mxu0 0.0
      %403 = vmatpush1.xpose.msra.mxu0 0.0
      %404 = vmatprep.subr.mxu0 0.0
      %405 = vmatpush1.xpose.msra.mxu0 0.0
      %406 = vmatprep.subr.mxu0 0.0
      %407 = vmatpush1.xpose.msra.mxu0 0.0
      %408 = vmatprep.subr.mxu0 0.0
      %409 = vmatpush1.xpose.msra.mxu0 0.0
      %410 = vmatprep.subr.mxu0 0.0
      %411 = vmatpush1.xpose.msra.mxu0 0.0
      %412 = vmatprep.subr.mxu0 0.0
      %413 = vmatpush1.xpose.msra.mxu0 0.0
      %414 = vmatprep.subr.mxu0 0.0
      %415 = vmatpush1.xpose.msra.mxu0 0.0
      %416 = vmatprep.subr.mxu0 0.0
      %417 = vmatpush1.xpose.msra.mxu0 0.0
      %418 = vmatprep.subr.mxu0 0.0
      %419 = vmatpush1.xpose.msra.mxu0 0.0
      %420 = vmatprep.subr.mxu0 0.0
      %421 = vmatpush1.xpose.msra.mxu0 0.0
      %422 = vmatprep.subr.mxu0 0.0
      %423 = vmatpush1.xpose.msra.mxu0 0.0
      %424 = vmatprep.subr.mxu0 0.0
      %425 = vmatpush1.xpose.msra.mxu0 0.0
      %426 = vmatprep.subr.mxu0 0.0
      %427 = vmatpush1.xpose.msra.mxu0 0.0
      %428 = vmatprep.subr.mxu0 0.0
      %429 = vmatpush1.xpose.msra.mxu0 0.0
      %430 = vmatprep.subr.mxu0 0.0
      %431 = vmatpush1.xpose.msra.mxu0 0.0
      %432 = vmatprep.subr.mxu0 0.0
      %433 = vmatpush1.xpose.msra.mxu0 0.0
      %434 = vmatprep.subr.mxu0 0.0
      %435 = vmatpush1.xpose.msra.mxu0 0.0
      %436 = vmatprep.subr.mxu0 0.0
      %437 = vmatpush1.xpose.msra.mxu0 0.0
      %438 = vmatprep.subr.mxu0 0.0
      %439 = vmatpush1.xpose.msra.mxu0 0.0
      %440 = vmatprep.subr.mxu0 0.0
      %441 = vmatpush1.xpose.msra.mxu0 0.0
      %442 = vmatprep.subr.mxu0 0.0
      %443 = vmatpush1.xpose.msra.mxu0 0.0
      %444 = vmatprep.subr.mxu0 0.0
      %445 = vmatpush1.xpose.msra.mxu0 0.0
      %446 = vmatprep.subr.mxu0 0.0
      %447 = vmatpush1.xpose.msra.mxu0 0.0
      %448 = vmatprep.subr.mxu0 0.0
      %449 = vmatpush1.xpose.msra.mxu0 0.0
      %450 = vmatprep.subr.mxu0 0.0
      %451 = vmatpush1.xpose.msra.mxu0 0.0
      %452 = vmatprep.subr.mxu0 0.0
      %453 = vmatpush1.xpose.msra.mxu0 0.0
      %454 = vmatprep.subr.mxu0 0.0
      %455 = vmatpush1.xpose.msra.mxu0 0.0
      %456 = vmatprep.mubr.f32.mxu0 %v356
      %457 = vmatmul.mubr.f32.gmra.mrb[0].mxu0 %v355
      %v458 = vpop.f32.mrb[0].mxu0
      %v459 = vadd.f32 0.0, %v458
      %v460 = vpop.f32.mrb[0].mxu0
      %461 = vmatprep.mubr.f32.mxu0 %v359
      %462 = vmatmul.mubr.f32.gmra.mrb[0].mxu0 %v358
      %v463 = vpop.f32.mrb[0].mxu0
      %v464 = vadd.f32 0.0, %v463
      %v465 = vpop.f32.mrb[0].mxu0
      %466 = vdwg.mxu0
      %v467 = vld [vmem:[%s306] sm:$0x1]
      %v469 = vlaneseq
      %v470 = vshrl.u32 %v469, 7
      %v471 = vsub.s32 0, %v470
      %v472 = vrot.slane %v467, %v471
      %473 = vset.pattern.permute.xlu0 0
      %474 = vperm.xlu0 %473, %v472
      %v475 = vpop.permute.xlu0 %474
      %v477 = vmul.f32 %v459, %v475
      %v478 = vmul.f32 %v464, %v475
      %vm479 = vcmask 130048
      %v480 = vsel %vm479, %v477, -inf
      %481 = vmax.xlane.f32.xlu0 %v480
      %v482 = vpop.xlane.xlu0 %481
      %v483 = vsel %vm479, %v478, -inf
      %484 = vmax.xlane.f32.xlu0 %v483
      %v485 = vpop.xlane.xlu0 %484
      %v486 = vsub.f32 %v477, %v482
      %v487 = vsub.f32 %v478, %v485
      %v488 = vmul.f32 %v486, 1.442695
      %v489 = vpow.pop %v488
      %v490 = vmul.f32 %v487, 1.442695
      %v491 = vpow.pop %v490
      %v492 = vsel %vm479, %v489, 0.0
      %493 = vadd.xlane.f32.xlu0 %v492
      %v494 = vpop.xlane.xlu0 %493
      %v495 = vsel %vm479, %v491, 0.0
      %496 = vadd.xlane.f32.xlu0 %v495
      %v497 = vpop.xlane.xlu0 %496
      %v498 = vrcp.pop %v494
      %v499 = vmul.f32 %v489, %v498
      %v500 = vrcp.pop %v497
      %v501 = vmul.f32 %v491, %v500
      %v503 = vsel %vm479, %v499, 0
      %v506 = vsel %vm479, %v501, 0
      %508 = vmatprep.subr.mxu0 %v325
      %509 = vmatpush1.msra.mxu0 %v324
      %510 = vmatprep.subr.mxu0 %v327
      %511 = vmatpush1.msra.mxu0 %v326
      %512 = vmatprep.subr.mxu0 0.0
      %513 = vmatpush1.msra.mxu0 0.0
      %514 = vmatprep.subr.mxu0 0.0
      %515 = vmatpush1.msra.mxu0 0.0
      %516 = vmatprep.subr.mxu0 0.0
      %517 = vmatpush1.msra.mxu0 0.0
      %518 = vmatprep.subr.mxu0 0.0
      %519 = vmatpush1.msra.mxu0 0.0
      %520 = vmatprep.subr.mxu0 0.0
      %521 = vmatpush1.msra.mxu0 0.0
      %522 = vmatprep.subr.mxu0 0.0
      %523 = vmatpush1.msra.mxu0 0.0
      %524 = vmatprep.subr.mxu0 0.0
      %525 = vmatpush1.msra.mxu0 0.0
      %526 = vmatprep.subr.mxu0 0.0
      %527 = vmatpush1.msra.mxu0 0.0
      %528 = vmatprep.subr.mxu0 0.0
      %529 = vmatpush1.msra.mxu0 0.0
      %530 = vmatprep.subr.mxu0 0.0
      %531 = vmatpush1.msra.mxu0 0.0
      %532 = vmatprep.subr.mxu0 0.0
      %533 = vmatpush1.msra.mxu0 0.0
      %534 = vmatprep.subr.mxu0 0.0
      %535 = vmatpush1.msra.mxu0 0.0
      %536 = vmatprep.subr.mxu0 0.0
      %537 = vmatpush1.msra.mxu0 0.0
      %538 = vmatprep.subr.mxu0 0.0
      %539 = vmatpush1.msra.mxu0 0.0
      %540 = vmatprep.subr.mxu0 0.0
      %541 = vmatpush1.msra.mxu0 0.0
      %542 = vmatprep.subr.mxu0 0.0
      %543 = vmatpush1.msra.mxu0 0.0
      %544 = vmatprep.subr.mxu0 0.0
      %545 = vmatpush1.msra.mxu0 0.0
      %546 = vmatprep.subr.mxu0 0.0
      %547 = vmatpush1.msra.mxu0 0.0
      %548 = vmatprep.subr.mxu0 0.0
      %549 = vmatpush1.msra.mxu0 0.0
      %550 = vmatprep.subr.mxu0 0.0
      %551 = vmatpush1.msra.mxu0 0.0
      %552 = vmatprep.subr.mxu0 0.0
      %553 = vmatpush1.msra.mxu0 0.0
      %554 = vmatprep.subr.mxu0 0.0
      %555 = vmatpush1.msra.mxu0 0.0
      %556 = vmatprep.subr.mxu0 0.0
      %557 = vmatpush1.msra.mxu0 0.0
      %558 = vmatprep.subr.mxu0 0.0
      %559 = vmatpush1.msra.mxu0 0.0
      %560 = vmatprep.subr.mxu0 0.0
      %561 = vmatpush1.msra.mxu0 0.0
      %562 = vmatprep.subr.mxu0 0.0
      %563 = vmatpush1.msra.mxu0 0.0
      %564 = vmatprep.subr.mxu0 0.0
      %565 = vmatpush1.msra.mxu0 0.0
      %566 = vmatprep.subr.mxu0 0.0
      %567 = vmatpush1.msra.mxu0 0.0
      %568 = vmatprep.subr.mxu0 0.0
      %569 = vmatpush1.msra.mxu0 0.0
      %570 = vmatprep.subr.mxu0 0.0
      %571 = vmatpush1.msra.mxu0 0.0
      %572 = vmatprep.mubr.f32.mxu0 0.0
      %573 = vmatmul.mubr.f32.gmra.mrb[0].mxu0 %v503
      %v574 = vpop.f32.mrb[0].mxu0
      %v575 = vadd.f32 0.0, %v574
      %v576 = vpop.f32.mrb[0].mxu0
      %v577 = vadd.f32 0.0, %v576
      %578 = vmatprep.mubr.f32.mxu0 0.0
      %579 = vmatmul.mubr.f32.gmra.mrb[0].mxu0 %v506
      %v580 = vpop.f32.mrb[0].mxu0
      %v581 = vadd.f32 0.0, %v580
      %v582 = vpop.f32.mrb[0].mxu0
      %v583 = vadd.f32 0.0, %v582
      %584 = vdwg.mxu0
      %585 = vst [vmem:[%s315] sm:$0xff] %v575
      %586 = vst [vmem:[%s315 + $0x8] sm:$0xff] %v577
      %587 = vst [vmem:[%s315 + $0x10] sm:$0xff] %v581
      %588 = vst [vmem:[%s315 + $0x18] sm:$0xff] %v583
      %p589 = scmp.lt.s32.totalorder %s19, 1
      %s590 = scalar_select %p589, %s19, 1
      %p591 = scmp.lt.s32.totalorder %s20, 1
      %s592 = scalar_select %p591, %s20, 1
      %s593 = smul.addr %s592, 4
      %s594 = smul.addr %s590, 8
      %s595 = sadd.s32 %s593, %s594
      %s596 = smul.addr %s595, 8
      %s597 = scalar_lea.vmem %s4, %s596
      // Predicated region
      $region37: #{attention_forward.10} parent=35 // pred_check
        %p598 = pneg %p157
      $region38: #{attention_forward.10} parent=35 // pred_check_branch
        %600 = sbr.rel (%p598) target = $region40
      $region39: #{attention_forward.10} parent=35 // pred_region
        _
      $region40: #{attention_forward.10} parent=35 // pred_fallthru
        _
    $region36: #{attention_forward.10} parent=5 // pred_fallthru
      _
    %p601 = scmp.le.s32.totalorder 2, %s10
    // Predicated region
    $region41: #{attention_forward.10} parent=5 // pred_check
      %p602 = pneg %p601
    $region42: #{attention_forward.10} parent=5 // pred_check_branch
      %604 = sbr.rel (%p602) target = $region44
    $region43: #{attention_forward.10} parent=5 // pred_region
      %s605 = ssub.s32 %s10, 2
      // Predicated region
      $region45: #{attention_forward.10} parent=43 // pred_check
        %p606 = pneg %p163
      $region46: #{attention_forward.10} parent=43 // pred_check_branch
        %608 = sbr.rel (%p606) target = $region48
      $region47: #{attention_forward.10} parent=43 // pred_region
        %p609 = scmp.lt.s32.totalorder %s21, 1
        %s610 = scalar_select %p609, %s21, 1
        %p611 = scmp.lt.s32.totalorder %s22, 1
        %s612 = scalar_select %p611, %s22, 1
        %s613 = smul.addr %s612, 4
        %s614 = smul.addr %s610, 8
        %s615 = sadd.s32 %s613, %s614
        %s616 = smul.addr %s615, 8
        %s617 = scalar_lea.vmem %s4, %s616
      $region48: #{attention_forward.10} parent=43 // pred_fallthru
        _
    $region44: #{attention_forward.10} parent=5 // pred_fallthru
      _
  $region6: #{attention_forward.10} parent=0 // loop_footer
    %s14 = sadd.s32 1, %s10
  $region7: #{attention_forward.10} parent=0 // loop_footer_branch
    %9 = sbr.rel target = $region3
  $region8: #{attention_forward.10} parent=0 // loop_exit
    _

// kernel: attention_forward.12
$region0: #{attention_forward.12}
  #allocation0 [shape = 'u32[]', space=smem, size = 0x4, offset = 0x4, fixed_abs, tag = 'smem constant byte address 0x4 - core index']
  #allocation1 [shape = 'u32[144,128]{1,0:T(1,128)}', space=vmem, size = 0x12000, scoped, tag = 'internal scratch']
  %s0 = inlined_call_operand.vmem [shape: f32[2,18,18,32], index: 0, kind: input, shape index: {}]
  %s1 = inlined_call_operand.vmem [shape: f32[3,3,32], index: 1, kind: input, shape index: {}]
  %s2 = inlined_call_operand.vmem [shape: f32[1,32], index: 2, kind: input, shape index: {}]
  %s3 = inlined_call_operand.vmem [shape: f32[2,16,16,32], index: 3, kind: output, shape index: {}]
  %s4 = sld [smem:[#allocation0]]
  $region45: #{attention_forward.12} parent=0
    _
  %s6 = ssub.s32 1, %s4
  %s7 = scalar_select 0, %s6, %s4
  loop: start=0, step=1, limit=4
  $region2: #{attention_forward.12} parent=0 // loop_pre_header
    _
  $region3: #{attention_forward.12} parent=0 // loop_header
    %s9 = sphi 0, %s13
    %p10 = scmp.ge.s32.totalorder %s9, 4
    %s19 = sphi 0, %s21
    %s22 = sphi 0, %s19
    %s23 = sphi 0, %s22
    %s39 = sphi 0, %s23
    %s43 = sphi 0, %s43
    %s45 = sphi 0, %s43
    %s46 = sphi 0, %s45
    %s60 = sphi 0, %s46
    %s64 = sphi 0, %s64
    %s66 = sphi 0, %s64
    %s67 = sphi 0, %s66
    %s81 = sphi 0, %s67
    %s87 = sphi 0, %s89
    %s90 = sphi 0, %s87
    %s91 = sphi 0, %s90
    %s107 = sphi 0, %s91
  $region4: #{attention_forward.12} parent=0 // loop_header_branch
    %12 = sbr.rel (%p10) target = $region8
  $region5: #{attention_forward.12} parent=0 // loop_body
    %s14 = ssub.s32 %s9, 1
    %s15 = ssub.s32 %s9, 2
    %s16 = sadd.s32 %s9, 1
    %s17 = ssub.s32 %s9, %s16
    %p18 = scmp.eq.s32.totalorder %s17, 0
    %s20 = sadd.s32 %s19, 1
    %s21 = scalar_select %p18, %s19, %s20
    %p24 = pneg %p18
    %p25 = scmp.eq.s32.totalorder %s9, 1
    %p26 = por %p24, %p25
    %p27 = scmp.ne.s32.totalorder %s19, %s22
    %p28 = scmp.eq.s32.totalorder %s9, 0
    %p29 = por %p27, %p28
    %p30 = scmp.ne.s32.totalorder %s19, %s22
    %p31 = scmp.eq.s32.totalorder %s14, 1
    %p32 = por %p30, %p31
    %p33 = scmp.ne.s32.totalorder %s22, %s23
    %p34 = scmp.eq.s32.totalorder %s14, 0
    %p35 = por %p33, %p34
    %p36 = scmp.ne.s32.totalorder %s22, %s23
    %p37 = scmp.eq.s32.totalorder %s15, 1
    %p38 = por %p36, %p37
    %p40 = scmp.ne.s32.totalorder %s23, %s39
    %p41 = scmp.eq.s32.totalorder %s15, 0
    %p42 = por %p40, %p41
    %s44 = sadd.s32 %s43, 1
    %p47 = scmp.eq.s32.totalorder %s9, 1
    %p48 = scmp.ne.s32.totalorder %s43, %s45
    %p49 = scmp.eq.s32.totalorder %s9, 0
    %p50 = por %p48, %p49
    %p51 = scmp.ne.s32.totalorder %s43, %s45
    %p52 = scmp.eq.s32.totalorder %s14, 1
    %p53 = por %p51, %p52
    %p54 = scmp.ne.s32.totalorder %s45, %s46
    %p55 = scmp.eq.s32.totalorder %s14, 0
    %p56 = por %p54, %p55
    %p57 = scmp.ne.s32.totalorder %s45, %s46
    %p58 = scmp.eq.s32.totalorder %s15, 1
    %p59 = por %p57, %p58
    %p61 = scmp.ne.s32.totalorder %s46, %s60
    %p62 = scmp.eq.s32.totalorder %s15, 0
    %p63 = por %p61, %p62
    %s65 = sadd.s32 %s64, 1
    %p68 = scmp.eq.s32.totalorder %s9, 1
    %p69 = scmp.ne.s32.totalorder %s64, %s66
    %p70 = scmp.eq.s32.totalorder %s9, 0
    %p71 = por %p69, %p70
    %p72 = scmp.ne.s32.totalorder %s64, %s66
    %p73 = scmp.eq.s32.totalorder %s14, 1
    %p74 = por %p72, %p73
    %p75 = scmp.ne.s32.totalorder %s66, %s67
    %p76 = scmp.eq.s32.totalorder %s14, 0
    %p77 = por %p75, %p76
    %p78 = scmp.ne.s32.totalorder %s66, %s67
    %p79 = scmp.eq.s32.totalorder %s15, 1
    %p80 = por %p78, %p79
    %p82 = scmp.ne.s32.totalorder %s67, %s81
    %p83 = scmp.eq.s32.totalorder %s15, 0
    %p84 = por %p82, %p83
    %s85 = ssub.s32 %s9, %s16
    %p86 = scmp.eq.s32.totalorder %s85, 0
    %s88 = sadd.s32 %s87, 1
    %s89 = scalar_select %p86, %s87, %s88
    %p92 = pneg %p86
    %p93 = scmp.eq.s32.totalorder %s9, 1
    %p94 = por %p92, %p93
    %p95 = scmp.ne.s32.totalorder %s87, %s90
    %p96 = scmp.eq.s32.totalorder %s9, 0
    %p97 = por %p95, %p96
    %p98 = scmp.ne.s32.totalorder %s87, %s90
    %p99 = scmp.eq.s32.totalorder %s14, 1
    %p100 = por %p98, %p99
    %p101 = scmp.ne.s32.totalorder %s90, %s91
    %p102 = scmp.eq.s32.totalorder %s14, 0
    %p103 = por %p101, %p102
    %p104 = scmp.ne.s32.totalorder %s90, %s91
    %p105 = scmp.eq.s32.totalorder %s15, 1
    %p106 = por %p104, %p105
    %p108 = scmp.ne.s32.totalorder %s91, %s107
    %p109 = scmp.eq.s32.totalorder %s15, 0
    %p110 = por %p108, %p109
    %p111 = scmp.le.s32.totalorder 1, %s9
    %p112 = scmp.lt.s32.totalorder %s9, 3
    %p113 = pnand %p111, %p112
    %p114 = pneg %p113
    // Predicated region
    $region9: #{attention_forward.12} parent=5 // pred_check
      _
    $region10: #{attention_forward.12} parent=5 // pred_check_branch
      %116 = sbr.rel (%p113) target = $region12
    $region11: #{attention_forward.12} parent=5 // pred_region
      %s117 = ssub.s32 %s9, 1
      // Predicated region
      $region13: #{attention_forward.12} parent=11 // pred_check
        %p118 = pneg %p56
      $region14: #{attention_forward.12} parent=11 // pred_check_branch
        %120 = sbr.rel (%p118) target = $region16
      $region15: #{attention_forward.12} parent=11 // pred_region
        _
      $region16: #{attention_forward.12} parent=11 // pred_fallthru
        _
      // Predicated region
      $region17: #{attention_forward.12} parent=11 // pred_check
        %p121 = pneg %p77
      $region18: #{attention_forward.12} parent=11 // pred_check_branch
        %123 = sbr.rel (%p121) target = $region20
      $region19: #{attention_forward.12} parent=11 // pred_region
        _
      $region20: #{attention_forward.12} parent=11 // pred_fallthru
        _
    $region12: #{attention_forward.12} parent=5 // pred_fallthru
      _
    %p124 = scmp.lt.s32.totalorder %s9, 2
    // Predicated region
    $region21: #{attention_forward.12} parent=5 // pred_check
      %p125 = pneg %p124
    $region22: #{attention_forward.12} parent=5 // pred_check_branch
      %127 = sbr.rel (%p125) target = $region24
    $region23: #{attention_forward.12} parent=5 // pred_region
      // Predicated region
      $region25: #{attention_forward.12} parent=23 // pred_check
        %p128 = pneg %p29
      $region26: #{attention_forward.12} parent=23 // pred_check_branch
        %130 = sbr.rel (%p128) target = $region28
      $region27: #{attention_forward.12} parent=23 // pred_region
        %p131 = scmp.lt.s32.totalorder %s9, 1
        %s132 = scalar_select %p131, %s9, 1
        %s133 = smul.addr %s132, 54
        %s134 = smul.addr %s133, 8
        %s135 = scalar_lea.vmem %s0, %s134
      $region28: #{attention_forward.12} parent=23 // pred_fallthru
        _
    $region24: #{attention_forward.12} parent=5 // pred_fallthru
      _
    %p136 = scmp.le.s32.totalorder 1, %s9
    %p137 = scmp.lt.s32.totalorder %s9, 3
    %p138 = pnand %p136, %p137
    %p139 = pneg %p138
    // Predicated region
    $region29: #{attention_forward.12} parent=5 // pred_check
      _
    $region30: #{attention_forward.12} parent=5 // pred_check_branch
      %141 = sbr.rel (%p138) target = $region32
    $region31: #{attention_forward.12} parent=5 // pred_region
      %s142 = ssub.s32 %s9, 1
      %p143 = scmp.lt.s32.totalorder %s14, 1
      %s144 = scalar_select %p143, %s14, 1
      %s145 = smul.addr %s144, 54
      %s146 = smul.addr %s145, 8
      %s147 = scalar_lea.vmem %s0, %s146
      %p148 = pneg %p35
      %p149 = pneg %p32
      %p150 = pneg %p56
      %p151 = pneg %p53
      %p152 = pneg %p77
      %p153 = pneg %p74
      %p154 = pneg %p103
      %p155 = pneg %p100
      %p156 = scmp.lt.s32.totalorder %s14, 1
      %s157 = scalar_select %p156, %s14, 1
      %s158 = smul.addr %s157, 32
      %s159 = smul.addr %s158, 8
      %s160 = scalar_lea.vmem %s3, %s159
      %p161 = scmp.lt.s32.totalorder %s14, 1
      %s162 = scalar_select %p161, %s14, 1
      %s163 = smul.addr %s162, 54
      %s164 = smul.addr %s163, 8
      %s165 = scalar_lea.vmem %s0, %s164
      %p166 = scmp.lt.s32.totalorder %s14, 1
      %s167 = scalar_select %p166, %s14, 1
      %s168 = smul.addr %s167, 32
      %s169 = smul.addr %s168, 8
      %s170 = scalar_lea.vmem %s3, %s169
      %v171 = vld [vmem:[%s165] sm:$0xff]
      %v172 = vld [vmem:[%s165 + $0x8] sm:$0xff]
      %v173 = vld [vmem:[%s165 + $0x10] sm:$0x3]
      %v174 = vld [vmem:[%s165 + $0x18] sm:$0xff]
      %v175 = vld [vmem:[%s165 + $0x20] sm:$0xff]
      %v176 = vld [vmem:[%s165 + $0x28] sm:$0x3]
      %v177 = vld [vmem:[%s165 + $0x30] sm:$0xff]
      %v178 = vld [vmem:[%s165 + $0x38] sm:$0xff]
      %v179 = vld [vmem:[%s165 + $0x40] sm:$0x3]
      %v180 = vld [vmem:[%s165 + $0x48] sm:$0xff]
      %v181 = vld [vmem:[%s165 + $0x50] sm:$0xff]
      %v182 = vld [vmem:[%s165 + $0x58] sm:$0x3]
      %v183 = vld [vmem:[%s165 + $0x60] sm:$0xff]
      %v184 = vld [vmem:[%s165 + $0x68] sm:$0xff]
      %v185 = vld [vmem:[%s165 + $0x70] sm:$0x3]
      %v186 = vld [vmem:[%s165 + $0x78] sm:$0xff]
      %v187 = vld [vmem:[%s165 + $0x80] sm:$0xff]
      %v188 = vld [vmem:[%s165 + $0x88] sm:$0x3]
      %v189 = vld [vmem:[%s165 + $0x90] sm:$0xff]
      %v190 = vld [vmem:[%s165 + $0x98] sm:$0xff]
      %v191 = vld [vmem:[%s165 + $0xa0] sm:$0x3]
      %v192 = vld [vmem:[%s165 + $0xa8] sm:$0xff]
      %v193 = vld [vmem:[%s165 + $0xb0] sm:$0xff]
      %v194 = vld [vmem:[%s165 + $0xb8] sm:$0x3]
      %v195 = vld [vmem:[%s165 + $0xc0] sm:$0xff]
      %v196 = vld [vmem:[%s165 + $0xc8] sm:$0xff]
      %v197 = vld [vmem:[%s165 + $0xd0] sm:$0x3]
      %v198 = vld [vmem:[%s165 + $0xd8] sm:$0xff]
      %v199 = vld [vmem:[%s165 + $0xe0] sm:$0xff]
      %v200 = vld [vmem:[%s165 + $0xe8] sm:$0x3]
      %v201 = vld [vmem:[%s165 + $0xf0] sm:$0xff]
      %v202 = vld [vmem:[%s165 + $0xf8] sm:$0xff]
      %v203 = vld [vmem:[%s165 + $0x100] sm:$0x3]
      %v204 = vld [vmem:[%s165 + $0x108] sm:$0xff]
      %v205 = vld [vmem:[%s165 + $0x110] sm:$0xff]
      %v206 = vld [vmem:[%s165 + $0x118] sm:$0x3]
      %v207 = vld [vmem:[%s165 + $0x120] sm:$0xff]
      %v208 = vld [vmem:[%s165 + $0x128] sm:$0xff]
      %v209 = vld [vmem:[%s165 + $0x130] sm:$0x3]
      %v210 = vld [vmem:[%s165 + $0x138] sm:$0xff]
      %v211 = vld [vmem:[%s165 + $0x140] sm:$0xff]
      %v212 = vld [vmem:[%s165 + $0x148] sm:$0x3]
      %v213 = vld [vmem:[%s165 + $0x150] sm:$0xff]
      %v214 = vld [vmem:[%s165 + $0x158] sm:$0xff]
      %v215 = vld [vmem:[%s165 + $0x160] sm:$0x3]
      %v216 = vld [vmem:[%s165 + $0x168] sm:$0xff]
      %v217 = vld [vmem:[%s165 + $0x170] sm:$0xff]
      %v218 = vld [vmem:[%s165 + $0x178] sm:$0x3]
      %v219 = vld [vmem:[%s165 + $0x180] sm:$0xff]
      %v220 = vld [vmem:[%s165 + $0x188] sm:$0xff]
      %v221 = vld [vmem:[%s165 + $0x190] sm:$0x3]
      %v222 = vld [vmem:[%s165 + $0x198] sm:$0xff]
      %v223 = vld [vmem:[%s165 + $0x1a0] sm:$0xff]
      %v224 = vld [vmem:[%s165 + $0x1a8] sm:$0x3]
      %v225 = vld [vmem:[%s1] sm:$0x7]
      %v226 = vld [vmem:[%s1 + $0x4] sm:$0x7]
      %v227 = vld [vmem:[%s1 + $0x8] sm:$0x7]
      %v228 = vlaneseq
      %v229 = vshrl.u32 %v228, 7
      %v230 = vsub.s32 0, %v229
      %v231 = vrot.slane %v225, %v230
      %v232 = vmul.f32 %v171, %v231
      %v233 = vmul.f32 %v172, %v231
      %v234 = vmul.f32 %v174, %v231
      %v235 = vmul.f32 %v175, %v231
      %v236 = vmul.f32 %v177, %v231
      %v237 = vmul.f32 %v178, %v231
      %v238 = vmul.f32 %v180, %v231
      %v239 = vmul.f32 %v181, %v231
      %v240 = vmul.f32 %v183, %v231
      %v241 = vmul.f32 %v184, %v231
      %v242 = vmul.f32 %v186, %v231
      %v243 = vmul.f32 %v187, %v231
      %v244 = vmul.f32 %v189, %v231
      %v245 = vmul.f32 %v190, %v231
      %v246 = vmul.f32 %v192, %v231
      %v247 = vmul.f32 %v193, %v231
      %v248 = vmul.f32 %v195, %v231
      %v249 = vmul.f32 %v196, %v231
      %v250 = vmul.f32 %v198, %v231
      %v251 = vmul.f32 %v199, %v231
      %v252 = vmul.f32 %v201, %v231
      %v253 = vmul.f32 %v202, %v231
      %v254 = vmul.f32 %v204, %v231
      %v255 = vmul.f32 %v205, %v231
      %v256 = vmul.f32 %v207, %v231
      %v257 = vmul.f32 %v208, %v231
      %v258 = vmul.f32 %v210, %v231
      %v259 = vmul.f32 %v211, %v231
      %v260 = vmul.f32 %v213, %v231
      %v261 = vmul.f32 %v214, %v231
      %v262 = vmul.f32 %v216, %v231
      %v263 = vmul.f32 %v217, %v231
      %v264 = vadd.f32 %v232, 0.0
      %v265 = vadd.f32 %v233, 0.0
      %v266 = vadd.f32 %v234, 0.0
      %v267 = vadd.f32 %v235, 0.0
      %v268 = vadd.f32 %v236, 0.0
      %v269 = vadd.f32 %v237, 0.0
      %v270 = vadd.f32 %v238, 0.0
      %v271 = vadd.f32 %v239, 0.0
      %v272 = vadd.f32 %v240, 0.0
      %v273 = vadd.f32 %v241, 0.0
      %v274 = vadd.f32 %v242, 0.0
      %v275 = vadd.f32 %v243, 0.0
      %v276 = vadd.f32 %v244, 0.0
      %v277 = vadd.f32 %v245, 0.0
      %v278 = vadd.f32 %v246, 0.0
      %v279 = vadd.f32 %v247, 0.0
      %v280 = vadd.f32 %v248, 0.0
      %v281 = vadd.f32 %v249, 0.0
      %v282 = vadd.f32 %v250, 0.0
      %v283 = vadd.f32 %v251, 0.0
      %v284 = vadd.f32 %v252, 0.0
      %v285 = vadd.f32 %v253, 0.0
      %v286 = vadd.f32 %v254, 0.0
      %v287 = vadd.f32 %v255, 0.0
      %v288 = vadd.f32 %v256, 0.0
      %v289 = vadd.f32 %v257, 0.0
      %v290 = vadd.f32 %v258, 0.0
      %v291 = vadd.f32 %v259, 0.0
      %v292 = vadd.f32 %v260, 0.0
      %v293 = vadd.f32 %v261, 0.0
      %v294 = vadd.f32 %v262, 0.0
      %v295 = vadd.f32 %v263, 0.0
      %v296 = vlaneseq
      %v297 = vshrl.u32 %v296, 7
      %v298 = vsub.s32 1, %v297
      %v299 = vrot.slane %v225, %v298
      %v300 = vmul.f32 %v171, %v299
      %v301 = vmul.f32 %v172, %v299
      %v302 = vmul.f32 %v173, %v299
      %v303 = vmul.f32 %v174, %v299
      %v304 = vmul.f32 %v175, %v299
      %v305 = vmul.f32 %v176, %v299
      %v306 = vmul.f32 %v177, %v299
      %v307 = vmul.f32 %v178, %v299
      %v308 = vmul.f32 %v179, %v299
      %v309 = vmul.f32 %v180, %v299
      %v310 = vmul.f32 %v181, %v299
      %v311 = vmul.f32 %v182, %v299
      %v312 = vmul.f32 %v183, %v299
      %v313 = vmul.f32 %v184, %v299
      %v314 = vmul.f32 %v185, %v299
      %v315 = vmul.f32 %v186, %v299
      %v316 = vmul.f32 %v187, %v299
      %v317 = vmul.f32 %v188, %v299
      %v318 = vmul.f32 %v189, %v299
      %v319 = vmul.f32 %v190, %v299
      %v320 = vmul.f32 %v191, %v299
      %v321 = vmul.f32 %v192, %v299
      %v322 = vmul.f32 %v193, %v299
      %v323 = vmul.f32 %v194, %v299
      %v324 = vmul.f32 %v195, %v299
      %v325 = vmul.f32 %v196, %v299
      %v326 = vmul.f32 %v197, %v299
      %v327 = vmul.f32 %v198, %v299
      %v328 = vmul.f32 %v199, %v299
      %v329 = vmul.f32 %v200, %v299
      %v330 = vmul.f32 %v201, %v299
      %v331 = vmul.f32 %v202, %v299
      %v332 = vmul.f32 %v203, %v299
      %v333 = vmul.f32 %v204, %v299
      %v334 = vmul.f32 %v205, %v299
      %v335 = vmul.f32 %v206, %v299
      %v336 = vmul.f32 %v207, %v299
      %v337 = vmul.f32 %v208, %v299
      %v338 = vmul.f32 %v209, %v299
      %v339 = vmul.f32 %v210, %v299
      %v340 = vmul.f32 %v211, %v299
      %v341 = vmul.f32 %v212, %v299
      %v342 = vmul.f32 %v213, %v299
      %v343 = vmul.f32 %v214, %v299
      %v344 = vmul.f32 %v215, %v299
      %v345 = vmul.f32 %v216, %v299
      %v346 = vmul.f32 %v217, %v299
      %v347 = vmul.f32 %v218, %v299
      %vm396 = vcmask 1046528
      %v397 = vrot.slane %v300, 1
      %v398 = vrot.slane %v301, 1
      %v399 = vsel %vm396, %v397, %v398
      %v400 = vrot.slane %v302, 1
      %v401 = vsel %vm396, %v398, %v400
      %v402 = vrot.slane %v303, 1
      %v403 = vrot.slane %v304, 1
      %v404 = vsel %vm396, %v402, %v403
      %v405 = vrot.slane %v305, 1
      %v406 = vsel %vm396, %v403, %v405
      %v407 = vrot.slane %v306, 1
      %v408 = vrot.slane %v307, 1
      %v409 = vsel %vm396, %v407, %v408
      %v410 = vrot.slane %v308, 1
      %v411 = vsel %vm396, %v408, %v410
      %v412 = vrot.slane %v309, 1
      %v413 = vrot.slane %v310, 1
      %v414 = vsel %vm396, %v412, %v413
      %v415 = vrot.slane %v311, 1
      %v416 = vsel %vm396, %v413, %v415
      %v417 = vrot.slane %v312, 1
      %v418 = vrot.slane %v313, 1
      %v419 = vsel %vm396, %v417, %v418
      %v420 = vrot.slane %v314, 1
      %v421 = vsel %vm396, %v418, %v420
      %v422 = vrot.slane %v315, 1
      %v423 = vrot.slane %v316, 1
      %v424 = vsel %vm396, %v422, %v423
      %v425 = vrot.slane %v317, 1
      %v426 = vsel %vm396, %v423, %v425
      %v427 = vrot.slane %v318, 1
      %v428 = vrot.slane %v319, 1
      %v429 = vsel %vm396, %v427, %v428
      %v430 = vrot.slane %v320, 1
      %v431 = vsel %vm396, %v428, %v430
      %v432 = vrot.slane %v321, 1
      %v433 = vrot.slane %v322, 1
      %v434 = vsel %vm396, %v432, %v433
      %v435 = vrot.slane %v323, 1
      %v436 = vsel %vm396, %v433, %v435
      %v437 = vrot.slane %v324, 1
      %v438 = vrot.slane %v325, 1
      %v439 = vsel %vm396, %v437, %v438
      %v440 = vrot.slane %v326, 1
      %v441 = vsel %vm396, %v438, %v440
      %v442 = vrot.slane %v327, 1
      %v443 = vrot.slane %v328, 1
      %v444 = vsel %vm396, %v442, %v443
      %v445 = vrot.slane %v329, 1
      %v446 = vsel %vm396, %v443, %v445
      %v447 = vrot.slane %v330, 1
      %v448 = vrot.slane %v331, 1
      %v449 = vsel %vm396, %v447, %v448
      %v450 = vrot.slane %v332, 1
      %v451 = vsel %vm396, %v448, %v450
      %v452 = vrot.slane %v333, 1
      %v453 = vrot.slane %v334, 1
      %v454 = vsel %vm396, %v452, %v453
      %v455 = vrot.slane %v335, 1
      %v456 = vsel %vm396, %v453, %v455
      %v457 = vrot.slane %v336, 1
      %v458 = vrot.slane %v337, 1
      %v459 = vsel %vm396, %v457, %v458
      %v460 = vrot.slane %v338, 1
      %v461 = vsel %vm396, %v458, %v460
      %v462 = vrot.slane %v339, 1
      %v463 = vrot.slane %v340, 1
      %v464 = vsel %vm396, %v462, %v463
      %v465 = vrot.slane %v341, 1
      %v466 = vsel %vm396, %v463, %v465
      %v467 = vrot.slane %v342, 1
      %v468 = vrot.slane %v343, 1
      %v469 = vsel %vm396, %v467, %v468
      %v470 = vrot.slane %v344, 1
      %v471 = vsel %vm396, %v468, %v470
      %v472 = vrot.slane %v345, 1
      %v473 = vrot.slane %v346, 1
      %v474 = vsel %vm396, %v472, %v473
      %v475 = vrot.slane %v347, 1
      %v476 = vsel %vm396, %v473, %v475
      %v509 = vadd.f32 %v264, %v399
      %v510 = vadd.f32 %v265, %v401
      %v511 = vadd.f32 %v266, %v404
      %v512 = vadd.f32 %v267, %v406
      %v513 = vadd.f32 %v268, %v409
      %v514 = vadd.f32 %v269, %v411
      %v515 = vadd.f32 %v270, %v414
      %v516 = vadd.f32 %v271, %v416
      %v517 = vadd.f32 %v272, %v419
      %v518 = vadd.f32 %v273, %v421
      %v519 = vadd.f32 %v274, %v424
      %v520 = vadd.f32 %v275, %v426
      %v521 = vadd.f32 %v276, %v429
      %v522 = vadd.f32 %v277, %v431
      %v523 = vadd.f32 %v278, %v434
      %v524 = vadd.f32 %v279, %v436
      %v525 = vadd.f32 %v280, %v439
      %v526 = vadd.f32 %v281, %v441
      %v527 = vadd.f32 %v282, %v444
      %v528 = vadd.f32 %v283, %v446
      %v529 = vadd.f32 %v284, %v449
      %v530 = vadd.f32 %v285, %v451
      %v531 = vadd.f32 %v286, %v454
      %v532 = vadd.f32 %v287, %v456
      %v533 = vadd.f32 %v288, %v459
      %v534 = vadd.f32 %v289, %v461
      %v535 = vadd.f32 %v290, %v464
      %v536 = vadd.f32 %v291, %v466
      %v537 = vadd.f32 %v292, %v469
      %v538 = vadd.f32 %v293, %v471
      %v539 = vadd.f32 %v294, %v474
      %v540 = vadd.f32 %v295, %v476
      %v541 = vlaneseq
      %v542 = vshrl.u32 %v541, 7
      %v543 = vsub.s32 2, %v542
      %v544 = vrot.slane %v225, %v543
      %v545 = vmul.f32 %v171, %v544
      %v546 = vmul.f32 %v172, %v544
      %v547 = vmul.f32 %v173, %v544
      %v548 = vmul.f32 %v174, %v544
      %v549 = vmul.f32 %v175, %v544
      %v550 = vmul.f32 %v176, %v544
      %v551 = vmul.f32 %v177, %v544
      %v552 = vmul.f32 %v178, %v544
      %v553 = vmul.f32 %v179, %v544
      %v554 = vmul.f32 %v180, %v544
      %v555 = vmul.f32 %v181, %v544
      %v556 = vmul.f32 %v182, %v544
      %v557 = vmul.f32 %v183, %v544
      %v558 = vmul.f32 %v184, %v544
      %v559 = vmul.f32 %v185, %v544
      %v560 = vmul.f32 %v186, %v544
      %v561 = vmul.f32 %v187, %v544
      %v562 = vmul.f32 %v188, %v544
      %v563 = vmul.f32 %v189, %v544
      %v564 = vmul.f32 %v190, %v544
      %v565 = vmul.f32 %v191, %v544
      %v566 = vmul.f32 %v192, %v544
      %v567 = vmul.f32 %v193, %v544
      %v568 = vmul.f32 %v194, %v544
      %v569 = vmul.f32 %v195, %v544
      %v570 = vmul.f32 %v196, %v544
      %v571 = vmul.f32 %v197, %v544
      %v572 = vmul.f32 %v198, %v544
      %v573 = vmul.f32 %v199, %v544
      %v574 = vmul.f32 %v200, %v544
      %v575 = vmul.f32 %v201, %v544
      %v576 = vmul.f32 %v202, %v544
      %v577 = vmul.f32 %v203, %v544
      %v578 = vmul.f32 %v204, %v544
      %v579 = vmul.f32 %v205, %v544
      %v580 = vmul.f32 %v206, %v544
      %v581 = vmul.f32 %v207, %v544
      %v582 = vmul.f32 %v208, %v544
      %v583 = vmul.f32 %v209, %v544
      %v584 = vmul.f32 %v210, %v544
      %v585 = vmul.f32 %v211, %v544
      %v586 = vmul.f32 %v212, %v544
      %v587 = vmul.f32 %v213, %v544
      %v588 = vmul.f32 %v214, %v544
      %v589 = vmul.f32 %v215, %v544
      %v590 = vmul.f32 %v216, %v544
      %v591 = vmul.f32 %v217, %v544
      %v592 = vmul.f32 %v218, %v544
      %vm641 = vcmask 1045504
      %v642 = vrot.slane %v545, 2
      %v643 = vrot.slane %v546, 2
      %v644 = vsel %vm641, %v642, %v643
      %v645 = vrot.slane %v547, 2
      %v646 = vsel %vm641, %v643, %v645
      %v647 = vrot.slane %v548, 2
      %v648 = vrot.slane %v549, 2
      %v649 = vsel %vm641, %v647, %v648
      %v650 = vrot.slane %v550, 2
      %v651 = vsel %vm641, %v648, %v650
      %v652 = vrot.slane %v551, 2
      %v653 = vrot.slane %v552, 2
      %v654 = vsel %vm641, %v652, %v653
      %v655 = vrot.slane %v553, 2
      %v656 = vsel %vm641, %v653, %v655
      %v657 = vrot.slane %v554, 2
      %v658 = vrot.slane %v555, 2
      %v659 = vsel %vm641, %v657, %v658
      %v660 = vrot.slane %v556, 2
      %v661 = vsel %vm641, %v658, %v660
      %v662 = vrot.slane %v557, 2
      %v663 = vrot.slane %v558, 2
      %v664 = vsel %vm641, %v662, %v663
      %v665 = vrot.slane %v559, 2
      %v666 = vsel %vm641, %v663, %v665
      %v667 = vrot.slane %v560, 2
      %v668 = vrot.slane %v561, 2
      %v669 = vsel %vm641, %v667, %v668
      %v670 = vrot.slane %v562, 2
      %v671 = vsel %vm641, %v668, %v670
      %v672 = vrot.slane %v563, 2
      %v673 = vrot.slane %v564, 2
      %v674 = vsel %vm641, %v672, %v673
      %v675 = vrot.slane %v565, 2
      %v676 = vsel %vm641, %v673, %v675
      %v677 = vrot.slane %v566, 2
      %v678 = vrot.slane %v567, 2
      %v679 = vsel %vm641, %v677, %v678
      %v680 = vrot.slane %v568, 2
      %v681 = vsel %vm641, %v678, %v680
      %v682 = vrot.slane %v569, 2
      %v683 = vrot.slane %v570, 2
      %v684 = vsel %vm641, %v682, %v683
      %v685 = vrot.slane %v571, 2
      %v686 = vsel %vm641, %v683, %v685
      %v687 = vrot.slane %v572, 2
      %v688 = vrot.slane %v573, 2
      %v689 = vsel %vm641, %v687, %v688
      %v690 = vrot.slane %v574, 2
      %v691 = vsel %vm641, %v688, %v690
      %v692 = vrot.slane %v575, 2
      %v693 = vrot.slane %v576, 2
      %v694 = vsel %vm641, %v692, %v693
      %v695 = vrot.slane %v577, 2
      %v696 = vsel %vm641, %v693, %v695
      %v697 = vrot.slane %v578, 2
      %v698 = vrot.slane %v579, 2
      %v699 = vsel %vm641, %v697, %v698
      %v700 = vrot.slane %v580, 2
      %v701 = vsel %vm641, %v698, %v700
      %v702 = vrot.slane %v581, 2
      %v703 = vrot.slane %v582, 2
      %v704 = vsel %vm641, %v702, %v703
      %v705 = vrot.slane %v583, 2
      %v706 = vsel %vm641, %v703, %v705
      %v707 = vrot.slane %v584, 2
      %v708 = vrot.slane %v585, 2
      %v709 = vsel %vm641, %v707, %v708
      %v710 = vrot.slane %v586, 2
      %v711 = vsel %vm641, %v708, %v710
      %v712 = vrot.slane %v587, 2
      %v713 = vrot.slane %v588, 2
      %v714 = vsel %vm641, %v712, %v713
      %v715 = vrot.slane %v589, 2
      %v716 = vsel %vm641, %v713, %v715
      %v717 = vrot.slane %v590, 2
      %v718 = vrot.slane %v591, 2
      %v719 = vsel %vm641, %v717, %v718
      %v720 = vrot.slane %v592, 2
      %v721 = vsel %vm641, %v718, %v720
      %v754 = vadd.f32 %v509, %v644
      %v755 = vadd.f32 %v510, %v646
      %v756 = vadd.f32 %v511, %v649
      %v757 = vadd.f32 %v512, %v651
      %v758 = vadd.f32 %v513, %v654
      %v759 = vadd.f32 %v514, %v656
      %v760 = vadd.f32 %v515, %v659
      %v761 = vadd.f32 %v516, %v661
      %v762 = vadd.f32 %v517, %v664
      %v763 = vadd.f32 %v518, %v666
      %v764 = vadd.f32 %v519, %v669
      %v765 = vadd.f32 %v520, %v671
      %v766 = vadd.f32 %v521, %v674
      %v767 = vadd.f32 %v522, %v676
      %v768 = vadd.f32 %v523, %v679
      %v769 = vadd.f32 %v524, %v681
      %v770 = vadd.f32 %v525, %v684
      %v771 = vadd.f32 %v526, %v686
      %v772 = vadd.f32 %v527, %v689
      %v773 = vadd.f32 %v528, %v691
      %v774 = vadd.f32 %v529, %v694
      %v775 = vadd.f32 %v530, %v696
      %v776 = vadd.f32 %v531, %v699
      %v777 = vadd.f32 %v532, %v701
      %v778 = vadd.f32 %v533, %v704
      %v779 = vadd.f32 %v534, %v706
      %v780 = vadd.f32 %v535, %v709
      %v781 = vadd.f32 %v536, %v711
      %v782 = vadd.f32 %v537, %v714
      %v783 = vadd.f32 %v538, %v716
      %v784 = vadd.f32 %v539, %v719
      %v785 = vadd.f32 %v540, %v721
      %v786 = vlaneseq
      %v787 = vshrl.u32 %v786, 7
      %v788 = vsub.s32 0, %v787
      %v789 = vrot.slane %v226, %v788
      %v790 = vmul.f32 %v174, %v789
      %v791 = vmul.f32 %v175, %v789
      %v792 = vmul.f32 %v177, %v789
      %v793 = vmul.f32 %v178, %v789
      %v794 = vmul.f32 %v180, %v789
      %v795 = vmul.f32 %v181, %v789
      %v796 = vmul.f32 %v183, %v789
      %v797 = vmul.f32 %v184, %v789
      %v798 = vmul.f32 %v186, %v789
      %v799 = vmul.f32 %v187, %v789
      %v800 = vmul.f32 %v189, %v789
      %v801 = vmul.f32 %v190, %v789
      %v802 = vmul.f32 %v192, %v789
      %v803 = vmul.f32 %v193, %v789
      %v804 = vmul.f32 %v195, %v789
      %v805 = vmul.f32 %v196, %v789
      %v806 = vmul.f32 %v198, %v789
      %v807 = vmul.f32 %v199, %v789
      %v808 = vmul.f32 %v201, %v789
      %v809 = vmul.f32 %v202, %v789
      %v810 = vmul.f32 %v204, %v789
      %v811 = vmul.f32 %v205, %v789
      %v812 = vmul.f32 %v207, %v789
      %v813 = vmul.f32 %v208, %v789
      %v814 = vmul.f32 %v210, %v789
      %v815 = vmul.f32 %v211, %v789
      %v816 = vmul.f32 %v213, %v789
      %v817 = vmul.f32 %v214, %v789
      %v818 = vmul.f32 %v216, %v789
      %v819 = vmul.f32 %v217, %v789
      %v820 = vmul.f32 %v219, %v789
      %v821 = vmul.f32 %v220, %v789
      %v822 = vadd.f32 %v754, %v790
      %v823 = vadd.f32 %v755, %v791
      %v824 = vadd.f32 %v756, %v792
      %v825 = vadd.f32 %v757, %v793
      %v826 = vadd.f32 %v758, %v794
      %v827 = vadd.f32 %v759, %v795
      %v828 = vadd.f32 %v760, %v796
      %v829 = vadd.f32 %v761, %v797
      %v830 = vadd.f32 %v762, %v798
      %v831 = vadd.f32 %v763, %v799
      %v832 = vadd.f32 %v764, %v800
      %v833 = vadd.f32 %v765, %v801
      %v834 = vadd.f32 %v766, %v802
      %v835 = vadd.f32 %v767, %v803
      %v836 = vadd.f32 %v768, %v804
      %v837 = vadd.f32 %v769, %v805
      %v838 = vadd.f32 %v770, %v806
      %v839 = vadd.f32 %v771, %v807
      %v840 = vadd.f32 %v772, %v808
      %v841 = vadd.f32 %v773, %v809
      %v842 = vadd.f32 %v774, %v810
      %v843 = vadd.f32 %v775, %v811
      %v844 = vadd.f32 %v776, %v812
      %v845 = vadd.f32 %v777, %v813
      %v846 = vadd.f32 %v778, %v814
      %v847 = vadd.f32 %v779, %v815
      %v848 = vadd.f32 %v780, %v816
      %v849 = vadd.f32 %v781, %v817
      %v850 = vadd.f32 %v782, %v818
      %v851 = vadd.f32 %v783, %v819
      %v852 = vadd.f32 %v784, %v820
      %v853 = vadd.f32 %v785, %v821
      %v854 = vlaneseq
      %v855 = vshrl.u32 %v854, 7
      %v856 = vsub.s32 1, %v855
      %v857 = vrot.slane %v226, %v856
      %v858 = vmul.f32 %v174, %v857
      %v859 = vmul.f32 %v175, %v857
      %v860 = vmul.f32 %v176, %v857
      %v861 = vmul.f32 %v177, %v857
      %v862 = vmul.f32 %v178, %v857
      %v863 = vmul.f32 %v179, %v857
      %v864 = vmul.f32 %v180, %v857
      %v865 = vmul.f32 %v181, %v857
      %v866 = vmul.f32 %v182, %v857
      %v867 = vmul.f32 %v183, %v857
      %v868 = vmul.f32 %v184, %v857
      %v869 = vmul.f32 %v185, %v857
      %v870 = vmul.f32 %v186, %v857
      %v871 = vmul.f32 %v187, %v857
      %v872 = vmul.f32 %v188, %v857
      %v873 = vmul.f32 %v189, %v857
      %v874 = vmul.f32 %v190, %v857
      %v875 = vmul.f32 %v191, %v857
      %v876 = vmul.f32 %v192, %v857
      %v877 = vmul.f32 %v193, %v857
      %v878 = vmul.f32 %v194, %v857
      %v879 = vmul.f32 %v195, %v857
      %v880 = vmul.f32 %v196, %v857
      %v881 = vmul.f32 %v197, %v857
      %v882 = vmul.f32 %v198, %v857
      %v883 = vmul.f32 %v199, %v857
      %v884 = vmul.f32 %v200, %v857
      %v885 = vmul.f32 %v201, %v857
      %v886 = vmul.f32 %v202, %v857
      %v887 = vmul.f32 %v203, %v857
      %v888 = vmul.f32 %v204, %v857
      %v889 = vmul.f32 %v205, %v857
      %v890 = vmul.f32 %v206, %v857
      %v891 = vmul.f32 %v207, %v857
      %v892 = vmul.f32 %v208, %v857
      %v893 = vmul.f32 %v209, %v857
      %v894 = vmul.f32 %v210, %v857
      %v895 = vmul.f32 %v211, %v857
      %v896 = vmul.f32 %v212, %v857
      %v897 = vmul.f32 %v213, %v857
      %v898 = vmul.f32 %v214, %v857
      %v899 = vmul.f32 %v215, %v857
      %v900 = vmul.f32 %v216, %v857
      %v901 = vmul.f32 %v217, %v857
      %v902 = vmul.f32 %v218, %v857
      %v903 = vmul.f32 %v219, %v857
      %v904 = vmul.f32 %v220, %v857
      %v905 = vmul.f32 %v221, %v857
      %v954 = vrot.slane %v858, 1
      %v955 = vrot.slane %v859, 1
      %v956 = vsel %vm396, %v954, %v955
      %v957 = vrot.slane %v860, 1
      %v958 = vsel %vm396, %v955, %v957
      %v959 = vrot.slane %v861, 1
      %v960 = vrot.slane %v862, 1
      %v961 = vsel %vm396, %v959, %v960
      %v962 = vrot.slane %v863, 1
      %v963 = vsel %vm396, %v960, %v962
      %v964 = vrot.slane %v864, 1
      %v965 = vrot.slane %v865, 1
      %v966 = vsel %vm396, %v964, %v965
      %v967 = vrot.slane %v866, 1
      %v968 = vsel %vm396, %v965, %v967
      %v969 = vrot.slane %v867, 1
      %v970 = vrot.slane %v868, 1
      %v971 = vsel %vm396, %v969, %v970
      %v972 = vrot.slane %v869, 1
      %v973 = vsel %vm396, %v970, %v972
      %v974 = vrot.slane %v870, 1
      %v975 = vrot.slane %v871, 1
      %v976 = vsel %vm396, %v974, %v975
      %v977 = vrot.slane %v872, 1
      %v978 = vsel %vm396, %v975, %v977
      %v979 = vrot.slane %v873, 1
      %v980 = vrot.slane %v874, 1
      %v981 = vsel %vm396, %v979, %v980
      %v982 = vrot.slane %v875, 1
      %v983 = vsel %vm396, %v980, %v982
      %v984 = vrot.slane %v876, 1
      %v985 = vrot.slane %v877, 1
      %v986 = vsel %vm396, %v984, %v985
      %v987 = vrot.slane %v878, 1
      %v988 = vsel %vm396, %v985, %v987
      %v989 = vrot.slane %v879, 1
      %v990 = vrot.slane %v880, 1
      %v991 = vsel %vm396, %v989, %v990
      %v992 = vrot.slane %v881, 1
      %v993 = vsel %vm396, %v990, %v992
      %v994 = vrot.slane %v882, 1
      %v995 = vrot.slane %v883, 1
      %v996 = vsel %vm396, %v994, %v995
      %v997 = vrot.slane %v884, 1
      %v998 = vsel %vm396, %v995, %v997
      %v999 = vrot.slane %v885, 1
      %v1000 = vrot.slane %v886, 1
      %v1001 = vsel %vm396, %v999, %v1000
      %v1002 = vrot.slane %v887, 1
      %v1003 = vsel %vm396, %v1000, %v1002
      %v1004 = vrot.slane %v888, 1
      %v1005 = vrot.slane %v889, 1
      %v1006 = vsel %vm396, %v1004, %v1005
      %v1007 = vrot.slane %v890, 1
      %v1008 = vsel %vm396, %v1005, %v1007
      %v1009 = vrot.slane %v891, 1
      %v1010 = vrot.slane %v892, 1
      %v1011 = vsel %vm396, %v1009, %v1010
      %v1012 = vrot.slane %v893, 1
      %v1013 = vsel %vm396, %v1010, %v1012
      %v1014 = vrot.slane %v894, 1
      %v1015 = vrot.slane %v895, 1
      %v1016 = vsel %vm396, %v1014, %v1015
      %v1017 = vrot.slane %v896, 1
      %v1018 = vsel %vm396, %v1015, %v1017
      %v1019 = vrot.slane %v897, 1
      %v1020 = vrot.slane %v898, 1
      %v1021 = vsel %vm396, %v1019, %v1020
      %v1022 = vrot.slane %v899, 1
      %v1023 = vsel %vm396, %v1020, %v1022
      %v1024 = vrot.slane %v900, 1
      %v1025 = vrot.slane %v901, 1
      %v1026 = vsel %vm396, %v1024, %v1025
      %v1027 = vrot.slane %v902, 1
      %v1028 = vsel %vm396, %v1025, %v1027
      %v1029 = vrot.slane %v903, 1
      %v1030 = vrot.slane %v904, 1
      %v1031 = vsel %vm396, %v1029, %v1030
      %v1032 = vrot.slane %v905, 1
      %v1033 = vsel %vm396, %v1030, %v1032
      %v1066 = vadd.f32 %v822, %v956
      %v1067 = vadd.f32 %v823, %v958
      %v1068 = vadd.f32 %v824, %v961
      %v1069 = vadd.f32 %v825, %v963
      %v1070 = vadd.f32 %v826, %v966
      %v1071 = vadd.f32 %v827, %v968
      %v1072 = vadd.f32 %v828, %v971
      %v1073 = vadd.f32 %v829, %v973
      %v1074 = vadd.f32 %v830, %v976
      %v1075 = vadd.f32 %v831, %v978
      %v1076 = vadd.f32 %v832, %v981
      %v1077 = vadd.f32 %v833, %v983
      %v1078 = vadd.f32 %v834, %v986
      %v1079 = vadd.f32 %v835, %v988
      %v1080 = vadd.f32 %v836, %v991
      %v1081 = vadd.f32 %v837, %v993
      %v1082 = vadd.f32 %v838, %v996
      %v1083 = vadd.f32 %v839, %v998
      %v1084 = vadd.f32 %v840, %v1001
      %v1085 = vadd.f32 %v841, %v1003
      %v1086 = vadd.f32 %v842, %v1006
      %v1087 = vadd.f32 %v843, %v1008
      %v1088 = vadd.f32 %v844, %v1011
      %v1089 = vadd.f32 %v845, %v1013
      %v1090 = vadd.f32 %v846, %v1016
      %v1091 = vadd.f32 %v847, %v1018
      %v1092 = vadd.f32 %v848, %v1021
      %v1093 = vadd.f32 %v849, %v1023
      %v1094 = vadd.f32 %v850, %v1026
      %v1095 = vadd.f32 %v851, %v1028
      %v1096 = vadd.f32 %v852, %v1031
      %v1097 = vadd.f32 %v853, %v1033
      %v1098 = vlaneseq
      %v1099 = vshrl.u32 %v1098, 7
      %v1100 = vsub.s32 2, %v1099
      %v1101 = vrot.slane %v226, %v1100
      %v1102 = vmul.f32 %v174, %v1101
      %v1103 = vmul.f32 %v175, %v1101
      %v1104 = vmul.f32 %v176, %v1101
      %v1105 = vmul.f32 %v177, %v1101
      %v1106 = vmul.f32 %v178, %v1101
      %v1107 = vmul.f32 %v179, %v1101
      %v1108 = vmul.f32 %v180, %v1101
      %v1109 = vmul.f32 %v181, %v1101
      %v1110 = vmul.f32 %v182, %v1101
      %v1111 = vmul.f32 %v183, %v1101
      %v1112 = vmul.f32 %v184, %v1101
      %v1113 = vmul.f32 %v185, %v1101
      %v1114 = vmul.f32 %v186, %v1101
      %v1115 = vmul.f32 %v187, %v1101
      %v1116 = vmul.f32 %v188, %v1101
      %v1117 = vmul.f32 %v189, %v1101
      %v1118 = vmul.f32 %v190, %v1101
      %v1119 = vmul.f32 %v191, %v1101
      %v1120 = vmul.f32 %v192, %v1101
      %v1121 = vmul.f32 %v193, %v1101
      %v1122 = vmul.f32 %v194, %v1101
      %v1123 = vmul.f32 %v195, %v1101
      %v1124 = vmul.f32 %v196, %v1101
      %v1125 = vmul.f32 %v197, %v1101
      %v1126 = vmul.f32 %v198, %v1101
      %v1127 = vmul.f32 %v199, %v1101
      %v1128 = vmul.f32 %v200, %v1101
      %v1129 = vmul.f32 %v201, %v1101
      %v1130 = vmul.f32 %v202, %v1101
      %v1131 = vmul.f32 %v203, %v1101
      %v1132 = vmul.f32 %v204, %v1101
      %v1133 = vmul.f32 %v205, %v1101
      %v1134 = vmul.f32 %v206, %v1101
      %v1135 = vmul.f32 %v207, %v1101
      %v1136 = vmul.f32 %v208, %v1101
      %v1137 = vmul.f32 %v209, %v1101
      %v1138 = vmul.f32 %v210, %v1101
      %v1139 = vmul.f32 %v211, %v1101
      %v1140 = vmul.f32 %v212, %v1101
      %v1141 = vmul.f32 %v213, %v1101
      %v1142 = vmul.f32 %v214, %v1101
      %v1143 = vmul.f32 %v215, %v1101
      %v1144 = vmul.f32 %v216, %v1101
      %v1145 = vmul.f32 %v217, %v1101
      %v1146 = vmul.f32 %v218, %v1101
      %v1147 = vmul.f32 %v219, %v1101
      %v1148 = vmul.f32 %v220, %v1101
      %v1149 = vmul.f32 %v221, %v1101
      %v1198 = vrot.slane %v1102, 2
      %v1199 = vrot.slane %v1103, 2
      %v1200 = vsel %vm641, %v1198, %v1199
      %v1201 = vrot.slane %v1104, 2
      %v1202 = vsel %vm641, %v1199, %v1201
      %v1203 = vrot.slane %v1105, 2
      %v1204 = vrot.slane %v1106, 2
      %v1205 = vsel %vm641, %v1203, %v1204
      %v1206 = vrot.slane %v1107, 2
      %v1207 = vsel %vm641, %v1204, %v1206
      %v1208 = vrot.slane %v1108, 2
      %v1209 = vrot.slane %v1109, 2
      %v1210 = vsel %vm641, %v1208, %v1209
      %v1211 = vrot.slane %v1110, 2
      %v1212 = vsel %vm641, %v1209, %v1211
      %v1213 = vrot.slane %v1111, 2
      %v1214 = vrot.slane %v1112, 2
      %v1215 = vsel %vm641, %v1213, %v1214
      %v1216 = vrot.slane %v1113, 2
      %v1217 = vsel %vm641, %v1214, %v1216
      %v1218 = vrot.slane %v1114, 2
      %v1219 = vrot.slane %v1115, 2
      %v1220 = vsel %vm641, %v1218, %v1219
      %v1221 = vrot.slane %v1116, 2
      %v1222 = vsel %vm641, %v1219, %v1221
      %v1223 = vrot.slane %v1117, 2
      %v1224 = vrot.slane %v1118, 2
      %v1225 = vsel %vm641, %v1223, %v1224
      %v1226 = vrot.slane %v1119, 2
      %v1227 = vsel %vm641, %v1224, %v1226
      %v1228 = vrot.slane %v1120, 2
      %v1229 = vrot.slane %v1121, 2
      %v1230 = vsel %vm641, %v1228, %v1229
      %v1231 = vrot.slane %v1122, 2
      %v1232 = vsel %vm641, %v1229, %v1231
      %v1233 = vrot.slane %v1123, 2
      %v1234 = vrot.slane %v1124, 2
      %v1235 = vsel %vm641, %v1233, %v1234
      %v1236 = vrot.slane %v1125, 2
      %v1237 = vsel %vm641, %v1234, %v1236
      %v1238 = vrot.slane %v1126, 2
      %v1239 = vrot.slane %v1127, 2
      %v1240 = vsel %vm641, %v1238, %v1239
      %v1241 = vrot.slane %v1128, 2
      %v1242 = vsel %vm641, %v1239, %v1241
      %v1243 = vrot.slane %v1129, 2
      %v1244 = vrot.slane %v1130, 2
      %v1245 = vsel %vm641, %v1243, %v1244
      %v1246 = vrot.slane %v1131, 2
      %v1247 = vsel %vm641, %v1244, %v1246
      %v1248 = vrot.slane %v1132, 2
      %v1249 = vrot.slane %v1133, 2
      %v1250 = vsel %vm641, %v1248, %v1249
      %v1251 = vrot.slane %v1134, 2
      %v1252 = vsel %vm641, %v1249, %v1251
      %v1253 = vrot.slane %v1135, 2
      %v1254 = vrot.slane %v1136, 2
      %v1255 = vsel %vm641, %v1253, %v1254
      %v1256 = vrot.slane %v1137, 2
      %v1257 = vsel %vm641, %v1254, %v1256
      %v1258 = vrot.slane %v1138, 2
      %v1259 = vrot.slane %v1139, 2
      %v1260 = vsel %vm641, %v1258, %v1259
      %v1261 = vrot.slane %v1140, 2
      %v1262 = vsel %vm641, %v1259, %v1261
      %v1263 = vrot.slane %v1141, 2
      %v1264 = vrot.slane %v1142, 2
      %v1265 = vsel %vm641, %v1263, %v1264
      %v1266 = vrot.slane %v1143, 2
      %v1267 = vsel %vm641, %v1264, %v1266
      %v1268 = vrot.slane %v1144, 2
      %v1269 = vrot.slane %v1145, 2
      %v1270 = vsel %vm641, %v1268, %v1269
      %v1271 = vrot.slane %v1146, 2
      %v1272 = vsel %vm641, %v1269, %v1271
      %v1273 = vrot.slane %v1147, 2
      %v1274 = vrot.slane %v1148, 2
      %v1275 = vsel %vm641, %v1273, %v1274
      %v1276 = vrot.slane %v1149, 2
      %v1277 = vsel %vm641, %v1274, %v1276
      %v1310 = vadd.f32 %v1066, %v1200
      %v1311 = vadd.f32 %v1067, %v1202
      %v1312 = vadd.f32 %v1068, %v1205
      %v1313 = vadd.f32 %v1069, %v1207
      %v1314 = vadd.f32 %v1070, %v1210
      %v1315 = vadd.f32 %v1071, %v1212
      %v1316 = vadd.f32 %v1072, %v1215
      %v1317 = vadd.f32 %v1073, %v1217
      %v1318 = vadd.f32 %v1074, %v1220
      %v1319 = vadd.f32 %v1075, %v1222
      %v1320 = vadd.f32 %v1076, %v1225
      %v1321 = vadd.f32 %v1077, %v1227
      %v1322 = vadd.f32 %v1078, %v1230
      %v1323 = vadd.f32 %v1079, %v1232
      %v1324 = vadd.f32 %v1080, %v1235
      %v1325 = vadd.f32 %v1081, %v1237
      %v1326 = vadd.f32 %v1082, %v1240
      %v1327 = vadd.f32 %v1083, %v1242
      %v1328 = vadd.f32 %v1084, %v1245
      %v1329 = vadd.f32 %v1085, %v1247
      %v1330 = vadd.f32 %v1086, %v1250
      %v1331 = vadd.f32 %v1087, %v1252
      %v1332 = vadd.f32 %v1088, %v1255
      %v1333 = vadd.f32 %v1089, %v1257
      %v1334 = vadd.f32 %v1090, %v1260
      %v1335 = vadd.f32 %v1091, %v1262
      %v1336 = vadd.f32 %v1092, %v1265
      %v1337 = vadd.f32 %v1093, %v1267
      %v1338 = vadd.f32 %v1094, %v1270
      %v1339 = vadd.f32 %v1095, %v1272
      %v1340 = vadd.f32 %v1096, %v1275
      %v1341 = vadd.f32 %v1097, %v1277
      %v1342 = vlaneseq
      %v1343 = vshrl.u32 %v1342, 7
      %v1344 = vsub.s32 0, %v1343
      %v1345 = vrot.slane %v227, %v1344
      %v1346 = vmul.f32 %v177, %v1345
      %v1347 = vmul.f32 %v178, %v1345
      %v1348 = vmul.f32 %v180, %v1345
      %v1349 = vmul.f32 %v181, %v1345
      %v1350 = vmul.f32 %v183, %v1345
      %v1351 = vmul.f32 %v184, %v1345
      %v1352 = vmul.f32 %v186, %v1345
      %v1353 = vmul.f32 %v187, %v1345
      %v1354 = vmul.f32 %v189, %v1345
      %v1355 = vmul.f32 %v190, %v1345
      %v1356 = vmul.f32 %v192, %v1345
      %v1357 = vmul.f32 %v193, %v1345
      %v1358 = vmul.f32 %v195, %v1345
      %v1359 = vmul.f32 %v196, %v1345
      %v1360 = vmul.f32 %v198, %v1345
      %v1361 = vmul.f32 %v199, %v1345
      %v1362 = vmul.f32 %v201, %v1345
      %v1363 = vmul.f32 %v202, %v1345
      %v1364 = vmul.f32 %v204, %v1345
      %v1365 = vmul.f32 %v205, %v1345
      %v1366 = vmul.f32 %v207, %v1345
      %v1367 = vmul.f32 %v208, %v1345
      %v1368 = vmul.f32 %v210, %v1345
      %v1369 = vmul.f32 %v211, %v1345
      %v1370 = vmul.f32 %v213, %v1345
      %v1371 = vmul.f32 %v214, %v1345
      %v1372 = vmul.f32 %v216, %v1345
      %v1373 = vmul.f32 %v217, %v1345
      %v1374 = vmul.f32 %v219, %v1345
      %v1375 = vmul.f32 %v220, %v1345
      %v1376 = vmul.f32 %v222, %v1345
      %v1377 = vmul.f32 %v223, %v1345
      %v1378 = vadd.f32 %v1310, %v1346
      %v1379 = vadd.f32 %v1311, %v1347
      %v1380 = vadd.f32 %v1312, %v1348
      %v1381 = vadd.f32 %v1313, %v1349
      %v1382 = vadd.f32 %v1314, %v1350
      %v1383 = vadd.f32 %v1315, %v1351
      %v1384 = vadd.f32 %v1316, %v1352
      %v1385 = vadd.f32 %v1317, %v1353
      %v1386 = vadd.f32 %v1318, %v1354
      %v1387 = vadd.f32 %v1319, %v1355
      %v1388 = vadd.f32 %v1320, %v1356
      %v1389 = vadd.f32 %v1321, %v1357
      %v1390 = vadd.f32 %v1322, %v1358
      %v1391 = vadd.f32 %v1323, %v1359
      %v1392 = vadd.f32 %v1324, %v1360
      %v1393 = vadd.f32 %v1325, %v1361
      %v1394 = vadd.f32 %v1326, %v1362
      %v1395 = vadd.f32 %v1327, %v1363
      %v1396 = vadd.f32 %v1328, %v1364
      %v1397 = vadd.f32 %v1329, %v1365
      %v1398 = vadd.f32 %v1330, %v1366
      %v1399 = vadd.f32 %v1331, %v1367
      %v1400 = vadd.f32 %v1332, %v1368
      %v1401 = vadd.f32 %v1333, %v1369
      %v1402 = vadd.f32 %v1334, %v1370
      %v1403 = vadd.f32 %v1335, %v1371
      %v1404 = vadd.f32 %v1336, %v1372
      %v1405 = vadd.f32 %v1337, %v1373
      %v1406 = vadd.f32 %v1338, %v1374
      %v1407 = vadd.f32 %v1339, %v1375
      %v1408 = vadd.f32 %v1340, %v1376
      %v1409 = vadd.f32 %v1341, %v1377
      %v1410 = vlaneseq
      %v1411 = vshrl.u32 %v1410, 7
      %v1412 = vsub.s32 1, %v1411
      %v1413 = vrot.slane %v227, %v1412
      %v1414 = vmul.f32 %v177, %v1413
      %v1415 = vmul.f32 %v178, %v1413
      %v1416 = vmul.f32 %v179, %v1413
      %v1417 = vmul.f32 %v180, %v1413
      %v1418 = vmul.f32 %v181, %v1413
      %v1419 = vmul.f32 %v182, %v1413
      %v1420 = vmul.f32 %v183, %v1413
      %v1421 = vmul.f32 %v184, %v1413
      %v1422 = vmul.f32 %v185, %v1413
      %v1423 = vmul.f32 %v186, %v1413
      %v1424 = vmul.f32 %v187, %v1413
      %v1425 = vmul.f32 %v188, %v1413
      %v1426 = vmul.f32 %v189, %v1413
      %v1427 = vmul.f32 %v190, %v1413
      %v1428 = vmul.f32 %v191, %v1413
      %v1429 = vmul.f32 %v192, %v1413
      %v1430 = vmul.f32 %v193, %v1413
      %v1431 = vmul.f32 %v194, %v1413
      %v1432 = vmul.f32 %v195, %v1413
      %v1433 = vmul.f32 %v196, %v1413
      %v1434 = vmul.f32 %v197, %v1413
      %v1435 = vmul.f32 %v198, %v1413
      %v1436 = vmul.f32 %v199, %v1413
      %v1437 = vmul.f32 %v200, %v1413
      %v1438 = vmul.f32 %v201, %v1413
      %v1439 = vmul.f32 %v202, %v1413
      %v1440 = vmul.f32 %v203, %v1413
      %v1441 = vmul.f32 %v204, %v1413
      %v1442 = vmul.f32 %v205, %v1413
      %v1443 = vmul.f32 %v206, %v1413
      %v1444 = vmul.f32 %v207, %v1413
      %v1445 = vmul.f32 %v208, %v1413
      %v1446 = vmul.f32 %v209, %v1413
      %v1447 = vmul.f32 %v210, %v1413
      %v1448 = vmul.f32 %v211, %v1413
      %v1449 = vmul.f32 %v212, %v1413
      %v1450 = vmul.f32 %v213, %v1413
      %v1451 = vmul.f32 %v214, %v1413
      %v1452 = vmul.f32 %v215, %v1413
      %v1453 = vmul.f32 %v216, %v1413
      %v1454 = vmul.f32 %v217, %v1413
      %v1455 = vmul.f32 %v218, %v1413
      %v1456 = vmul.f32 %v219, %v1413
      %v1457 = vmul.f32 %v220, %v1413
      %v1458 = vmul.f32 %v221, %v1413
      %v1459 = vmul.f32 %v222, %v1413
      %v1460 = vmul.f32 %v223, %v1413
      %v1461 = vmul.f32 %v224, %v1413
      %v1510 = vrot.slane %v1414, 1
      %v1511 = vrot.slane %v1415, 1
      %v1512 = vsel %vm396, %v1510, %v1511
      %v1513 = vrot.slane %v1416, 1
      %v1514 = vsel %vm396, %v1511, %v1513
      %v1515 = vrot.slane %v1417, 1
      %v1516 = vrot.slane %v1418, 1
      %v1517 = vsel %vm396, %v1515, %v1516
      %v1518 = vrot.slane %v1419, 1
      %v1519 = vsel %vm396, %v1516, %v1518
      %v1520 = vrot.slane %v1420, 1
      %v1521 = vrot.slane %v1421, 1
      %v1522 = vsel %vm396, %v1520, %v1521
      %v1523 = vrot.slane %v1422, 1
      %v1524 = vsel %vm396, %v1521, %v1523
      %v1525 = vrot.slane %v1423, 1
      %v1526 = vrot.slane %v1424, 1
      %v1527 = vsel %vm396, %v1525, %v1526
      %v1528 = vrot.slane %v1425, 1
      %v1529 = vsel %vm396, %v1526, %v1528
      %v1530 = vrot.slane %v1426, 1
      %v1531 = vrot.slane %v1427, 1
      %v1532 = vsel %vm396, %v1530, %v1531
      %v1533 = vrot.slane %v1428, 1
      %v1534 = vsel %vm396, %v1531, %v1533
      %v1535 = vrot.slane %v1429, 1
      %v1536 = vrot.slane %v1430, 1
      %v1537 = vsel %vm396, %v1535, %v1536
      %v1538 = vrot.slane %v1431, 1
      %v1539 = vsel %vm396, %v1536, %v1538
      %v1540 = vrot.slane %v1432, 1
      %v1541 = vrot.slane %v1433, 1
      %v1542 = vsel %vm396, %v1540, %v1541
      %v1543 = vrot.slane %v1434, 1
      %v1544 = vsel %vm396, %v1541, %v1543
      %v1545 = vrot.slane %v1435, 1
      %v1546 = vrot.slane %v1436, 1
      %v1547 = vsel %vm396, %v1545, %v1546
      %v1548 = vrot.slane %v1437, 1
      %v1549 = vsel %vm396, %v1546, %v1548
      %v1550 = vrot.slane %v1438, 1
      %v1551 = vrot.slane %v1439, 1
      %v1552 = vsel %vm396, %v1550, %v1551
      %v1553 = vrot.slane %v1440, 1
      %v1554 = vsel %vm396, %v1551, %v1553
      %v1555 = vrot.slane %v1441, 1
      %v1556 = vrot.slane %v1442, 1
      %v1557 = vsel %vm396, %v1555, %v1556
      %v1558 = vrot.slane %v1443, 1
      %v1559 = vsel %vm396, %v1556, %v1558
      %v1560 = vrot.slane %v1444, 1
      %v1561 = vrot.slane %v1445, 1
      %v1562 = vsel %vm396, %v1560, %v1561
      %v1563 = vrot.slane %v1446, 1
      %v1564 = vsel %vm396, %v1561, %v1563
      %v1565 = vrot.slane %v1447, 1
      %v1566 = vrot.slane %v1448, 1
      %v1567 = vsel %vm396, %v1565, %v1566
      %v1568 = vrot.slane %v1449, 1
      %v1569 = vsel %vm396, %v1566, %v1568
      %v1570 = vrot.slane %v1450, 1
      %v1571 = vrot.slane %v1451, 1
      %v1572 = vsel %vm396, %v1570, %v1571
      %v1573 = vrot.slane %v1452, 1
      %v1574 = vsel %vm396, %v1571, %v1573
      %v1575 = vrot.slane %v1453, 1
      %v1576 = vrot.slane %v1454, 1
      %v1577 = vsel %vm396, %v1575, %v1576
      %v1578 = vrot.slane %v1455, 1
      %v1579 = vsel %vm396, %v1576, %v1578
      %v1580 = vrot.slane %v1456, 1
      %v1581 = vrot.slane %v1457, 1
      %v1582 = vsel %vm396, %v1580, %v1581
      %v1583 = vrot.slane %v1458, 1
      %v1584 = vsel %vm396, %v1581, %v1583
      %v1585 = vrot.slane %v1459, 1
      %v1586 = vrot.slane %v1460, 1
      %v1587 = vsel %vm396, %v1585, %v1586
      %v1588 = vrot.slane %v1461, 1
      %v1589 = vsel %vm396, %v1586, %v1588
      %v1622 = vadd.f32 %v1378, %v1512
      %v1623 = vadd.f32 %v1379, %v1514
      %v1624 = vadd.f32 %v1380, %v1517
      %v1625 = vadd.f32 %v1381, %v1519
      %v1626 = vadd.f32 %v1382, %v1522
      %v1627 = vadd.f32 %v1383, %v1524
      %v1628 = vadd.f32 %v1384, %v1527
      %v1629 = vadd.f32 %v1385, %v1529
      %v1630 = vadd.f32 %v1386, %v1532
      %v1631 = vadd.f32 %v1387, %v1534
      %v1632 = vadd.f32 %v1388, %v1537
      %v1633 = vadd.f32 %v1389, %v1539
      %v1634 = vadd.f32 %v1390, %v1542
      %v1635 = vadd.f32 %v1391, %v1544
      %v1636 = vadd.f32 %v1392, %v1547
      %v1637 = vadd.f32 %v1393, %v1549
      %v1638 = vadd.f32 %v1394, %v1552
      %v1639 = vadd.f32 %v1395, %v1554
      %v1640 = vadd.f32 %v1396, %v1557
      %v1641 = vadd.f32 %v1397, %v1559
      %v1642 = vadd.f32 %v1398, %v1562
      %v1643 = vadd.f32 %v1399, %v1564
      %v1644 = vadd.f32 %v1400, %v1567
      %v1645 = vadd.f32 %v1401, %v1569
      %v1646 = vadd.f32 %v1402, %v1572
      %v1647 = vadd.f32 %v1403, %v1574
      %v1648 = vadd.f32 %v1404, %v1577
      %v1649 = vadd.f32 %v1405, %v1579
      %v1650 = vadd.f32 %v1406, %v1582
      %v1651 = vadd.f32 %v1407, %v1584
      %v1652 = vadd.f32 %v1408, %v1587
      %v1653 = vadd.f32 %v1409, %v1589
      %v1654 = vlaneseq
      %v1655 = vshrl.u32 %v1654, 7
      %v1656 = vsub.s32 2, %v1655
      %v1657 = vrot.slane %v227, %v1656
      %v1658 = vmul.f32 %v177, %v1657
      %v1659 = vmul.f32 %v178, %v1657
      %v1660 = vmul.f32 %v179, %v1657
      %v1661 = vmul.f32 %v180, %v1657
      %v1662 = vmul.f32 %v181, %v1657
      %v1663 = vmul.f32 %v182, %v1657
      %v1664 = vmul.f32 %v183, %v1657
      %v1665 = vmul.f32 %v184, %v1657
      %v1666 = vmul.f32 %v185, %v1657
      %v1667 = vmul.f32 %v186, %v1657
      %v1668 = vmul.f32 %v187, %v1657
      %v1669 = vmul.f32 %v188, %v1657
      %v1670 = vmul.f32 %v189, %v1657
      %v1671 = vmul.f32 %v190, %v1657
      %v1672 = vmul.f32 %v191, %v1657
      %v1673 = vmul.f32 %v192, %v1657
      %v1674 = vmul.f32 %v193, %v1657
      %v1675 = vmul.f32 %v194, %v1657
      %v1676 = vmul.f32 %v195, %v1657
      %v1677 = vmul.f32 %v196, %v1657
      %v1678 = vmul.f32 %v197, %v1657
      %v1679 = vmul.f32 %v198, %v1657
      %v1680 = vmul.f32 %v199, %v1657
      %v1681 = vmul.f32 %v200, %v1657
      %v1682 = vmul.f32 %v201, %v1657
      %v1683 = vmul.f32 %v202, %v1657
      %v1684 = vmul.f32 %v203, %v1657
      %v1685 = vmul.f32 %v204, %v1657
      %v1686 = vmul.f32 %v205, %v1657
      %v1687 = vmul.f32 %v206, %v1657
      %v1688 = vmul.f32 %v207, %v1657
      %v1689 = vmul.f32 %v208, %v1657
      %v1690 = vmul.f32 %v209, %v1657
      %v1691 = vmul.f32 %v210, %v1657
      %v1692 = vmul.f32 %v211, %v1657
      %v1693 = vmul.f32 %v212, %v1657
      %v1694 = vmul.f32 %v213, %v1657
      %v1695 = vmul.f32 %v214, %v1657
      %v1696 = vmul.f32 %v215, %v1657
      %v1697 = vmul.f32 %v216, %v1657
      %v1698 = vmul.f32 %v217, %v1657
      %v1699 = vmul.f32 %v218, %v1657
      %v1700 = vmul.f32 %v219, %v1657
      %v1701 = vmul.f32 %v220, %v1657
      %v1702 = vmul.f32 %v221, %v1657
      %v1703 = vmul.f32 %v222, %v1657
      %v1704 = vmul.f32 %v223, %v1657
      %v1705 = vmul.f32 %v224, %v1657
      %v1754 = vrot.slane %v1658, 2
      %v1755 = vrot.slane %v1659, 2
      %v1756 = vsel %vm641, %v1754, %v1755
      %v1757 = vrot.slane %v1660, 2
      %v1758 = vsel %vm641, %v1755, %v1757
      %v1759 = vrot.slane %v1661, 2
      %v1760 = vrot.slane %v1662, 2
      %v1761 = vsel %vm641, %v1759, %v1760
      %v1762 = vrot.slane %v1663, 2
      %v1763 = vsel %vm641, %v1760, %v1762
      %v1764 = vrot.slane %v1664, 2
      %v1765 = vrot.slane %v1665, 2
      %v1766 = vsel %vm641, %v1764, %v1765
      %v1767 = vrot.slane %v1666, 2
      %v1768 = vsel %vm641, %v1765, %v1767
      %v1769 = vrot.slane %v1667, 2
      %v1770 = vrot.slane %v1668, 2
      %v1771 = vsel %vm641, %v1769, %v1770
      %v1772 = vrot.slane %v1669, 2
      %v1773 = vsel %vm641, %v1770, %v1772
      %v1774 = vrot.slane %v1670, 2
      %v1775 = vrot.slane %v1671, 2
      %v1776 = vsel %vm641, %v1774, %v1775
      %v1777 = vrot.slane %v1672, 2
      %v1778 = vsel %vm641, %v1775, %v1777
      %v1779 = vrot.slane %v1673, 2
      %v1780 = vrot.slane %v1674, 2
      %v1781 = vsel %vm641, %v1779, %v1780
      %v1782 = vrot.slane %v1675, 2
      %v1783 = vsel %vm641, %v1780, %v1782
      %v1784 = vrot.slane %v1676, 2
      %v1785 = vrot.slane %v1677, 2
      %v1786 = vsel %vm641, %v1784, %v1785
      %v1787 = vrot.slane %v1678, 2
      %v1788 = vsel %vm641, %v1785, %v1787
      %v1789 = vrot.slane %v1679, 2
      %v1790 = vrot.slane %v1680, 2
      %v1791 = vsel %vm641, %v1789, %v1790
      %v1792 = vrot.slane %v1681, 2
      %v1793 = vsel %vm641, %v1790, %v1792
      %v1794 = vrot.slane %v1682, 2
      %v1795 = vrot.slane %v1683, 2
      %v1796 = vsel %vm641, %v1794, %v1795
      %v1797 = vrot.slane %v1684, 2
      %v1798 = vsel %vm641, %v1795, %v1797
      %v1799 = vrot.slane %v1685, 2
      %v1800 = vrot.slane %v1686, 2
      %v1801 = vsel %vm641, %v1799, %v1800
      %v1802 = vrot.slane %v1687, 2
      %v1803 = vsel %vm641, %v1800, %v1802
      %v1804 = vrot.slane %v1688, 2
      %v1805 = vrot.slane %v1689, 2
      %v1806 = vsel %vm641, %v1804, %v1805
      %v1807 = vrot.slane %v1690, 2
      %v1808 = vsel %vm641, %v1805, %v1807
      %v1809 = vrot.slane %v1691, 2
      %v1810 = vrot.slane %v1692, 2
      %v1811 = vsel %vm641, %v1809, %v1810
      %v1812 = vrot.slane %v1693, 2
      %v1813 = vsel %vm641, %v1810, %v1812
      %v1814 = vrot.slane %v1694, 2
      %v1815 = vrot.slane %v1695, 2
      %v1816 = vsel %vm641, %v1814, %v1815
      %v1817 = vrot.slane %v1696, 2
      %v1818 = vsel %vm641, %v1815, %v1817
      %v1819 = vrot.slane %v1697, 2
      %v1820 = vrot.slane %v1698, 2
      %v1821 = vsel %vm641, %v1819, %v1820
      %v1822 = vrot.slane %v1699, 2
      %v1823 = vsel %vm641, %v1820, %v1822
      %v1824 = vrot.slane %v1700, 2
      %v1825 = vrot.slane %v1701, 2
      %v1826 = vsel %vm641, %v1824, %v1825
      %v1827 = vrot.slane %v1702, 2
      %v1828 = vsel %vm641, %v1825, %v1827
      %v1829 = vrot.slane %v1703, 2
      %v1830 = vrot.slane %v1704, 2
      %v1831 = vsel %vm641, %v1829, %v1830
      %v1832 = vrot.slane %v1705, 2
      %v1833 = vsel %vm641, %v1830, %v1832
      %v1866 = vadd.f32 %v1622, %v1756
      %v1867 = vadd.f32 %v1623, %v1758
      %v1868 = vadd.f32 %v1624, %v1761
      %v1869 = vadd.f32 %v1625, %v1763
      %v1870 = vadd.f32 %v1626, %v1766
      %v1871 = vadd.f32 %v1627, %v1768
      %v1872 = vadd.f32 %v1628, %v1771
      %v1873 = vadd.f32 %v1629, %v1773
      %v1874 = vadd.f32 %v1630, %v1776
      %v1875 = vadd.f32 %v1631, %v1778
      %v1876 = vadd.f32 %v1632, %v1781
      %v1877 = vadd.f32 %v1633, %v1783
      %v1878 = vadd.f32 %v1634, %v1786
      %v1879 = vadd.f32 %v1635, %v1788
      %v1880 = vadd.f32 %v1636, %v1791
      %v1881 = vadd.f32 %v1637, %v1793
      %v1882 = vadd.f32 %v1638, %v1796
      %v1883 = vadd.f32 %v1639, %v1798
      %v1884 = vadd.f32 %v1640, %v1801
      %v1885 = vadd.f32 %v1641, %v1803
      %v1886 = vadd.f32 %v1642, %v1806
      %v1887 = vadd.f32 %v1643, %v1808
      %v1888 = vadd.f32 %v1644, %v1811
      %v1889 = vadd.f32 %v1645, %v1813
      %v1890 = vadd.f32 %v1646, %v1816
      %v1891 = vadd.f32 %v1647, %v1818
      %v1892 = vadd.f32 %v1648, %v1821
      %v1893 = vadd.f32 %v1649, %v1823
      %v1894 = vadd.f32 %v1650, %v1826
      %v1895 = vadd.f32 %v1651, %v1828
      %v1896 = vadd.f32 %v1652, %v1831
      %v1897 = vadd.f32 %v1653, %v1833
      %v1898 = vld [vmem:[%s2] sm:$0x1]
      %v1900 = vlaneseq
      %v1901 = vshrl.u32 %v1900, 7
      %v1902 = vsub.s32 0, %v1901
      %v1903 = vrot.slane %v1898, %v1902
      %v1905 = vadd.f32 %v1866, %v1903
      %v1906 = vadd.f32 %v1867, %v1903
      %v1907 = vadd.f32 %v1868, %v1903
      %v1908 = vadd.f32 %v1869, %v1903
      %v1909 = vadd.f32 %v1870, %v1903
      %v1910 = vadd.f32 %v1871, %v1903
      %v1911 = vadd.f32 %v1872, %v1903
      %v1912 = vadd.f32 %v1873, %v1903
      %v1913 = vadd.f32 %v1874, %v1903
      %v1914 = vadd.f32 %v1875, %v1903
      %v1915 = vadd.f32 %v1876, %v1903
      %v1916 = vadd.f32 %v1877, %v1903
      %v1917 = vadd.f32 %v1878, %v1903
      %v1918 = vadd.f32 %v1879, %v1903
      %v1919 = vadd.f32 %v1880, %v1903
      %v1920 = vadd.f32 %v1881, %v1903
      %v1921 = vadd.f32 %v1882, %v1903
      %v1922 = vadd.f32 %v1883, %v1903
      %v1923 = vadd.f32 %v1884, %v1903
      %v1924 = vadd.f32 %v1885, %v1903
      %v1925 = vadd.f32 %v1886, %v1903
      %v1926 = vadd.f32 %v1887, %v1903
      %v1927 = vadd.f32 %v1888, %v1903
      %v1928 = vadd.f32 %v1889, %v1903
      %v1929 = vadd.f32 %v1890, %v1903
      %v1930 = vadd.f32 %v1891, %v1903
      %v1931 = vadd.f32 %v1892, %v1903
      %v1932 = vadd.f32 %v1893, %v1903
      %v1933 = vadd.f32 %v1894, %v1903
      %v1934 = vadd.f32 %v1895, %v1903
      %v1935 = vadd.f32 %v1896, %v1903
      %v1936 = vadd.f32 %v1897, %v1903
      %vm1937 = vcmask 261120
      %1938 = vst.msk [vmem:[%s170] sm:$0xff] %vm1937, %v1905
      %1939 = vst.msk [vmem:[%s170 + $0x8] sm:$0xff] %vm1937, %v1906
      %1940 = vst.msk [vmem:[%s170 + $0x10] sm:$0xff] %vm1937, %v1907
      %1941 = vst.msk [vmem:[%s170 + $0x18] sm:$0xff] %vm1937, %v1908
      %1942 = vst.msk [vmem:[%s170 + $0x20] sm:$0xff] %vm1937, %v1909
      %1943 = vst.msk [vmem:[%s170 + $0x28] sm:$0xff] %vm1937, %v1910
      %1944 = vst.msk [vmem:[%s170 + $0x30] sm:$0xff] %vm1937, %v1911
      %1945 = vst.msk [vmem:[%s170 + $0x38] sm:$0xff] %vm1937, %v1912
      %1946 = vst.msk [vmem:[%s170 + $0x40] sm:$0xff] %vm1937, %v1913
      %1947 = vst.msk [vmem:[%s170 + $0x48] sm:$0xff] %vm1937, %v1914
      %1948 = vst.msk [vmem:[%s170 + $0x50] sm:$0xff] %vm1937, %v1915
      %1949 = vst.msk [vmem:[%s170 + $0x58] sm:$0xff] %vm1937, %v1916
      %1950 = vst.msk [vmem:[%s170 + $0x60] sm:$0xff] %vm1937, %v1917
      %1951 = vst.msk [vmem:[%s170 + $0x68] sm:$0xff] %vm1937, %v1918
      %1952 = vst.msk [vmem:[%s170 + $0x70] sm:$0xff] %vm1937, %v1919
      %1953 = vst.msk [vmem:[%s170 + $0x78] sm:$0xff] %vm1937, %v1920
      %1954 = vst.msk [vmem:[%s170 + $0x80] sm:$0xff] %vm1937, %v1921
      %1955 = vst.msk [vmem:[%s170 + $0x88] sm:$0xff] %vm1937, %v1922
      %1956 = vst.msk [vmem:[%s170 + $0x90] sm:$0xff] %vm1937, %v1923
      %1957 = vst.msk [vmem:[%s170 + $0x98] sm:$0xff] %vm1937, %v1924
      %1958 = vst.msk [vmem:[%s170 + $0xa0] sm:$0xff] %vm1937, %v1925
      %1959 = vst.msk [vmem:[%s170 + $0xa8] sm:$0xff] %vm1937, %v1926
      %1960 = vst.msk [vmem:[%s170 + $0xb0] sm:$0xff] %vm1937, %v1927
      %1961 = vst.msk [vmem:[%s170 + $0xb8] sm:$0xff] %vm1937, %v1928
      %1962 = vst.msk [vmem:[%s170 + $0xc0] sm:$0xff] %vm1937, %v1929
      %1963 = vst.msk [vmem:[%s170 + $0xc8] sm:$0xff] %vm1937, %v1930
      %1964 = vst.msk [vmem:[%s170 + $0xd0] sm:$0xff] %vm1937, %v1931
      %1965 = vst.msk [vmem:[%s170 + $0xd8] sm:$0xff] %vm1937, %v1932
      %1966 = vst.msk [vmem:[%s170 + $0xe0] sm:$0xff] %vm1937, %v1933
      %1967 = vst.msk [vmem:[%s170 + $0xe8] sm:$0xff] %vm1937, %v1934
      %1968 = vst.msk [vmem:[%s170 + $0xf0] sm:$0xff] %vm1937, %v1935
      %1969 = vst.msk [vmem:[%s170 + $0xf8] sm:$0xff] %vm1937, %v1936
      %p1970 = scmp.lt.s32.totalorder %s14, 1
      %s1971 = scalar_select %p1970, %s14, 1
      %s1972 = smul.addr %s1971, 32
      %s1973 = smul.addr %s1972, 8
      %s1974 = scalar_lea.vmem %s3, %s1973
      // Predicated region
      $region33: #{attention_forward.12} parent=31 // pred_check
        %p1975 = pneg %p100
      $region34: #{attention_forward.12} parent=31 // pred_check_branch
        %1977 = sbr.rel (%p1975) target = $region36
      $region35: #{attention_forward.12} parent=31 // pred_region
        _
      $region36: #{attention_forward.12} parent=31 // pred_fallthru
        _
    $region32: #{attention_forward.12} parent=5 // pred_fallthru
      _
    %p1978 = scmp.le.s32.totalorder 2, %s9
    // Predicated region
    $region37: #{attention_forward.12} parent=5 // pred_check
      %p1979 = pneg %p1978
    $region38: #{attention_forward.12} parent=5 // pred_check_branch
      %1981 = sbr.rel (%p1979) target = $region40
    $region39: #{attention_forward.12} parent=5 // pred_region
      %s1982 = ssub.s32 %s9, 2
      // Predicated region
      $region41: #{attention_forward.12} parent=39 // pred_check
        %p1983 = pneg %p106
      $region42: #{attention_forward.12} parent=39 // pred_check_branch
        %1985 = sbr.rel (%p1983) target = $region44
      $region43: #{attention_forward.12} parent=39 // pred_region
        %p1986 = scmp.lt.s32.totalorder %s15, 1
        %s1987 = scalar_select %p1986, %s15, 1
        %s1988 = smul.addr %s1987, 32
        %s1989 = smul.addr %s1988, 8
        %s1990 = scalar_lea.vmem %s3, %s1989
      $region44: #{attention_forward.12} parent=39 // pred_fallthru
        _
    $region40: #{attention_forward.12} parent=5 // pred_fallthru
      _
  $region6: #{attention_forward.12} parent=0 // loop_footer
    %s13 = sadd.s32 1, %s9
  $region7: #{attention_forward.12} parent=0 // loop_footer_branch
    %8 = sbr.rel target = $region3
  $region8: #{attention_forward.12} parent=0 // loop_exit
    _

// kernel: attention_forward.11
$region0: #{attention_forward.11}
  #allocation0 [shape = 'u32[]', space=smem, size = 0x4, offset = 0x4, fixed_abs, tag = 'smem constant byte address 0x4 - core index']
  #allocation1 [shape = 'u32[144,128]{1,0:T(1,128)}', space=vmem, size = 0x12000, scoped, tag = 'internal scratch']
  %s0 = inlined_call_operand.vmem [shape: f32[2,18,18,32], index: 0, kind: input, shape index: {}]
  %s1 = inlined_call_operand.vmem [shape: f32[3,3,32], index: 1, kind: input, shape index: {}]
  %s2 = inlined_call_operand.vmem [shape: f32[1,32], index: 2, kind: input, shape index: {}]
  %s3 = inlined_call_operand.vmem [shape: f32[2,16,16,32], index: 3, kind: output, shape index: {}]
  %s4 = sld [smem:[#allocation0]]
  $region45: #{attention_forward.11} parent=0
    _
  %s6 = ssub.s32 1, %s4
  %s7 = scalar_select 0, %s6, %s4
  loop: start=0, step=1, limit=4
  $region2: #{attention_forward.11} parent=0 // loop_pre_header
    _
  $region3: #{attention_forward.11} parent=0 // loop_header
    %s9 = sphi 0, %s13
    %p10 = scmp.ge.s32.totalorder %s9, 4
    %s19 = sphi 0, %s21
    %s22 = sphi 0, %s19
    %s23 = sphi 0, %s22
    %s39 = sphi 0, %s23
    %s43 = sphi 0, %s43
    %s45 = sphi 0, %s43
    %s46 = sphi 0, %s45
    %s60 = sphi 0, %s46
    %s64 = sphi 0, %s64
    %s66 = sphi 0, %s64
    %s67 = sphi 0, %s66
    %s81 = sphi 0, %s67
    %s87 = sphi 0, %s89
    %s90 = sphi 0, %s87
    %s91 = sphi 0, %s90
    %s107 = sphi 0, %s91
  $region4: #{attention_forward.11} parent=0 // loop_header_branch
    %12 = sbr.rel (%p10) target = $region8
  $region5: #{attention_forward.11} parent=0 // loop_body
    %s14 = ssub.s32 %s9, 1
    %s15 = ssub.s32 %s9, 2
    %s16 = sadd.s32 %s9, 1
    %s17 = ssub.s32 %s9, %s16
    %p18 = scmp.eq.s32.totalorder %s17, 0
    %s20 = sadd.s32 %s19, 1
    %s21 = scalar_select %p18, %s19, %s20
    %p24 = pneg %p18
    %p25 = scmp.eq.s32.totalorder %s9, 1
    %p26 = por %p24, %p25
    %p27 = scmp.ne.s32.totalorder %s19, %s22
    %p28 = scmp.eq.s32.totalorder %s9, 0
    %p29 = por %p27, %p28
    %p30 = scmp.ne.s32.totalorder %s19, %s22
    %p31 = scmp.eq.s32.totalorder %s14, 1
    %p32 = por %p30, %p31
    %p33 = scmp.ne.s32.totalorder %s22, %s23
    %p34 = scmp.eq.s32.totalorder %s14, 0
    %p35 = por %p33, %p34
    %p36 = scmp.ne.s32.totalorder %s22, %s23
    %p37 = scmp.eq.s32.totalorder %s15, 1
    %p38 = por %p36, %p37
    %p40 = scmp.ne.s32.totalorder %s23, %s39
    %p41 = scmp.eq.s32.totalorder %s15, 0
    %p42 = por %p40, %p41
    %s44 = sadd.s32 %s43, 1
    %p47 = scmp.eq.s32.totalorder %s9, 1
    %p48 = scmp.ne.s32.totalorder %s43, %s45
    %p49 = scmp.eq.s32.totalorder %s9, 0
    %p50 = por %p48, %p49
    %p51 = scmp.ne.s32.totalorder %s43, %s45
    %p52 = scmp.eq.s32.totalorder %s14, 1
    %p53 = por %p51, %p52
    %p54 = scmp.ne.s32.totalorder %s45, %s46
    %p55 = scmp.eq.s32.totalorder %s14, 0
    %p56 = por %p54, %p55
    %p57 = scmp.ne.s32.totalorder %s45, %s46
    %p58 = scmp.eq.s32.totalorder %s15, 1
    %p59 = por %p57, %p58
    %p61 = scmp.ne.s32.totalorder %s46, %s60
    %p62 = scmp.eq.s32.totalorder %s15, 0
    %p63 = por %p61, %p62
    %s65 = sadd.s32 %s64, 1
    %p68 = scmp.eq.s32.totalorder %s9, 1
    %p69 = scmp.ne.s32.totalorder %s64, %s66
    %p70 = scmp.eq.s32.totalorder %s9, 0
    %p71 = por %p69, %p70
    %p72 = scmp.ne.s32.totalorder %s64, %s66
    %p73 = scmp.eq.s32.totalorder %s14, 1
    %p74 = por %p72, %p73
    %p75 = scmp.ne.s32.totalorder %s66, %s67
    %p76 = scmp.eq.s32.totalorder %s14, 0
    %p77 = por %p75, %p76
    %p78 = scmp.ne.s32.totalorder %s66, %s67
    %p79 = scmp.eq.s32.totalorder %s15, 1
    %p80 = por %p78, %p79
    %p82 = scmp.ne.s32.totalorder %s67, %s81
    %p83 = scmp.eq.s32.totalorder %s15, 0
    %p84 = por %p82, %p83
    %s85 = ssub.s32 %s9, %s16
    %p86 = scmp.eq.s32.totalorder %s85, 0
    %s88 = sadd.s32 %s87, 1
    %s89 = scalar_select %p86, %s87, %s88
    %p92 = pneg %p86
    %p93 = scmp.eq.s32.totalorder %s9, 1
    %p94 = por %p92, %p93
    %p95 = scmp.ne.s32.totalorder %s87, %s90
    %p96 = scmp.eq.s32.totalorder %s9, 0
    %p97 = por %p95, %p96
    %p98 = scmp.ne.s32.totalorder %s87, %s90
    %p99 = scmp.eq.s32.totalorder %s14, 1
    %p100 = por %p98, %p99
    %p101 = scmp.ne.s32.totalorder %s90, %s91
    %p102 = scmp.eq.s32.totalorder %s14, 0
    %p103 = por %p101, %p102
    %p104 = scmp.ne.s32.totalorder %s90, %s91
    %p105 = scmp.eq.s32.totalorder %s15, 1
    %p106 = por %p104, %p105
    %p108 = scmp.ne.s32.totalorder %s91, %s107
    %p109 = scmp.eq.s32.totalorder %s15, 0
    %p110 = por %p108, %p109
    %p111 = scmp.le.s32.totalorder 1, %s9
    %p112 = scmp.lt.s32.totalorder %s9, 3
    %p113 = pnand %p111, %p112
    %p114 = pneg %p113
    // Predicated region
    $region9: #{attention_forward.11} parent=5 // pred_check
      _
    $region10: #{attention_forward.11} parent=5 // pred_check_branch
      %116 = sbr.rel (%p113) target = $region12
    $region11: #{attention_forward.11} parent=5 // pred_region
      %s117 = ssub.s32 %s9, 1
      // Predicated region
      $region13: #{attention_forward.11} parent=11 // pred_check
        %p118 = pneg %p56
      $region14: #{attention_forward.11} parent=11 // pred_check_branch
        %120 = sbr.rel (%p118) target = $region16
      $region15: #{attention_forward.11} parent=11 // pred_region
        _
      $region16: #{attention_forward.11} parent=11 // pred_fallthru
        _
      // Predicated region
      $region17: #{attention_forward.11} parent=11 // pred_check
        %p121 = pneg %p77
      $region18: #{attention_forward.11} parent=11 // pred_check_branch
        %123 = sbr.rel (%p121) target = $region20
      $region19: #{attention_forward.11} parent=11 // pred_region
        _
      $region20: #{attention_forward.11} parent=11 // pred_fallthru
        _
    $region12: #{attention_forward.11} parent=5 // pred_fallthru
      _
    %p124 = scmp.lt.s32.totalorder %s9, 2
    // Predicated region
    $region21: #{attention_forward.11} parent=5 // pred_check
      %p125 = pneg %p124
    $region22: #{attention_forward.11} parent=5 // pred_check_branch
      %127 = sbr.rel (%p125) target = $region24
    $region23: #{attention_forward.11} parent=5 // pred_region
      // Predicated region
      $region25: #{attention_forward.11} parent=23 // pred_check
        %p128 = pneg %p29
      $region26: #{attention_forward.11} parent=23 // pred_check_branch
        %130 = sbr.rel (%p128) target = $region28
      $region27: #{attention_forward.11} parent=23 // pred_region
        %p131 = scmp.lt.s32.totalorder %s9, 1
        %s132 = scalar_select %p131, %s9, 1
        %s133 = smul.addr %s132, 54
        %s134 = smul.addr %s133, 8
        %s135 = scalar_lea.vmem %s0, %s134
      $region28: #{attention_forward.11} parent=23 // pred_fallthru
        _
    $region24: #{attention_forward.11} parent=5 // pred_fallthru
      _
    %p136 = scmp.le.s32.totalorder 1, %s9
    %p137 = scmp.lt.s32.totalorder %s9, 3
    %p138 = pnand %p136, %p137
    %p139 = pneg %p138
    // Predicated region
    $region29: #{attention_forward.11} parent=5 // pred_check
      _
    $region30: #{attention_forward.11} parent=5 // pred_check_branch
      %141 = sbr.rel (%p138) target = $region32
    $region31: #{attention_forward.11} parent=5 // pred_region
      %s142 = ssub.s32 %s9, 1
      %p143 = scmp.lt.s32.totalorder %s14, 1
      %s144 = scalar_select %p143, %s14, 1
      %s145 = smul.addr %s144, 54
      %s146 = smul.addr %s145, 8
      %s147 = scalar_lea.vmem %s0, %s146
      %p148 = pneg %p35
      %p149 = pneg %p32
      %p150 = pneg %p56
      %p151 = pneg %p53
      %p152 = pneg %p77
      %p153 = pneg %p74
      %p154 = pneg %p103
      %p155 = pneg %p100
      %p156 = scmp.lt.s32.totalorder %s14, 1
      %s157 = scalar_select %p156, %s14, 1
      %s158 = smul.addr %s157, 32
      %s159 = smul.addr %s158, 8
      %s160 = scalar_lea.vmem %s3, %s159
      %p161 = scmp.lt.s32.totalorder %s14, 1
      %s162 = scalar_select %p161, %s14, 1
      %s163 = smul.addr %s162, 54
      %s164 = smul.addr %s163, 8
      %s165 = scalar_lea.vmem %s0, %s164
      %p166 = scmp.lt.s32.totalorder %s14, 1
      %s167 = scalar_select %p166, %s14, 1
      %s168 = smul.addr %s167, 32
      %s169 = smul.addr %s168, 8
      %s170 = scalar_lea.vmem %s3, %s169
      %v171 = vld [vmem:[%s165] sm:$0xff]
      %v172 = vld [vmem:[%s165 + $0x8] sm:$0xff]
      %v173 = vld [vmem:[%s165 + $0x10] sm:$0x3]
      %v174 = vld [vmem:[%s165 + $0x18] sm:$0xff]
      %v175 = vld [vmem:[%s165 + $0x20] sm:$0xff]
      %v176 = vld [vmem:[%s165 + $0x28] sm:$0x3]
      %v177 = vld [vmem:[%s165 + $0x30] sm:$0xff]
      %v178 = vld [vmem:[%s165 + $0x38] sm:$0xff]
      %v179 = vld [vmem:[%s165 + $0x40] sm:$0x3]
      %v180 = vld [vmem:[%s165 + $0x48] sm:$0xff]
      %v181 = vld [vmem:[%s165 + $0x50] sm:$0xff]
      %v182 = vld [vmem:[%s165 + $0x58] sm:$0x3]
      %v183 = vld [vmem:[%s165 + $0x60] sm:$0xff]
      %v184 = vld [vmem:[%s165 + $0x68] sm:$0xff]
      %v185 = vld [vmem:[%s165 + $0x70] sm:$0x3]
      %v186 = vld [vmem:[%s165 + $0x78] sm:$0xff]
      %v187 = vld [vmem:[%s165 + $0x80] sm:$0xff]
      %v188 = vld [vmem:[%s165 + $0x88] sm:$0x3]
      %v189 = vld [vmem:[%s165 + $0x90] sm:$0xff]
      %v190 = vld [vmem:[%s165 + $0x98] sm:$0xff]
      %v191 = vld [vmem:[%s165 + $0xa0] sm:$0x3]
      %v192 = vld [vmem:[%s165 + $0xa8] sm:$0xff]
      %v193 = vld [vmem:[%s165 + $0xb0] sm:$0xff]
      %v194 = vld [vmem:[%s165 + $0xb8] sm:$0x3]
      %v195 = vld [vmem:[%s165 + $0xc0] sm:$0xff]
      %v196 = vld [vmem:[%s165 + $0xc8] sm:$0xff]
      %v197 = vld [vmem:[%s165 + $0xd0] sm:$0x3]
      %v198 = vld [vmem:[%s165 + $0xd8] sm:$0xff]
      %v199 = vld [vmem:[%s165 + $0xe0] sm:$0xff]
      %v200 = vld [vmem:[%s165 + $0xe8] sm:$0x3]
      %v201 = vld [vmem:[%s165 + $0xf0] sm:$0xff]
      %v202 = vld [vmem:[%s165 + $0xf8] sm:$0xff]
      %v203 = vld [vmem:[%s165 + $0x100] sm:$0x3]
      %v204 = vld [vmem:[%s165 + $0x108] sm:$0xff]
      %v205 = vld [vmem:[%s165 + $0x110] sm:$0xff]
      %v206 = vld [vmem:[%s165 + $0x118] sm:$0x3]
      %v207 = vld [vmem:[%s165 + $0x120] sm:$0xff]
      %v208 = vld [vmem:[%s165 + $0x128] sm:$0xff]
      %v209 = vld [vmem:[%s165 + $0x130] sm:$0x3]
      %v210 = vld [vmem:[%s165 + $0x138] sm:$0xff]
      %v211 = vld [vmem:[%s165 + $0x140] sm:$0xff]
      %v212 = vld [vmem:[%s165 + $0x148] sm:$0x3]
      %v213 = vld [vmem:[%s165 + $0x150] sm:$0xff]
      %v214 = vld [vmem:[%s165 + $0x158] sm:$0xff]
      %v215 = vld [vmem:[%s165 + $0x160] sm:$0x3]
      %v216 = vld [vmem:[%s165 + $0x168] sm:$0xff]
      %v217 = vld [vmem:[%s165 + $0x170] sm:$0xff]
      %v218 = vld [vmem:[%s165 + $0x178] sm:$0x3]
      %v219 = vld [vmem:[%s165 + $0x180] sm:$0xff]
      %v220 = vld [vmem:[%s165 + $0x188] sm:$0xff]
      %v221 = vld [vmem:[%s165 + $0x190] sm:$0x3]
      %v222 = vld [vmem:[%s165 + $0x198] sm:$0xff]
      %v223 = vld [vmem:[%s165 + $0x1a0] sm:$0xff]
      %v224 = vld [vmem:[%s165 + $0x1a8] sm:$0x3]
      %v225 = vld [vmem:[%s1] sm:$0x7]
      %v226 = vld [vmem:[%s1 + $0x4] sm:$0x7]
      %v227 = vld [vmem:[%s1 + $0x8] sm:$0x7]
      %v228 = vlaneseq
      %v229 = vshrl.u32 %v228, 7
      %v230 = vsub.s32 0, %v229
      %v231 = vrot.slane %v225, %v230
      %v232 = vmul.f32 %v171, %v231
      %v233 = vmul.f32 %v172, %v231
      %v234 = vmul.f32 %v174, %v231
      %v235 = vmul.f32 %v175, %v231
      %v236 = vmul.f32 %v177, %v231
      %v237 = vmul.f32 %v178, %v231
      %v238 = vmul.f32 %v180, %v231
      %v239 = vmul.f32 %v181, %v231
      %v240 = vmul.f32 %v183, %v231
      %v241 = vmul.f32 %v184, %v231
      %v242 = vmul.f32 %v186, %v231
      %v243 = vmul.f32 %v187, %v231
      %v244 = vmul.f32 %v189, %v231
      %v245 = vmul.f32 %v190, %v231
      %v246 = vmul.f32 %v192, %v231
      %v247 = vmul.f32 %v193, %v231
      %v248 = vmul.f32 %v195, %v231
      %v249 = vmul.f32 %v196, %v231
      %v250 = vmul.f32 %v198, %v231
      %v251 = vmul.f32 %v199, %v231
      %v252 = vmul.f32 %v201, %v231
      %v253 = vmul.f32 %v202, %v231
      %v254 = vmul.f32 %v204, %v231
      %v255 = vmul.f32 %v205, %v231
      %v256 = vmul.f32 %v207, %v231
      %v257 = vmul.f32 %v208, %v231
      %v258 = vmul.f32 %v210, %v231
      %v259 = vmul.f32 %v211, %v231
      %v260 = vmul.f32 %v213, %v231
      %v261 = vmul.f32 %v214, %v231
      %v262 = vmul.f32 %v216, %v231
      %v263 = vmul.f32 %v217, %v231
      %v264 = vadd.f32 %v232, 0.0
      %v265 = vadd.f32 %v233, 0.0
      %v266 = vadd.f32 %v234, 0.0
      %v267 = vadd.f32 %v235, 0.0
      %v268 = vadd.f32 %v236, 0.0
      %v269 = vadd.f32 %v237, 0.0
      %v270 = vadd.f32 %v238, 0.0
      %v271 = vadd.f32 %v239, 0.0
      %v272 = vadd.f32 %v240, 0.0
      %v273 = vadd.f32 %v241, 0.0
      %v274 = vadd.f32 %v242, 0.0
      %v275 = vadd.f32 %v243, 0.0
      %v276 = vadd.f32 %v244, 0.0
      %v277 = vadd.f32 %v245, 0.0
      %v278 = vadd.f32 %v246, 0.0
      %v279 = vadd.f32 %v247, 0.0
      %v280 = vadd.f32 %v248, 0.0
      %v281 = vadd.f32 %v249, 0.0
      %v282 = vadd.f32 %v250, 0.0
      %v283 = vadd.f32 %v251, 0.0
      %v284 = vadd.f32 %v252, 0.0
      %v285 = vadd.f32 %v253, 0.0
      %v286 = vadd.f32 %v254, 0.0
      %v287 = vadd.f32 %v255, 0.0
      %v288 = vadd.f32 %v256, 0.0
      %v289 = vadd.f32 %v257, 0.0
      %v290 = vadd.f32 %v258, 0.0
      %v291 = vadd.f32 %v259, 0.0
      %v292 = vadd.f32 %v260, 0.0
      %v293 = vadd.f32 %v261, 0.0
      %v294 = vadd.f32 %v262, 0.0
      %v295 = vadd.f32 %v263, 0.0
      %v296 = vlaneseq
      %v297 = vshrl.u32 %v296, 7
      %v298 = vsub.s32 1, %v297
      %v299 = vrot.slane %v225, %v298
      %v300 = vmul.f32 %v171, %v299
      %v301 = vmul.f32 %v172, %v299
      %v302 = vmul.f32 %v173, %v299
      %v303 = vmul.f32 %v174, %v299
      %v304 = vmul.f32 %v175, %v299
      %v305 = vmul.f32 %v176, %v299
      %v306 = vmul.f32 %v177, %v299
      %v307 = vmul.f32 %v178, %v299
      %v308 = vmul.f32 %v179, %v299
      %v309 = vmul.f32 %v180, %v299
      %v310 = vmul.f32 %v181, %v299
      %v311 = vmul.f32 %v182, %v299
      %v312 = vmul.f32 %v183, %v299
      %v313 = vmul.f32 %v184, %v299
      %v314 = vmul.f32 %v185, %v299
      %v315 = vmul.f32 %v186, %v299
      %v316 = vmul.f32 %v187, %v299
      %v317 = vmul.f32 %v188, %v299
      %v318 = vmul.f32 %v189, %v299
      %v319 = vmul.f32 %v190, %v299
      %v320 = vmul.f32 %v191, %v299
      %v321 = vmul.f32 %v192, %v299
      %v322 = vmul.f32 %v193, %v299
      %v323 = vmul.f32 %v194, %v299
      %v324 = vmul.f32 %v195, %v299
      %v325 = vmul.f32 %v196, %v299
      %v326 = vmul.f32 %v197, %v299
      %v327 = vmul.f32 %v198, %v299
      %v328 = vmul.f32 %v199, %v299
      %v329 = vmul.f32 %v200, %v299
      %v330 = vmul.f32 %v201, %v299
      %v331 = vmul.f32 %v202, %v299
      %v332 = vmul.f32 %v203, %v299
      %v333 = vmul.f32 %v204, %v299
      %v334 = vmul.f32 %v205, %v299
      %v335 = vmul.f32 %v206, %v299
      %v336 = vmul.f32 %v207, %v299
      %v337 = vmul.f32 %v208, %v299
      %v338 = vmul.f32 %v209, %v299
      %v339 = vmul.f32 %v210, %v299
      %v340 = vmul.f32 %v211, %v299
      %v341 = vmul.f32 %v212, %v299
      %v342 = vmul.f32 %v213, %v299
      %v343 = vmul.f32 %v214, %v299
      %v344 = vmul.f32 %v215, %v299
      %v345 = vmul.f32 %v216, %v299
      %v346 = vmul.f32 %v217, %v299
      %v347 = vmul.f32 %v218, %v299
      %vm396 = vcmask 1046528
      %v397 = vrot.slane %v300, 1
      %v398 = vrot.slane %v301, 1
      %v399 = vsel %vm396, %v397, %v398
      %v400 = vrot.slane %v302, 1
      %v401 = vsel %vm396, %v398, %v400
      %v402 = vrot.slane %v303, 1
      %v403 = vrot.slane %v304, 1
      %v404 = vsel %vm396, %v402, %v403
      %v405 = vrot.slane %v305, 1
      %v406 = vsel %vm396, %v403, %v405
      %v407 = vrot.slane %v306, 1
      %v408 = vrot.slane %v307, 1
      %v409 = vsel %vm396, %v407, %v408
      %v410 = vrot.slane %v308, 1
      %v411 = vsel %vm396, %v408, %v410
      %v412 = vrot.slane %v309, 1
      %v413 = vrot.slane %v310, 1
      %v414 = vsel %vm396, %v412, %v413
      %v415 = vrot.slane %v311, 1
      %v416 = vsel %vm396, %v413, %v415
      %v417 = vrot.slane %v312, 1
      %v418 = vrot.slane %v313, 1
      %v419 = vsel %vm396, %v417, %v418
      %v420 = vrot.slane %v314, 1
      %v421 = vsel %vm396, %v418, %v420
      %v422 = vrot.slane %v315, 1
      %v423 = vrot.slane %v316, 1
      %v424 = vsel %vm396, %v422, %v423
      %v425 = vrot.slane %v317, 1
      %v426 = vsel %vm396, %v423, %v425
      %v427 = vrot.slane %v318, 1
      %v428 = vrot.slane %v319, 1
      %v429 = vsel %vm396, %v427, %v428
      %v430 = vrot.slane %v320, 1
      %v431 = vsel %vm396, %v428, %v430
      %v432 = vrot.slane %v321, 1
      %v433 = vrot.slane %v322, 1
      %v434 = vsel %vm396, %v432, %v433
      %v435 = vrot.slane %v323, 1
      %v436 = vsel %vm396, %v433, %v435
      %v437 = vrot.slane %v324, 1
      %v438 = vrot.slane %v325, 1
      %v439 = vsel %vm396, %v437, %v438
      %v440 = vrot.slane %v326, 1
      %v441 = vsel %vm396, %v438, %v440
      %v442 = vrot.slane %v327, 1
      %v443 = vrot.slane %v328, 1
      %v444 = vsel %vm396, %v442, %v443
      %v445 = vrot.slane %v329, 1
      %v446 = vsel %vm396, %v443, %v445
      %v447 = vrot.slane %v330, 1
      %v448 = vrot.slane %v331, 1
      %v449 = vsel %vm396, %v447, %v448
      %v450 = vrot.slane %v332, 1
      %v451 = vsel %vm396, %v448, %v450
      %v452 = vrot.slane %v333, 1
      %v453 = vrot.slane %v334, 1
      %v454 = vsel %vm396, %v452, %v453
      %v455 = vrot.slane %v335, 1
      %v456 = vsel %vm396, %v453, %v455
      %v457 = vrot.slane %v336, 1
      %v458 = vrot.slane %v337, 1
      %v459 = vsel %vm396, %v457, %v458
      %v460 = vrot.slane %v338, 1
      %v461 = vsel %vm396, %v458, %v460
      %v462 = vrot.slane %v339, 1
      %v463 = vrot.slane %v340, 1
      %v464 = vsel %vm396, %v462, %v463
      %v465 = vrot.slane %v341, 1
      %v466 = vsel %vm396, %v463, %v465
      %v467 = vrot.slane %v342, 1
      %v468 = vrot.slane %v343, 1
      %v469 = vsel %vm396, %v467, %v468
      %v470 = vrot.slane %v344, 1
      %v471 = vsel %vm396, %v468, %v470
      %v472 = vrot.slane %v345, 1
      %v473 = vrot.slane %v346, 1
      %v474 = vsel %vm396, %v472, %v473
      %v475 = vrot.slane %v347, 1
      %v476 = vsel %vm396, %v473, %v475
      %v509 = vadd.f32 %v264, %v399
      %v510 = vadd.f32 %v265, %v401
      %v511 = vadd.f32 %v266, %v404
      %v512 = vadd.f32 %v267, %v406
      %v513 = vadd.f32 %v268, %v409
      %v514 = vadd.f32 %v269, %v411
      %v515 = vadd.f32 %v270, %v414
      %v516 = vadd.f32 %v271, %v416
      %v517 = vadd.f32 %v272, %v419
      %v518 = vadd.f32 %v273, %v421
      %v519 = vadd.f32 %v274, %v424
      %v520 = vadd.f32 %v275, %v426
      %v521 = vadd.f32 %v276, %v429
      %v522 = vadd.f32 %v277, %v431
      %v523 = vadd.f32 %v278, %v434
      %v524 = vadd.f32 %v279, %v436
      %v525 = vadd.f32 %v280, %v439
      %v526 = vadd.f32 %v281, %v441
      %v527 = vadd.f32 %v282, %v444
      %v528 = vadd.f32 %v283, %v446
      %v529 = vadd.f32 %v284, %v449
      %v530 = vadd.f32 %v285, %v451
      %v531 = vadd.f32 %v286, %v454
      %v532 = vadd.f32 %v287, %v456
      %v533 = vadd.f32 %v288, %v459
      %v534 = vadd.f32 %v289, %v461
      %v535 = vadd.f32 %v290, %v464
      %v536 = vadd.f32 %v291, %v466
      %v537 = vadd.f32 %v292, %v469
      %v538 = vadd.f32 %v293, %v471
      %v539 = vadd.f32 %v294, %v474
      %v540 = vadd.f32 %v295, %v476
      %v541 = vlaneseq
      %v542 = vshrl.u32 %v541, 7
      %v543 = vsub.s32 2, %v542
      %v544 = vrot.slane %v225, %v543
      %v545 = vmul.f32 %v171, %v544
      %v546 = vmul.f32 %v172, %v544
      %v547 = vmul.f32 %v173, %v544
      %v548 = vmul.f32 %v174, %v544
      %v549 = vmul.f32 %v175, %v544
      %v550 = vmul.f32 %v176, %v544
      %v551 = vmul.f32 %v177, %v544
      %v552 = vmul.f32 %v178, %v544
      %v553 = vmul.f32 %v179, %v544
      %v554 = vmul.f32 %v180, %v544
      %v555 = vmul.f32 %v181, %v544
      %v556 = vmul.f32 %v182, %v544
      %v557 = vmul.f32 %v183, %v544
      %v558 = vmul.f32 %v184, %v544
      %v559 = vmul.f32 %v185, %v544
      %v560 = vmul.f32 %v186, %v544
      %v561 = vmul.f32 %v187, %v544
      %v562 = vmul.f32 %v188, %v544
      %v563 = vmul.f32 %v189, %v544
      %v564 = vmul.f32 %v190, %v544
      %v565 = vmul.f32 %v191, %v544
      %v566 = vmul.f32 %v192, %v544
      %v567 = vmul.f32 %v193, %v544
      %v568 = vmul.f32 %v194, %v544
      %v569 = vmul.f32 %v195, %v544
      %v570 = vmul.f32 %v196, %v544
      %v571 = vmul.f32 %v197, %v544
      %v572 = vmul.f32 %v198, %v544
      %v573 = vmul.f32 %v199, %v544
      %v574 = vmul.f32 %v200, %v544
      %v575 = vmul.f32 %v201, %v544
      %v576 = vmul.f32 %v202, %v544
      %v577 = vmul.f32 %v203, %v544
      %v578 = vmul.f32 %v204, %v544
      %v579 = vmul.f32 %v205, %v544
      %v580 = vmul.f32 %v206, %v544
      %v581 = vmul.f32 %v207, %v544
      %v582 = vmul.f32 %v208, %v544
      %v583 = vmul.f32 %v209, %v544
      %v584 = vmul.f32 %v210, %v544
      %v585 = vmul.f32 %v211, %v544
      %v586 = vmul.f32 %v212, %v544
      %v587 = vmul.f32 %v213, %v544
      %v588 = vmul.f32 %v214, %v544
      %v589 = vmul.f32 %v215, %v544
      %v590 = vmul.f32 %v216, %v544
      %v591 = vmul.f32 %v217, %v544
      %v592 = vmul.f32 %v218, %v544
      %vm641 = vcmask 1045504
      %v642 = vrot.slane %v545, 2
      %v643 = vrot.slane %v546, 2
      %v644 = vsel %vm641, %v642, %v643
      %v645 = vrot.slane %v547, 2
      %v646 = vsel %vm641, %v643, %v645
      %v647 = vrot.slane %v548, 2
      %v648 = vrot.slane %v549, 2
      %v649 = vsel %vm641, %v647, %v648
      %v650 = vrot.slane %v550, 2
      %v651 = vsel %vm641, %v648, %v650
      %v652 = vrot.slane %v551, 2
      %v653 = vrot.slane %v552, 2
      %v654 = vsel %vm641, %v652, %v653
      %v655 = vrot.slane %v553, 2
      %v656 = vsel %vm641, %v653, %v655
      %v657 = vrot.slane %v554, 2
      %v658 = vrot.slane %v555, 2
      %v659 = vsel %vm641, %v657, %v658
      %v660 = vrot.slane %v556, 2
      %v661 = vsel %vm641, %v658, %v660
      %v662 = vrot.slane %v557, 2
      %v663 = vrot.slane %v558, 2
      %v664 = vsel %vm641, %v662, %v663
      %v665 = vrot.slane %v559, 2
      %v666 = vsel %vm641, %v663, %v665
      %v667 = vrot.slane %v560, 2
      %v668 = vrot.slane %v561, 2
      %v669 = vsel %vm641, %v667, %v668
      %v670 = vrot.slane %v562, 2
      %v671 = vsel %vm641, %v668, %v670
      %v672 = vrot.slane %v563, 2
      %v673 = vrot.slane %v564, 2
      %v674 = vsel %vm641, %v672, %v673
      %v675 = vrot.slane %v565, 2
      %v676 = vsel %vm641, %v673, %v675
      %v677 = vrot.slane %v566, 2
      %v678 = vrot.slane %v567, 2
      %v679 = vsel %vm641, %v677, %v678
      %v680 = vrot.slane %v568, 2
      %v681 = vsel %vm641, %v678, %v680
      %v682 = vrot.slane %v569, 2
      %v683 = vrot.slane %v570, 2
      %v684 = vsel %vm641, %v682, %v683
      %v685 = vrot.slane %v571, 2
      %v686 = vsel %vm641, %v683, %v685
      %v687 = vrot.slane %v572, 2
      %v688 = vrot.slane %v573, 2
      %v689 = vsel %vm641, %v687, %v688
      %v690 = vrot.slane %v574, 2
      %v691 = vsel %vm641, %v688, %v690
      %v692 = vrot.slane %v575, 2
      %v693 = vrot.slane %v576, 2
      %v694 = vsel %vm641, %v692, %v693
      %v695 = vrot.slane %v577, 2
      %v696 = vsel %vm641, %v693, %v695
      %v697 = vrot.slane %v578, 2
      %v698 = vrot.slane %v579, 2
      %v699 = vsel %vm641, %v697, %v698
      %v700 = vrot.slane %v580, 2
      %v701 = vsel %vm641, %v698, %v700
      %v702 = vrot.slane %v581, 2
      %v703 = vrot.slane %v582, 2
      %v704 = vsel %vm641, %v702, %v703
      %v705 = vrot.slane %v583, 2
      %v706 = vsel %vm641, %v703, %v705
      %v707 = vrot.slane %v584, 2
      %v708 = vrot.slane %v585, 2
      %v709 = vsel %vm641, %v707, %v708
      %v710 = vrot.slane %v586, 2
      %v711 = vsel %vm641, %v708, %v710
      %v712 = vrot.slane %v587, 2
      %v713 = vrot.slane %v588, 2
      %v714 = vsel %vm641, %v712, %v713
      %v715 = vrot.slane %v589, 2
      %v716 = vsel %vm641, %v713, %v715
      %v717 = vrot.slane %v590, 2
      %v718 = vrot.slane %v591, 2
      %v719 = vsel %vm641, %v717, %v718
      %v720 = vrot.slane %v592, 2
      %v721 = vsel %vm641, %v718, %v720
      %v754 = vadd.f32 %v509, %v644
      %v755 = vadd.f32 %v510, %v646
      %v756 = vadd.f32 %v511, %v649
      %v757 = vadd.f32 %v512, %v651
      %v758 = vadd.f32 %v513, %v654
      %v759 = vadd.f32 %v514, %v656
      %v760 = vadd.f32 %v515, %v659
      %v761 = vadd.f32 %v516, %v661
      %v762 = vadd.f32 %v517, %v664
      %v763 = vadd.f32 %v518, %v666
      %v764 = vadd.f32 %v519, %v669
      %v765 = vadd.f32 %v520, %v671
      %v766 = vadd.f32 %v521, %v674
      %v767 = vadd.f32 %v522, %v676
      %v768 = vadd.f32 %v523, %v679
      %v769 = vadd.f32 %v524, %v681
      %v770 = vadd.f32 %v525, %v684
      %v771 = vadd.f32 %v526, %v686
      %v772 = vadd.f32 %v527, %v689
      %v773 = vadd.f32 %v528, %v691
      %v774 = vadd.f32 %v529, %v694
      %v775 = vadd.f32 %v530, %v696
      %v776 = vadd.f32 %v531, %v699
      %v777 = vadd.f32 %v532, %v701
      %v778 = vadd.f32 %v533, %v704
      %v779 = vadd.f32 %v534, %v706
      %v780 = vadd.f32 %v535, %v709
      %v781 = vadd.f32 %v536, %v711
      %v782 = vadd.f32 %v537, %v714
      %v783 = vadd.f32 %v538, %v716
      %v784 = vadd.f32 %v539, %v719
      %v785 = vadd.f32 %v540, %v721
      %v786 = vlaneseq
      %v787 = vshrl.u32 %v786, 7
      %v788 = vsub.s32 0, %v787
      %v789 = vrot.slane %v226, %v788
      %v790 = vmul.f32 %v174, %v789
      %v791 = vmul.f32 %v175, %v789
      %v792 = vmul.f32 %v177, %v789
      %v793 = vmul.f32 %v178, %v789
      %v794 = vmul.f32 %v180, %v789
      %v795 = vmul.f32 %v181, %v789
      %v796 = vmul.f32 %v183, %v789
      %v797 = vmul.f32 %v184, %v789
      %v798 = vmul.f32 %v186, %v789
      %v799 = vmul.f32 %v187, %v789
      %v800 = vmul.f32 %v189, %v789
      %v801 = vmul.f32 %v190, %v789
      %v802 = vmul.f32 %v192, %v789
      %v803 = vmul.f32 %v193, %v789
      %v804 = vmul.f32 %v195, %v789
      %v805 = vmul.f32 %v196, %v789
      %v806 = vmul.f32 %v198, %v789
      %v807 = vmul.f32 %v199, %v789
      %v808 = vmul.f32 %v201, %v789
      %v809 = vmul.f32 %v202, %v789
      %v810 = vmul.f32 %v204, %v789
      %v811 = vmul.f32 %v205, %v789
      %v812 = vmul.f32 %v207, %v789
      %v813 = vmul.f32 %v208, %v789
      %v814 = vmul.f32 %v210, %v789
      %v815 = vmul.f32 %v211, %v789
      %v816 = vmul.f32 %v213, %v789
      %v817 = vmul.f32 %v214, %v789
      %v818 = vmul.f32 %v216, %v789
      %v819 = vmul.f32 %v217, %v789
      %v820 = vmul.f32 %v219, %v789
      %v821 = vmul.f32 %v220, %v789
      %v822 = vadd.f32 %v754, %v790
      %v823 = vadd.f32 %v755, %v791
      %v824 = vadd.f32 %v756, %v792
      %v825 = vadd.f32 %v757, %v793
      %v826 = vadd.f32 %v758, %v794
      %v827 = vadd.f32 %v759, %v795
      %v828 = vadd.f32 %v760, %v796
      %v829 = vadd.f32 %v761, %v797
      %v830 = vadd.f32 %v762, %v798
      %v831 = vadd.f32 %v763, %v799
      %v832 = vadd.f32 %v764, %v800
      %v833 = vadd.f32 %v765, %v801
      %v834 = vadd.f32 %v766, %v802
      %v835 = vadd.f32 %v767, %v803
      %v836 = vadd.f32 %v768, %v804
      %v837 = vadd.f32 %v769, %v805
      %v838 = vadd.f32 %v770, %v806
      %v839 = vadd.f32 %v771, %v807
      %v840 = vadd.f32 %v772, %v808
      %v841 = vadd.f32 %v773, %v809
      %v842 = vadd.f32 %v774, %v810
      %v843 = vadd.f32 %v775, %v811
      %v844 = vadd.f32 %v776, %v812
      %v845 = vadd.f32 %v777, %v813
      %v846 = vadd.f32 %v778, %v814
      %v847 = vadd.f32 %v779, %v815
      %v848 = vadd.f32 %v780, %v816
      %v849 = vadd.f32 %v781, %v817
      %v850 = vadd.f32 %v782, %v818
      %v851 = vadd.f32 %v783, %v819
      %v852 = vadd.f32 %v784, %v820
      %v853 = vadd.f32 %v785, %v821
      %v854 = vlaneseq
      %v855 = vshrl.u32 %v854, 7
      %v856 = vsub.s32 1, %v855
      %v857 = vrot.slane %v226, %v856
      %v858 = vmul.f32 %v174, %v857
      %v859 = vmul.f32 %v175, %v857
      %v860 = vmul.f32 %v176, %v857
      %v861 = vmul.f32 %v177, %v857
      %v862 = vmul.f32 %v178, %v857
      %v863 = vmul.f32 %v179, %v857
      %v864 = vmul.f32 %v180, %v857
      %v865 = vmul.f32 %v181, %v857
      %v866 = vmul.f32 %v182, %v857
      %v867 = vmul.f32 %v183, %v857
      %v868 = vmul.f32 %v184, %v857
      %v869 = vmul.f32 %v185, %v857
      %v870 = vmul.f32 %v186, %v857
      %v871 = vmul.f32 %v187, %v857
      %v872 = vmul.f32 %v188, %v857
      %v873 = vmul.f32 %v189, %v857
      %v874 = vmul.f32 %v190, %v857
      %v875 = vmul.f32 %v191, %v857
      %v876 = vmul.f32 %v192, %v857
      %v877 = vmul.f32 %v193, %v857
      %v878 = vmul.f32 %v194, %v857
      %v879 = vmul.f32 %v195, %v857
      %v880 = vmul.f32 %v196, %v857
      %v881 = vmul.f32 %v197, %v857
      %v882 = vmul.f32 %v198, %v857
      %v883 = vmul.f32 %v199, %v857
      %v884 = vmul.f32 %v200, %v857
      %v885 = vmul.f32 %v201, %v857
      %v886 = vmul.f32 %v202, %v857
      %v887 = vmul.f32 %v203, %v857
      %v888 = vmul.f32 %v204, %v857
      %v889 = vmul.f32 %v205, %v857
      %v890 = vmul.f32 %v206, %v857
      %v891 = vmul.f32 %v207, %v857
      %v892 = vmul.f32 %v208, %v857
      %v893 = vmul.f32 %v209, %v857
      %v894 = vmul.f32 %v210, %v857
      %v895 = vmul.f32 %v211, %v857
      %v896 = vmul.f32 %v212, %v857
      %v897 = vmul.f32 %v213, %v857
      %v898 = vmul.f32 %v214, %v857
      %v899 = vmul.f32 %v215, %v857
      %v900 = vmul.f32 %v216, %v857
      %v901 = vmul.f32 %v217, %v857
      %v902 = vmul.f32 %v218, %v857
      %v903 = vmul.f32 %v219, %v857
      %v904 = vmul.f32 %v220, %v857
      %v905 = vmul.f32 %v221, %v857
      %v954 = vrot.slane %v858, 1
      %v955 = vrot.slane %v859, 1
      %v956 = vsel %vm396, %v954, %v955
      %v957 = vrot.slane %v860, 1
      %v958 = vsel %vm396, %v955, %v957
      %v959 = vrot.slane %v861, 1
      %v960 = vrot.slane %v862, 1
      %v961 = vsel %vm396, %v959, %v960
      %v962 = vrot.slane %v863, 1
      %v963 = vsel %vm396, %v960, %v962
      %v964 = vrot.slane %v864, 1
      %v965 = vrot.slane %v865, 1
      %v966 = vsel %vm396, %v964, %v965
      %v967 = vrot.slane %v866, 1
      %v968 = vsel %vm396, %v965, %v967
      %v969 = vrot.slane %v867, 1
      %v970 = vrot.slane %v868, 1
      %v971 = vsel %vm396, %v969, %v970
      %v972 = vrot.slane %v869, 1
      %v973 = vsel %vm396, %v970, %v972
      %v974 = vrot.slane %v870, 1
      %v975 = vrot.slane %v871, 1
      %v976 = vsel %vm396, %v974, %v975
      %v977 = vrot.slane %v872, 1
      %v978 = vsel %vm396, %v975, %v977
      %v979 = vrot.slane %v873, 1
      %v980 = vrot.slane %v874, 1
      %v981 = vsel %vm396, %v979, %v980
      %v982 = vrot.slane %v875, 1
      %v983 = vsel %vm396, %v980, %v982
      %v984 = vrot.slane %v876, 1
      %v985 = vrot.slane %v877, 1
      %v986 = vsel %vm396, %v984, %v985
      %v987 = vrot.slane %v878, 1
      %v988 = vsel %vm396, %v985, %v987
      %v989 = vrot.slane %v879, 1
      %v990 = vrot.slane %v880, 1
      %v991 = vsel %vm396, %v989, %v990
      %v992 = vrot.slane %v881, 1
      %v993 = vsel %vm396, %v990, %v992
      %v994 = vrot.slane %v882, 1
      %v995 = vrot.slane %v883, 1
      %v996 = vsel %vm396, %v994, %v995
      %v997 = vrot.slane %v884, 1
      %v998 = vsel %vm396, %v995, %v997
      %v999 = vrot.slane %v885, 1
      %v1000 = vrot.slane %v886, 1
      %v1001 = vsel %vm396, %v999, %v1000
      %v1002 = vrot.slane %v887, 1
      %v1003 = vsel %vm396, %v1000, %v1002
      %v1004 = vrot.slane %v888, 1
      %v1005 = vrot.slane %v889, 1
      %v1006 = vsel %vm396, %v1004, %v1005
      %v1007 = vrot.slane %v890, 1
      %v1008 = vsel %vm396, %v1005, %v1007
      %v1009 = vrot.slane %v891, 1
      %v1010 = vrot.slane %v892, 1
      %v1011 = vsel %vm396, %v1009, %v1010
      %v1012 = vrot.slane %v893, 1
      %v1013 = vsel %vm396, %v1010, %v1012
      %v1014 = vrot.slane %v894, 1
      %v1015 = vrot.slane %v895, 1
      %v1016 = vsel %vm396, %v1014, %v1015
      %v1017 = vrot.slane %v896, 1
      %v1018 = vsel %vm396, %v1015, %v1017
      %v1019 = vrot.slane %v897, 1
      %v1020 = vrot.slane %v898, 1
      %v1021 = vsel %vm396, %v1019, %v1020
      %v1022 = vrot.slane %v899, 1
      %v1023 = vsel %vm396, %v1020, %v1022
      %v1024 = vrot.slane %v900, 1
      %v1025 = vrot.slane %v901, 1
      %v1026 = vsel %vm396, %v1024, %v1025
      %v1027 = vrot.slane %v902, 1
      %v1028 = vsel %vm396, %v1025, %v1027
      %v1029 = vrot.slane %v903, 1
      %v1030 = vrot.slane %v904, 1
      %v1031 = vsel %vm396, %v1029, %v1030
      %v1032 = vrot.slane %v905, 1
      %v1033 = vsel %vm396, %v1030, %v1032
      %v1066 = vadd.f32 %v822, %v956
      %v1067 = vadd.f32 %v823, %v958
      %v1068 = vadd.f32 %v824, %v961
      %v1069 = vadd.f32 %v825, %v963
      %v1070 = vadd.f32 %v826, %v966
      %v1071 = vadd.f32 %v827, %v968
      %v1072 = vadd.f32 %v828, %v971
      %v1073 = vadd.f32 %v829, %v973
      %v1074 = vadd.f32 %v830, %v976
      %v1075 = vadd.f32 %v831, %v978
      %v1076 = vadd.f32 %v832, %v981
      %v1077 = vadd.f32 %v833, %v983
      %v1078 = vadd.f32 %v834, %v986
      %v1079 = vadd.f32 %v835, %v988
      %v1080 = vadd.f32 %v836, %v991
      %v1081 = vadd.f32 %v837, %v993
      %v1082 = vadd.f32 %v838, %v996
      %v1083 = vadd.f32 %v839, %v998
      %v1084 = vadd.f32 %v840, %v1001
      %v1085 = vadd.f32 %v841, %v1003
      %v1086 = vadd.f32 %v842, %v1006
      %v1087 = vadd.f32 %v843, %v1008
      %v1088 = vadd.f32 %v844, %v1011
      %v1089 = vadd.f32 %v845, %v1013
      %v1090 = vadd.f32 %v846, %v1016
      %v1091 = vadd.f32 %v847, %v1018
      %v1092 = vadd.f32 %v848, %v1021
      %v1093 = vadd.f32 %v849, %v1023
      %v1094 = vadd.f32 %v850, %v1026
      %v1095 = vadd.f32 %v851, %v1028
      %v1096 = vadd.f32 %v852, %v1031
      %v1097 = vadd.f32 %v853, %v1033
      %v1098 = vlaneseq
      %v1099 = vshrl.u32 %v1098, 7
      %v1100 = vsub.s32 2, %v1099
      %v1101 = vrot.slane %v226, %v1100
      %v1102 = vmul.f32 %v174, %v1101
      %v1103 = vmul.f32 %v175, %v1101
      %v1104 = vmul.f32 %v176, %v1101
      %v1105 = vmul.f32 %v177, %v1101
      %v1106 = vmul.f32 %v178, %v1101
      %v1107 = vmul.f32 %v179, %v1101
      %v1108 = vmul.f32 %v180, %v1101
      %v1109 = vmul.f32 %v181, %v1101
      %v1110 = vmul.f32 %v182, %v1101
      %v1111 = vmul.f32 %v183, %v1101
      %v1112 = vmul.f32 %v184, %v1101
      %v1113 = vmul.f32 %v185, %v1101
      %v1114 = vmul.f32 %v186, %v1101
      %v1115 = vmul.f32 %v187, %v1101
      %v1116 = vmul.f32 %v188, %v1101
      %v1117 = vmul.f32 %v189, %v1101
      %v1118 = vmul.f32 %v190, %v1101
      %v1119 = vmul.f32 %v191, %v1101
      %v1120 = vmul.f32 %v192, %v1101
      %v1121 = vmul.f32 %v193, %v1101
      %v1122 = vmul.f32 %v194, %v1101
      %v1123 = vmul.f32 %v195, %v1101
      %v1124 = vmul.f32 %v196, %v1101
      %v1125 = vmul.f32 %v197, %v1101
      %v1126 = vmul.f32 %v198, %v1101
      %v1127 = vmul.f32 %v199, %v1101
      %v1128 = vmul.f32 %v200, %v1101
      %v1129 = vmul.f32 %v201, %v1101
      %v1130 = vmul.f32 %v202, %v1101
      %v1131 = vmul.f32 %v203, %v1101
      %v1132 = vmul.f32 %v204, %v1101
      %v1133 = vmul.f32 %v205, %v1101
      %v1134 = vmul.f32 %v206, %v1101
      %v1135 = vmul.f32 %v207, %v1101
      %v1136 = vmul.f32 %v208, %v1101
      %v1137 = vmul.f32 %v209, %v1101
      %v1138 = vmul.f32 %v210, %v1101
      %v1139 = vmul.f32 %v211, %v1101
      %v1140 = vmul.f32 %v212, %v1101
      %v1141 = vmul.f32 %v213, %v1101
      %v1142 = vmul.f32 %v214, %v1101
      %v1143 = vmul.f32 %v215, %v1101
      %v1144 = vmul.f32 %v216, %v1101
      %v1145 = vmul.f32 %v217, %v1101
      %v1146 = vmul.f32 %v218, %v1101
      %v1147 = vmul.f32 %v219, %v1101
      %v1148 = vmul.f32 %v220, %v1101
      %v1149 = vmul.f32 %v221, %v1101
      %v1198 = vrot.slane %v1102, 2
      %v1199 = vrot.slane %v1103, 2
      %v1200 = vsel %vm641, %v1198, %v1199
      %v1201 = vrot.slane %v1104, 2
      %v1202 = vsel %vm641, %v1199, %v1201
      %v1203 = vrot.slane %v1105, 2
      %v1204 = vrot.slane %v1106, 2
      %v1205 = vsel %vm641, %v1203, %v1204
      %v1206 = vrot.slane %v1107, 2
      %v1207 = vsel %vm641, %v1204, %v1206
      %v1208 = vrot.slane %v1108, 2
      %v1209 = vrot.slane %v1109, 2
      %v1210 = vsel %vm641, %v1208, %v1209
      %v1211 = vrot.slane %v1110, 2
      %v1212 = vsel %vm641, %v1209, %v1211
      %v1213 = vrot.slane %v1111, 2
      %v1214 = vrot.slane %v1112, 2
      %v1215 = vsel %vm641, %v1213, %v1214
      %v1216 = vrot.slane %v1113, 2
      %v1217 = vsel %vm641, %v1214, %v1216
      %v1218 = vrot.slane %v1114, 2
      %v1219 = vrot.slane %v1115, 2
      %v1220 = vsel %vm641, %v1218, %v1219
      %v1221 = vrot.slane %v1116, 2
      %v1222 = vsel %vm641, %v1219, %v1221
      %v1223 = vrot.slane %v1117, 2
      %v1224 = vrot.slane %v1118, 2
      %v1225 = vsel %vm641, %v1223, %v1224
      %v1226 = vrot.slane %v1119, 2
      %v1227 = vsel %vm641, %v1224, %v1226
      %v1228 = vrot.slane %v1120, 2
      %v1229 = vrot.slane %v1121, 2
      %v1230 = vsel %vm641, %v1228, %v1229
      %v1231 = vrot.slane %v1122, 2
      %v1232 = vsel %vm641, %v1229, %v1231
      %v1233 = vrot.slane %v1123, 2
      %v1234 = vrot.slane %v1124, 2
      %v1235 = vsel %vm641, %v1233, %v1234
      %v1236 = vrot.slane %v1125, 2
      %v1237 = vsel %vm641, %v1234, %v1236
      %v1238 = vrot.slane %v1126, 2
      %v1239 = vrot.slane %v1127, 2
      %v1240 = vsel %vm641, %v1238, %v1239
      %v1241 = vrot.slane %v1128, 2
      %v1242 = vsel %vm641, %v1239, %v1241
      %v1243 = vrot.slane %v1129, 2
      %v1244 = vrot.slane %v1130, 2
      %v1245 = vsel %vm641, %v1243, %v1244
      %v1246 = vrot.slane %v1131, 2
      %v1247 = vsel %vm641, %v1244, %v1246
      %v1248 = vrot.slane %v1132, 2
      %v1249 = vrot.slane %v1133, 2
      %v1250 = vsel %vm641, %v1248, %v1249
      %v1251 = vrot.slane %v1134, 2
      %v1252 = vsel %vm641, %v1249, %v1251
      %v1253 = vrot.slane %v1135, 2
      %v1254 = vrot.slane %v1136, 2
      %v1255 = vsel %vm641, %v1253, %v1254
      %v1256 = vrot.slane %v1137, 2
      %v1257 = vsel %vm641, %v1254, %v1256
      %v1258 = vrot.slane %v1138, 2
      %v1259 = vrot.slane %v1139, 2
      %v1260 = vsel %vm641, %v1258, %v1259
      %v1261 = vrot.slane %v1140, 2
      %v1262 = vsel %vm641, %v1259, %v1261
      %v1263 = vrot.slane %v1141, 2
      %v1264 = vrot.slane %v1142, 2
      %v1265 = vsel %vm641, %v1263, %v1264
      %v1266 = vrot.slane %v1143, 2
      %v1267 = vsel %vm641, %v1264, %v1266
      %v1268 = vrot.slane %v1144, 2
      %v1269 = vrot.slane %v1145, 2
      %v1270 = vsel %vm641, %v1268, %v1269
      %v1271 = vrot.slane %v1146, 2
      %v1272 = vsel %vm641, %v1269, %v1271
      %v1273 = vrot.slane %v1147, 2
      %v1274 = vrot.slane %v1148, 2
      %v1275 = vsel %vm641, %v1273, %v1274
      %v1276 = vrot.slane %v1149, 2
      %v1277 = vsel %vm641, %v1274, %v1276
      %v1310 = vadd.f32 %v1066, %v1200
      %v1311 = vadd.f32 %v1067, %v1202
      %v1312 = vadd.f32 %v1068, %v1205
      %v1313 = vadd.f32 %v1069, %v1207
      %v1314 = vadd.f32 %v1070, %v1210
      %v1315 = vadd.f32 %v1071, %v1212
      %v1316 = vadd.f32 %v1072, %v1215
      %v1317 = vadd.f32 %v1073, %v1217
      %v1318 = vadd.f32 %v1074, %v1220
      %v1319 = vadd.f32 %v1075, %v1222
      %v1320 = vadd.f32 %v1076, %v1225
      %v1321 = vadd.f32 %v1077, %v1227
      %v1322 = vadd.f32 %v1078, %v1230
      %v1323 = vadd.f32 %v1079, %v1232
      %v1324 = vadd.f32 %v1080, %v1235
      %v1325 = vadd.f32 %v1081, %v1237
      %v1326 = vadd.f32 %v1082, %v1240
      %v1327 = vadd.f32 %v1083, %v1242
      %v1328 = vadd.f32 %v1084, %v1245
      %v1329 = vadd.f32 %v1085, %v1247
      %v1330 = vadd.f32 %v1086, %v1250
      %v1331 = vadd.f32 %v1087, %v1252
      %v1332 = vadd.f32 %v1088, %v1255
      %v1333 = vadd.f32 %v1089, %v1257
      %v1334 = vadd.f32 %v1090, %v1260
      %v1335 = vadd.f32 %v1091, %v1262
      %v1336 = vadd.f32 %v1092, %v1265
      %v1337 = vadd.f32 %v1093, %v1267
      %v1338 = vadd.f32 %v1094, %v1270
      %v1339 = vadd.f32 %v1095, %v1272
      %v1340 = vadd.f32 %v1096, %v1275
      %v1341 = vadd.f32 %v1097, %v1277
      %v1342 = vlaneseq
      %v1343 = vshrl.u32 %v1342, 7
      %v1344 = vsub.s32 0, %v1343
      %v1345 = vrot.slane %v227, %v1344
      %v1346 = vmul.f32 %v177, %v1345
      %v1347 = vmul.f32 %v178, %v1345
      %v1348 = vmul.f32 %v180, %v1345
      %v1349 = vmul.f32 %v181, %v1345
      %v1350 = vmul.f32 %v183, %v1345
      %v1351 = vmul.f32 %v184, %v1345
      %v1352 = vmul.f32 %v186, %v1345
      %v1353 = vmul.f32 %v187, %v1345
      %v1354 = vmul.f32 %v189, %v1345
      %v1355 = vmul.f32 %v190, %v1345
      %v1356 = vmul.f32 %v192, %v1345
      %v1357 = vmul.f32 %v193, %v1345
      %v1358 = vmul.f32 %v195, %v1345
      %v1359 = vmul.f32 %v196, %v1345
      %v1360 = vmul.f32 %v198, %v1345
      %v1361 = vmul.f32 %v199, %v1345
      %v1362 = vmul.f32 %v201, %v1345
      %v1363 = vmul.f32 %v202, %v1345
      %v1364 = vmul.f32 %v204, %v1345
      %v1365 = vmul.f32 %v205, %v1345
      %v1366 = vmul.f32 %v207, %v1345
      %v1367 = vmul.f32 %v208, %v1345
      %v1368 = vmul.f32 %v210, %v1345
      %v1369 = vmul.f32 %v211, %v1345
      %v1370 = vmul.f32 %v213, %v1345
      %v1371 = vmul.f32 %v214, %v1345
      %v1372 = vmul.f32 %v216, %v1345
      %v1373 = vmul.f32 %v217, %v1345
      %v1374 = vmul.f32 %v219, %v1345
      %v1375 = vmul.f32 %v220, %v1345
      %v1376 = vmul.f32 %v222, %v1345
      %v1377 = vmul.f32 %v223, %v1345
      %v1378 = vadd.f32 %v1310, %v1346
      %v1379 = vadd.f32 %v1311, %v1347
      %v1380 = vadd.f32 %v1312, %v1348
      %v1381 = vadd.f32 %v1313, %v1349
      %v1382 = vadd.f32 %v1314, %v1350
      %v1383 = vadd.f32 %v1315, %v1351
      %v1384 = vadd.f32 %v1316, %v1352
      %v1385 = vadd.f32 %v1317, %v1353
      %v1386 = vadd.f32 %v1318, %v1354
      %v1387 = vadd.f32 %v1319, %v1355
      %v1388 = vadd.f32 %v1320, %v1356
      %v1389 = vadd.f32 %v1321, %v1357
      %v1390 = vadd.f32 %v1322, %v1358
      %v1391 = vadd.f32 %v1323, %v1359
      %v1392 = vadd.f32 %v1324, %v1360
      %v1393 = vadd.f32 %v1325, %v1361
      %v1394 = vadd.f32 %v1326, %v1362
      %v1395 = vadd.f32 %v1327, %v1363
      %v1396 = vadd.f32 %v1328, %v1364
      %v1397 = vadd.f32 %v1329, %v1365
      %v1398 = vadd.f32 %v1330, %v1366
      %v1399 = vadd.f32 %v1331, %v1367
      %v1400 = vadd.f32 %v1332, %v1368
      %v1401 = vadd.f32 %v1333, %v1369
      %v1402 = vadd.f32 %v1334, %v1370
      %v1403 = vadd.f32 %v1335, %v1371
      %v1404 = vadd.f32 %v1336, %v1372
      %v1405 = vadd.f32 %v1337, %v1373
      %v1406 = vadd.f32 %v1338, %v1374
      %v1407 = vadd.f32 %v1339, %v1375
      %v1408 = vadd.f32 %v1340, %v1376
      %v1409 = vadd.f32 %v1341, %v1377
      %v1410 = vlaneseq
      %v1411 = vshrl.u32 %v1410, 7
      %v1412 = vsub.s32 1, %v1411
      %v1413 = vrot.slane %v227, %v1412
      %v1414 = vmul.f32 %v177, %v1413
      %v1415 = vmul.f32 %v178, %v1413
      %v1416 = vmul.f32 %v179, %v1413
      %v1417 = vmul.f32 %v180, %v1413
      %v1418 = vmul.f32 %v181, %v1413
      %v1419 = vmul.f32 %v182, %v1413
      %v1420 = vmul.f32 %v183, %v1413
      %v1421 = vmul.f32 %v184, %v1413
      %v1422 = vmul.f32 %v185, %v1413
      %v1423 = vmul.f32 %v186, %v1413
      %v1424 = vmul.f32 %v187, %v1413
      %v1425 = vmul.f32 %v188, %v1413
      %v1426 = vmul.f32 %v189, %v1413
      %v1427 = vmul.f32 %v190, %v1413
      %v1428 = vmul.f32 %v191, %v1413
      %v1429 = vmul.f32 %v192, %v1413
      %v1430 = vmul.f32 %v193, %v1413
      %v1431 = vmul.f32 %v194, %v1413
      %v1432 = vmul.f32 %v195, %v1413
      %v1433 = vmul.f32 %v196, %v1413
      %v1434 = vmul.f32 %v197, %v1413
      %v1435 = vmul.f32 %v198, %v1413
      %v1436 = vmul.f32 %v199, %v1413
      %v1437 = vmul.f32 %v200, %v1413
      %v1438 = vmul.f32 %v201, %v1413
      %v1439 = vmul.f32 %v202, %v1413
      %v1440 = vmul.f32 %v203, %v1413
      %v1441 = vmul.f32 %v204, %v1413
      %v1442 = vmul.f32 %v205, %v1413
      %v1443 = vmul.f32 %v206, %v1413
      %v1444 = vmul.f32 %v207, %v1413
      %v1445 = vmul.f32 %v208, %v1413
      %v1446 = vmul.f32 %v209, %v1413
      %v1447 = vmul.f32 %v210, %v1413
      %v1448 = vmul.f32 %v211, %v1413
      %v1449 = vmul.f32 %v212, %v1413
      %v1450 = vmul.f32 %v213, %v1413
      %v1451 = vmul.f32 %v214, %v1413
      %v1452 = vmul.f32 %v215, %v1413
      %v1453 = vmul.f32 %v216, %v1413
      %v1454 = vmul.f32 %v217, %v1413
      %v1455 = vmul.f32 %v218, %v1413
      %v1456 = vmul.f32 %v219, %v1413
      %v1457 = vmul.f32 %v220, %v1413
      %v1458 = vmul.f32 %v221, %v1413
      %v1459 = vmul.f32 %v222, %v1413
      %v1460 = vmul.f32 %v223, %v1413
      %v1461 = vmul.f32 %v224, %v1413
      %v1510 = vrot.slane %v1414, 1
      %v1511 = vrot.slane %v1415, 1
      %v1512 = vsel %vm396, %v1510, %v1511
      %v1513 = vrot.slane %v1416, 1
      %v1514 = vsel %vm396, %v1511, %v1513
      %v1515 = vrot.slane %v1417, 1
      %v1516 = vrot.slane %v1418, 1
      %v1517 = vsel %vm396, %v1515, %v1516
      %v1518 = vrot.slane %v1419, 1
      %v1519 = vsel %vm396, %v1516, %v1518
      %v1520 = vrot.slane %v1420, 1
      %v1521 = vrot.slane %v1421, 1
      %v1522 = vsel %vm396, %v1520, %v1521
      %v1523 = vrot.slane %v1422, 1
      %v1524 = vsel %vm396, %v1521, %v1523
      %v1525 = vrot.slane %v1423, 1
      %v1526 = vrot.slane %v1424, 1
      %v1527 = vsel %vm396, %v1525, %v1526
      %v1528 = vrot.slane %v1425, 1
      %v1529 = vsel %vm396, %v1526, %v1528
      %v1530 = vrot.slane %v1426, 1
      %v1531 = vrot.slane %v1427, 1
      %v1532 = vsel %vm396, %v1530, %v1531
      %v1533 = vrot.slane %v1428, 1
      %v1534 = vsel %vm396, %v1531, %v1533
      %v1535 = vrot.slane %v1429, 1
      %v1536 = vrot.slane %v1430, 1
      %v1537 = vsel %vm396, %v1535, %v1536
      %v1538 = vrot.slane %v1431, 1
      %v1539 = vsel %vm396, %v1536, %v1538
      %v1540 = vrot.slane %v1432, 1
      %v1541 = vrot.slane %v1433, 1
      %v1542 = vsel %vm396, %v1540, %v1541
      %v1543 = vrot.slane %v1434, 1
      %v1544 = vsel %vm396, %v1541, %v1543
      %v1545 = vrot.slane %v1435, 1
      %v1546 = vrot.slane %v1436, 1
      %v1547 = vsel %vm396, %v1545, %v1546
      %v1548 = vrot.slane %v1437, 1
      %v1549 = vsel %vm396, %v1546, %v1548
      %v1550 = vrot.slane %v1438, 1
      %v1551 = vrot.slane %v1439, 1
      %v1552 = vsel %vm396, %v1550, %v1551
      %v1553 = vrot.slane %v1440, 1
      %v1554 = vsel %vm396, %v1551, %v1553
      %v1555 = vrot.slane %v1441, 1
      %v1556 = vrot.slane %v1442, 1
      %v1557 = vsel %vm396, %v1555, %v1556
      %v1558 = vrot.slane %v1443, 1
      %v1559 = vsel %vm396, %v1556, %v1558
      %v1560 = vrot.slane %v1444, 1
      %v1561 = vrot.slane %v1445, 1
      %v1562 = vsel %vm396, %v1560, %v1561
      %v1563 = vrot.slane %v1446, 1
      %v1564 = vsel %vm396, %v1561, %v1563
      %v1565 = vrot.slane %v1447, 1
      %v1566 = vrot.slane %v1448, 1
      %v1567 = vsel %vm396, %v1565, %v1566
      %v1568 = vrot.slane %v1449, 1
      %v1569 = vsel %vm396, %v1566, %v1568
      %v1570 = vrot.slane %v1450, 1
      %v1571 = vrot.slane %v1451, 1
      %v1572 = vsel %vm396, %v1570, %v1571
      %v1573 = vrot.slane %v1452, 1
      %v1574 = vsel %vm396, %v1571, %v1573
      %v1575 = vrot.slane %v1453, 1
      %v1576 = vrot.slane %v1454, 1
      %v1577 = vsel %vm396, %v1575, %v1576
      %v1578 = vrot.slane %v1455, 1
      %v1579 = vsel %vm396, %v1576, %v1578
      %v1580 = vrot.slane %v1456, 1
      %v1581 = vrot.slane %v1457, 1
      %v1582 = vsel %vm396, %v1580, %v1581
      %v1583 = vrot.slane %v1458, 1
      %v1584 = vsel %vm396, %v1581, %v1583
      %v1585 = vrot.slane %v1459, 1
      %v1586 = vrot.slane %v1460, 1
      %v1587 = vsel %vm396, %v1585, %v1586
      %v1588 = vrot.slane %v1461, 1
      %v1589 = vsel %vm396, %v1586, %v1588
      %v1622 = vadd.f32 %v1378, %v1512
      %v1623 = vadd.f32 %v1379, %v1514
      %v1624 = vadd.f32 %v1380, %v1517
      %v1625 = vadd.f32 %v1381, %v1519
      %v1626 = vadd.f32 %v1382, %v1522
      %v1627 = vadd.f32 %v1383, %v1524
      %v1628 = vadd.f32 %v1384, %v1527
      %v1629 = vadd.f32 %v1385, %v1529
      %v1630 = vadd.f32 %v1386, %v1532
      %v1631 = vadd.f32 %v1387, %v1534
      %v1632 = vadd.f32 %v1388, %v1537
      %v1633 = vadd.f32 %v1389, %v1539
      %v1634 = vadd.f32 %v1390, %v1542
      %v1635 = vadd.f32 %v1391, %v1544
      %v1636 = vadd.f32 %v1392, %v1547
      %v1637 = vadd.f32 %v1393, %v1549
      %v1638 = vadd.f32 %v1394, %v1552
      %v1639 = vadd.f32 %v1395, %v1554
      %v1640 = vadd.f32 %v1396, %v1557
      %v1641 = vadd.f32 %v1397, %v1559
      %v1642 = vadd.f32 %v1398, %v1562
      %v1643 = vadd.f32 %v1399, %v1564
      %v1644 = vadd.f32 %v1400, %v1567
      %v1645 = vadd.f32 %v1401, %v1569
      %v1646 = vadd.f32 %v1402, %v1572
      %v1647 = vadd.f32 %v1403, %v1574
      %v1648 = vadd.f32 %v1404, %v1577
      %v1649 = vadd.f32 %v1405, %v1579
      %v1650 = vadd.f32 %v1406, %v1582
      %v1651 = vadd.f32 %v1407, %v1584
      %v1652 = vadd.f32 %v1408, %v1587
      %v1653 = vadd.f32 %v1409, %v1589
      %v1654 = vlaneseq
      %v1655 = vshrl.u32 %v1654, 7
      %v1656 = vsub.s32 2, %v1655
      %v1657 = vrot.slane %v227, %v1656
      %v1658 = vmul.f32 %v177, %v1657
      %v1659 = vmul.f32 %v178, %v1657
      %v1660 = vmul.f32 %v179, %v1657
      %v1661 = vmul.f32 %v180, %v1657
      %v1662 = vmul.f32 %v181, %v1657
      %v1663 = vmul.f32 %v182, %v1657
      %v1664 = vmul.f32 %v183, %v1657
      %v1665 = vmul.f32 %v184, %v1657
      %v1666 = vmul.f32 %v185, %v1657
      %v1667 = vmul.f32 %v186, %v1657
      %v1668 = vmul.f32 %v187, %v1657
      %v1669 = vmul.f32 %v188, %v1657
      %v1670 = vmul.f32 %v189, %v1657
      %v1671 = vmul.f32 %v190, %v1657
      %v1672 = vmul.f32 %v191, %v1657
      %v1673 = vmul.f32 %v192, %v1657
      %v1674 = vmul.f32 %v193, %v1657
      %v1675 = vmul.f32 %v194, %v1657
      %v1676 = vmul.f32 %v195, %v1657
      %v1677 = vmul.f32 %v196, %v1657
      %v1678 = vmul.f32 %v197, %v1657
      %v1679 = vmul.f32 %v198, %v1657
      %v1680 = vmul.f32 %v199, %v1657
      %v1681 = vmul.f32 %v200, %v1657
      %v1682 = vmul.f32 %v201, %v1657
      %v1683 = vmul.f32 %v202, %v1657
      %v1684 = vmul.f32 %v203, %v1657
      %v1685 = vmul.f32 %v204, %v1657
      %v1686 = vmul.f32 %v205, %v1657
      %v1687 = vmul.f32 %v206, %v1657
      %v1688 = vmul.f32 %v207, %v1657
      %v1689 = vmul.f32 %v208, %v1657
      %v1690 = vmul.f32 %v209, %v1657
      %v1691 = vmul.f32 %v210, %v1657
      %v1692 = vmul.f32 %v211, %v1657
      %v1693 = vmul.f32 %v212, %v1657
      %v1694 = vmul.f32 %v213, %v1657
      %v1695 = vmul.f32 %v214, %v1657
      %v1696 = vmul.f32 %v215, %v1657
      %v1697 = vmul.f32 %v216, %v1657
      %v1698 = vmul.f32 %v217, %v1657
      %v1699 = vmul.f32 %v218, %v1657
      %v1700 = vmul.f32 %v219, %v1657
      %v1701 = vmul.f32 %v220, %v1657
      %v1702 = vmul.f32 %v221, %v1657
      %v1703 = vmul.f32 %v222, %v1657
      %v1704 = vmul.f32 %v223, %v1657
      %v1705 = vmul.f32 %v224, %v1657
      %v1754 = vrot.slane %v1658, 2
      %v1755 = vrot.slane %v1659, 2
      %v1756 = vsel %vm641, %v1754, %v1755
      %v1757 = vrot.slane %v1660, 2
      %v1758 = vsel %vm641, %v1755, %v1757
      %v1759 = vrot.slane %v1661, 2
      %v1760 = vrot.slane %v1662, 2
      %v1761 = vsel %vm641, %v1759, %v1760
      %v1762 = vrot.slane %v1663, 2
      %v1763 = vsel %vm641, %v1760, %v1762
      %v1764 = vrot.slane %v1664, 2
      %v1765 = vrot.slane %v1665, 2
      %v1766 = vsel %vm641, %v1764, %v1765
      %v1767 = vrot.slane %v1666, 2
      %v1768 = vsel %vm641, %v1765, %v1767
      %v1769 = vrot.slane %v1667, 2
      %v1770 = vrot.slane %v1668, 2
      %v1771 = vsel %vm641, %v1769, %v1770
      %v1772 = vrot.slane %v1669, 2
      %v1773 = vsel %vm641, %v1770, %v1772
      %v1774 = vrot.slane %v1670, 2
      %v1775 = vrot.slane %v1671, 2
      %v1776 = vsel %vm641, %v1774, %v1775
      %v1777 = vrot.slane %v1672, 2
      %v1778 = vsel %vm641, %v1775, %v1777
      %v1779 = vrot.slane %v1673, 2
      %v1780 = vrot.slane %v1674, 2
      %v1781 = vsel %vm641, %v1779, %v1780
      %v1782 = vrot.slane %v1675, 2
      %v1783 = vsel %vm641, %v1780, %v1782
      %v1784 = vrot.slane %v1676, 2
      %v1785 = vrot.slane %v1677, 2
      %v1786 = vsel %vm641, %v1784, %v1785
      %v1787 = vrot.slane %v1678, 2
      %v1788 = vsel %vm641, %v1785, %v1787
      %v1789 = vrot.slane %v1679, 2
      %v1790 = vrot.slane %v1680, 2
      %v1791 = vsel %vm641, %v1789, %v1790
      %v1792 = vrot.slane %v1681, 2
      %v1793 = vsel %vm641, %v1790, %v1792
      %v1794 = vrot.slane %v1682, 2
      %v1795 = vrot.slane %v1683, 2
      %v1796 = vsel %vm641, %v1794, %v1795
      %v1797 = vrot.slane %v1684, 2
      %v1798 = vsel %vm641, %v1795, %v1797
      %v1799 = vrot.slane %v1685, 2
      %v1800 = vrot.slane %v1686, 2
      %v1801 = vsel %vm641, %v1799, %v1800
      %v1802 = vrot.slane %v1687, 2
      %v1803 = vsel %vm641, %v1800, %v1802
      %v1804 = vrot.slane %v1688, 2
      %v1805 = vrot.slane %v1689, 2
      %v1806 = vsel %vm641, %v1804, %v1805
      %v1807 = vrot.slane %v1690, 2
      %v1808 = vsel %vm641, %v1805, %v1807
      %v1809 = vrot.slane %v1691, 2
      %v1810 = vrot.slane %v1692, 2
      %v1811 = vsel %vm641, %v1809, %v1810
      %v1812 = vrot.slane %v1693, 2
      %v1813 = vsel %vm641, %v1810, %v1812
      %v1814 = vrot.slane %v1694, 2
      %v1815 = vrot.slane %v1695, 2
      %v1816 = vsel %vm641, %v1814, %v1815
      %v1817 = vrot.slane %v1696, 2
      %v1818 = vsel %vm641, %v1815, %v1817
      %v1819 = vrot.slane %v1697, 2
      %v1820 = vrot.slane %v1698, 2
      %v1821 = vsel %vm641, %v1819, %v1820
      %v1822 = vrot.slane %v1699, 2
      %v1823 = vsel %vm641, %v1820, %v1822
      %v1824 = vrot.slane %v1700, 2
      %v1825 = vrot.slane %v1701, 2
      %v1826 = vsel %vm641, %v1824, %v1825
      %v1827 = vrot.slane %v1702, 2
      %v1828 = vsel %vm641, %v1825, %v1827
      %v1829 = vrot.slane %v1703, 2
      %v1830 = vrot.slane %v1704, 2
      %v1831 = vsel %vm641, %v1829, %v1830
      %v1832 = vrot.slane %v1705, 2
      %v1833 = vsel %vm641, %v1830, %v1832
      %v1866 = vadd.f32 %v1622, %v1756
      %v1867 = vadd.f32 %v1623, %v1758
      %v1868 = vadd.f32 %v1624, %v1761
      %v1869 = vadd.f32 %v1625, %v1763
      %v1870 = vadd.f32 %v1626, %v1766
      %v1871 = vadd.f32 %v1627, %v1768
      %v1872 = vadd.f32 %v1628, %v1771
      %v1873 = vadd.f32 %v1629, %v1773
      %v1874 = vadd.f32 %v1630, %v1776
      %v1875 = vadd.f32 %v1631, %v1778
      %v1876 = vadd.f32 %v1632, %v1781
      %v1877 = vadd.f32 %v1633, %v1783
      %v1878 = vadd.f32 %v1634, %v1786
      %v1879 = vadd.f32 %v1635, %v1788
      %v1880 = vadd.f32 %v1636, %v1791
      %v1881 = vadd.f32 %v1637, %v1793
      %v1882 = vadd.f32 %v1638, %v1796
      %v1883 = vadd.f32 %v1639, %v1798
      %v1884 = vadd.f32 %v1640, %v1801
      %v1885 = vadd.f32 %v1641, %v1803
      %v1886 = vadd.f32 %v1642, %v1806
      %v1887 = vadd.f32 %v1643, %v1808
      %v1888 = vadd.f32 %v1644, %v1811
      %v1889 = vadd.f32 %v1645, %v1813
      %v1890 = vadd.f32 %v1646, %v1816
      %v1891 = vadd.f32 %v1647, %v1818
      %v1892 = vadd.f32 %v1648, %v1821
      %v1893 = vadd.f32 %v1649, %v1823
      %v1894 = vadd.f32 %v1650, %v1826
      %v1895 = vadd.f32 %v1651, %v1828
      %v1896 = vadd.f32 %v1652, %v1831
      %v1897 = vadd.f32 %v1653, %v1833
      %v1898 = vld [vmem:[%s2] sm:$0x1]
      %v1900 = vlaneseq
      %v1901 = vshrl.u32 %v1900, 7
      %v1902 = vsub.s32 0, %v1901
      %v1903 = vrot.slane %v1898, %v1902
      %v1905 = vadd.f32 %v1866, %v1903
      %v1906 = vadd.f32 %v1867, %v1903
      %v1907 = vadd.f32 %v1868, %v1903
      %v1908 = vadd.f32 %v1869, %v1903
      %v1909 = vadd.f32 %v1870, %v1903
      %v1910 = vadd.f32 %v1871, %v1903
      %v1911 = vadd.f32 %v1872, %v1903
      %v1912 = vadd.f32 %v1873, %v1903
      %v1913 = vadd.f32 %v1874, %v1903
      %v1914 = vadd.f32 %v1875, %v1903
      %v1915 = vadd.f32 %v1876, %v1903
      %v1916 = vadd.f32 %v1877, %v1903
      %v1917 = vadd.f32 %v1878, %v1903
      %v1918 = vadd.f32 %v1879, %v1903
      %v1919 = vadd.f32 %v1880, %v1903
      %v1920 = vadd.f32 %v1881, %v1903
      %v1921 = vadd.f32 %v1882, %v1903
      %v1922 = vadd.f32 %v1883, %v1903
      %v1923 = vadd.f32 %v1884, %v1903
      %v1924 = vadd.f32 %v1885, %v1903
      %v1925 = vadd.f32 %v1886, %v1903
      %v1926 = vadd.f32 %v1887, %v1903
      %v1927 = vadd.f32 %v1888, %v1903
      %v1928 = vadd.f32 %v1889, %v1903
      %v1929 = vadd.f32 %v1890, %v1903
      %v1930 = vadd.f32 %v1891, %v1903
      %v1931 = vadd.f32 %v1892, %v1903
      %v1932 = vadd.f32 %v1893, %v1903
      %v1933 = vadd.f32 %v1894, %v1903
      %v1934 = vadd.f32 %v1895, %v1903
      %v1935 = vadd.f32 %v1896, %v1903
      %v1936 = vadd.f32 %v1897, %v1903
      %vm1937 = vcmp.gt.f32.partialorder %v1905, 0.0
      %vm1938 = vcmp.gt.f32.partialorder %v1906, 0.0
      %vm1939 = vcmp.gt.f32.partialorder %v1907, 0.0
      %vm1940 = vcmp.gt.f32.partialorder %v1908, 0.0
      %vm1941 = vcmp.gt.f32.partialorder %v1909, 0.0
      %vm1942 = vcmp.gt.f32.partialorder %v1910, 0.0
      %vm1943 = vcmp.gt.f32.partialorder %v1911, 0.0
      %vm1944 = vcmp.gt.f32.partialorder %v1912, 0.0
      %vm1945 = vcmp.gt.f32.partialorder %v1913, 0.0
      %vm1946 = vcmp.gt.f32.partialorder %v1914, 0.0
      %vm1947 = vcmp.gt.f32.partialorder %v1915, 0.0
      %vm1948 = vcmp.gt.f32.partialorder %v1916, 0.0
      %vm1949 = vcmp.gt.f32.partialorder %v1917, 0.0
      %vm1950 = vcmp.gt.f32.partialorder %v1918, 0.0
      %vm1951 = vcmp.gt.f32.partialorder %v1919, 0.0
      %vm1952 = vcmp.gt.f32.partialorder %v1920, 0.0
      %vm1953 = vcmp.gt.f32.partialorder %v1921, 0.0
      %vm1954 = vcmp.gt.f32.partialorder %v1922, 0.0
      %vm1955 = vcmp.gt.f32.partialorder %v1923, 0.0
      %vm1956 = vcmp.gt.f32.partialorder %v1924, 0.0
      %vm1957 = vcmp.gt.f32.partialorder %v1925, 0.0
      %vm1958 = vcmp.gt.f32.partialorder %v1926, 0.0
      %vm1959 = vcmp.gt.f32.partialorder %v1927, 0.0
      %vm1960 = vcmp.gt.f32.partialorder %v1928, 0.0
      %vm1961 = vcmp.gt.f32.partialorder %v1929, 0.0
      %vm1962 = vcmp.gt.f32.partialorder %v1930, 0.0
      %vm1963 = vcmp.gt.f32.partialorder %v1931, 0.0
      %vm1964 = vcmp.gt.f32.partialorder %v1932, 0.0
      %vm1965 = vcmp.gt.f32.partialorder %v1933, 0.0
      %vm1966 = vcmp.gt.f32.partialorder %v1934, 0.0
      %vm1967 = vcmp.gt.f32.partialorder %v1935, 0.0
      %vm1968 = vcmp.gt.f32.partialorder %v1936, 0.0
      %v1969 = vmul.f32 %v1905, 1.442695
      %v1970 = vpow.pop %v1969
      %v1971 = vmul.f32 %v1906, 1.442695
      %v1972 = vpow.pop %v1971
      %v1973 = vmul.f32 %v1907, 1.442695
      %v1974 = vpow.pop %v1973
      %v1975 = vmul.f32 %v1908, 1.442695
      %v1976 = vpow.pop %v1975
      %v1977 = vmul.f32 %v1909, 1.442695
      %v1978 = vpow.pop %v1977
      %v1979 = vmul.f32 %v1910, 1.442695
      %v1980 = vpow.pop %v1979
      %v1981 = vmul.f32 %v1911, 1.442695
      %v1982 = vpow.pop %v1981
      %v1983 = vmul.f32 %v1912, 1.442695
      %v1984 = vpow.pop %v1983
      %v1985 = vmul.f32 %v1913, 1.442695
      %v1986 = vpow.pop %v1985
      %v1987 = vmul.f32 %v1914, 1.442695
      %v1988 = vpow.pop %v1987
      %v1989 = vmul.f32 %v1915, 1.442695
      %v1990 = vpow.pop %v1989
      %v1991 = vmul.f32 %v1916, 1.442695
      %v1992 = vpow.pop %v1991
      %v1993 = vmul.f32 %v1917, 1.442695
      %v1994 = vpow.pop %v1993
      %v1995 = vmul.f32 %v1918, 1.442695
      %v1996 = vpow.pop %v1995
      %v1997 = vmul.f32 %v1919, 1.442695
      %v1998 = vpow.pop %v1997
      %v1999 = vmul.f32 %v1920, 1.442695
      %v2000 = vpow.pop %v1999
      %v2001 = vmul.f32 %v1921, 1.442695
      %v2002 = vpow.pop %v2001
      %v2003 = vmul.f32 %v1922, 1.442695
      %v2004 = vpow.pop %v2003
      %v2005 = vmul.f32 %v1923, 1.442695
      %v2006 = vpow.pop %v2005
      %v2007 = vmul.f32 %v1924, 1.442695
      %v2008 = vpow.pop %v2007
      %v2009 = vmul.f32 %v1925, 1.442695
      %v2010 = vpow.pop %v2009
      %v2011 = vmul.f32 %v1926, 1.442695
      %v2012 = vpow.pop %v2011
      %v2013 = vmul.f32 %v1927, 1.442695
      %v2014 = vpow.pop %v2013
      %v2015 = vmul.f32 %v1928, 1.442695
      %v2016 = vpow.pop %v2015
      %v2017 = vmul.f32 %v1929, 1.442695
      %v2018 = vpow.pop %v2017
      %v2019 = vmul.f32 %v1930, 1.442695
      %v2020 = vpow.pop %v2019
      %v2021 = vmul.f32 %v1931, 1.442695
      %v2022 = vpow.pop %v2021
      %v2023 = vmul.f32 %v1932, 1.442695
      %v2024 = vpow.pop %v2023
      %v2025 = vmul.f32 %v1933, 1.442695
      %v2026 = vpow.pop %v2025
      %v2027 = vmul.f32 %v1934, 1.442695
      %v2028 = vpow.pop %v2027
      %v2029 = vmul.f32 %v1935, 1.442695
      %v2030 = vpow.pop %v2029
      %v2031 = vmul.f32 %v1936, 1.442695
      %v2032 = vpow.pop %v2031
      %v2033 = vsub.f32 %v1970, 1.0
      %v2034 = vsub.f32 %v1972, 1.0
      %v2035 = vsub.f32 %v1974, 1.0
      %v2036 = vsub.f32 %v1976, 1.0
      %v2037 = vsub.f32 %v1978, 1.0
      %v2038 = vsub.f32 %v1980, 1.0
      %v2039 = vsub.f32 %v1982, 1.0
      %v2040 = vsub.f32 %v1984, 1.0
      %v2041 = vsub.f32 %v1986, 1.0
      %v2042 = vsub.f32 %v1988, 1.0
      %v2043 = vsub.f32 %v1990, 1.0
      %v2044 = vsub.f32 %v1992, 1.0
      %v2045 = vsub.f32 %v1994, 1.0
      %v2046 = vsub.f32 %v1996, 1.0
      %v2047 = vsub.f32 %v1998, 1.0
      %v2048 = vsub.f32 %v2000, 1.0
      %v2049 = vsub.f32 %v2002, 1.0
      %v2050 = vsub.f32 %v2004, 1.0
      %v2051 = vsub.f32 %v2006, 1.0
      %v2052 = vsub.f32 %v2008, 1.0
      %v2053 = vsub.f32 %v2010, 1.0
      %v2054 = vsub.f32 %v2012, 1.0
      %v2055 = vsub.f32 %v2014, 1.0
      %v2056 = vsub.f32 %v2016, 1.0
      %v2057 = vsub.f32 %v2018, 1.0
      %v2058 = vsub.f32 %v2020, 1.0
      %v2059 = vsub.f32 %v2022, 1.0
      %v2060 = vsub.f32 %v2024, 1.0
      %v2061 = vsub.f32 %v2026, 1.0
      %v2062 = vsub.f32 %v2028, 1.0
      %v2063 = vsub.f32 %v2030, 1.0
      %v2064 = vsub.f32 %v2032, 1.0
      %v2065 = vsel %vm1937, %v1905, %v2033
      %v2066 = vsel %vm1938, %v1906, %v2034
      %v2067 = vsel %vm1939, %v1907, %v2035
      %v2068 = vsel %vm1940, %v1908, %v2036
      %v2069 = vsel %vm1941, %v1909, %v2037
      %v2070 = vsel %vm1942, %v1910, %v2038
      %v2071 = vsel %vm1943, %v1911, %v2039
      %v2072 = vsel %vm1944, %v1912, %v2040
      %v2073 = vsel %vm1945, %v1913, %v2041
      %v2074 = vsel %vm1946, %v1914, %v2042
      %v2075 = vsel %vm1947, %v1915, %v2043
      %v2076 = vsel %vm1948, %v1916, %v2044
      %v2077 = vsel %vm1949, %v1917, %v2045
      %v2078 = vsel %vm1950, %v1918, %v2046
      %v2079 = vsel %vm1951, %v1919, %v2047
      %v2080 = vsel %vm1952, %v1920, %v2048
      %v2081 = vsel %vm1953, %v1921, %v2049
      %v2082 = vsel %vm1954, %v1922, %v2050
      %v2083 = vsel %vm1955, %v1923, %v2051
      %v2084 = vsel %vm1956, %v1924, %v2052
      %v2085 = vsel %vm1957, %v1925, %v2053
      %v2086 = vsel %vm1958, %v1926, %v2054
      %v2087 = vsel %vm1959, %v1927, %v2055
      %v2088 = vsel %vm1960, %v1928, %v2056
      %v2089 = vsel %vm1961, %v1929, %v2057
      %v2090 = vsel %vm1962, %v1930, %v2058
      %v2091 = vsel %vm1963, %v1931, %v2059
      %v2092 = vsel %vm1964, %v1932, %v2060
      %v2093 = vsel %vm1965, %v1933, %v2061
      %v2094 = vsel %vm1966, %v1934, %v2062
      %v2095 = vsel %vm1967, %v1935, %v2063
      %v2096 = vsel %vm1968, %v1936, %v2064
      %vm2097 = vcmask 261120
      %2098 = vst.msk [vmem:[%s170] sm:$0xff] %vm2097, %v2065
      %2099 = vst.msk [vmem:[%s170 + $0x8] sm:$0xff] %vm2097, %v2066
      %2100 = vst.msk [vmem:[%s170 + $0x10] sm:$0xff] %vm2097, %v2067
      %2101 = vst.msk [vmem:[%s170 + $0x18] sm:$0xff] %vm2097, %v2068
      %2102 = vst.msk [vmem:[%s170 + $0x20] sm:$0xff] %vm2097, %v2069
      %2103 = vst.msk [vmem:[%s170 + $0x28] sm:$0xff] %vm2097, %v2070
      %2104 = vst.msk [vmem:[%s170 + $0x30] sm:$0xff] %vm2097, %v2071
      %2105 = vst.msk [vmem:[%s170 + $0x38] sm:$0xff] %vm2097, %v2072
      %2106 = vst.msk [vmem:[%s170 + $0x40] sm:$0xff] %vm2097, %v2073
      %2107 = vst.msk [vmem:[%s170 + $0x48] sm:$0xff] %vm2097, %v2074
      %2108 = vst.msk [vmem:[%s170 + $0x50] sm:$0xff] %vm2097, %v2075
      %2109 = vst.msk [vmem:[%s170 + $0x58] sm:$0xff] %vm2097, %v2076
      %2110 = vst.msk [vmem:[%s170 + $0x60] sm:$0xff] %vm2097, %v2077
      %2111 = vst.msk [vmem:[%s170 + $0x68] sm:$0xff] %vm2097, %v2078
      %2112 = vst.msk [vmem:[%s170 + $0x70] sm:$0xff] %vm2097, %v2079
      %2113 = vst.msk [vmem:[%s170 + $0x78] sm:$0xff] %vm2097, %v2080
      %2114 = vst.msk [vmem:[%s170 + $0x80] sm:$0xff] %vm2097, %v2081
      %2115 = vst.msk [vmem:[%s170 + $0x88] sm:$0xff] %vm2097, %v2082
      %2116 = vst.msk [vmem:[%s170 + $0x90] sm:$0xff] %vm2097, %v2083
      %2117 = vst.msk [vmem:[%s170 + $0x98] sm:$0xff] %vm2097, %v2084
      %2118 = vst.msk [vmem:[%s170 + $0xa0] sm:$0xff] %vm2097, %v2085
      %2119 = vst.msk [vmem:[%s170 + $0xa8] sm:$0xff] %vm2097, %v2086
      %2120 = vst.msk [vmem:[%s170 + $0xb0] sm:$0xff] %vm2097, %v2087
      %2121 = vst.msk [vmem:[%s170 + $0xb8] sm:$0xff] %vm2097, %v2088
      %2122 = vst.msk [vmem:[%s170 + $0xc0] sm:$0xff] %vm2097, %v2089
      %2123 = vst.msk [vmem:[%s170 + $0xc8] sm:$0xff] %vm2097, %v2090
      %2124 = vst.msk [vmem:[%s170 + $0xd0] sm:$0xff] %vm2097, %v2091
      %2125 = vst.msk [vmem:[%s170 + $0xd8] sm:$0xff] %vm2097, %v2092
      %2126 = vst.msk [vmem:[%s170 + $0xe0] sm:$0xff] %vm2097, %v2093
      %2127 = vst.msk [vmem:[%s170 + $0xe8] sm:$0xff] %vm2097, %v2094
      %2128 = vst.msk [vmem:[%s170 + $0xf0] sm:$0xff] %vm2097, %v2095
      %2129 = vst.msk [vmem:[%s170 + $0xf8] sm:$0xff] %vm2097, %v2096
      %p2130 = scmp.lt.s32.totalorder %s14, 1
      %s2131 = scalar_select %p2130, %s14, 1
      %s2132 = smul.addr %s2131, 32
      %s2133 = smul.addr %s2132, 8
      %s2134 = scalar_lea.vmem %s3, %s2133
      // Predicated region
      $region33: #{attention_forward.11} parent=31 // pred_check
        %p2135 = pneg %p100
      $region34: #{attention_forward.11} parent=31 // pred_check_branch
        %2137 = sbr.rel (%p2135) target = $region36
      $region35: #{attention_forward.11} parent=31 // pred_region
        _
      $region36: #{attention_forward.11} parent=31 // pred_fallthru
        _
    $region32: #{attention_forward.11} parent=5 // pred_fallthru
      _
    %p2138 = scmp.le.s32.totalorder 2, %s9
    // Predicated region
    $region37: #{attention_forward.11} parent=5 // pred_check
      %p2139 = pneg %p2138
    $region38: #{attention_forward.11} parent=5 // pred_check_branch
      %2141 = sbr.rel (%p2139) target = $region40
    $region39: #{attention_forward.11} parent=5 // pred_region
      %s2142 = ssub.s32 %s9, 2
      // Predicated region
      $region41: #{attention_forward.11} parent=39 // pred_check
        %p2143 = pneg %p106
      $region42: #{attention_forward.11} parent=39 // pred_check_branch
        %2145 = sbr.rel (%p2143) target = $region44
      $region43: #{attention_forward.11} parent=39 // pred_region
        %p2146 = scmp.lt.s32.totalorder %s15, 1
        %s2147 = scalar_select %p2146, %s15, 1
        %s2148 = smul.addr %s2147, 32
        %s2149 = smul.addr %s2148, 8
        %s2150 = scalar_lea.vmem %s3, %s2149
      $region44: #{attention_forward.11} parent=39 // pred_fallthru
        _
    $region40: #{attention_forward.11} parent=5 // pred_fallthru
      _
  $region6: #{attention_forward.11} parent=0 // loop_footer
    %s13 = sadd.s32 1, %s9
  $region7: #{attention_forward.11} parent=0 // loop_footer_branch
    %8 = sbr.rel target = $region3
  $region8: #{attention_forward.11} parent=0 // loop_exit
    _

// kernel: attention_forward.9
$region0: #{attention_forward.9}
  #allocation0 [shape = 'u32[]', space=smem, size = 0x4, offset = 0x4, fixed_abs, tag = 'smem constant byte address 0x4 - core index']
  #allocation1 [shape = 'u32[144,128]{1,0:T(1,128)}', space=vmem, size = 0x12000, scoped, tag = 'internal scratch']
  %s0 = inlined_call_operand.vmem [shape: f32[2,2,256,16], index: 0, kind: input, shape index: {}]
  %s1 = inlined_call_operand.vmem [shape: f32[2,2,256,16], index: 1, kind: input, shape index: {}]
  %s2 = inlined_call_operand.vmem [shape: f32[2,2,256,16], index: 2, kind: input, shape index: {}]
  %s3 = inlined_call_operand.vmem [shape: f32[2,256,256], index: 3, kind: input, shape index: {}]
  %s4 = inlined_call_operand.vmem [shape: f32[2,2,256,16], index: 4, kind: output, shape index: {}]
  %s5 = sld [smem:[#allocation0]]
  $region49: #{attention_forward.9} parent=0
    _
  %s7 = ssub.s32 1, %s5
  %s8 = scalar_select 0, %s7, %s5
  loop: start=0, step=1, limit=6
  $region2: #{attention_forward.9} parent=0 // loop_pre_header
    _
  $region3: #{attention_forward.9} parent=0 // loop_header
    %s10 = sphi 0, %s14
    %p11 = scmp.ge.s32.totalorder %s10, 6
    %s17 = sphi 0, %s29
    %s18 = sphi 0, %s25
    %s19 = sphi 0, %s17
    %s20 = sphi 0, %s18
    %s21 = sphi 0, %s19
    %s22 = sphi 0, %s20
    %s34 = sphi 0, %s36
    %s37 = sphi 0, %s34
    %s38 = sphi 0, %s37
    %s54 = sphi 0, %s38
    %s62 = sphi 0, %s64
    %s65 = sphi 0, %s62
    %s66 = sphi 0, %s65
    %s82 = sphi 0, %s66
    %s90 = sphi 0, %s92
    %s93 = sphi 0, %s90
    %s94 = sphi 0, %s93
    %s110 = sphi 0, %s94
    %s116 = sphi 0, %s118
    %s119 = sphi 0, %s116
    %s120 = sphi 0, %s119
    %s136 = sphi 0, %s120
    %s144 = sphi 0, %s146
    %s147 = sphi 0, %s144
    %s148 = sphi 0, %s147
    %s164 = sphi 0, %s148
  $region4: #{attention_forward.9} parent=0 // loop_header_branch
    %13 = sbr.rel (%p11) target = $region8
  $region5: #{attention_forward.9} parent=0 // loop_body
    %s15 = ssub.s32 %s10, 1
    %s16 = ssub.s32 %s10, 2
    %s23 = sadd.s32 1, %s18
    %p24 = scmp.ge.s32.totalorder %s23, 2
    %s25 = scalar_select %p24, 0, %s23
    %s26 = sadd.s32 1, %s17
    %s27 = scalar_select %p24, %s26, %s17
    %p28 = scmp.ge.s32.totalorder %s27, 2
    %s29 = scalar_select %p28, 0, %s27
    %s30 = ssub.s32 %s17, %s29
    %s31 = ssub.s32 %s18, %s25
    %s32 = sor.u32 %s30, %s31
    %p33 = scmp.eq.s32.totalorder %s32, 0
    %s35 = sadd.s32 %s34, 1
    %s36 = scalar_select %p33, %s34, %s35
    %p39 = pneg %p33
    %p40 = scmp.eq.s32.totalorder %s10, 3
    %p41 = por %p39, %p40
    %p42 = scmp.ne.s32.totalorder %s34, %s37
    %p43 = scmp.eq.s32.totalorder %s10, 0
    %p44 = por %p42, %p43
    %p45 = scmp.ne.s32.totalorder %s34, %s37
    %p46 = scmp.eq.s32.totalorder %s15, 3
    %p47 = por %p45, %p46
    %p48 = scmp.ne.s32.totalorder %s37, %s38
    %p49 = scmp.eq.s32.totalorder %s15, 0
    %p50 = por %p48, %p49
    %p51 = scmp.ne.s32.totalorder %s37, %s38
    %p52 = scmp.eq.s32.totalorder %s16, 3
    %p53 = por %p51, %p52
    %p55 = scmp.ne.s32.totalorder %s38, %s54
    %p56 = scmp.eq.s32.totalorder %s16, 0
    %p57 = por %p55, %p56
    %s58 = ssub.s32 %s17, %s29
    %s59 = ssub.s32 %s18, %s25
    %s60 = sor.u32 %s58, %s59
    %p61 = scmp.eq.s32.totalorder %s60, 0
    %s63 = sadd.s32 %s62, 1
    %s64 = scalar_select %p61, %s62, %s63
    %p67 = pneg %p61
    %p68 = scmp.eq.s32.totalorder %s10, 3
    %p69 = por %p67, %p68
    %p70 = scmp.ne.s32.totalorder %s62, %s65
    %p71 = scmp.eq.s32.totalorder %s10, 0
    %p72 = por %p70, %p71
    %p73 = scmp.ne.s32.totalorder %s62, %s65
    %p74 = scmp.eq.s32.totalorder %s15, 3
    %p75 = por %p73, %p74
    %p76 = scmp.ne.s32.totalorder %s65, %s66
    %p77 = scmp.eq.s32.totalorder %s15, 0
    %p78 = por %p76, %p77
    %p79 = scmp.ne.s32.totalorder %s65, %s66
    %p80 = scmp.eq.s32.totalorder %s16, 3
    %p81 = por %p79, %p80
    %p83 = scmp.ne.s32.totalorder %s66, %s82
    %p84 = scmp.eq.s32.totalorder %s16, 0
    %p85 = por %p83, %p84
    %s86 = ssub.s32 %s17, %s29
    %s87 = ssub.s32 %s18, %s25
    %s88 = sor.u32 %s86, %s87
    %p89 = scmp.eq.s32.totalorder %s88, 0
    %s91 = sadd.s32 %s90, 1
    %s92 = scalar_select %p89, %s90, %s91
    %p95 = pneg %p89
    %p96 = scmp.eq.s32.totalorder %s10, 3
    %p97 = por %p95, %p96
    %p98 = scmp.ne.s32.totalorder %s90, %s93
    %p99 = scmp.eq.s32.totalorder %s10, 0
    %p100 = por %p98, %p99
    %p101 = scmp.ne.s32.totalorder %s90, %s93
    %p102 = scmp.eq.s32.totalorder %s15, 3
    %p103 = por %p101, %p102
    %p104 = scmp.ne.s32.totalorder %s93, %s94
    %p105 = scmp.eq.s32.totalorder %s15, 0
    %p106 = por %p104, %p105
    %p107 = scmp.ne.s32.totalorder %s93, %s94
    %p108 = scmp.eq.s32.totalorder %s16, 3
    %p109 = por %p107, %p108
    %p111 = scmp.ne.s32.totalorder %s94, %s110
    %p112 = scmp.eq.s32.totalorder %s16, 0
    %p113 = por %p111, %p112
    %s114 = ssub.s32 %s18, %s25
    %p115 = scmp.eq.s32.totalorder %s114, 0
    %s117 = sadd.s32 %s116, 1
    %s118 = scalar_select %p115, %s116, %s117
    %p121 = pneg %p115
    %p122 = scmp.eq.s32.totalorder %s10, 3
    %p123 = por %p121, %p122
    %p124 = scmp.ne.s32.totalorder %s116, %s119
    %p125 = scmp.eq.s32.totalorder %s10, 0
    %p126 = por %p124, %p125
    %p127 = scmp.ne.s32.totalorder %s116, %s119
    %p128 = scmp.eq.s32.totalorder %s15, 3
    %p129 = por %p127, %p128
    %p130 = scmp.ne.s32.totalorder %s119, %s120
    %p131 = scmp.eq.s32.totalorder %s15, 0
    %p132 = por %p130, %p131
    %p133 = scmp.ne.s32.totalorder %s119, %s120
    %p134 = scmp.eq.s32.totalorder %s16, 3
    %p135 = por %p133, %p134
    %p137 = scmp.ne.s32.totalorder %s120, %s136
    %p138 = scmp.eq.s32.totalorder %s16, 0
    %p139 = por %p137, %p138
    %s140 = ssub.s32 %s17, %s29
    %s141 = ssub.s32 %s18, %s25
    %s142 = sor.u32 %s140, %s141
    %p143 = scmp.eq.s32.totalorder %s142, 0
    %s145 = sadd.s32 %s144, 1
    %s146 = scalar_select %p143, %s144, %s145
    %p149 = pneg %p143
    %p150 = scmp.eq.s32.totalorder %s10, 3
    %p151 = por %p149, %p150
    %p152 = scmp.ne.s32.totalorder %s144, %s147
    %p153 = scmp.eq.s32.totalorder %s10, 0
    %p154 = por %p152, %p153
    %p155 = scmp.ne.s32.totalorder %s144, %s147
    %p156 = scmp.eq.s32.totalorder %s15, 3
    %p157 = por %p155, %p156
    %p158 = scmp.ne.s32.totalorder %s147, %s148
    %p159 = scmp.eq.s32.totalorder %s15, 0
    %p160 = por %p158, %p159
    %p161 = scmp.ne.s32.totalorder %s147, %s148
    %p162 = scmp.eq.s32.totalorder %s16, 3
    %p163 = por %p161, %p162
    %p165 = scmp.ne.s32.totalorder %s148, %s164
    %p166 = scmp.eq.s32.totalorder %s16, 0
    %p167 = por %p165, %p166
    %p168 = scmp.le.s32.totalorder 1, %s10
    %p169 = scmp.lt.s32.totalorder %s10, 5
    %p170 = pnand %p168, %p169
    %p171 = pneg %p170
    // Predicated region
    $region9: #{attention_forward.9} parent=5 // pred_check
      _
    $region10: #{attention_forward.9} parent=5 // pred_check_branch
      %173 = sbr.rel (%p170) target = $region12
    $region11: #{attention_forward.9} parent=5 // pred_region
      %s174 = ssub.s32 %s10, 1
    $region12: #{attention_forward.9} parent=5 // pred_fallthru
      _
    %p175 = scmp.lt.s32.totalorder %s10, 4
    // Predicated region
    $region13: #{attention_forward.9} parent=5 // pred_check
      %p176 = pneg %p175
    $region14: #{attention_forward.9} parent=5 // pred_check_branch
      %178 = sbr.rel (%p176) target = $region16
    $region15: #{attention_forward.9} parent=5 // pred_region
      // Predicated region
      $region17: #{attention_forward.9} parent=15 // pred_check
        %p179 = pneg %p44
      $region18: #{attention_forward.9} parent=15 // pred_check_branch
        %181 = sbr.rel (%p179) target = $region20
      $region19: #{attention_forward.9} parent=15 // pred_region
        %p182 = scmp.lt.s32.totalorder %s17, 1
        %s183 = scalar_select %p182, %s17, 1
        %p184 = scmp.lt.s32.totalorder %s18, 1
        %s185 = scalar_select %p184, %s18, 1
        %s186 = smul.addr %s185, 32
        %s187 = smul.addr %s183, 64
        %s188 = sadd.s32 %s186, %s187
        %s189 = smul.addr %s188, 8
        %s190 = scalar_lea.vmem %s0, %s189
      $region20: #{attention_forward.9} parent=15 // pred_fallthru
        _
      // Predicated region
      $region21: #{attention_forward.9} parent=15 // pred_check
        %p191 = pneg %p72
      $region22: #{attention_forward.9} parent=15 // pred_check_branch
        %193 = sbr.rel (%p191) target = $region24
      $region23: #{attention_forward.9} parent=15 // pred_region
        %p194 = scmp.lt.s32.totalorder %s17, 1
        %s195 = scalar_select %p194, %s17, 1
        %p196 = scmp.lt.s32.totalorder %s18, 1
        %s197 = scalar_select %p196, %s18, 1
        %s198 = smul.addr %s197, 32
        %s199 = smul.addr %s195, 64
        %s200 = sadd.s32 %s198, %s199
        %s201 = smul.addr %s200, 8
        %s202 = scalar_lea.vmem %s1, %s201
      $region24: #{attention_forward.9} parent=15 // pred_fallthru
        _
      // Predicated region
      $region25: #{attention_forward.9} parent=15 // pred_check
        %p203 = pneg %p100
      $region26: #{attention_forward.9} parent=15 // pred_check_branch
        %205 = sbr.rel (%p203) target = $region28
      $region27: #{attention_forward.9} parent=15 // pred_region
        %p206 = scmp.lt.s32.totalorder %s17, 1
        %s207 = scalar_select %p206, %s17, 1
        %p208 = scmp.lt.s32.totalorder %s18, 1
        %s209 = scalar_select %p208, %s18, 1
        %s210 = smul.addr %s209, 32
        %s211 = smul.addr %s207, 64
        %s212 = sadd.s32 %s210, %s211
        %s213 = smul.addr %s212, 8
        %s214 = scalar_lea.vmem %s2, %s213
      $region28: #{attention_forward.9} parent=15 // pred_fallthru
        _
      // Predicated region
      $region29: #{attention_forward.9} parent=15 // pred_check
        %p215 = pneg %p126
      $region30: #{attention_forward.9} parent=15 // pred_check_branch
        %217 = sbr.rel (%p215) target = $region32
      $region31: #{attention_forward.9} parent=15 // pred_region
        %p218 = scmp.lt.s32.totalorder %s18, 1
        %s219 = scalar_select %p218, %s18, 1
        %s220 = smul.addr %s219, 64
        %s221 = smul.addr %s220, 8
        %s222 = scalar_lea.vmem %s3, %s221
      $region32: #{attention_forward.9} parent=15 // pred_fallthru
        _
    $region16: #{attention_forward.9} parent=5 // pred_fallthru
      _
    %p223 = scmp.le.s32.totalorder 1, %s10
    %p224 = scmp.lt.s32.totalorder %s10, 5
    %p225 = pnand %p223, %p224
    %p226 = pneg %p225
    // Predicated region
    $region33: #{attention_forward.9} parent=5 // pred_check
      _
    $region34: #{attention_forward.9} parent=5 // pred_check_branch
      %228 = sbr.rel (%p225) target = $region36
    $region35: #{attention_forward.9} parent=5 // pred_region
      %s229 = ssub.s32 %s10, 1
      %p230 = scmp.lt.s32.totalorder %s19, 1
      %s231 = scalar_select %p230, %s19, 1
      %p232 = scmp.lt.s32.totalorder %s20, 1
      %s233 = scalar_select %p232, %s20, 1
      %s234 = smul.addr %s233, 32
      %s235 = smul.addr %s231, 64
      %s236 = sadd.s32 %s234, %s235
      %s237 = smul.addr %s236, 8
      %s238 = scalar_lea.vmem %s0, %s237
      %p239 = pneg %p50
      %p240 = pneg %p47
      %p241 = scmp.lt.s32.totalorder %s19, 1
      %s242 = scalar_select %p241, %s19, 1
      %p243 = scmp.lt.s32.totalorder %s20, 1
      %s244 = scalar_select %p243, %s20, 1
      %s245 = smul.addr %s244, 32
      %s246 = smul.addr %s242, 64
      %s247 = sadd.s32 %s245, %s246
      %s248 = smul.addr %s247, 8
      %s249 = scalar_lea.vmem %s1, %s248
      %p250 = pneg %p78
      %p251 = pneg %p75
      %p252 = scmp.lt.s32.totalorder %s19, 1
      %s253 = scalar_select %p252, %s19, 1
      %p254 = scmp.lt.s32.totalorder %s20, 1
      %s255 = scalar_select %p254, %s20, 1
      %s256 = smul.addr %s255, 32
      %s257 = smul.addr %s253, 64
      %s258 = sadd.s32 %s256, %s257
      %s259 = smul.addr %s258, 8
      %s260 = scalar_lea.vmem %s2, %s259
      %p261 = pneg %p106
      %p262 = pneg %p103
      %p263 = scmp.lt.s32.totalorder %s20, 1
      %s264 = scalar_select %p263, %s20, 1
      %s265 = smul.addr %s264, 64
      %s266 = smul.addr %s265, 8
      %s267 = scalar_lea.vmem %s3, %s266
      %p268 = pneg %p132
      %p269 = pneg %p129
      %p270 = pneg %p160
      %p271 = pneg %p157
      %p272 = scmp.lt.s32.totalorder %s19, 1
      %s273 = scalar_select %p272, %s19, 1
      %p274 = scmp.lt.s32.totalorder %s20, 1
      %s275 = scalar_select %p274, %s20, 1
      %s276 = smul.addr %s275, 32
      %s277 = smul.addr %s273, 64
      %s278 = sadd.s32 %s276, %s277
      %s279 = smul.addr %s278, 8
      %s280 = scalar_lea.vmem %s4, %s279
      %p281 = scmp.lt.s32.totalorder %s19, 1
      %s282 = scalar_select %p281, %s19, 1
      %p283 = scmp.lt.s32.totalorder %s20, 1
      %s284 = scalar_select %p283, %s20, 1
      %s285 = smul.addr %s284, 32
      %s286 = smul.addr %s282, 64
      %s287 = sadd.s32 %s285, %s286
      %s288 = smul.addr %s287, 8
      %s289 = scalar_lea.vmem %s0, %s288
      %p290 = scmp.lt.s32.totalorder %s19, 1
      %s291 = scalar_select %p290, %s19, 1
      %p292 = scmp.lt.s32.totalorder %s20, 1
      %s293 = scalar_select %p292, %s20, 1
      %s294 = smul.addr %s293, 32
      %s295 = smul.addr %s291, 64
      %s296 = sadd.s32 %s294, %s295
      %s297 = smul.addr %s296, 8
      %s298 = scalar_lea.vmem %s1, %s297
      %p299 = scmp.lt.s32.totalorder %s19, 1
      %s300 = scalar_select %p299, %s19, 1
      %p301 = scmp.lt.s32.totalorder %s20, 1
      %s302 = scalar_select %p301, %s20, 1
      %s303 = smul.addr %s302, 32
      %s304 = smul.addr %s300, 64
      %s305 = sadd.s32 %s303, %s304
      %s306 = smul.addr %s305, 8
      %s307 = scalar_lea.vmem %s2, %s306
      %p308 = scmp.lt.s32.totalorder %s20, 1
      %s309 = scalar_select %p308, %s20, 1
      %s310 = smul.addr %s309, 64
      %s311 = smul.addr %s310, 8
      %s312 = scalar_lea.vmem %s3, %s311
      %p313 = scmp.lt.s32.totalorder %s19, 1
      %s314 = scalar_select %p313, %s19, 1
      %p315 = scmp.lt.s32.totalorder %s20, 1
      %s316 = scalar_select %p315, %s20, 1
      %s317 = smul.addr %s316, 32
      %s318 = smul.addr %s314, 64
      %s319 = sadd.s32 %s317, %s318
      %s320 = smul.addr %s319, 8
      %s321 = scalar_lea.vmem %s4, %s320
      %v322 = vld [vmem:[%s289] sm:$0xff]
      %v323 = vld [vmem:[%s289 + $0x8] sm:$0xff]
      %v324 = vld [vmem:[%s289 + $0x10] sm:$0xff]
      %v325 = vld [vmem:[%s289 + $0x18] sm:$0xff]
      %v326 = vld [vmem:[%s289 + $0x20] sm:$0xff]
      %v327 = vld [vmem:[%s289 + $0x28] sm:$0xff]
      %v328 = vld [vmem:[%s289 + $0x30] sm:$0xff]
      %v329 = vld [vmem:[%s289 + $0x38] sm:$0xff]
      %v330 = vld [vmem:[%s289 + $0x40] sm:$0xff]
      %v331 = vld [vmem:[%s289 + $0x48] sm:$0xff]
      %v332 = vld [vmem:[%s289 + $0x50] sm:$0xff]
      %v333 = vld [vmem:[%s289 + $0x58] sm:$0xff]
      %v334 = vld [vmem:[%s289 + $0x60] sm:$0xff]
      %v335 = vld [vmem:[%s289 + $0x68] sm:$0xff]
      %v336 = vld [vmem:[%s289 + $0x70] sm:$0xff]
      %v337 = vld [vmem:[%s289 + $0x78] sm:$0xff]
      %v338 = vld [vmem:[%s289 + $0x80] sm:$0xff]
      %v339 = vld [vmem:[%s289 + $0x88] sm:$0xff]
      %v340 = vld [vmem:[%s289 + $0x90] sm:$0xff]
      %v341 = vld [vmem:[%s289 + $0x98] sm:$0xff]
      %v342 = vld [vmem:[%s289 + $0xa0] sm:$0xff]
      %v343 = vld [vmem:[%s289 + $0xa8] sm:$0xff]
      %v344 = vld [vmem:[%s289 + $0xb0] sm:$0xff]
      %v345 = vld [vmem:[%s289 + $0xb8] sm:$0xff]
      %v346 = vld [vmem:[%s289 + $0xc0] sm:$0xff]
      %v347 = vld [vmem:[%s289 + $0xc8] sm:$0xff]
      %v348 = vld [vmem:[%s289 + $0xd0] sm:$0xff]
      %v349 = vld [vmem:[%s289 + $0xd8] sm:$0xff]
      %v350 = vld [vmem:[%s289 + $0xe0] sm:$0xff]
      %v351 = vld [vmem:[%s289 + $0xe8] sm:$0xff]
      %v352 = vld [vmem:[%s289 + $0xf0] sm:$0xff]
      %v353 = vld [vmem:[%s289 + $0xf8] sm:$0xff]
      %v354 = vmul.f32 %v322, 0.25
      %v355 = vmul.f32 %v323, 0.25
      %v356 = vmul.f32 %v324, 0.25
      %v357 = vmul.f32 %v325, 0.25
      %v358 = vmul.f32 %v326, 0.25
      %v359 = vmul.f32 %v327, 0.25
      %v360 = vmul.f32 %v328, 0.25
      %v361 = vmul.f32 %v329, 0.25
      %v362 = vmul.f32 %v330, 0.25
      %v363 = vmul.f32 %v331, 0.25
      %v364 = vmul.f32 %v332, 0.25
      %v365 = vmul.f32 %v333, 0.25
      %v366 = vmul.f32 %v334, 0.25
      %v367 = vmul.f32 %v335, 0.25
      %v368 = vmul.f32 %v336, 0.25
      %v369 = vmul.f32 %v337, 0.25
      %v370 = vmul.f32 %v338, 0.25
      %v371 = vmul.f32 %v339, 0.25
      %v372 = vmul.f32 %v340, 0.25
      %v373 = vmul.f32 %v341, 0.25
      %v374 = vmul.f32 %v342, 0.25
      %v375 = vmul.f32 %v343, 0.25
      %v376 = vmul.f32 %v344, 0.25
      %v377 = vmul.f32 %v345, 0.25
      %v378 = vmul.f32 %v346, 0.25
      %v379 = vmul.f32 %v347, 0.25
      %v380 = vmul.f32 %v348, 0.25
      %v381 = vmul.f32 %v349, 0.25
      %v382 = vmul.f32 %v350, 0.25
      %v383 = vmul.f32 %v351, 0.25
      %v384 = vmul.f32 %v352, 0.25
      %v385 = vmul.f32 %v353, 0.25
      %v386 = vld [vmem:[%s298] sm:$0xff]
      %v387 = vld [vmem:[%s298 + $0x8] sm:$0xff]
      %v388 = vld [vmem:[%s298 + $0x10] sm:$0xff]
      %v389 = vld [vmem:[%s298 + $0x18] sm:$0xff]
      %v390 = vld [vmem:[%s298 + $0x20] sm:$0xff]
      %v391 = vld [vmem:[%s298 + $0x28] sm:$0xff]
      %v392 = vld [vmem:[%s298 + $0x30] sm:$0xff]
      %v393 = vld [vmem:[%s298 + $0x38] sm:$0xff]
      %v394 = vld [vmem:[%s298 + $0x40] sm:$0xff]
      %v395 = vld [vmem:[%s298 + $0x48] sm:$0xff]
      %v396 = vld [vmem:[%s298 + $0x50] sm:$0xff]
      %v397 = vld [vmem:[%s298 + $0x58] sm:$0xff]
      %v398 = vld [vmem:[%s298 + $0x60] sm:$0xff]
      %v399 = vld [vmem:[%s298 + $0x68] sm:$0xff]
      %v400 = vld [vmem:[%s298 + $0x70] sm:$0xff]
      %v401 = vld [vmem:[%s298 + $0x78] sm:$0xff]
      %v402 = vld [vmem:[%s298 + $0x80] sm:$0xff]
      %v403 = vld [vmem:[%s298 + $0x88] sm:$0xff]
      %v404 = vld [vmem:[%s298 + $0x90] sm:$0xff]
      %v405 = vld [vmem:[%s298 + $0x98] sm:$0xff]
      %v406 = vld [vmem:[%s298 + $0xa0] sm:$0xff]
      %v407 = vld [vmem:[%s298 + $0xa8] sm:$0xff]
      %v408 = vld [vmem:[%s298 + $0xb0] sm:$0xff]
      %v409 = vld [vmem:[%s298 + $0xb8] sm:$0xff]
      %v410 = vld [vmem:[%s298 + $0xc0] sm:$0xff]
      %v411 = vld [vmem:[%s298 + $0xc8] sm:$0xff]
      %v412 = vld [vmem:[%s298 + $0xd0] sm:$0xff]
      %v413 = vld [vmem:[%s298 + $0xd8] sm:$0xff]
      %v414 = vld [vmem:[%s298 + $0xe0] sm:$0xff]
      %v415 = vld [vmem:[%s298 + $0xe8] sm:$0xff]
      %v416 = vld [vmem:[%s298 + $0xf0] sm:$0xff]
      %v417 = vld [vmem:[%s298 + $0xf8] sm:$0xff]
      %v418 = vld [vmem:[%s307] sm:$0xff]
      %v419 = vld [vmem:[%s307 + $0x8] sm:$0xff]
      %v420 = vld [vmem:[%s307 + $0x10] sm:$0xff]
      %v421 = vld [vmem:[%s307 + $0x18] sm:$0xff]
      %v422 = vld [vmem:[%s307 + $0x20] sm:$0xff]
      %v423 = vld [vmem:[%s307 + $0x28] sm:$0xff]
      %v424 = vld [vmem:[%s307 + $0x30] sm:$0xff]
      %v425 = vld [vmem:[%s307 + $0x38] sm:$0xff]
      %v426 = vld [vmem:[%s307 + $0x40] sm:$0xff]
      %v427 = vld [vmem:[%s307 + $0x48] sm:$0xff]
      %v428 = vld [vmem:[%s307 + $0x50] sm:$0xff]
      %v429 = vld [vmem:[%s307 + $0x58] sm:$0xff]
      %v430 = vld [vmem:[%s307 + $0x60] sm:$0xff]
      %v431 = vld [vmem:[%s307 + $0x68] sm:$0xff]
      %v432 = vld [vmem:[%s307 + $0x70] sm:$0xff]
      %v433 = vld [vmem:[%s307 + $0x78] sm:$0xff]
      %v434 = vld [vmem:[%s307 + $0x80] sm:$0xff]
      %v435 = vld [vmem:[%s307 + $0x88] sm:$0xff]
      %v436 = vld [vmem:[%s307 + $0x90] sm:$0xff]
      %v437 = vld [vmem:[%s307 + $0x98] sm:$0xff]
      %v438 = vld [vmem:[%s307 + $0xa0] sm:$0xff]
      %v439 = vld [vmem:[%s307 + $0xa8] sm:$0xff]
      %v440 = vld [vmem:[%s307 + $0xb0] sm:$0xff]
      %v441 = vld [vmem:[%s307 + $0xb8] sm:$0xff]
      %v442 = vld [vmem:[%s307 + $0xc0] sm:$0xff]
      %v443 = vld [vmem:[%s307 + $0xc8] sm:$0xff]
      %v444 = vld [vmem:[%s307 + $0xd0] sm:$0xff]
      %v445 = vld [vmem:[%s307 + $0xd8] sm:$0xff]
      %v446 = vld [vmem:[%s307 + $0xe0] sm:$0xff]
      %v447 = vld [vmem:[%s307 + $0xe8] sm:$0xff]
      %v448 = vld [vmem:[%s307 + $0xf0] sm:$0xff]
      %v449 = vld [vmem:[%s307 + $0xf8] sm:$0xff]
      %v450 = vld [vmem:[%s312] sm:$0xff]
      %v451 = vld [vmem:[%s312 + $0x8] sm:$0xff]
      %v452 = vld [vmem:[%s312 + $0x10] sm:$0xff]
      %v453 = vld [vmem:[%s312 + $0x18] sm:$0xff]
      %v454 = vld [vmem:[%s312 + $0x20] sm:$0xff]
      %v455 = vld [vmem:[%s312 + $0x28] sm:$0xff]
      %v456 = vld [vmem:[%s312 + $0x30] sm:$0xff]
      %v457 = vld [vmem:[%s312 + $0x38] sm:$0xff]
      %v458 = vld [vmem:[%s312 + $0x40] sm:$0xff]
      %v459 = vld [vmem:[%s312 + $0x48] sm:$0xff]
      %v460 = vld [vmem:[%s312 + $0x50] sm:$0xff]
      %v461 = vld [vmem:[%s312 + $0x58] sm:$0xff]
      %v462 = vld [vmem:[%s312 + $0x60] sm:$0xff]
      %v463 = vld [vmem:[%s312 + $0x68] sm:$0xff]
      %v464 = vld [vmem:[%s312 + $0x70] sm:$0xff]
      %v465 = vld [vmem:[%s312 + $0x78] sm:$0xff]
      %v466 = vld [vmem:[%s312 + $0x80] sm:$0xff]
      %v467 = vld [vmem:[%s312 + $0x88] sm:$0xff]
      %v468 = vld [vmem:[%s312 + $0x90] sm:$0xff]
      %v469 = vld [vmem:[%s312 + $0x98] sm:$0xff]
      %v470 = vld [vmem:[%s312 + $0xa0] sm:$0xff]
      %v471 = vld [vmem:[%s312 + $0xa8] sm:$0xff]
      %v472 = vld [vmem:[%s312 + $0xb0] sm:$0xff]
      %v473 = vld [vmem:[%s312 + $0xb8] sm:$0xff]
      %v474 = vld [vmem:[%s312 + $0xc0] sm:$0xff]
      %v475 = vld [vmem:[%s312 + $0xc8] sm:$0xff]
      %v476 = vld [vmem:[%s312 + $0xd0] sm:$0xff]
      %v477 = vld [vmem:[%s312 + $0xd8] sm:$0xff]
      %v478 = vld [vmem:[%s312 + $0xe0] sm:$0xff]
      %v479 = vld [vmem:[%s312 + $0xe8] sm:$0xff]
      %v480 = vld [vmem:[%s312 + $0xf0] sm:$0xff]
      %v481 = vld [vmem:[%s312 + $0xf8] sm:$0xff]
      %v482 = vld [vmem:[%s312 + $0x100] sm:$0xff]
      %v483 = vld [vmem:[%s312 + $0x108] sm:$0xff]
      %v484 = vld [vmem:[%s312 + $0x110] sm:$0xff]
      %v485 = vld [vmem:[%s312 + $0x118] sm:$0xff]
      %v486 = vld [vmem:[%s312 + $0x120] sm:$0xff]
      %v487 = vld [vmem:[%s312 + $0x128] sm:$0xff]
      %v488 = vld [vmem:[%s312 + $0x130] sm:$0xff]
      %v489 = vld [vmem:[%s312 + $0x138] sm:$0xff]
      %v490 = vld [vmem:[%s312 + $0x140] sm:$0xff]
      %v491 = vld [vmem:[%s312 + $0x148] sm:$0xff]
      %v492 = vld [vmem:[%s312 + $0x150] sm:$0xff]
      %v493 = vld [vmem:[%s312 + $0x158] sm:$0xff]
      %v494 = vld [vmem:[%s312 + $0x160] sm:$0xff]
      %v495 = vld [vmem:[%s312 + $0x168] sm:$0xff]
      %v496 = vld [vmem:[%s312 + $0x170] sm:$0xff]
      %v497 = vld [vmem:[%s312 + $0x178] sm:$0xff]
      %v498 = vld [vmem:[%s312 + $0x180] sm:$0xff]
      %v499 = vld [vmem:[%s312 + $0x188] sm:$0xff]
      %v500 = vld [vmem:[%s312 + $0x190] sm:$0xff]
      %v501 = vld [vmem:[%s312 + $0x198] sm:$0xff]
      %v502 = vld [vmem:[%s312 + $0x1a0] sm:$0xff]
      %v503 = vld [vmem:[%s312 + $0x1a8] sm:$0xff]
      %v504 = vld [vmem:[%s312 + $0x1b0] sm:$0xff]
      %v505 = vld [vmem:[%s312 + $0x1b8] sm:$0xff]
      %v506 = vld [vmem:[%s312 + $0x1c0] sm:$0xff]
      %v507 = vld [vmem:[%s312 + $0x1c8] sm:$0xff]
      %v508 = vld [vmem:[%s312 + $0x1d0] sm:$0xff]
      %v509 = vld [vmem:[%s312 + $0x1d8] sm:$0xff]
      %v510 = vld [vmem:[%s312 + $0x1e0] sm:$0xff]
      %v511 = vld [vmem:[%s312 + $0x1e8] sm:$0xff]
      %v512 = vld [vmem:[%s312 + $0x1f0] sm:$0xff]
      %v513 = vld [vmem:[%s312 + $0x1f8] sm:$0xff]
      %vm514 = vcmask 130048
      %v516 = vsel %vm514, %v354, 0
      %v519 = vsel %vm514, %v355, 0
      %v522 = vsel %vm514, %v356, 0
      %v525 = vsel %vm514, %v357, 0
      %v528 = vsel %vm514, %v358, 0
      %v531 = vsel %vm514, %v359, 0
      %v534 = vsel %vm514, %v360, 0
      %v537 = vsel %vm514, %v361, 0
      %v540 = vsel %vm514, %v362, 0
      %v543 = vsel %vm514, %v363, 0
      %v546 = vsel %vm514, %v364, 0
      %v549 = vsel %vm514, %v365, 0
      %v552 = vsel %vm514, %v366, 0
      %v555 = vsel %vm514, %v367, 0
      %v558 = vsel %vm514, %v368, 0
      %v561 = vsel %vm514, %v369, 0
      %v564 = vsel %vm514, %v370, 0
      %v567 = vsel %vm514, %v371, 0
      %v570 = vsel %vm514, %v372, 0
      %v573 = vsel %vm514, %v373, 0
      %v576 = vsel %vm514, %v374, 0
      %v579 = vsel %vm514, %v375, 0
      %v582 = vsel %vm514, %v376, 0
      %v585 = vsel %vm514, %v377, 0
      %v588 = vsel %vm514, %v378, 0
      %v591 = vsel %vm514, %v379, 0
      %v594 = vsel %vm514, %v380, 0
      %v597 = vsel %vm514, %v381, 0
      %v600 = vsel %vm514, %v382, 0
      %v603 = vsel %vm514, %v383, 0
      %v606 = vsel %vm514, %v384, 0
      %v609 = vsel %vm514, %v385, 0
      %v612 = vsel %vm514, %v386, 0
      %v615 = vsel %vm514, %v387, 0
      %v618 = vsel %vm514, %v388, 0
      %v621 = vsel %vm514, %v389, 0
      %v624 = vsel %vm514, %v390, 0
      %v627 = vsel %vm514, %v391, 0
      %v630 = vsel %vm514, %v392, 0
      %v633 = vsel %vm514, %v393, 0
      %v636 = vsel %vm514, %v394, 0
      %v639 = vsel %vm514, %v395, 0
      %v642 = vsel %vm514, %v396, 0
      %v645 = vsel %vm514, %v397, 0
      %v648 = vsel %vm514, %v398, 0
      %v651 = vsel %vm514, %v399, 0
      %v654 = vsel %vm514, %v400, 0
      %v657 = vsel %vm514, %v401, 0
      %v660 = vsel %vm514, %v402, 0
      %v663 = vsel %vm514, %v403, 0
      %v666 = vsel %vm514, %v404, 0
      %v669 = vsel %vm514, %v405, 0
      %v672 = vsel %vm514, %v406, 0
      %v675 = vsel %vm514, %v407, 0
      %v678 = vsel %vm514, %v408, 0
      %v681 = vsel %vm514, %v409, 0
      %v684 = vsel %vm514, %v410, 0
      %v687 = vsel %vm514, %v411, 0
      %v690 = vsel %vm514, %v412, 0
      %v693 = vsel %vm514, %v413, 0
      %v696 = vsel %vm514, %v414, 0
      %v699 = vsel %vm514, %v415, 0
      %v702 = vsel %vm514, %v416, 0
      %v705 = vsel %vm514, %v417, 0
      %707 = vmatprep.subr.mxu0 0.0
      %708 = vmatpush1.xpose.msra.mxu0 %v612
      %709 = vmatprep.subr.mxu0 0.0
      %710 = vmatpush1.xpose.msra.mxu0 %v615
      %711 = vmatprep.subr.mxu0 0.0
      %712 = vmatpush1.xpose.msra.mxu0 %v618
      %713 = vmatprep.subr.mxu0 0.0
      %714 = vmatpush1.xpose.msra.mxu0 %v621
      %715 = vmatprep.subr.mxu0 0.0
      %716 = vmatpush1.xpose.msra.mxu0 %v624
      %717 = vmatprep.subr.mxu0 0.0
      %718 = vmatpush1.xpose.msra.mxu0 %v627
      %719 = vmatprep.subr.mxu0 0.0
      %720 = vmatpush1.xpose.msra.mxu0 %v630
      %721 = vmatprep.subr.mxu0 0.0
      %722 = vmatpush1.xpose.msra.mxu0 %v633
      %723 = vmatprep.subr.mxu0 0.0
      %724 = vmatpush1.xpose.msra.mxu0 %v636
      %725 = vmatprep.subr.mxu0 0.0
      %726 = vmatpush1.xpose.msra.mxu0 %v639
      %727 = vmatprep.subr.mxu0 0.0
      %728 = vmatpush1.xpose.msra.mxu0 %v642
      %729 = vmatprep.subr.mxu0 0.0
      %730 = vmatpush1.xpose.msra.mxu0 %v645
      %731 = vmatprep.subr.mxu0 0.0
      %732 = vmatpush1.xpose.msra.mxu0 %v648
      %733 = vmatprep.subr.mxu0 0.0
      %734 = vmatpush1.xpose.msra.mxu0 %v651
      %735 = vmatprep.subr.mxu0 0.0
      %736 = vmatpush1.xpose.msra.mxu0 %v654
      %737 = vmatprep.subr.mxu0 0.0
      %738 = vmatpush1.xpose.msra.mxu0 %v657
      %739 = vmatprep.subr.mxu0 0.0
      %740 = vmatpush1.xpose.msra.mxu0 %v660
      %741 = vmatprep.subr.mxu0 0.0
      %742 = vmatpush1.xpose.msra.mxu0 %v663
      %743 = vmatprep.subr.mxu0 0.0
      %744 = vmatpush1.xpose.msra.mxu0 %v666
      %745 = vmatprep.subr.mxu0 0.0
      %746 = vmatpush1.xpose.msra.mxu0 %v669
      %747 = vmatprep.subr.mxu0 0.0
      %748 = vmatpush1.xpose.msra.mxu0 %v672
      %749 = vmatprep.subr.mxu0 0.0
      %750 = vmatpush1.xpose.msra.mxu0 %v675
      %751 = vmatprep.subr.mxu0 0.0
      %752 = vmatpush1.xpose.msra.mxu0 %v678
      %753 = vmatprep.subr.mxu0 0.0
      %754 = vmatpush1.xpose.msra.mxu0 %v681
      %755 = vmatprep.subr.mxu0 0.0
      %756 = vmatpush1.xpose.msra.mxu0 %v684
      %757 = vmatprep.subr.mxu0 0.0
      %758 = vmatpush1.xpose.msra.mxu0 %v687
      %759 = vmatprep.subr.mxu0 0.0
      %760 = vmatpush1.xpose.msra.mxu0 %v690
      %761 = vmatprep.subr.mxu0 0.0
      %762 = vmatpush1.xpose.msra.mxu0 %v693
      %763 = vmatprep.subr.mxu0 0.0
      %764 = vmatpush1.xpose.msra.mxu0 %v696
      %765 = vmatprep.subr.mxu0 0.0
      %766 = vmatpush1.xpose.msra.mxu0 %v699
      %767 = vmatprep.subr.mxu0 0.0
      %768 = vmatpush1.xpose.msra.mxu0 %v702
      %769 = vmatprep.subr.mxu0 0.0
      %770 = vmatpush1.xpose.msra.mxu0 %v705
      %771 = vmatprep.mubr.f32.mxu0 0.0
      %772 = vmatmul.mubr.f32.gmra.mrb[0].mxu0 %v516
      %v773 = vpop.f32.mrb[0].mxu0
      %v774 = vadd.f32 %v450, %v773
      %v775 = vpop.f32.mrb[0].mxu0
      %v776 = vadd.f32 %v451, %v775
      %777 = vmatprep.mubr.f32.mxu0 0.0
      %778 = vmatmul.mubr.f32.gmra.mrb[0].mxu0 %v519
      %v779 = vpop.f32.mrb[0].mxu0
      %v780 = vadd.f32 %v452, %v779
      %v781 = vpop.f32.mrb[0].mxu0
      %v782 = vadd.f32 %v453, %v781
      %783 = vmatprep.mubr.f32.mxu0 0.0
      %784 = vmatmul.mubr.f32.gmra.mrb[0].mxu0 %v522
      %v785 = vpop.f32.mrb[0].mxu0
      %v786 = vadd.f32 %v454, %v785
      %v787 = vpop.f32.mrb[0].mxu0
      %v788 = vadd.f32 %v455, %v787
      %789 = vmatprep.mubr.f32.mxu0 0.0
      %790 = vmatmul.mubr.f32.gmra.mrb[0].mxu0 %v525
      %v791 = vpop.f32.mrb[0].mxu0
      %v792 = vadd.f32 %v456, %v791
      %v793 = vpop.f32.mrb[0].mxu0
      %v794 = vadd.f32 %v457, %v793
      %795 = vmatprep.mubr.f32.mxu0 0.0
      %796 = vmatmul.mubr.f32.gmra.mrb[0].mxu0 %v528
      %v797 = vpop.f32.mrb[0].mxu0
      %v798 = vadd.f32 %v458, %v797
      %v799 = vpop.f32.mrb[0].mxu0
      %v800 = vadd.f32 %v459, %v799
      %801 = vmatprep.mubr.f32.mxu0 0.0
      %802 = vmatmul.mubr.f32.gmra.mrb[0].mxu0 %v531
      %v803 = vpop.f32.mrb[0].mxu0
      %v804 = vadd.f32 %v460, %v803
      %v805 = vpop.f32.mrb[0].mxu0
      %v806 = vadd.f32 %v461, %v805
      %807 = vmatprep.mubr.f32.mxu0 0.0
      %808 = vmatmul.mubr.f32.gmra.mrb[0].mxu0 %v534
      %v809 = vpop.f32.mrb[0].mxu0
      %v810 = vadd.f32 %v462, %v809
      %v811 = vpop.f32.mrb[0].mxu0
      %v812 = vadd.f32 %v463, %v811
      %813 = vmatprep.mubr.f32.mxu0 0.0
      %814 = vmatmul.mubr.f32.gmra.mrb[0].mxu0 %v537
      %v815 = vpop.f32.mrb[0].mxu0
      %v816 = vadd.f32 %v464, %v815
      %v817 = vpop.f32.mrb[0].mxu0
      %v818 = vadd.f32 %v465, %v817
      %819 = vmatprep.mubr.f32.mxu0 0.0
      %820 = vmatmul.mubr.f32.gmra.mrb[0].mxu0 %v540
      %v821 = vpop.f32.mrb[0].mxu0
      %v822 = vadd.f32 %v466, %v821
      %v823 = vpop.f32.mrb[0].mxu0
      %v824 = vadd.f32 %v467, %v823
      %825 = vmatprep.mubr.f32.mxu0 0.0
      %826 = vmatmul.mubr.f32.gmra.mrb[0].mxu0 %v543
      %v827 = vpop.f32.mrb[0].mxu0
      %v828 = vadd.f32 %v468, %v827
      %v829 = vpop.f32.mrb[0].mxu0
      %v830 = vadd.f32 %v469, %v829
      %831 = vmatprep.mubr.f32.mxu0 0.0
      %832 = vmatmul.mubr.f32.gmra.mrb[0].mxu0 %v546
      %v833 = vpop.f32.mrb[0].mxu0
      %v834 = vadd.f32 %v470, %v833
      %v835 = vpop.f32.mrb[0].mxu0
      %v836 = vadd.f32 %v471, %v835
      %837 = vmatprep.mubr.f32.mxu0 0.0
      %838 = vmatmul.mubr.f32.gmra.mrb[0].mxu0 %v549
      %v839 = vpop.f32.mrb[0].mxu0
      %v840 = vadd.f32 %v472, %v839
      %v841 = vpop.f32.mrb[0].mxu0
      %v842 = vadd.f32 %v473, %v841
      %843 = vmatprep.mubr.f32.mxu0 0.0
      %844 = vmatmul.mubr.f32.gmra.mrb[0].mxu0 %v552
      %v845 = vpop.f32.mrb[0].mxu0
      %v846 = vadd.f32 %v474, %v845
      %v847 = vpop.f32.mrb[0].mxu0
      %v848 = vadd.f32 %v475, %v847
      %849 = vmatprep.mubr.f32.mxu0 0.0
      %850 = vmatmul.mubr.f32.gmra.mrb[0].mxu0 %v555
      %v851 = vpop.f32.mrb[0].mxu0
      %v852 = vadd.f32 %v476, %v851
      %v853 = vpop.f32.mrb[0].mxu0
      %v854 = vadd.f32 %v477, %v853
      %855 = vmatprep.mubr.f32.mxu0 0.0
      %856 = vmatmul.mubr.f32.gmra.mrb[0].mxu0 %v558
      %v857 = vpop.f32.mrb[0].mxu0
      %v858 = vadd.f32 %v478, %v857
      %v859 = vpop.f32.mrb[0].mxu0
      %v860 = vadd.f32 %v479, %v859
      %861 = vmatprep.mubr.f32.mxu0 0.0
      %862 = vmatmul.mubr.f32.gmra.mrb[0].mxu0 %v561
      %v863 = vpop.f32.mrb[0].mxu0
      %v864 = vadd.f32 %v480, %v863
      %v865 = vpop.f32.mrb[0].mxu0
      %v866 = vadd.f32 %v481, %v865
      %867 = vmatprep.mubr.f32.mxu0 0.0
      %868 = vmatmul.mubr.f32.gmra.mrb[0].mxu0 %v564
      %v869 = vpop.f32.mrb[0].mxu0
      %v870 = vadd.f32 %v482, %v869
      %v871 = vpop.f32.mrb[0].mxu0
      %v872 = vadd.f32 %v483, %v871
      %873 = vmatprep.mubr.f32.mxu0 0.0
      %874 = vmatmul.mubr.f32.gmra.mrb[0].mxu0 %v567
      %v875 = vpop.f32.mrb[0].mxu0
      %v876 = vadd.f32 %v484, %v875
      %v877 = vpop.f32.mrb[0].mxu0
      %v878 = vadd.f32 %v485, %v877
      %879 = vmatprep.mubr.f32.mxu0 0.0
      %880 = vmatmul.mubr.f32.gmra.mrb[0].mxu0 %v570
      %v881 = vpop.f32.mrb[0].mxu0
      %v882 = vadd.f32 %v486, %v881
      %v883 = vpop.f32.mrb[0].mxu0
      %v884 = vadd.f32 %v487, %v883
      %885 = vmatprep.mubr.f32.mxu0 0.0
      %886 = vmatmul.mubr.f32.gmra.mrb[0].mxu0 %v573
      %v887 = vpop.f32.mrb[0].mxu0
      %v888 = vadd.f32 %v488, %v887
      %v889 = vpop.f32.mrb[0].mxu0
      %v890 = vadd.f32 %v489, %v889
      %891 = vmatprep.mubr.f32.mxu0 0.0
      %892 = vmatmul.mubr.f32.gmra.mrb[0].mxu0 %v576
      %v893 = vpop.f32.mrb[0].mxu0
      %v894 = vadd.f32 %v490, %v893
      %v895 = vpop.f32.mrb[0].mxu0
      %v896 = vadd.f32 %v491, %v895
      %897 = vmatprep.mubr.f32.mxu0 0.0
      %898 = vmatmul.mubr.f32.gmra.mrb[0].mxu0 %v579
      %v899 = vpop.f32.mrb[0].mxu0
      %v900 = vadd.f32 %v492, %v899
      %v901 = vpop.f32.mrb[0].mxu0
      %v902 = vadd.f32 %v493, %v901
      %903 = vmatprep.mubr.f32.mxu0 0.0
      %904 = vmatmul.mubr.f32.gmra.mrb[0].mxu0 %v582
      %v905 = vpop.f32.mrb[0].mxu0
      %v906 = vadd.f32 %v494, %v905
      %v907 = vpop.f32.mrb[0].mxu0
      %v908 = vadd.f32 %v495, %v907
      %909 = vmatprep.mubr.f32.mxu0 0.0
      %910 = vmatmul.mubr.f32.gmra.mrb[0].mxu0 %v585
      %v911 = vpop.f32.mrb[0].mxu0
      %v912 = vadd.f32 %v496, %v911
      %v913 = vpop.f32.mrb[0].mxu0
      %v914 = vadd.f32 %v497, %v913
      %915 = vmatprep.mubr.f32.mxu0 0.0
      %916 = vmatmul.mubr.f32.gmra.mrb[0].mxu0 %v588
      %v917 = vpop.f32.mrb[0].mxu0
      %v918 = vadd.f32 %v498, %v917
      %v919 = vpop.f32.mrb[0].mxu0
      %v920 = vadd.f32 %v499, %v919
      %921 = vmatprep.mubr.f32.mxu0 0.0
      %922 = vmatmul.mubr.f32.gmra.mrb[0].mxu0 %v591
      %v923 = vpop.f32.mrb[0].mxu0
      %v924 = vadd.f32 %v500, %v923
      %v925 = vpop.f32.mrb[0].mxu0
      %v926 = vadd.f32 %v501, %v925
      %927 = vmatprep.mubr.f32.mxu0 0.0
      %928 = vmatmul.mubr.f32.gmra.mrb[0].mxu0 %v594
      %v929 = vpop.f32.mrb[0].mxu0
      %v930 = vadd.f32 %v502, %v929
      %v931 = vpop.f32.mrb[0].mxu0
      %v932 = vadd.f32 %v503, %v931
      %933 = vmatprep.mubr.f32.mxu0 0.0
      %934 = vmatmul.mubr.f32.gmra.mrb[0].mxu0 %v597
      %v935 = vpop.f32.mrb[0].mxu0
      %v936 = vadd.f32 %v504, %v935
      %v937 = vpop.f32.mrb[0].mxu0
      %v938 = vadd.f32 %v505, %v937
      %939 = vmatprep.mubr.f32.mxu0 0.0
      %940 = vmatmul.mubr.f32.gmra.mrb[0].mxu0 %v600
      %v941 = vpop.f32.mrb[0].mxu0
      %v942 = vadd.f32 %v506, %v941
      %v943 = vpop.f32.mrb[0].mxu0
      %v944 = vadd.f32 %v507, %v943
      %945 = vmatprep.mubr.f32.mxu0 0.0
      %946 = vmatmul.mubr.f32.gmra.mrb[0].mxu0 %v603
      %v947 = vpop.f32.mrb[0].mxu0
      %v948 = vadd.f32 %v508, %v947
      %v949 = vpop.f32.mrb[0].mxu0
      %v950 = vadd.f32 %v509, %v949
      %951 = vmatprep.mubr.f32.mxu0 0.0
      %952 = vmatmul.mubr.f32.gmra.mrb[0].mxu0 %v606
      %v953 = vpop.f32.mrb[0].mxu0
      %v954 = vadd.f32 %v510, %v953
      %v955 = vpop.f32.mrb[0].mxu0
      %v956 = vadd.f32 %v511, %v955
      %957 = vmatprep.mubr.f32.mxu0 0.0
      %958 = vmatmul.mubr.f32.gmra.mrb[0].mxu0 %v609
      %v959 = vpop.f32.mrb[0].mxu0
      %v960 = vadd.f32 %v512, %v959
      %v961 = vpop.f32.mrb[0].mxu0
      %v962 = vadd.f32 %v513, %v961
      %963 = vdwg.mxu0
      %v964 = vmax.f32 %v774, %v776
      %965 = vmax.xlane.f32.xlu0 %v964
      %v966 = vpop.xlane.xlu0 %965
      %v967 = vmax.f32 %v780, %v782
      %968 = vmax.xlane.f32.xlu0 %v967
      %v969 = vpop.xlane.xlu0 %968
      %v970 = vmax.f32 %v786, %v788
      %971 = vmax.xlane.f32.xlu0 %v970
      %v972 = vpop.xlane.xlu0 %971
      %v973 = vmax.f32 %v792, %v794
      %974 = vmax.xlane.f32.xlu0 %v973
      %v975 = vpop.xlane.xlu0 %974
      %v976 = vmax.f32 %v798, %v800
      %977 = vmax.xlane.f32.xlu0 %v976
      %v978 = vpop.xlane.xlu0 %977
      %v979 = vmax.f32 %v804, %v806
      %980 = vmax.xlane.f32.xlu0 %v979
      %v981 = vpop.xlane.xlu0 %980
      %v982 = vmax.f32 %v810, %v812
      %983 = vmax.xlane.f32.xlu0 %v982
      %v984 = vpop.xlane.xlu0 %983
      %v985 = vmax.f32 %v816, %v818
      %986 = vmax.xlane.f32.xlu0 %v985
      %v987 = vpop.xlane.xlu0 %986
      %v988 = vmax.f32 %v822, %v824
      %989 = vmax.xlane.f32.xlu0 %v988
      %v990 = vpop.xlane.xlu0 %989
      %v991 = vmax.f32 %v828, %v830
      %992 = vmax.xlane.f32.xlu0 %v991
      %v993 = vpop.xlane.xlu0 %992
      %v994 = vmax.f32 %v834, %v836
      %995 = vmax.xlane.f32.xlu0 %v994
      %v996 = vpop.xlane.xlu0 %995
      %v997 = vmax.f32 %v840, %v842
      %998 = vmax.xlane.f32.xlu0 %v997
      %v999 = vpop.xlane.xlu0 %998
      %v1000 = vmax.f32 %v846, %v848
      %1001 = vmax.xlane.f32.xlu0 %v1000
      %v1002 = vpop.xlane.xlu0 %1001
      %v1003 = vmax.f32 %v852, %v854
      %1004 = vmax.xlane.f32.xlu0 %v1003
      %v1005 = vpop.xlane.xlu0 %1004
      %v1006 = vmax.f32 %v858, %v860
      %1007 = vmax.xlane.f32.xlu0 %v1006
      %v1008 = vpop.xlane.xlu0 %1007
      %v1009 = vmax.f32 %v864, %v866
      %1010 = vmax.xlane.f32.xlu0 %v1009
      %v1011 = vpop.xlane.xlu0 %1010
      %v1012 = vmax.f32 %v870, %v872
      %1013 = vmax.xlane.f32.xlu0 %v1012
      %v1014 = vpop.xlane.xlu0 %1013
      %v1015 = vmax.f32 %v876, %v878
      %1016 = vmax.xlane.f32.xlu0 %v1015
      %v1017 = vpop.xlane.xlu0 %1016
      %v1018 = vmax.f32 %v882, %v884
      %1019 = vmax.xlane.f32.xlu0 %v1018
      %v1020 = vpop.xlane.xlu0 %1019
      %v1021 = vmax.f32 %v888, %v890
      %1022 = vmax.xlane.f32.xlu0 %v1021
      %v1023 = vpop.xlane.xlu0 %1022
      %v1024 = vmax.f32 %v894, %v896
      %1025 = vmax.xlane.f32.xlu0 %v1024
      %v1026 = vpop.xlane.xlu0 %1025
      %v1027 = vmax.f32 %v900, %v902
      %1028 = vmax.xlane.f32.xlu0 %v1027
      %v1029 = vpop.xlane.xlu0 %1028
      %v1030 = vmax.f32 %v906, %v908
      %1031 = vmax.xlane.f32.xlu0 %v1030
      %v1032 = vpop.xlane.xlu0 %1031
      %v1033 = vmax.f32 %v912, %v914
      %1034 = vmax.xlane.f32.xlu0 %v1033
      %v1035 = vpop.xlane.xlu0 %1034
      %v1036 = vmax.f32 %v918, %v920
      %1037 = vmax.xlane.f32.xlu0 %v1036
      %v1038 = vpop.xlane.xlu0 %1037
      %v1039 = vmax.f32 %v924, %v926
      %1040 = vmax.xlane.f32.xlu0 %v1039
      %v1041 = vpop.xlane.xlu0 %1040
      %v1042 = vmax.f32 %v930, %v932
      %1043 = vmax.xlane.f32.xlu0 %v1042
      %v1044 = vpop.xlane.xlu0 %1043
      %v1045 = vmax.f32 %v936, %v938
      %1046 = vmax.xlane.f32.xlu0 %v1045
      %v1047 = vpop.xlane.xlu0 %1046
      %v1048 = vmax.f32 %v942, %v944
      %1049 = vmax.xlane.f32.xlu0 %v1048
      %v1050 = vpop.xlane.xlu0 %1049
      %v1051 = vmax.f32 %v948, %v950
      %1052 = vmax.xlane.f32.xlu0 %v1051
      %v1053 = vpop.xlane.xlu0 %1052
      %v1054 = vmax.f32 %v954, %v956
      %1055 = vmax.xlane.f32.xlu0 %v1054
      %v1056 = vpop.xlane.xlu0 %1055
      %v1057 = vmax.f32 %v960, %v962
      %1058 = vmax.xlane.f32.xlu0 %v1057
      %v1059 = vpop.xlane.xlu0 %1058
      %v1060 = vsub.f32 %v774, %v966
      %v1061 = vsub.f32 %v776, %v966
      %v1062 = vsub.f32 %v780, %v969
      %v1063 = vsub.f32 %v782, %v969
      %v1064 = vsub.f32 %v786, %v972
      %v1065 = vsub.f32 %v788, %v972
      %v1066 = vsub.f32 %v792, %v975
      %v1067 = vsub.f32 %v794, %v975
      %v1068 = vsub.f32 %v798, %v978
      %v1069 = vsub.f32 %v800, %v978
      %v1070 = vsub.f32 %v804, %v981
      %v1071 = vsub.f32 %v806, %v981
      %v1072 = vsub.f32 %v810, %v984
      %v1073 = vsub.f32 %v812, %v984
      %v1074 = vsub.f32 %v816, %v987
      %v1075 = vsub.f32 %v818, %v987
      %v1076 = vsub.f32 %v822, %v990
      %v1077 = vsub.f32 %v824, %v990
      %v1078 = vsub.f32 %v828, %v993
      %v1079 = vsub.f32 %v830, %v993
      %v1080 = vsub.f32 %v834, %v996
      %v1081 = vsub.f32 %v836, %v996
      %v1082 = vsub.f32 %v840, %v999
      %v1083 = vsub.f32 %v842, %v999
      %v1084 = vsub.f32 %v846, %v1002
      %v1085 = vsub.f32 %v848, %v1002
      %v1086 = vsub.f32 %v852, %v1005
      %v1087 = vsub.f32 %v854, %v1005
      %v1088 = vsub.f32 %v858, %v1008
      %v1089 = vsub.f32 %v860, %v1008
      %v1090 = vsub.f32 %v864, %v1011
      %v1091 = vsub.f32 %v866, %v1011
      %v1092 = vsub.f32 %v870, %v1014
      %v1093 = vsub.f32 %v872, %v1014
      %v1094 = vsub.f32 %v876, %v1017
      %v1095 = vsub.f32 %v878, %v1017
      %v1096 = vsub.f32 %v882, %v1020
      %v1097 = vsub.f32 %v884, %v1020
      %v1098 = vsub.f32 %v888, %v1023
      %v1099 = vsub.f32 %v890, %v1023
      %v1100 = vsub.f32 %v894, %v1026
      %v1101 = vsub.f32 %v896, %v1026
      %v1102 = vsub.f32 %v900, %v1029
      %v1103 = vsub.f32 %v902, %v1029
      %v1104 = vsub.f32 %v906, %v1032
      %v1105 = vsub.f32 %v908, %v1032
      %v1106 = vsub.f32 %v912, %v1035
      %v1107 = vsub.f32 %v914, %v1035
      %v1108 = vsub.f32 %v918, %v1038
      %v1109 = vsub.f32 %v920, %v1038
      %v1110 = vsub.f32 %v924, %v1041
      %v1111 = vsub.f32 %v926, %v1041
      %v1112 = vsub.f32 %v930, %v1044
      %v1113 = vsub.f32 %v932, %v1044
      %v1114 = vsub.f32 %v936, %v1047
      %v1115 = vsub.f32 %v938, %v1047
      %v1116 = vsub.f32 %v942, %v1050
      %v1117 = vsub.f32 %v944, %v1050
      %v1118 = vsub.f32 %v948, %v1053
      %v1119 = vsub.f32 %v950, %v1053
      %v1120 = vsub.f32 %v954, %v1056
      %v1121 = vsub.f32 %v956, %v1056
      %v1122 = vsub.f32 %v960, %v1059
      %v1123 = vsub.f32 %v962, %v1059
      %v1124 = vmul.f32 %v1060, 1.442695
      %v1125 = vpow.pop %v1124
      %v1126 = vmul.f32 %v1061, 1.442695
      %v1127 = vpow.pop %v1126
      %v1128 = vmul.f32 %v1062, 1.442695
      %v1129 = vpow.pop %v1128
      %v1130 = vmul.f32 %v1063, 1.442695
      %v1131 = vpow.pop %v1130
      %v1132 = vmul.f32 %v1064, 1.442695
      %v1133 = vpow.pop %v1132
      %v1134 = vmul.f32 %v1065, 1.442695
      %v1135 = vpow.pop %v1134
      %v1136 = vmul.f32 %v1066, 1.442695
      %v1137 = vpow.pop %v1136
      %v1138 = vmul.f32 %v1067, 1.442695
      %v1139 = vpow.pop %v1138
      %v1140 = vmul.f32 %v1068, 1.442695
      %v1141 = vpow.pop %v1140
      %v1142 = vmul.f32 %v1069, 1.442695
      %v1143 = vpow.pop %v1142
      %v1144 = vmul.f32 %v1070, 1.442695
      %v1145 = vpow.pop %v1144
      %v1146 = vmul.f32 %v1071, 1.442695
      %v1147 = vpow.pop %v1146
      %v1148 = vmul.f32 %v1072, 1.442695
      %v1149 = vpow.pop %v1148
      %v1150 = vmul.f32 %v1073, 1.442695
      %v1151 = vpow.pop %v1150
      %v1152 = vmul.f32 %v1074, 1.442695
      %v1153 = vpow.pop %v1152
      %v1154 = vmul.f32 %v1075, 1.442695
      %v1155 = vpow.pop %v1154
      %v1156 = vmul.f32 %v1076, 1.442695
      %v1157 = vpow.pop %v1156
      %v1158 = vmul.f32 %v1077, 1.442695
      %v1159 = vpow.pop %v1158
      %v1160 = vmul.f32 %v1078, 1.442695
      %v1161 = vpow.pop %v1160
      %v1162 = vmul.f32 %v1079, 1.442695
      %v1163 = vpow.pop %v1162
      %v1164 = vmul.f32 %v1080, 1.442695
      %v1165 = vpow.pop %v1164
      %v1166 = vmul.f32 %v1081, 1.442695
      %v1167 = vpow.pop %v1166
      %v1168 = vmul.f32 %v1082, 1.442695
      %v1169 = vpow.pop %v1168
      %v1170 = vmul.f32 %v1083, 1.442695
      %v1171 = vpow.pop %v1170
      %v1172 = vmul.f32 %v1084, 1.442695
      %v1173 = vpow.pop %v1172
      %v1174 = vmul.f32 %v1085, 1.442695
      %v1175 = vpow.pop %v1174
      %v1176 = vmul.f32 %v1086, 1.442695
      %v1177 = vpow.pop %v1176
      %v1178 = vmul.f32 %v1087, 1.442695
      %v1179 = vpow.pop %v1178
      %v1180 = vmul.f32 %v1088, 1.442695
      %v1181 = vpow.pop %v1180
      %v1182 = vmul.f32 %v1089, 1.442695
      %v1183 = vpow.pop %v1182
      %v1184 = vmul.f32 %v1090, 1.442695
      %v1185 = vpow.pop %v1184
      %v1186 = vmul.f32 %v1091, 1.442695
      %v1187 = vpow.pop %v1186
      %v1188 = vmul.f32 %v1092, 1.442695
      %v1189 = vpow.pop %v1188
      %v1190 = vmul.f32 %v1093, 1.442695
      %v1191 = vpow.pop %v1190
      %v1192 = vmul.f32 %v1094, 1.442695
      %v1193 = vpow.pop %v1192
      %v1194 = vmul.f32 %v1095, 1.442695
      %v1195 = vpow.pop %v1194
      %v1196 = vmul.f32 %v1096, 1.442695
      %v1197 = vpow.pop %v1196
      %v1198 = vmul.f32 %v1097, 1.442695
      %v1199 = vpow.pop %v1198
      %v1200 = vmul.f32 %v1098, 1.442695
      %v1201 = vpow.pop %v1200
      %v1202 = vmul.f32 %v1099, 1.442695
      %v1203 = vpow.pop %v1202
      %v1204 = vmul.f32 %v1100, 1.442695
      %v1205 = vpow.pop %v1204
      %v1206 = vmul.f32 %v1101, 1.442695
      %v1207 = vpow.pop %v1206
      %v1208 = vmul.f32 %v1102, 1.442695
      %v1209 = vpow.pop %v1208
      %v1210 = vmul.f32 %v1103, 1.442695
      %v1211 = vpow.pop %v1210
      %v1212 = vmul.f32 %v1104, 1.442695
      %v1213 = vpow.pop %v1212
      %v1214 = vmul.f32 %v1105, 1.442695
      %v1215 = vpow.pop %v1214
      %v1216 = vmul.f32 %v1106, 1.442695
      %v1217 = vpow.pop %v1216
      %v1218 = vmul.f32 %v1107, 1.442695
      %v1219 = vpow.pop %v1218
      %v1220 = vmul.f32 %v1108, 1.442695
      %v1221 = vpow.pop %v1220
      %v1222 = vmul.f32 %v1109, 1.442695
      %v1223 = vpow.pop %v1222
      %v1224 = vmul.f32 %v1110, 1.442695
      %v1225 = vpow.pop %v1224
      %v1226 = vmul.f32 %v1111, 1.442695
      %v1227 = vpow.pop %v1226
      %v1228 = vmul.f32 %v1112, 1.442695
      %v1229 = vpow.pop %v1228
      %v1230 = vmul.f32 %v1113, 1.442695
      %v1231 = vpow.pop %v1230
      %v1232 = vmul.f32 %v1114, 1.442695
      %v1233 = vpow.pop %v1232
      %v1234 = vmul.f32 %v1115, 1.442695
      %v1235 = vpow.pop %v1234
      %v1236 = vmul.f32 %v1116, 1.442695
      %v1237 = vpow.pop %v1236
      %v1238 = vmul.f32 %v1117, 1.442695
      %v1239 = vpow.pop %v1238
      %v1240 = vmul.f32 %v1118, 1.442695
      %v1241 = vpow.pop %v1240
      %v1242 = vmul.f32 %v1119, 1.442695
      %v1243 = vpow.pop %v1242
      %v1244 = vmul.f32 %v1120, 1.442695
      %v1245 = vpow.pop %v1244
      %v1246 = vmul.f32 %v1121, 1.442695
      %v1247 = vpow.pop %v1246
      %v1248 = vmul.f32 %v1122, 1.442695
      %v1249 = vpow.pop %v1248
      %v1250 = vmul.f32 %v1123, 1.442695
      %v1251 = vpow.pop %v1250
      %v1252 = vadd.f32 %v1125, %v1127
      %1253 = vadd.xlane.f32.xlu0 %v1252
      %v1254 = vpop.xlane.xlu0 %1253
      %v1255 = vadd.f32 %v1129, %v1131
      %1256 = vadd.xlane.f32.xlu0 %v1255
      %v1257 = vpop.xlane.xlu0 %1256
      %v1258 = vadd.f32 %v1133, %v1135
      %1259 = vadd.xlane.f32.xlu0 %v1258
      %v1260 = vpop.xlane.xlu0 %1259
      %v1261 = vadd.f32 %v1137, %v1139
      %1262 = vadd.xlane.f32.xlu0 %v1261
      %v1263 = vpop.xlane.xlu0 %1262
      %v1264 = vadd.f32 %v1141, %v1143
      %1265 = vadd.xlane.f32.xlu0 %v1264
      %v1266 = vpop.xlane.xlu0 %1265
      %v1267 = vadd.f32 %v1145, %v1147
      %1268 = vadd.xlane.f32.xlu0 %v1267
      %v1269 = vpop.xlane.xlu0 %1268
      %v1270 = vadd.f32 %v1149, %v1151
      %1271 = vadd.xlane.f32.xlu0 %v1270
      %v1272 = vpop.xlane.xlu0 %1271
      %v1273 = vadd.f32 %v1153, %v1155
      %1274 = vadd.xlane.f32.xlu0 %v1273
      %v1275 = vpop.xlane.xlu0 %1274
      %v1276 = vadd.f32 %v1157, %v1159
      %1277 = vadd.xlane.f32.xlu0 %v1276
      %v1278 = vpop.xlane.xlu0 %1277
      %v1279 = vadd.f32 %v1161, %v1163
      %1280 = vadd.xlane.f32.xlu0 %v1279
      %v1281 = vpop.xlane.xlu0 %1280
      %v1282 = vadd.f32 %v1165, %v1167
      %1283 = vadd.xlane.f32.xlu0 %v1282
      %v1284 = vpop.xlane.xlu0 %1283
      %v1285 = vadd.f32 %v1169, %v1171
      %1286 = vadd.xlane.f32.xlu0 %v1285
      %v1287 = vpop.xlane.xlu0 %1286
      %v1288 = vadd.f32 %v1173, %v1175
      %1289 = vadd.xlane.f32.xlu0 %v1288
      %v1290 = vpop.xlane.xlu0 %1289
      %v1291 = vadd.f32 %v1177, %v1179
      %1292 = vadd.xlane.f32.xlu0 %v1291
      %v1293 = vpop.xlane.xlu0 %1292
      %v1294 = vadd.f32 %v1181, %v1183
      %1295 = vadd.xlane.f32.xlu0 %v1294
      %v1296 = vpop.xlane.xlu0 %1295
      %v1297 = vadd.f32 %v1185, %v1187
      %1298 = vadd.xlane.f32.xlu0 %v1297
      %v1299 = vpop.xlane.xlu0 %1298
      %v1300 = vadd.f32 %v1189, %v1191
      %1301 = vadd.xlane.f32.xlu0 %v1300
      %v1302 = vpop.xlane.xlu0 %1301
      %v1303 = vadd.f32 %v1193, %v1195
      %1304 = vadd.xlane.f32.xlu0 %v1303
      %v1305 = vpop.xlane.xlu0 %1304
      %v1306 = vadd.f32 %v1197, %v1199
      %1307 = vadd.xlane.f32.xlu0 %v1306
      %v1308 = vpop.xlane.xlu0 %1307
      %v1309 = vadd.f32 %v1201, %v1203
      %1310 = vadd.xlane.f32.xlu0 %v1309
      %v1311 = vpop.xlane.xlu0 %1310
      %v1312 = vadd.f32 %v1205, %v1207
      %1313 = vadd.xlane.f32.xlu0 %v1312
      %v1314 = vpop.xlane.xlu0 %1313
      %v1315 = vadd.f32 %v1209, %v1211
      %1316 = vadd.xlane.f32.xlu0 %v1315
      %v1317 = vpop.xlane.xlu0 %1316
      %v1318 = vadd.f32 %v1213, %v1215
      %1319 = vadd.xlane.f32.xlu0 %v1318
      %v1320 = vpop.xlane.xlu0 %1319
      %v1321 = vadd.f32 %v1217, %v1219
      %1322 = vadd.xlane.f32.xlu0 %v1321
      %v1323 = vpop.xlane.xlu0 %1322
      %v1324 = vadd.f32 %v1221, %v1223
      %1325 = vadd.xlane.f32.xlu0 %v1324
      %v1326 = vpop.xlane.xlu0 %1325
      %v1327 = vadd.f32 %v1225, %v1227
      %1328 = vadd.xlane.f32.xlu0 %v1327
      %v1329 = vpop.xlane.xlu0 %1328
      %v1330 = vadd.f32 %v1229, %v1231
      %1331 = vadd.xlane.f32.xlu0 %v1330
      %v1332 = vpop.xlane.xlu0 %1331
      %v1333 = vadd.f32 %v1233, %v1235
      %1334 = vadd.xlane.f32.xlu0 %v1333
      %v1335 = vpop.xlane.xlu0 %1334
      %v1336 = vadd.f32 %v1237, %v1239
      %1337 = vadd.xlane.f32.xlu0 %v1336
      %v1338 = vpop.xlane.xlu0 %1337
      %v1339 = vadd.f32 %v1241, %v1243
      %1340 = vadd.xlane.f32.xlu0 %v1339
      %v1341 = vpop.xlane.xlu0 %1340
      %v1342 = vadd.f32 %v1245, %v1247
      %1343 = vadd.xlane.f32.xlu0 %v1342
      %v1344 = vpop.xlane.xlu0 %1343
      %v1345 = vadd.f32 %v1249, %v1251
      %1346 = vadd.xlane.f32.xlu0 %v1345
      %v1347 = vpop.xlane.xlu0 %1346
      %v1348 = vrcp.pop %v1254
      %v1349 = vmul.f32 %v1125, %v1348
      %v1350 = vmul.f32 %v1127, %v1348
      %v1351 = vrcp.pop %v1257
      %v1352 = vmul.f32 %v1129, %v1351
      %v1353 = vmul.f32 %v1131, %v1351
      %v1354 = vrcp.pop %v1260
      %v1355 = vmul.f32 %v1133, %v1354
      %v1356 = vmul.f32 %v1135, %v1354
      %v1357 = vrcp.pop %v1263
      %v1358 = vmul.f32 %v1137, %v1357
      %v1359 = vmul.f32 %v1139, %v1357
      %v1360 = vrcp.pop %v1266
      %v1361 = vmul.f32 %v1141, %v1360
      %v1362 = vmul.f32 %v1143, %v1360
      %v1363 = vrcp.pop %v1269
      %v1364 = vmul.f32 %v1145, %v1363
      %v1365 = vmul.f32 %v1147, %v1363
      %v1366 = vrcp.pop %v1272
      %v1367 = vmul.f32 %v1149, %v1366
      %v1368 = vmul.f32 %v1151, %v1366
      %v1369 = vrcp.pop %v1275
      %v1370 = vmul.f32 %v1153, %v1369
      %v1371 = vmul.f32 %v1155, %v1369
      %v1372 = vrcp.pop %v1278
      %v1373 = vmul.f32 %v1157, %v1372
      %v1374 = vmul.f32 %v1159, %v1372
      %v1375 = vrcp.pop %v1281
      %v1376 = vmul.f32 %v1161, %v1375
      %v1377 = vmul.f32 %v1163, %v1375
      %v1378 = vrcp.pop %v1284
      %v1379 = vmul.f32 %v1165, %v1378
      %v1380 = vmul.f32 %v1167, %v1378
      %v1381 = vrcp.pop %v1287
      %v1382 = vmul.f32 %v1169, %v1381
      %v1383 = vmul.f32 %v1171, %v1381
      %v1384 = vrcp.pop %v1290
      %v1385 = vmul.f32 %v1173, %v1384
      %v1386 = vmul.f32 %v1175, %v1384
      %v1387 = vrcp.pop %v1293
      %v1388 = vmul.f32 %v1177, %v1387
      %v1389 = vmul.f32 %v1179, %v1387
      %v1390 = vrcp.pop %v1296
      %v1391 = vmul.f32 %v1181, %v1390
      %v1392 = vmul.f32 %v1183, %v1390
      %v1393 = vrcp.pop %v1299
      %v1394 = vmul.f32 %v1185, %v1393
      %v1395 = vmul.f32 %v1187, %v1393
      %v1396 = vrcp.pop %v1302
      %v1397 = vmul.f32 %v1189, %v1396
      %v1398 = vmul.f32 %v1191, %v1396
      %v1399 = vrcp.pop %v1305
      %v1400 = vmul.f32 %v1193, %v1399
      %v1401 = vmul.f32 %v1195, %v1399
      %v1402 = vrcp.pop %v1308
      %v1403 = vmul.f32 %v1197, %v1402
      %v1404 = vmul.f32 %v1199, %v1402
      %v1405 = vrcp.pop %v1311
      %v1406 = vmul.f32 %v1201, %v1405
      %v1407 = vmul.f32 %v1203, %v1405
      %v1408 = vrcp.pop %v1314
      %v1409 = vmul.f32 %v1205, %v1408
      %v1410 = vmul.f32 %v1207, %v1408
      %v1411 = vrcp.pop %v1317
      %v1412 = vmul.f32 %v1209, %v1411
      %v1413 = vmul.f32 %v1211, %v1411
      %v1414 = vrcp.pop %v1320
      %v1415 = vmul.f32 %v1213, %v1414
      %v1416 = vmul.f32 %v1215, %v1414
      %v1417 = vrcp.pop %v1323
      %v1418 = vmul.f32 %v1217, %v1417
      %v1419 = vmul.f32 %v1219, %v1417
      %v1420 = vrcp.pop %v1326
      %v1421 = vmul.f32 %v1221, %v1420
      %v1422 = vmul.f32 %v1223, %v1420
      %v1423 = vrcp.pop %v1329
      %v1424 = vmul.f32 %v1225, %v1423
      %v1425 = vmul.f32 %v1227, %v1423
      %v1426 = vrcp.pop %v1332
      %v1427 = vmul.f32 %v1229, %v1426
      %v1428 = vmul.f32 %v1231, %v1426
      %v1429 = vrcp.pop %v1335
      %v1430 = vmul.f32 %v1233, %v1429
      %v1431 = vmul.f32 %v1235, %v1429
      %v1432 = vrcp.pop %v1338
      %v1433 = vmul.f32 %v1237, %v1432
      %v1434 = vmul.f32 %v1239, %v1432
      %v1435 = vrcp.pop %v1341
      %v1436 = vmul.f32 %v1241, %v1435
      %v1437 = vmul.f32 %v1243, %v1435
      %v1438 = vrcp.pop %v1344
      %v1439 = vmul.f32 %v1245, %v1438
      %v1440 = vmul.f32 %v1247, %v1438
      %v1441 = vrcp.pop %v1347
      %v1442 = vmul.f32 %v1249, %v1441
      %v1443 = vmul.f32 %v1251, %v1441
      %1444 = vmatprep.subr.mxu0 0.0
      %1445 = vmatpush1.msra.mxu0 %v418
      %1446 = vmatprep.subr.mxu0 0.0
      %1447 = vmatpush1.msra.mxu0 %v419
      %1448 = vmatprep.subr.mxu0 0.0
      %1449 = vmatpush1.msra.mxu0 %v420
      %1450 = vmatprep.subr.mxu0 0.0
      %1451 = vmatpush1.msra.mxu0 %v421
      %1452 = vmatprep.subr.mxu0 0.0
      %1453 = vmatpush1.msra.mxu0 %v422
      %1454 = vmatprep.subr.mxu0 0.0
      %1455 = vmatpush1.msra.mxu0 %v423
      %1456 = vmatprep.subr.mxu0 0.0
      %1457 = vmatpush1.msra.mxu0 %v424
      %1458 = vmatprep.subr.mxu0 0.0
      %1459 = vmatpush1.msra.mxu0 %v425
      %1460 = vmatprep.subr.mxu0 0.0
      %1461 = vmatpush1.msra.mxu0 %v426
      %1462 = vmatprep.subr.mxu0 0.0
      %1463 = vmatpush1.msra.mxu0 %v427
      %1464 = vmatprep.subr.mxu0 0.0
      %1465 = vmatpush1.msra.mxu0 %v428
      %1466 = vmatprep.subr.mxu0 0.0
      %1467 = vmatpush1.msra.mxu0 %v429
      %1468 = vmatprep.subr.mxu0 0.0
      %1469 = vmatpush1.msra.mxu0 %v430
      %1470 = vmatprep.subr.mxu0 0.0
      %1471 = vmatpush1.msra.mxu0 %v431
      %1472 = vmatprep.subr.mxu0 0.0
      %1473 = vmatpush1.msra.mxu0 %v432
      %1474 = vmatprep.subr.mxu0 0.0
      %1475 = vmatpush1.msra.mxu0 %v433
      %1476 = vmatprep.subr.mxu0 0.0
      %1477 = vmatpush1.msra.mxu0 %v434
      %1478 = vmatprep.subr.mxu0 0.0
      %1479 = vmatpush1.msra.mxu0 %v435
      %1480 = vmatprep.subr.mxu0 0.0
      %1481 = vmatpush1.msra.mxu0 %v436
      %1482 = vmatprep.subr.mxu0 0.0
      %1483 = vmatpush1.msra.mxu0 %v437
      %1484 = vmatprep.subr.mxu0 0.0
      %1485 = vmatpush1.msra.mxu0 %v438
      %1486 = vmatprep.subr.mxu0 0.0
      %1487 = vmatpush1.msra.mxu0 %v439
      %1488 = vmatprep.subr.mxu0 0.0
      %1489 = vmatpush1.msra.mxu0 %v440
      %1490 = vmatprep.subr.mxu0 0.0
      %1491 = vmatpush1.msra.mxu0 %v441
      %1492 = vmatprep.subr.mxu0 0.0
      %1493 = vmatpush1.msra.mxu0 %v442
      %1494 = vmatprep.subr.mxu0 0.0
      %1495 = vmatpush1.msra.mxu0 %v443
      %1496 = vmatprep.subr.mxu0 0.0
      %1497 = vmatpush1.msra.mxu0 %v444
      %1498 = vmatprep.subr.mxu0 0.0
      %1499 = vmatpush1.msra.mxu0 %v445
      %1500 = vmatprep.subr.mxu0 0.0
      %1501 = vmatpush1.msra.mxu0 %v446
      %1502 = vmatprep.subr.mxu0 0.0
      %1503 = vmatpush1.msra.mxu0 %v447
      %1504 = vmatprep.subr.mxu0 0.0
      %1505 = vmatpush1.msra.mxu0 %v448
      %1506 = vmatprep.subr.mxu0 0.0
      %1507 = vmatpush1.msra.mxu0 %v449
      %1508 = vmatprep.mubr.f32.mxu0 %v1350
      %1509 = vmatmul.mubr.f32.gmra.mrb[0].mxu0 %v1349
      %v1510 = vpop.f32.mrb[0].mxu0
      %v1511 = vadd.f32 0.0, %v1510
      %v1512 = vpop.f32.mrb[0].mxu0
      %1513 = vmatprep.mubr.f32.mxu0 %v1353
      %1514 = vmatmul.mubr.f32.gmra.mrb[0].mxu0 %v1352
      %v1515 = vpop.f32.mrb[0].mxu0
      %v1516 = vadd.f32 0.0, %v1515
      %v1517 = vpop.f32.mrb[0].mxu0
      %1518 = vmatprep.mubr.f32.mxu0 %v1356
      %1519 = vmatmul.mubr.f32.gmra.mrb[0].mxu0 %v1355
      %v1520 = vpop.f32.mrb[0].mxu0
      %v1521 = vadd.f32 0.0, %v1520
      %v1522 = vpop.f32.mrb[0].mxu0
      %1523 = vmatprep.mubr.f32.mxu0 %v1359
      %1524 = vmatmul.mubr.f32.gmra.mrb[0].mxu0 %v1358
      %v1525 = vpop.f32.mrb[0].mxu0
      %v1526 = vadd.f32 0.0, %v1525
      %v1527 = vpop.f32.mrb[0].mxu0
      %1528 = vmatprep.mubr.f32.mxu0 %v1362
      %1529 = vmatmul.mubr.f32.gmra.mrb[0].mxu0 %v1361
      %v1530 = vpop.f32.mrb[0].mxu0
      %v1531 = vadd.f32 0.0, %v1530
      %v1532 = vpop.f32.mrb[0].mxu0
      %1533 = vmatprep.mubr.f32.mxu0 %v1365
      %1534 = vmatmul.mubr.f32.gmra.mrb[0].mxu0 %v1364
      %v1535 = vpop.f32.mrb[0].mxu0
      %v1536 = vadd.f32 0.0, %v1535
      %v1537 = vpop.f32.mrb[0].mxu0
      %1538 = vmatprep.mubr.f32.mxu0 %v1368
      %1539 = vmatmul.mubr.f32.gmra.mrb[0].mxu0 %v1367
      %v1540 = vpop.f32.mrb[0].mxu0
      %v1541 = vadd.f32 0.0, %v1540
      %v1542 = vpop.f32.mrb[0].mxu0
      %1543 = vmatprep.mubr.f32.mxu0 %v1371
      %1544 = vmatmul.mubr.f32.gmra.mrb[0].mxu0 %v1370
      %v1545 = vpop.f32.mrb[0].mxu0
      %v1546 = vadd.f32 0.0, %v1545
      %v1547 = vpop.f32.mrb[0].mxu0
      %1548 = vmatprep.mubr.f32.mxu0 %v1374
      %1549 = vmatmul.mubr.f32.gmra.mrb[0].mxu0 %v1373
      %v1550 = vpop.f32.mrb[0].mxu0
      %v1551 = vadd.f32 0.0, %v1550
      %v1552 = vpop.f32.mrb[0].mxu0
      %1553 = vmatprep.mubr.f32.mxu0 %v1377
      %1554 = vmatmul.mubr.f32.gmra.mrb[0].mxu0 %v1376
      %v1555 = vpop.f32.mrb[0].mxu0
      %v1556 = vadd.f32 0.0, %v1555
      %v1557 = vpop.f32.mrb[0].mxu0
      %1558 = vmatprep.mubr.f32.mxu0 %v1380
      %1559 = vmatmul.mubr.f32.gmra.mrb[0].mxu0 %v1379
      %v1560 = vpop.f32.mrb[0].mxu0
      %v1561 = vadd.f32 0.0, %v1560
      %v1562 = vpop.f32.mrb[0].mxu0
      %1563 = vmatprep.mubr.f32.mxu0 %v1383
      %1564 = vmatmul.mubr.f32.gmra.mrb[0].mxu0 %v1382
      %v1565 = vpop.f32.mrb[0].mxu0
      %v1566 = vadd.f32 0.0, %v1565
      %v1567 = vpop.f32.mrb[0].mxu0
      %1568 = vmatprep.mubr.f32.mxu0 %v1386
      %1569 = vmatmul.mubr.f32.gmra.mrb[0].mxu0 %v1385
      %v1570 = vpop.f32.mrb[0].mxu0
      %v1571 = vadd.f32 0.0, %v1570
      %v1572 = vpop.f32.mrb[0].mxu0
      %1573 = vmatprep.mubr.f32.mxu0 %v1389
      %1574 = vmatmul.mubr.f32.gmra.mrb[0].mxu0 %v1388
      %v1575 = vpop.f32.mrb[0].mxu0
      %v1576 = vadd.f32 0.0, %v1575
      %v1577 = vpop.f32.mrb[0].mxu0
      %1578 = vmatprep.mubr.f32.mxu0 %v1392
      %1579 = vmatmul.mubr.f32.gmra.mrb[0].mxu0 %v1391
      %v1580 = vpop.f32.mrb[0].mxu0
      %v1581 = vadd.f32 0.0, %v1580
      %v1582 = vpop.f32.mrb[0].mxu0
      %1583 = vmatprep.mubr.f32.mxu0 %v1395
      %1584 = vmatmul.mubr.f32.gmra.mrb[0].mxu0 %v1394
      %v1585 = vpop.f32.mrb[0].mxu0
      %v1586 = vadd.f32 0.0, %v1585
      %v1587 = vpop.f32.mrb[0].mxu0
      %1588 = vmatprep.mubr.f32.mxu0 %v1398
      %1589 = vmatmul.mubr.f32.gmra.mrb[0].mxu0 %v1397
      %v1590 = vpop.f32.mrb[0].mxu0
      %v1591 = vadd.f32 0.0, %v1590
      %v1592 = vpop.f32.mrb[0].mxu0
      %1593 = vmatprep.mubr.f32.mxu0 %v1401
      %1594 = vmatmul.mubr.f32.gmra.mrb[0].mxu0 %v1400
      %v1595 = vpop.f32.mrb[0].mxu0
      %v1596 = vadd.f32 0.0, %v1595
      %v1597 = vpop.f32.mrb[0].mxu0
      %1598 = vmatprep.mubr.f32.mxu0 %v1404
      %1599 = vmatmul.mubr.f32.gmra.mrb[0].mxu0 %v1403
      %v1600 = vpop.f32.mrb[0].mxu0
      %v1601 = vadd.f32 0.0, %v1600
      %v1602 = vpop.f32.mrb[0].mxu0
      %1603 = vmatprep.mubr.f32.mxu0 %v1407
      %1604 = vmatmul.mubr.f32.gmra.mrb[0].mxu0 %v1406
      %v1605 = vpop.f32.mrb[0].mxu0
      %v1606 = vadd.f32 0.0, %v1605
      %v1607 = vpop.f32.mrb[0].mxu0
      %1608 = vmatprep.mubr.f32.mxu0 %v1410
      %1609 = vmatmul.mubr.f32.gmra.mrb[0].mxu0 %v1409
      %v1610 = vpop.f32.mrb[0].mxu0
      %v1611 = vadd.f32 0.0, %v1610
      %v1612 = vpop.f32.mrb[0].mxu0
      %1613 = vmatprep.mubr.f32.mxu0 %v1413
      %1614 = vmatmul.mubr.f32.gmra.mrb[0].mxu0 %v1412
      %v1615 = vpop.f32.mrb[0].mxu0
      %v1616 = vadd.f32 0.0, %v1615
      %v1617 = vpop.f32.mrb[0].mxu0
      %1618 = vmatprep.mubr.f32.mxu0 %v1416
      %1619 = vmatmul.mubr.f32.gmra.mrb[0].mxu0 %v1415
      %v1620 = vpop.f32.mrb[0].mxu0
      %v1621 = vadd.f32 0.0, %v1620
      %v1622 = vpop.f32.mrb[0].mxu0
      %1623 = vmatprep.mubr.f32.mxu0 %v1419
      %1624 = vmatmul.mubr.f32.gmra.mrb[0].mxu0 %v1418
      %v1625 = vpop.f32.mrb[0].mxu0
      %v1626 = vadd.f32 0.0, %v1625
      %v1627 = vpop.f32.mrb[0].mxu0
      %1628 = vmatprep.mubr.f32.mxu0 %v1422
      %1629 = vmatmul.mubr.f32.gmra.mrb[0].mxu0 %v1421
      %v1630 = vpop.f32.mrb[0].mxu0
      %v1631 = vadd.f32 0.0, %v1630
      %v1632 = vpop.f32.mrb[0].mxu0
      %1633 = vmatprep.mubr.f32.mxu0 %v1425
      %1634 = vmatmul.mubr.f32.gmra.mrb[0].mxu0 %v1424
      %v1635 = vpop.f32.mrb[0].mxu0
      %v1636 = vadd.f32 0.0, %v1635
      %v1637 = vpop.f32.mrb[0].mxu0
      %1638 = vmatprep.mubr.f32.mxu0 %v1428
      %1639 = vmatmul.mubr.f32.gmra.mrb[0].mxu0 %v1427
      %v1640 = vpop.f32.mrb[0].mxu0
      %v1641 = vadd.f32 0.0, %v1640
      %v1642 = vpop.f32.mrb[0].mxu0
      %1643 = vmatprep.mubr.f32.mxu0 %v1431
      %1644 = vmatmul.mubr.f32.gmra.mrb[0].mxu0 %v1430
      %v1645 = vpop.f32.mrb[0].mxu0
      %v1646 = vadd.f32 0.0, %v1645
      %v1647 = vpop.f32.mrb[0].mxu0
      %1648 = vmatprep.mubr.f32.mxu0 %v1434
      %1649 = vmatmul.mubr.f32.gmra.mrb[0].mxu0 %v1433
      %v1650 = vpop.f32.mrb[0].mxu0
      %v1651 = vadd.f32 0.0, %v1650
      %v1652 = vpop.f32.mrb[0].mxu0
      %1653 = vmatprep.mubr.f32.mxu0 %v1437
      %1654 = vmatmul.mubr.f32.gmra.mrb[0].mxu0 %v1436
      %v1655 = vpop.f32.mrb[0].mxu0
      %v1656 = vadd.f32 0.0, %v1655
      %v1657 = vpop.f32.mrb[0].mxu0
      %1658 = vmatprep.mubr.f32.mxu0 %v1440
      %1659 = vmatmul.mubr.f32.gmra.mrb[0].mxu0 %v1439
      %v1660 = vpop.f32.mrb[0].mxu0
      %v1661 = vadd.f32 0.0, %v1660
      %v1662 = vpop.f32.mrb[0].mxu0
      %1663 = vmatprep.mubr.f32.mxu0 %v1443
      %1664 = vmatmul.mubr.f32.gmra.mrb[0].mxu0 %v1442
      %v1665 = vpop.f32.mrb[0].mxu0
      %v1666 = vadd.f32 0.0, %v1665
      %v1667 = vpop.f32.mrb[0].mxu0
      %1668 = vdwg.mxu0
      %1669 = vst.msk [vmem:[%s321] sm:$0xff] %vm514, %v1511
      %1670 = vst.msk [vmem:[%s321 + $0x8] sm:$0xff] %vm514, %v1516
      %1671 = vst.msk [vmem:[%s321 + $0x10] sm:$0xff] %vm514, %v1521
      %1672 = vst.msk [vmem:[%s321 + $0x18] sm:$0xff] %vm514, %v1526
      %1673 = vst.msk [vmem:[%s321 + $0x20] sm:$0xff] %vm514, %v1531
      %1674 = vst.msk [vmem:[%s321 + $0x28] sm:$0xff] %vm514, %v1536
      %1675 = vst.msk [vmem:[%s321 + $0x30] sm:$0xff] %vm514, %v1541
      %1676 = vst.msk [vmem:[%s321 + $0x38] sm:$0xff] %vm514, %v1546
      %1677 = vst.msk [vmem:[%s321 + $0x40] sm:$0xff] %vm514, %v1551
      %1678 = vst.msk [vmem:[%s321 + $0x48] sm:$0xff] %vm514, %v1556
      %1679 = vst.msk [vmem:[%s321 + $0x50] sm:$0xff] %vm514, %v1561
      %1680 = vst.msk [vmem:[%s321 + $0x58] sm:$0xff] %vm514, %v1566
      %1681 = vst.msk [vmem:[%s321 + $0x60] sm:$0xff] %vm514, %v1571
      %1682 = vst.msk [vmem:[%s321 + $0x68] sm:$0xff] %vm514, %v1576
      %1683 = vst.msk [vmem:[%s321 + $0x70] sm:$0xff] %vm514, %v1581
      %1684 = vst.msk [vmem:[%s321 + $0x78] sm:$0xff] %vm514, %v1586
      %1685 = vst.msk [vmem:[%s321 + $0x80] sm:$0xff] %vm514, %v1591
      %1686 = vst.msk [vmem:[%s321 + $0x88] sm:$0xff] %vm514, %v1596
      %1687 = vst.msk [vmem:[%s321 + $0x90] sm:$0xff] %vm514, %v1601
      %1688 = vst.msk [vmem:[%s321 + $0x98] sm:$0xff] %vm514, %v1606
      %1689 = vst.msk [vmem:[%s321 + $0xa0] sm:$0xff] %vm514, %v1611
      %1690 = vst.msk [vmem:[%s321 + $0xa8] sm:$0xff] %vm514, %v1616
      %1691 = vst.msk [vmem:[%s321 + $0xb0] sm:$0xff] %vm514, %v1621
      %1692 = vst.msk [vmem:[%s321 + $0xb8] sm:$0xff] %vm514, %v1626
      %1693 = vst.msk [vmem:[%s321 + $0xc0] sm:$0xff] %vm514, %v1631
      %1694 = vst.msk [vmem:[%s321 + $0xc8] sm:$0xff] %vm514, %v1636
      %1695 = vst.msk [vmem:[%s321 + $0xd0] sm:$0xff] %vm514, %v1641
      %1696 = vst.msk [vmem:[%s321 + $0xd8] sm:$0xff] %vm514, %v1646
      %1697 = vst.msk [vmem:[%s321 + $0xe0] sm:$0xff] %vm514, %v1651
      %1698 = vst.msk [vmem:[%s321 + $0xe8] sm:$0xff] %vm514, %v1656
      %1699 = vst.msk [vmem:[%s321 + $0xf0] sm:$0xff] %vm514, %v1661
      %1700 = vst.msk [vmem:[%s321 + $0xf8] sm:$0xff] %vm514, %v1666
      %p1701 = scmp.lt.s32.totalorder %s19, 1
      %s1702 = scalar_select %p1701, %s19, 1
      %p1703 = scmp.lt.s32.totalorder %s20, 1
      %s1704 = scalar_select %p1703, %s20, 1
      %s1705 = smul.addr %s1704, 32
      %s1706 = smul.addr %s1702, 64
      %s1707 = sadd.s32 %s1705, %s1706
      %s1708 = smul.addr %s1707, 8
      %s1709 = scalar_lea.vmem %s4, %s1708
      // Predicated region
      $region37: #{attention_forward.9} parent=35 // pred_check
        %p1710 = pneg %p157
      $region38: #{attention_forward.9} parent=35 // pred_check_branch
        %1712 = sbr.rel (%p1710) target = $region40
      $region39: #{attention_forward.9} parent=35 // pred_region
        _
      $region40: #{attention_forward.9} parent=35 // pred_fallthru
        _
    $region36: #{attention_forward.9} parent=5 // pred_fallthru
      _
    %p1713 = scmp.le.s32.totalorder 2, %s10
    // Predicated region
    $region41: #{attention_forward.9} parent=5 // pred_check
      %p1714 = pneg %p1713
    $region42: #{attention_forward.9} parent=5 // pred_check_branch
      %1716 = sbr.rel (%p1714) target = $region44
    $region43: #{attention_forward.9} parent=5 // pred_region
      %s1717 = ssub.s32 %s10, 2
      // Predicated region
      $region45: #{attention_forward.9} parent=43 // pred_check
        %p1718 = pneg %p163
      $region46: #{attention_forward.9} parent=43 // pred_check_branch
        %1720 = sbr.rel (%p1718) target = $region48
      $region47: #{attention_forward.9} parent=43 // pred_region
        %p1721 = scmp.lt.s32.totalorder %s21, 1
        %s1722 = scalar_select %p1721, %s21, 1
        %p1723 = scmp.lt.s32.totalorder %s22, 1
        %s1724 = scalar_select %p1723, %s22, 1
        %s1725 = smul.addr %s1724, 32
        %s1726 = smul.addr %s1722, 64
        %s1727 = sadd.s32 %s1725, %s1726
        %s1728 = smul.addr %s1727, 8
        %s1729 = scalar_lea.vmem %s4, %s1728
      $region48: #{attention_forward.9} parent=43 // pred_fallthru
        _
    $region44: #{attention_forward.9} parent=5 // pred_fallthru
      _
  $region6: #{attention_forward.9} parent=0 // loop_footer
    %s14 = sadd.s32 1, %s10
  $region7: #{attention_forward.9} parent=0 // loop_footer_branch
    %9 = sbr.rel target = $region3
  $region8: #{attention_forward.9} parent=0 // loop_exit
    _

// kernel: attention_forward.13
$region0: #{attention_forward.13}
  #allocation0 [shape = 'u32[]', space=smem, size = 0x4, offset = 0x4, fixed_abs, tag = 'smem constant byte address 0x4 - core index']
  #allocation1 [shape = 'u32[144,128]{1,0:T(1,128)}', space=vmem, size = 0x12000, scoped, tag = 'internal scratch']
  %s0 = inlined_call_operand.vmem [shape: f32[2,256,32], index: 0, kind: input, shape index: {}]
  %s1 = inlined_call_operand.vmem [shape: f32[2,256,32], index: 1, kind: input, shape index: {}]
  %s2 = inlined_call_operand.vmem [shape: f32[2,256,32], index: 2, kind: input, shape index: {}]
  %s3 = inlined_call_operand.vmem [shape: f32[32,32], index: 3, kind: input, shape index: {}]
  %s4 = inlined_call_operand.vmem [shape: f32[1,32], index: 4, kind: input, shape index: {}]
  %s5 = inlined_call_operand.vmem [shape: f32[32,32], index: 5, kind: input, shape index: {}]
  %s6 = inlined_call_operand.vmem [shape: f32[1,32], index: 6, kind: input, shape index: {}]
  %s7 = inlined_call_operand.hbm [shape: f32[2,256,32], index: 7, kind: output, shape index: {}]
  %s8 = sld [smem:[#allocation0]]
  $region61: #{attention_forward.13} parent=0
    _
  %s10 = ssub.s32 1, %s8
  %s11 = scalar_select 0, %s10, %s8
  $region1: #{attention_forward.13} parent=0
    #allocation2 [shape = 'u8[262144]{0}', space=vmem, size = 0x40000, scoped, tag = 'output window, operand 0']
    #allocation3 [shape = 's32[2]{0}', space=sflag, size = 0x8, scoped, tag = 'scoped memory for attention_forward.13']
    %12 = vsyncpa [#allocation3], 0
    %s13 = scalar_lea.sflag [#allocation3], 1
    %14 = vsyncpa %s13, 0
    loop: start=0, step=1, limit=4
    $region2: #{attention_forward.13} parent=1 // loop_pre_header
      _
    $region3: #{attention_forward.13} parent=1 // loop_header
      %s16 = sphi 0, %s20
      %p17 = scmp.ge.s32.totalorder %s16, 4
      %s26 = sphi 0, %s28
      %s29 = sphi 0, %s26
      %s30 = sphi 0, %s29
      %s46 = sphi 0, %s30
      %s52 = sphi 0, %s54
      %s55 = sphi 0, %s52
      %s56 = sphi 0, %s55
      %s72 = sphi 0, %s56
      %s78 = sphi 0, %s80
      %s81 = sphi 0, %s78
      %s82 = sphi 0, %s81
      %s98 = sphi 0, %s82
      %s102 = sphi 0, %s102
      %s104 = sphi 0, %s102
      %s105 = sphi 0, %s104
      %s119 = sphi 0, %s105
      %s123 = sphi 0, %s123
      %s125 = sphi 0, %s123
      %s126 = sphi 0, %s125
      %s140 = sphi 0, %s126
      %s144 = sphi 0, %s144
      %s146 = sphi 0, %s144
      %s147 = sphi 0, %s146
      %s161 = sphi 0, %s147
      %s165 = sphi 0, %s165
      %s167 = sphi 0, %s165
      %s168 = sphi 0, %s167
      %s182 = sphi 0, %s168
      %s188 = sphi 0, %s190
      %s191 = sphi 0, %s188
      %s192 = sphi 0, %s191
      %s208 = sphi 0, %s192
    $region4: #{attention_forward.13} parent=1 // loop_header_branch
      %19 = sbr.rel (%p17) target = $region8
    $region5: #{attention_forward.13} parent=1 // loop_body
      %s21 = ssub.s32 %s16, 1
      %s22 = ssub.s32 %s16, 2
      %s23 = sadd.s32 %s16, 1
      %s24 = ssub.s32 %s16, %s23
      %p25 = scmp.eq.s32.totalorder %s24, 0
      %s27 = sadd.s32 %s26, 1
      %s28 = scalar_select %p25, %s26, %s27
      %p31 = pneg %p25
      %p32 = scmp.eq.s32.totalorder %s16, 1
      %p33 = por %p31, %p32
      %p34 = scmp.ne.s32.totalorder %s26, %s29
      %p35 = scmp.eq.s32.totalorder %s16, 0
      %p36 = por %p34, %p35
      %p37 = scmp.ne.s32.totalorder %s26, %s29
      %p38 = scmp.eq.s32.totalorder %s21, 1
      %p39 = por %p37, %p38
      %p40 = scmp.ne.s32.totalorder %s29, %s30
      %p41 = scmp.eq.s32.totalorder %s21, 0
      %p42 = por %p40, %p41
      %p43 = scmp.ne.s32.totalorder %s29, %s30
      %p44 = scmp.eq.s32.totalorder %s22, 1
      %p45 = por %p43, %p44
      %p47 = scmp.ne.s32.totalorder %s30, %s46
      %p48 = scmp.eq.s32.totalorder %s22, 0
      %p49 = por %p47, %p48
      %s50 = ssub.s32 %s16, %s23
      %p51 = scmp.eq.s32.totalorder %s50, 0
      %s53 = sadd.s32 %s52, 1
      %s54 = scalar_select %p51, %s52, %s53
      %p57 = pneg %p51
      %p58 = scmp.eq.s32.totalorder %s16, 1
      %p59 = por %p57, %p58
      %p60 = scmp.ne.s32.totalorder %s52, %s55
      %p61 = scmp.eq.s32.totalorder %s16, 0
      %p62 = por %p60, %p61
      %p63 = scmp.ne.s32.totalorder %s52, %s55
      %p64 = scmp.eq.s32.totalorder %s21, 1
      %p65 = por %p63, %p64
      %p66 = scmp.ne.s32.totalorder %s55, %s56
      %p67 = scmp.eq.s32.totalorder %s21, 0
      %p68 = por %p66, %p67
      %p69 = scmp.ne.s32.totalorder %s55, %s56
      %p70 = scmp.eq.s32.totalorder %s22, 1
      %p71 = por %p69, %p70
      %p73 = scmp.ne.s32.totalorder %s56, %s72
      %p74 = scmp.eq.s32.totalorder %s22, 0
      %p75 = por %p73, %p74
      %s76 = ssub.s32 %s16, %s23
      %p77 = scmp.eq.s32.totalorder %s76, 0
      %s79 = sadd.s32 %s78, 1
      %s80 = scalar_select %p77, %s78, %s79
      %p83 = pneg %p77
      %p84 = scmp.eq.s32.totalorder %s16, 1
      %p85 = por %p83, %p84
      %p86 = scmp.ne.s32.totalorder %s78, %s81
      %p87 = scmp.eq.s32.totalorder %s16, 0
      %p88 = por %p86, %p87
      %p89 = scmp.ne.s32.totalorder %s78, %s81
      %p90 = scmp.eq.s32.totalorder %s21, 1
      %p91 = por %p89, %p90
      %p92 = scmp.ne.s32.totalorder %s81, %s82
      %p93 = scmp.eq.s32.totalorder %s21, 0
      %p94 = por %p92, %p93
      %p95 = scmp.ne.s32.totalorder %s81, %s82
      %p96 = scmp.eq.s32.totalorder %s22, 1
      %p97 = por %p95, %p96
      %p99 = scmp.ne.s32.totalorder %s82, %s98
      %p100 = scmp.eq.s32.totalorder %s22, 0
      %p101 = por %p99, %p100
      %s103 = sadd.s32 %s102, 1
      %p106 = scmp.eq.s32.totalorder %s16, 1
      %p107 = scmp.ne.s32.totalorder %s102, %s104
      %p108 = scmp.eq.s32.totalorder %s16, 0
      %p109 = por %p107, %p108
      %p110 = scmp.ne.s32.totalorder %s102, %s104
      %p111 = scmp.eq.s32.totalorder %s21, 1
      %p112 = por %p110, %p111
      %p113 = scmp.ne.s32.totalorder %s104, %s105
      %p114 = scmp.eq.s32.totalorder %s21, 0
      %p115 = por %p113, %p114
      %p116 = scmp.ne.s32.totalorder %s104, %s105
      %p117 = scmp.eq.s32.totalorder %s22, 1
      %p118 = por %p116, %p117
      %p120 = scmp.ne.s32.totalorder %s105, %s119
      %p121 = scmp.eq.s32.totalorder %s22, 0
      %p122 = por %p120, %p121
      %s124 = sadd.s32 %s123, 1
      %p127 = scmp.eq.s32.totalorder %s16, 1
      %p128 = scmp.ne.s32.totalorder %s123, %s125
      %p129 = scmp.eq.s32.totalorder %s16, 0
      %p130 = por %p128, %p129
      %p131 = scmp.ne.s32.totalorder %s123, %s125
      %p132 = scmp.eq.s32.totalorder %s21, 1
      %p133 = por %p131, %p132
      %p134 = scmp.ne.s32.totalorder %s125, %s126
      %p135 = scmp.eq.s32.totalorder %s21, 0
      %p136 = por %p134, %p135
      %p137 = scmp.ne.s32.totalorder %s125, %s126
      %p138 = scmp.eq.s32.totalorder %s22, 1
      %p139 = por %p137, %p138
      %p141 = scmp.ne.s32.totalorder %s126, %s140
      %p142 = scmp.eq.s32.totalorder %s22, 0
      %p143 = por %p141, %p142
      %s145 = sadd.s32 %s144, 1
      %p148 = scmp.eq.s32.totalorder %s16, 1
      %p149 = scmp.ne.s32.totalorder %s144, %s146
      %p150 = scmp.eq.s32.totalorder %s16, 0
      %p151 = por %p149, %p150
      %p152 = scmp.ne.s32.totalorder %s144, %s146
      %p153 = scmp.eq.s32.totalorder %s21, 1
      %p154 = por %p152, %p153
      %p155 = scmp.ne.s32.totalorder %s146, %s147
      %p156 = scmp.eq.s32.totalorder %s21, 0
      %p157 = por %p155, %p156
      %p158 = scmp.ne.s32.totalorder %s146, %s147
      %p159 = scmp.eq.s32.totalorder %s22, 1
      %p160 = por %p158, %p159
      %p162 = scmp.ne.s32.totalorder %s147, %s161
      %p163 = scmp.eq.s32.totalorder %s22, 0
      %p164 = por %p162, %p163
      %s166 = sadd.s32 %s165, 1
      %p169 = scmp.eq.s32.totalorder %s16, 1
      %p170 = scmp.ne.s32.totalorder %s165, %s167
      %p171 = scmp.eq.s32.totalorder %s16, 0
      %p172 = por %p170, %p171
      %p173 = scmp.ne.s32.totalorder %s165, %s167
      %p174 = scmp.eq.s32.totalorder %s21, 1
      %p175 = por %p173, %p174
      %p176 = scmp.ne.s32.totalorder %s167, %s168
      %p177 = scmp.eq.s32.totalorder %s21, 0
      %p178 = por %p176, %p177
      %p179 = scmp.ne.s32.totalorder %s167, %s168
      %p180 = scmp.eq.s32.totalorder %s22, 1
      %p181 = por %p179, %p180
      %p183 = scmp.ne.s32.totalorder %s168, %s182
      %p184 = scmp.eq.s32.totalorder %s22, 0
      %p185 = por %p183, %p184
      %s186 = ssub.s32 %s16, %s23
      %p187 = scmp.eq.s32.totalorder %s186, 0
      %s189 = sadd.s32 %s188, 1
      %s190 = scalar_select %p187, %s188, %s189
      %p193 = pneg %p187
      %p194 = scmp.eq.s32.totalorder %s16, 1
      %p195 = por %p193, %p194
      %p196 = scmp.ne.s32.totalorder %s188, %s191
      %p197 = scmp.eq.s32.totalorder %s16, 0
      %p198 = por %p196, %p197
      %p199 = scmp.ne.s32.totalorder %s188, %s191
      %p200 = scmp.eq.s32.totalorder %s21, 1
      %p201 = por %p199, %p200
      %p202 = scmp.ne.s32.totalorder %s191, %s192
      %p203 = scmp.eq.s32.totalorder %s21, 0
      %p204 = por %p202, %p203
      %p205 = scmp.ne.s32.totalorder %s191, %s192
      %p206 = scmp.eq.s32.totalorder %s22, 1
      %p207 = por %p205, %p206
      %p209 = scmp.ne.s32.totalorder %s192, %s208
      %p210 = scmp.eq.s32.totalorder %s22, 0
      %p211 = por %p209, %p210
      %p212 = scmp.le.s32.totalorder 1, %s16
      %p213 = scmp.lt.s32.totalorder %s16, 3
      %p214 = pnand %p212, %p213
      %p215 = pneg %p214
      // Predicated region
      $region9: #{attention_forward.13} parent=5 // pred_check
        _
      $region10: #{attention_forward.13} parent=5 // pred_check_branch
        %217 = sbr.rel (%p214) target = $region12
      $region11: #{attention_forward.13} parent=5 // pred_region
        %s218 = ssub.s32 %s16, 1
        // Predicated region
        $region13: #{attention_forward.13} parent=11 // pred_check
          %p219 = pneg %p115
        $region14: #{attention_forward.13} parent=11 // pred_check_branch
          %221 = sbr.rel (%p219) target = $region16
        $region15: #{attention_forward.13} parent=11 // pred_region
          _
        $region16: #{attention_forward.13} parent=11 // pred_fallthru
          _
        // Predicated region
        $region17: #{attention_forward.13} parent=11 // pred_check
          %p222 = pneg %p136
        $region18: #{attention_forward.13} parent=11 // pred_check_branch
          %224 = sbr.rel (%p222) target = $region20
        $region19: #{attention_forward.13} parent=11 // pred_region
          _
        $region20: #{attention_forward.13} parent=11 // pred_fallthru
          _
        // Predicated region
        $region21: #{attention_forward.13} parent=11 // pred_check
          %p225 = pneg %p157
        $region22: #{attention_forward.13} parent=11 // pred_check_branch
          %227 = sbr.rel (%p225) target = $region24
        $region23: #{attention_forward.13} parent=11 // pred_region
          _
        $region24: #{attention_forward.13} parent=11 // pred_fallthru
          _
        // Predicated region
        $region25: #{attention_forward.13} parent=11 // pred_check
          %p228 = pneg %p178
        $region26: #{attention_forward.13} parent=11 // pred_check_branch
          %230 = sbr.rel (%p228) target = $region28
        $region27: #{attention_forward.13} parent=11 // pred_region
          _
        $region28: #{attention_forward.13} parent=11 // pred_fallthru
          _
      $region12: #{attention_forward.13} parent=5 // pred_fallthru
        _
      %p231 = scmp.lt.s32.totalorder %s16, 2
      // Predicated region
      $region29: #{attention_forward.13} parent=5 // pred_check
        %p232 = pneg %p231
      $region30: #{attention_forward.13} parent=5 // pred_check_branch
        %234 = sbr.rel (%p232) target = $region32
      $region31: #{attention_forward.13} parent=5 // pred_region
        // Predicated region
        $region33: #{attention_forward.13} parent=31 // pred_check
          %p235 = pneg %p36
        $region34: #{attention_forward.13} parent=31 // pred_check_branch
          %237 = sbr.rel (%p235) target = $region36
        $region35: #{attention_forward.13} parent=31 // pred_region
          %p238 = scmp.lt.s32.totalorder %s16, 1
          %s239 = scalar_select %p238, %s16, 1
          %s240 = smul.addr %s239, 32
          %s241 = smul.addr %s240, 8
          %s242 = scalar_lea.vmem %s0, %s241
        $region36: #{attention_forward.13} parent=31 // pred_fallthru
          _
        // Predicated region
        $region37: #{attention_forward.13} parent=31 // pred_check
          %p243 = pneg %p62
        $region38: #{attention_forward.13} parent=31 // pred_check_branch
          %245 = sbr.rel (%p243) target = $region40
        $region39: #{attention_forward.13} parent=31 // pred_region
          %p246 = scmp.lt.s32.totalorder %s16, 1
          %s247 = scalar_select %p246, %s16, 1
          %s248 = smul.addr %s247, 32
          %s249 = smul.addr %s248, 8
          %s250 = scalar_lea.vmem %s1, %s249
        $region40: #{attention_forward.13} parent=31 // pred_fallthru
          _
        // Predicated region
        $region41: #{attention_forward.13} parent=31 // pred_check
          %p251 = pneg %p88
        $region42: #{attention_forward.13} parent=31 // pred_check_branch
          %253 = sbr.rel (%p251) target = $region44
        $region43: #{attention_forward.13} parent=31 // pred_region
          %p254 = scmp.lt.s32.totalorder %s16, 1
          %s255 = scalar_select %p254, %s16, 1
          %s256 = smul.addr %s255, 32
          %s257 = smul.addr %s256, 8
          %s258 = scalar_lea.vmem %s2, %s257
        $region44: #{attention_forward.13} parent=31 // pred_fallthru
          _
      $region32: #{attention_forward.13} parent=5 // pred_fallthru
        _
      %p259 = scmp.le.s32.totalorder 1, %s16
      %p260 = scmp.lt.s32.totalorder %s16, 3
      %p261 = pnand %p259, %p260
      %p262 = pneg %p261
      // Predicated region
      $region45: #{attention_forward.13} parent=5 // pred_check
        _
      $region46: #{attention_forward.13} parent=5 // pred_check_branch
        %264 = sbr.rel (%p261) target = $region48
      $region47: #{attention_forward.13} parent=5 // pred_region
        %s265 = ssub.s32 %s16, 1
        %p266 = scmp.lt.s32.totalorder %s21, 1
        %s267 = scalar_select %p266, %s21, 1
        %s268 = smul.addr %s267, 32
        %s269 = smul.addr %s268, 8
        %s270 = scalar_lea.vmem %s0, %s269
        %p271 = pneg %p42
        %p272 = pneg %p39
        %p273 = scmp.lt.s32.totalorder %s21, 1
        %s274 = scalar_select %p273, %s21, 1
        %s275 = smul.addr %s274, 32
        %s276 = smul.addr %s275, 8
        %s277 = scalar_lea.vmem %s1, %s276
        %p278 = pneg %p68
        %p279 = pneg %p65
        %p280 = scmp.lt.s32.totalorder %s21, 1
        %s281 = scalar_select %p280, %s21, 1
        %s282 = smul.addr %s281, 32
        %s283 = smul.addr %s282, 8
        %s284 = scalar_lea.vmem %s2, %s283
        %p285 = pneg %p94
        %p286 = pneg %p91
        %p287 = pneg %p115
        %p288 = pneg %p112
        %p289 = pneg %p136
        %p290 = pneg %p133
        %p291 = pneg %p157
        %p292 = pneg %p154
        %p293 = pneg %p178
        %p294 = pneg %p175
        %p295 = pneg %p204
        %p296 = pneg %p201
        %s297 = sand.u32 %s191, 1
        %s298 = scalar_lea.sflag [#allocation3], %s297
        %s299 = sand.u32 %s191, 1
        %s300 = smul.addr %s299, 256
        %s301 = scalar_lea.vmem [#allocation2], %s300
        %p302 = scmp.lt.s32.totalorder %s21, 1
        %s303 = scalar_select %p302, %s21, 1
        %s304 = smul.addr %s303, 32
        %s305 = smul.addr %s304, 8
        %s306 = scalar_lea.vmem %s0, %s305
        %p307 = scmp.lt.s32.totalorder %s21, 1
        %s308 = scalar_select %p307, %s21, 1
        %s309 = smul.addr %s308, 32
        %s310 = smul.addr %s309, 8
        %s311 = scalar_lea.vmem %s1, %s310
        %p312 = scmp.lt.s32.totalorder %s21, 1
        %s313 = scalar_select %p312, %s21, 1
        %s314 = smul.addr %s313, 32
        %s315 = smul.addr %s314, 8
        %s316 = scalar_lea.vmem %s2, %s315
        %v317 = vld [vmem:[%s306] sm:$0xff]
        %v318 = vld [vmem:[%s306 + $0x8] sm:$0xff]
        %v319 = vld [vmem:[%s306 + $0x10] sm:$0xff]
        %v320 = vld [vmem:[%s306 + $0x18] sm:$0xff]
        %v321 = vld [vmem:[%s306 + $0x20] sm:$0xff]
        %v322 = vld [vmem:[%s306 + $0x28] sm:$0xff]
        %v323 = vld [vmem:[%s306 + $0x30] sm:$0xff]
        %v324 = vld [vmem:[%s306 + $0x38] sm:$0xff]
        %v325 = vld [vmem:[%s306 + $0x40] sm:$0xff]
        %v326 = vld [vmem:[%s306 + $0x48] sm:$0xff]
        %v327 = vld [vmem:[%s306 + $0x50] sm:$0xff]
        %v328 = vld [vmem:[%s306 + $0x58] sm:$0xff]
        %v329 = vld [vmem:[%s306 + $0x60] sm:$0xff]
        %v330 = vld [vmem:[%s306 + $0x68] sm:$0xff]
        %v331 = vld [vmem:[%s306 + $0x70] sm:$0xff]
        %v332 = vld [vmem:[%s306 + $0x78] sm:$0xff]
        %v333 = vld [vmem:[%s306 + $0x80] sm:$0xff]
        %v334 = vld [vmem:[%s306 + $0x88] sm:$0xff]
        %v335 = vld [vmem:[%s306 + $0x90] sm:$0xff]
        %v336 = vld [vmem:[%s306 + $0x98] sm:$0xff]
        %v337 = vld [vmem:[%s306 + $0xa0] sm:$0xff]
        %v338 = vld [vmem:[%s306 + $0xa8] sm:$0xff]
        %v339 = vld [vmem:[%s306 + $0xb0] sm:$0xff]
        %v340 = vld [vmem:[%s306 + $0xb8] sm:$0xff]
        %v341 = vld [vmem:[%s306 + $0xc0] sm:$0xff]
        %v342 = vld [vmem:[%s306 + $0xc8] sm:$0xff]
        %v343 = vld [vmem:[%s306 + $0xd0] sm:$0xff]
        %v344 = vld [vmem:[%s306 + $0xd8] sm:$0xff]
        %v345 = vld [vmem:[%s306 + $0xe0] sm:$0xff]
        %v346 = vld [vmem:[%s306 + $0xe8] sm:$0xff]
        %v347 = vld [vmem:[%s306 + $0xf0] sm:$0xff]
        %v348 = vld [vmem:[%s306 + $0xf8] sm:$0xff]
        %v349 = vld [vmem:[%s3] sm:$0xff]
        %v350 = vld [vmem:[%s3 + $0x8] sm:$0xff]
        %v351 = vld [vmem:[%s3 + $0x10] sm:$0xff]
        %v352 = vld [vmem:[%s3 + $0x18] sm:$0xff]
        %v353 = vld [vmem:[%s4] sm:$0x1]
        %v355 = vlaneseq
        %v356 = vshrl.u32 %v355, 7
        %v357 = vsub.s32 0, %v356
        %v358 = vrot.slane %v353, %v357
        %vm360 = vcmask 261120
        %v362 = vsel %vm360, %v317, 0
        %v365 = vsel %vm360, %v318, 0
        %v368 = vsel %vm360, %v319, 0
        %v371 = vsel %vm360, %v320, 0
        %v374 = vsel %vm360, %v321, 0
        %v377 = vsel %vm360, %v322, 0
        %v380 = vsel %vm360, %v323, 0
        %v383 = vsel %vm360, %v324, 0
        %v386 = vsel %vm360, %v325, 0
        %v389 = vsel %vm360, %v326, 0
        %v392 = vsel %vm360, %v327, 0
        %v395 = vsel %vm360, %v328, 0
        %v398 = vsel %vm360, %v329, 0
        %v401 = vsel %vm360, %v330, 0
        %v404 = vsel %vm360, %v331, 0
        %v407 = vsel %vm360, %v332, 0
        %v410 = vsel %vm360, %v333, 0
        %v413 = vsel %vm360, %v334, 0
        %v416 = vsel %vm360, %v335, 0
        %v419 = vsel %vm360, %v336, 0
        %v422 = vsel %vm360, %v337, 0
        %v425 = vsel %vm360, %v338, 0
        %v428 = vsel %vm360, %v339, 0
        %v431 = vsel %vm360, %v340, 0
        %v434 = vsel %vm360, %v341, 0
        %v437 = vsel %vm360, %v342, 0
        %v440 = vsel %vm360, %v343, 0
        %v443 = vsel %vm360, %v344, 0
        %v446 = vsel %vm360, %v345, 0
        %v449 = vsel %vm360, %v346, 0
        %v452 = vsel %vm360, %v347, 0
        %v455 = vsel %vm360, %v348, 0
        %457 = vmatprep.subr.mxu0 0.0
        %458 = vmatpush1.msra.mxu0 %v349
        %459 = vmatprep.subr.mxu0 0.0
        %460 = vmatpush1.msra.mxu0 %v350
        %461 = vmatprep.subr.mxu0 0.0
        %462 = vmatpush1.msra.mxu0 %v351
        %463 = vmatprep.subr.mxu0 0.0
        %464 = vmatpush1.msra.mxu0 %v352
        %465 = vmatprep.subr.mxu0 0.0
        %466 = vmatpush1.msra.mxu0 0.0
        %467 = vmatprep.subr.mxu0 0.0
        %468 = vmatpush1.msra.mxu0 0.0
        %469 = vmatprep.subr.mxu0 0.0
        %470 = vmatpush1.msra.mxu0 0.0
        %471 = vmatprep.subr.mxu0 0.0
        %472 = vmatpush1.msra.mxu0 0.0
        %473 = vmatprep.subr.mxu0 0.0
        %474 = vmatpush1.msra.mxu0 0.0
        %475 = vmatprep.subr.mxu0 0.0
        %476 = vmatpush1.msra.mxu0 0.0
        %477 = vmatprep.subr.mxu0 0.0
        %478 = vmatpush1.msra.mxu0 0.0
        %479 = vmatprep.subr.mxu0 0.0
        %480 = vmatpush1.msra.mxu0 0.0
        %481 = vmatprep.subr.mxu0 0.0
        %482 = vmatpush1.msra.mxu0 0.0
        %483 = vmatprep.subr.mxu0 0.0
        %484 = vmatpush1.msra.mxu0 0.0
        %485 = vmatprep.subr.mxu0 0.0
        %486 = vmatpush1.msra.mxu0 0.0
        %487 = vmatprep.subr.mxu0 0.0
        %488 = vmatpush1.msra.mxu0 0.0
        %489 = vmatprep.subr.mxu0 0.0
        %490 = vmatpush1.msra.mxu0 0.0
        %491 = vmatprep.subr.mxu0 0.0
        %492 = vmatpush1.msra.mxu0 0.0
        %493 = vmatprep.subr.mxu0 0.0
        %494 = vmatpush1.msra.mxu0 0.0
        %495 = vmatprep.subr.mxu0 0.0
        %496 = vmatpush1.msra.mxu0 0.0
        %497 = vmatprep.subr.mxu0 0.0
        %498 = vmatpush1.msra.mxu0 0.0
        %499 = vmatprep.subr.mxu0 0.0
        %500 = vmatpush1.msra.mxu0 0.0
        %501 = vmatprep.subr.mxu0 0.0
        %502 = vmatpush1.msra.mxu0 0.0
        %503 = vmatprep.subr.mxu0 0.0
        %504 = vmatpush1.msra.mxu0 0.0
        %505 = vmatprep.subr.mxu0 0.0
        %506 = vmatpush1.msra.mxu0 0.0
        %507 = vmatprep.subr.mxu0 0.0
        %508 = vmatpush1.msra.mxu0 0.0
        %509 = vmatprep.subr.mxu0 0.0
        %510 = vmatpush1.msra.mxu0 0.0
        %511 = vmatprep.subr.mxu0 0.0
        %512 = vmatpush1.msra.mxu0 0.0
        %513 = vmatprep.subr.mxu0 0.0
        %514 = vmatpush1.msra.mxu0 0.0
        %515 = vmatprep.subr.mxu0 0.0
        %516 = vmatpush1.msra.mxu0 0.0
        %517 = vmatprep.subr.mxu0 0.0
        %518 = vmatpush1.msra.mxu0 0.0
        %519 = vmatprep.subr.mxu0 0.0
        %520 = vmatpush1.msra.mxu0 0.0
        %521 = vmatprep.mubr.f32.mxu0 0.0
        %522 = vmatmul.mubr.f32.gmra.mrb[0].mxu0 %v362
        %v523 = vpop.f32.mrb[0].mxu0
        %v524 = vadd.f32 %v358, %v523
        %v525 = vpop.f32.mrb[0].mxu0
        %526 = vmatprep.mubr.f32.mxu0 0.0
        %527 = vmatmul.mubr.f32.gmra.mrb[0].mxu0 %v365
        %v528 = vpop.f32.mrb[0].mxu0
        %v529 = vadd.f32 %v358, %v528
        %v530 = vpop.f32.mrb[0].mxu0
        %531 = vmatprep.mubr.f32.mxu0 0.0
        %532 = vmatmul.mubr.f32.gmra.mrb[0].mxu0 %v368
        %v533 = vpop.f32.mrb[0].mxu0
        %v534 = vadd.f32 %v358, %v533
        %v535 = vpop.f32.mrb[0].mxu0
        %536 = vmatprep.mubr.f32.mxu0 0.0
        %537 = vmatmul.mubr.f32.gmra.mrb[0].mxu0 %v371
        %v538 = vpop.f32.mrb[0].mxu0
        %v539 = vadd.f32 %v358, %v538
        %v540 = vpop.f32.mrb[0].mxu0
        %541 = vmatprep.mubr.f32.mxu0 0.0
        %542 = vmatmul.mubr.f32.gmra.mrb[0].mxu0 %v374
        %v543 = vpop.f32.mrb[0].mxu0
        %v544 = vadd.f32 %v358, %v543
        %v545 = vpop.f32.mrb[0].mxu0
        %546 = vmatprep.mubr.f32.mxu0 0.0
        %547 = vmatmul.mubr.f32.gmra.mrb[0].mxu0 %v377
        %v548 = vpop.f32.mrb[0].mxu0
        %v549 = vadd.f32 %v358, %v548
        %v550 = vpop.f32.mrb[0].mxu0
        %551 = vmatprep.mubr.f32.mxu0 0.0
        %552 = vmatmul.mubr.f32.gmra.mrb[0].mxu0 %v380
        %v553 = vpop.f32.mrb[0].mxu0
        %v554 = vadd.f32 %v358, %v553
        %v555 = vpop.f32.mrb[0].mxu0
        %556 = vmatprep.mubr.f32.mxu0 0.0
        %557 = vmatmul.mubr.f32.gmra.mrb[0].mxu0 %v383
        %v558 = vpop.f32.mrb[0].mxu0
        %v559 = vadd.f32 %v358, %v558
        %v560 = vpop.f32.mrb[0].mxu0
        %561 = vmatprep.mubr.f32.mxu0 0.0
        %562 = vmatmul.mubr.f32.gmra.mrb[0].mxu0 %v386
        %v563 = vpop.f32.mrb[0].mxu0
        %v564 = vadd.f32 %v358, %v563
        %v565 = vpop.f32.mrb[0].mxu0
        %566 = vmatprep.mubr.f32.mxu0 0.0
        %567 = vmatmul.mubr.f32.gmra.mrb[0].mxu0 %v389
        %v568 = vpop.f32.mrb[0].mxu0
        %v569 = vadd.f32 %v358, %v568
        %v570 = vpop.f32.mrb[0].mxu0
        %571 = vmatprep.mubr.f32.mxu0 0.0
        %572 = vmatmul.mubr.f32.gmra.mrb[0].mxu0 %v392
        %v573 = vpop.f32.mrb[0].mxu0
        %v574 = vadd.f32 %v358, %v573
        %v575 = vpop.f32.mrb[0].mxu0
        %576 = vmatprep.mubr.f32.mxu0 0.0
        %577 = vmatmul.mubr.f32.gmra.mrb[0].mxu0 %v395
        %v578 = vpop.f32.mrb[0].mxu0
        %v579 = vadd.f32 %v358, %v578
        %v580 = vpop.f32.mrb[0].mxu0
        %581 = vmatprep.mubr.f32.mxu0 0.0
        %582 = vmatmul.mubr.f32.gmra.mrb[0].mxu0 %v398
        %v583 = vpop.f32.mrb[0].mxu0
        %v584 = vadd.f32 %v358, %v583
        %v585 = vpop.f32.mrb[0].mxu0
        %586 = vmatprep.mubr.f32.mxu0 0.0
        %587 = vmatmul.mubr.f32.gmra.mrb[0].mxu0 %v401
        %v588 = vpop.f32.mrb[0].mxu0
        %v589 = vadd.f32 %v358, %v588
        %v590 = vpop.f32.mrb[0].mxu0
        %591 = vmatprep.mubr.f32.mxu0 0.0
        %592 = vmatmul.mubr.f32.gmra.mrb[0].mxu0 %v404
        %v593 = vpop.f32.mrb[0].mxu0
        %v594 = vadd.f32 %v358, %v593
        %v595 = vpop.f32.mrb[0].mxu0
        %596 = vmatprep.mubr.f32.mxu0 0.0
        %597 = vmatmul.mubr.f32.gmra.mrb[0].mxu0 %v407
        %v598 = vpop.f32.mrb[0].mxu0
        %v599 = vadd.f32 %v358, %v598
        %v600 = vpop.f32.mrb[0].mxu0
        %601 = vmatprep.mubr.f32.mxu0 0.0
        %602 = vmatmul.mubr.f32.gmra.mrb[0].mxu0 %v410
        %v603 = vpop.f32.mrb[0].mxu0
        %v604 = vadd.f32 %v358, %v603
        %v605 = vpop.f32.mrb[0].mxu0
        %606 = vmatprep.mubr.f32.mxu0 0.0
        %607 = vmatmul.mubr.f32.gmra.mrb[0].mxu0 %v413
        %v608 = vpop.f32.mrb[0].mxu0
        %v609 = vadd.f32 %v358, %v608
        %v610 = vpop.f32.mrb[0].mxu0
        %611 = vmatprep.mubr.f32.mxu0 0.0
        %612 = vmatmul.mubr.f32.gmra.mrb[0].mxu0 %v416
        %v613 = vpop.f32.mrb[0].mxu0
        %v614 = vadd.f32 %v358, %v613
        %v615 = vpop.f32.mrb[0].mxu0
        %616 = vmatprep.mubr.f32.mxu0 0.0
        %617 = vmatmul.mubr.f32.gmra.mrb[0].mxu0 %v419
        %v618 = vpop.f32.mrb[0].mxu0
        %v619 = vadd.f32 %v358, %v618
        %v620 = vpop.f32.mrb[0].mxu0
        %621 = vmatprep.mubr.f32.mxu0 0.0
        %622 = vmatmul.mubr.f32.gmra.mrb[0].mxu0 %v422
        %v623 = vpop.f32.mrb[0].mxu0
        %v624 = vadd.f32 %v358, %v623
        %v625 = vpop.f32.mrb[0].mxu0
        %626 = vmatprep.mubr.f32.mxu0 0.0
        %627 = vmatmul.mubr.f32.gmra.mrb[0].mxu0 %v425
        %v628 = vpop.f32.mrb[0].mxu0
        %v629 = vadd.f32 %v358, %v628
        %v630 = vpop.f32.mrb[0].mxu0
        %631 = vmatprep.mubr.f32.mxu0 0.0
        %632 = vmatmul.mubr.f32.gmra.mrb[0].mxu0 %v428
        %v633 = vpop.f32.mrb[0].mxu0
        %v634 = vadd.f32 %v358, %v633
        %v635 = vpop.f32.mrb[0].mxu0
        %636 = vmatprep.mubr.f32.mxu0 0.0
        %637 = vmatmul.mubr.f32.gmra.mrb[0].mxu0 %v431
        %v638 = vpop.f32.mrb[0].mxu0
        %v639 = vadd.f32 %v358, %v638
        %v640 = vpop.f32.mrb[0].mxu0
        %641 = vmatprep.mubr.f32.mxu0 0.0
        %642 = vmatmul.mubr.f32.gmra.mrb[0].mxu0 %v434
        %v643 = vpop.f32.mrb[0].mxu0
        %v644 = vadd.f32 %v358, %v643
        %v645 = vpop.f32.mrb[0].mxu0
        %646 = vmatprep.mubr.f32.mxu0 0.0
        %647 = vmatmul.mubr.f32.gmra.mrb[0].mxu0 %v437
        %v648 = vpop.f32.mrb[0].mxu0
        %v649 = vadd.f32 %v358, %v648
        %v650 = vpop.f32.mrb[0].mxu0
        %651 = vmatprep.mubr.f32.mxu0 0.0
        %652 = vmatmul.mubr.f32.gmra.mrb[0].mxu0 %v440
        %v653 = vpop.f32.mrb[0].mxu0
        %v654 = vadd.f32 %v358, %v653
        %v655 = vpop.f32.mrb[0].mxu0
        %656 = vmatprep.mubr.f32.mxu0 0.0
        %657 = vmatmul.mubr.f32.gmra.mrb[0].mxu0 %v443
        %v658 = vpop.f32.mrb[0].mxu0
        %v659 = vadd.f32 %v358, %v658
        %v660 = vpop.f32.mrb[0].mxu0
        %661 = vmatprep.mubr.f32.mxu0 0.0
        %662 = vmatmul.mubr.f32.gmra.mrb[0].mxu0 %v446
        %v663 = vpop.f32.mrb[0].mxu0
        %v664 = vadd.f32 %v358, %v663
        %v665 = vpop.f32.mrb[0].mxu0
        %666 = vmatprep.mubr.f32.mxu0 0.0
        %667 = vmatmul.mubr.f32.gmra.mrb[0].mxu0 %v449
        %v668 = vpop.f32.mrb[0].mxu0
        %v669 = vadd.f32 %v358, %v668
        %v670 = vpop.f32.mrb[0].mxu0
        %671 = vmatprep.mubr.f32.mxu0 0.0
        %672 = vmatmul.mubr.f32.gmra.mrb[0].mxu0 %v452
        %v673 = vpop.f32.mrb[0].mxu0
        %v674 = vadd.f32 %v358, %v673
        %v675 = vpop.f32.mrb[0].mxu0
        %676 = vmatprep.mubr.f32.mxu0 0.0
        %677 = vmatmul.mubr.f32.gmra.mrb[0].mxu0 %v455
        %v678 = vpop.f32.mrb[0].mxu0
        %v679 = vadd.f32 %v358, %v678
        %v680 = vpop.f32.mrb[0].mxu0
        %681 = vdwg.mxu0
        %v682 = vsel %vm360, %v524, 0.0
        %v683 = vsel %vm360, %v529, 0.0
        %v684 = vadd.f32 %v682, %v683
        %v685 = vsel %vm360, %v534, 0.0
        %v686 = vadd.f32 %v684, %v685
        %v687 = vsel %vm360, %v539, 0.0
        %v688 = vadd.f32 %v686, %v687
        %v689 = vsel %vm360, %v544, 0.0
        %v690 = vadd.f32 %v688, %v689
        %v691 = vsel %vm360, %v549, 0.0
        %v692 = vadd.f32 %v690, %v691
        %v693 = vsel %vm360, %v554, 0.0
        %v694 = vadd.f32 %v692, %v693
        %v695 = vsel %vm360, %v559, 0.0
        %v696 = vadd.f32 %v694, %v695
        %v697 = vsel %vm360, %v564, 0.0
        %v698 = vadd.f32 %v696, %v697
        %v699 = vsel %vm360, %v569, 0.0
        %v700 = vadd.f32 %v698, %v699
        %v701 = vsel %vm360, %v574, 0.0
        %v702 = vadd.f32 %v700, %v701
        %v703 = vsel %vm360, %v579, 0.0
        %v704 = vadd.f32 %v702, %v703
        %v705 = vsel %vm360, %v584, 0.0
        %v706 = vadd.f32 %v704, %v705
        %v707 = vsel %vm360, %v589, 0.0
        %v708 = vadd.f32 %v706, %v707
        %v709 = vsel %vm360, %v594, 0.0
        %v710 = vadd.f32 %v708, %v709
        %v711 = vsel %vm360, %v599, 0.0
        %v712 = vadd.f32 %v710, %v711
        %v713 = vsel %vm360, %v604, 0.0
        %v714 = vadd.f32 %v712, %v713
        %v715 = vsel %vm360, %v609, 0.0
        %v716 = vadd.f32 %v714, %v715
        %v717 = vsel %vm360, %v614, 0.0
        %v718 = vadd.f32 %v716, %v717
        %v719 = vsel %vm360, %v619, 0.0
        %v720 = vadd.f32 %v718, %v719
        %v721 = vsel %vm360, %v624, 0.0
        %v722 = vadd.f32 %v720, %v721
        %v723 = vsel %vm360, %v629, 0.0
        %v724 = vadd.f32 %v722, %v723
        %v725 = vsel %vm360, %v634, 0.0
        %v726 = vadd.f32 %v724, %v725
        %v727 = vsel %vm360, %v639, 0.0
        %v728 = vadd.f32 %v726, %v727
        %v729 = vsel %vm360, %v644, 0.0
        %v730 = vadd.f32 %v728, %v729
        %v731 = vsel %vm360, %v649, 0.0
        %v732 = vadd.f32 %v730, %v731
        %v733 = vsel %vm360, %v654, 0.0
        %v734 = vadd.f32 %v732, %v733
        %v735 = vsel %vm360, %v659, 0.0
        %v736 = vadd.f32 %v734, %v735
        %v737 = vsel %vm360, %v664, 0.0
        %v738 = vadd.f32 %v736, %v737
        %v739 = vsel %vm360, %v669, 0.0
        %v740 = vadd.f32 %v738, %v739
        %v741 = vsel %vm360, %v674, 0.0
        %v742 = vadd.f32 %v740, %v741
        %v743 = vsel %vm360, %v679, 0.0
        %v744 = vadd.f32 %v742, %v743
        %v745 = vrot.slane %v744, 4
        %v746 = vadd.f32 %v744, %v745
        %v747 = vrot.slane %v746, 2
        %v748 = vadd.f32 %v746, %v747
        %v749 = vrot.slane %v748, 1
        %v750 = vadd.f32 %v748, %v749
        %v751 = vrcp.pop 256.0
        %v752 = vmul.f32 %v750, %v751
        %v753 = vsub.f32 %v524, %v752
        %v754 = vsub.f32 %v529, %v752
        %v755 = vsub.f32 %v534, %v752
        %v756 = vsub.f32 %v539, %v752
        %v757 = vsub.f32 %v544, %v752
        %v758 = vsub.f32 %v549, %v752
        %v759 = vsub.f32 %v554, %v752
        %v760 = vsub.f32 %v559, %v752
        %v761 = vsub.f32 %v564, %v752
        %v762 = vsub.f32 %v569, %v752
        %v763 = vsub.f32 %v574, %v752
        %v764 = vsub.f32 %v579, %v752
        %v765 = vsub.f32 %v584, %v752
        %v766 = vsub.f32 %v589, %v752
        %v767 = vsub.f32 %v594, %v752
        %v768 = vsub.f32 %v599, %v752
        %v769 = vsub.f32 %v604, %v752
        %v770 = vsub.f32 %v609, %v752
        %v771 = vsub.f32 %v614, %v752
        %v772 = vsub.f32 %v619, %v752
        %v773 = vsub.f32 %v624, %v752
        %v774 = vsub.f32 %v629, %v752
        %v775 = vsub.f32 %v634, %v752
        %v776 = vsub.f32 %v639, %v752
        %v777 = vsub.f32 %v644, %v752
        %v778 = vsub.f32 %v649, %v752
        %v779 = vsub.f32 %v654, %v752
        %v780 = vsub.f32 %v659, %v752
        %v781 = vsub.f32 %v664, %v752
        %v782 = vsub.f32 %v669, %v752
        %v783 = vsub.f32 %v674, %v752
        %v784 = vsub.f32 %v679, %v752
        %v785 = vld [vmem:[%s311] sm:$0xff]
        %v786 = vld [vmem:[%s311 + $0x8] sm:$0xff]
        %v787 = vld [vmem:[%s311 + $0x10] sm:$0xff]
        %v788 = vld [vmem:[%s311 + $0x18] sm:$0xff]
        %v789 = vld [vmem:[%s311 + $0x20] sm:$0xff]
        %v790 = vld [vmem:[%s311 + $0x28] sm:$0xff]
        %v791 = vld [vmem:[%s311 + $0x30] sm:$0xff]
        %v792 = vld [vmem:[%s311 + $0x38] sm:$0xff]
        %v793 = vld [vmem:[%s311 + $0x40] sm:$0xff]
        %v794 = vld [vmem:[%s311 + $0x48] sm:$0xff]
        %v795 = vld [vmem:[%s311 + $0x50] sm:$0xff]
        %v796 = vld [vmem:[%s311 + $0x58] sm:$0xff]
        %v797 = vld [vmem:[%s311 + $0x60] sm:$0xff]
        %v798 = vld [vmem:[%s311 + $0x68] sm:$0xff]
        %v799 = vld [vmem:[%s311 + $0x70] sm:$0xff]
        %v800 = vld [vmem:[%s311 + $0x78] sm:$0xff]
        %v801 = vld [vmem:[%s311 + $0x80] sm:$0xff]
        %v802 = vld [vmem:[%s311 + $0x88] sm:$0xff]
        %v803 = vld [vmem:[%s311 + $0x90] sm:$0xff]
        %v804 = vld [vmem:[%s311 + $0x98] sm:$0xff]
        %v805 = vld [vmem:[%s311 + $0xa0] sm:$0xff]
        %v806 = vld [vmem:[%s311 + $0xa8] sm:$0xff]
        %v807 = vld [vmem:[%s311 + $0xb0] sm:$0xff]
        %v808 = vld [vmem:[%s311 + $0xb8] sm:$0xff]
        %v809 = vld [vmem:[%s311 + $0xc0] sm:$0xff]
        %v810 = vld [vmem:[%s311 + $0xc8] sm:$0xff]
        %v811 = vld [vmem:[%s311 + $0xd0] sm:$0xff]
        %v812 = vld [vmem:[%s311 + $0xd8] sm:$0xff]
        %v813 = vld [vmem:[%s311 + $0xe0] sm:$0xff]
        %v814 = vld [vmem:[%s311 + $0xe8] sm:$0xff]
        %v815 = vld [vmem:[%s311 + $0xf0] sm:$0xff]
        %v816 = vld [vmem:[%s311 + $0xf8] sm:$0xff]
        %v817 = vld [vmem:[%s5] sm:$0xff]
        %v818 = vld [vmem:[%s5 + $0x8] sm:$0xff]
        %v819 = vld [vmem:[%s5 + $0x10] sm:$0xff]
        %v820 = vld [vmem:[%s5 + $0x18] sm:$0xff]
        %v821 = vld [vmem:[%s6] sm:$0x1]
        %v823 = vlaneseq
        %v824 = vshrl.u32 %v823, 7
        %v825 = vsub.s32 0, %v824
        %v826 = vrot.slane %v821, %v825
        %v829 = vsel %vm360, %v785, 0
        %v832 = vsel %vm360, %v786, 0
        %v835 = vsel %vm360, %v787, 0
        %v838 = vsel %vm360, %v788, 0
        %v841 = vsel %vm360, %v789, 0
        %v844 = vsel %vm360, %v790, 0
        %v847 = vsel %vm360, %v791, 0
        %v850 = vsel %vm360, %v792, 0
        %v853 = vsel %vm360, %v793, 0
        %v856 = vsel %vm360, %v794, 0
        %v859 = vsel %vm360, %v795, 0
        %v862 = vsel %vm360, %v796, 0
        %v865 = vsel %vm360, %v797, 0
        %v868 = vsel %vm360, %v798, 0
        %v871 = vsel %vm360, %v799, 0
        %v874 = vsel %vm360, %v800, 0
        %v877 = vsel %vm360, %v801, 0
        %v880 = vsel %vm360, %v802, 0
        %v883 = vsel %vm360, %v803, 0
        %v886 = vsel %vm360, %v804, 0
        %v889 = vsel %vm360, %v805, 0
        %v892 = vsel %vm360, %v806, 0
        %v895 = vsel %vm360, %v807, 0
        %v898 = vsel %vm360, %v808, 0
        %v901 = vsel %vm360, %v809, 0
        %v904 = vsel %vm360, %v810, 0
        %v907 = vsel %vm360, %v811, 0
        %v910 = vsel %vm360, %v812, 0
        %v913 = vsel %vm360, %v813, 0
        %v916 = vsel %vm360, %v814, 0
        %v919 = vsel %vm360, %v815, 0
        %v922 = vsel %vm360, %v816, 0
        %924 = vmatprep.subr.mxu0 0.0
        %925 = vmatpush1.msra.mxu0 %v817
        %926 = vmatprep.subr.mxu0 0.0
        %927 = vmatpush1.msra.mxu0 %v818
        %928 = vmatprep.subr.mxu0 0.0
        %929 = vmatpush1.msra.mxu0 %v819
        %930 = vmatprep.subr.mxu0 0.0
        %931 = vmatpush1.msra.mxu0 %v820
        %932 = vmatprep.subr.mxu0 0.0
        %933 = vmatpush1.msra.mxu0 0.0
        %934 = vmatprep.subr.mxu0 0.0
        %935 = vmatpush1.msra.mxu0 0.0
        %936 = vmatprep.subr.mxu0 0.0
        %937 = vmatpush1.msra.mxu0 0.0
        %938 = vmatprep.subr.mxu0 0.0
        %939 = vmatpush1.msra.mxu0 0.0
        %940 = vmatprep.subr.mxu0 0.0
        %941 = vmatpush1.msra.mxu0 0.0
        %942 = vmatprep.subr.mxu0 0.0
        %943 = vmatpush1.msra.mxu0 0.0
        %944 = vmatprep.subr.mxu0 0.0
        %945 = vmatpush1.msra.mxu0 0.0
        %946 = vmatprep.subr.mxu0 0.0
        %947 = vmatpush1.msra.mxu0 0.0
        %948 = vmatprep.subr.mxu0 0.0
        %949 = vmatpush1.msra.mxu0 0.0
        %950 = vmatprep.subr.mxu0 0.0
        %951 = vmatpush1.msra.mxu0 0.0
        %952 = vmatprep.subr.mxu0 0.0
        %953 = vmatpush1.msra.mxu0 0.0
        %954 = vmatprep.subr.mxu0 0.0
        %955 = vmatpush1.msra.mxu0 0.0
        %956 = vmatprep.subr.mxu0 0.0
        %957 = vmatpush1.msra.mxu0 0.0
        %958 = vmatprep.subr.mxu0 0.0
        %959 = vmatpush1.msra.mxu0 0.0
        %960 = vmatprep.subr.mxu0 0.0
        %961 = vmatpush1.msra.mxu0 0.0
        %962 = vmatprep.subr.mxu0 0.0
        %963 = vmatpush1.msra.mxu0 0.0
        %964 = vmatprep.subr.mxu0 0.0
        %965 = vmatpush1.msra.mxu0 0.0
        %966 = vmatprep.subr.mxu0 0.0
        %967 = vmatpush1.msra.mxu0 0.0
        %968 = vmatprep.subr.mxu0 0.0
        %969 = vmatpush1.msra.mxu0 0.0
        %970 = vmatprep.subr.mxu0 0.0
        %971 = vmatpush1.msra.mxu0 0.0
        %972 = vmatprep.subr.mxu0 0.0
        %973 = vmatpush1.msra.mxu0 0.0
        %974 = vmatprep.subr.mxu0 0.0
        %975 = vmatpush1.msra.mxu0 0.0
        %976 = vmatprep.subr.mxu0 0.0
        %977 = vmatpush1.msra.mxu0 0.0
        %978 = vmatprep.subr.mxu0 0.0
        %979 = vmatpush1.msra.mxu0 0.0
        %980 = vmatprep.subr.mxu0 0.0
        %981 = vmatpush1.msra.mxu0 0.0
        %982 = vmatprep.subr.mxu0 0.0
        %983 = vmatpush1.msra.mxu0 0.0
        %984 = vmatprep.subr.mxu0 0.0
        %985 = vmatpush1.msra.mxu0 0.0
        %986 = vmatprep.subr.mxu0 0.0
        %987 = vmatpush1.msra.mxu0 0.0
        %988 = vmatprep.mubr.f32.mxu0 0.0
        %989 = vmatmul.mubr.f32.gmra.mrb[0].mxu0 %v829
        %v990 = vpop.f32.mrb[0].mxu0
        %v991 = vadd.f32 %v826, %v990
        %v992 = vpop.f32.mrb[0].mxu0
        %993 = vmatprep.mubr.f32.mxu0 0.0
        %994 = vmatmul.mubr.f32.gmra.mrb[0].mxu0 %v832
        %v995 = vpop.f32.mrb[0].mxu0
        %v996 = vadd.f32 %v826, %v995
        %v997 = vpop.f32.mrb[0].mxu0
        %998 = vmatprep.mubr.f32.mxu0 0.0
        %999 = vmatmul.mubr.f32.gmra.mrb[0].mxu0 %v835
        %v1000 = vpop.f32.mrb[0].mxu0
        %v1001 = vadd.f32 %v826, %v1000
        %v1002 = vpop.f32.mrb[0].mxu0
        %1003 = vmatprep.mubr.f32.mxu0 0.0
        %1004 = vmatmul.mubr.f32.gmra.mrb[0].mxu0 %v838
        %v1005 = vpop.f32.mrb[0].mxu0
        %v1006 = vadd.f32 %v826, %v1005
        %v1007 = vpop.f32.mrb[0].mxu0
        %1008 = vmatprep.mubr.f32.mxu0 0.0
        %1009 = vmatmul.mubr.f32.gmra.mrb[0].mxu0 %v841
        %v1010 = vpop.f32.mrb[0].mxu0
        %v1011 = vadd.f32 %v826, %v1010
        %v1012 = vpop.f32.mrb[0].mxu0
        %1013 = vmatprep.mubr.f32.mxu0 0.0
        %1014 = vmatmul.mubr.f32.gmra.mrb[0].mxu0 %v844
        %v1015 = vpop.f32.mrb[0].mxu0
        %v1016 = vadd.f32 %v826, %v1015
        %v1017 = vpop.f32.mrb[0].mxu0
        %1018 = vmatprep.mubr.f32.mxu0 0.0
        %1019 = vmatmul.mubr.f32.gmra.mrb[0].mxu0 %v847
        %v1020 = vpop.f32.mrb[0].mxu0
        %v1021 = vadd.f32 %v826, %v1020
        %v1022 = vpop.f32.mrb[0].mxu0
        %1023 = vmatprep.mubr.f32.mxu0 0.0
        %1024 = vmatmul.mubr.f32.gmra.mrb[0].mxu0 %v850
        %v1025 = vpop.f32.mrb[0].mxu0
        %v1026 = vadd.f32 %v826, %v1025
        %v1027 = vpop.f32.mrb[0].mxu0
        %1028 = vmatprep.mubr.f32.mxu0 0.0
        %1029 = vmatmul.mubr.f32.gmra.mrb[0].mxu0 %v853
        %v1030 = vpop.f32.mrb[0].mxu0
        %v1031 = vadd.f32 %v826, %v1030
        %v1032 = vpop.f32.mrb[0].mxu0
        %1033 = vmatprep.mubr.f32.mxu0 0.0
        %1034 = vmatmul.mubr.f32.gmra.mrb[0].mxu0 %v856
        %v1035 = vpop.f32.mrb[0].mxu0
        %v1036 = vadd.f32 %v826, %v1035
        %v1037 = vpop.f32.mrb[0].mxu0
        %1038 = vmatprep.mubr.f32.mxu0 0.0
        %1039 = vmatmul.mubr.f32.gmra.mrb[0].mxu0 %v859
        %v1040 = vpop.f32.mrb[0].mxu0
        %v1041 = vadd.f32 %v826, %v1040
        %v1042 = vpop.f32.mrb[0].mxu0
        %1043 = vmatprep.mubr.f32.mxu0 0.0
        %1044 = vmatmul.mubr.f32.gmra.mrb[0].mxu0 %v862
        %v1045 = vpop.f32.mrb[0].mxu0
        %v1046 = vadd.f32 %v826, %v1045
        %v1047 = vpop.f32.mrb[0].mxu0
        %1048 = vmatprep.mubr.f32.mxu0 0.0
        %1049 = vmatmul.mubr.f32.gmra.mrb[0].mxu0 %v865
        %v1050 = vpop.f32.mrb[0].mxu0
        %v1051 = vadd.f32 %v826, %v1050
        %v1052 = vpop.f32.mrb[0].mxu0
        %1053 = vmatprep.mubr.f32.mxu0 0.0
        %1054 = vmatmul.mubr.f32.gmra.mrb[0].mxu0 %v868
        %v1055 = vpop.f32.mrb[0].mxu0
        %v1056 = vadd.f32 %v826, %v1055
        %v1057 = vpop.f32.mrb[0].mxu0
        %1058 = vmatprep.mubr.f32.mxu0 0.0
        %1059 = vmatmul.mubr.f32.gmra.mrb[0].mxu0 %v871
        %v1060 = vpop.f32.mrb[0].mxu0
        %v1061 = vadd.f32 %v826, %v1060
        %v1062 = vpop.f32.mrb[0].mxu0
        %1063 = vmatprep.mubr.f32.mxu0 0.0
        %1064 = vmatmul.mubr.f32.gmra.mrb[0].mxu0 %v874
        %v1065 = vpop.f32.mrb[0].mxu0
        %v1066 = vadd.f32 %v826, %v1065
        %v1067 = vpop.f32.mrb[0].mxu0
        %1068 = vmatprep.mubr.f32.mxu0 0.0
        %1069 = vmatmul.mubr.f32.gmra.mrb[0].mxu0 %v877
        %v1070 = vpop.f32.mrb[0].mxu0
        %v1071 = vadd.f32 %v826, %v1070
        %v1072 = vpop.f32.mrb[0].mxu0
        %1073 = vmatprep.mubr.f32.mxu0 0.0
        %1074 = vmatmul.mubr.f32.gmra.mrb[0].mxu0 %v880
        %v1075 = vpop.f32.mrb[0].mxu0
        %v1076 = vadd.f32 %v826, %v1075
        %v1077 = vpop.f32.mrb[0].mxu0
        %1078 = vmatprep.mubr.f32.mxu0 0.0
        %1079 = vmatmul.mubr.f32.gmra.mrb[0].mxu0 %v883
        %v1080 = vpop.f32.mrb[0].mxu0
        %v1081 = vadd.f32 %v826, %v1080
        %v1082 = vpop.f32.mrb[0].mxu0
        %1083 = vmatprep.mubr.f32.mxu0 0.0
        %1084 = vmatmul.mubr.f32.gmra.mrb[0].mxu0 %v886
        %v1085 = vpop.f32.mrb[0].mxu0
        %v1086 = vadd.f32 %v826, %v1085
        %v1087 = vpop.f32.mrb[0].mxu0
        %1088 = vmatprep.mubr.f32.mxu0 0.0
        %1089 = vmatmul.mubr.f32.gmra.mrb[0].mxu0 %v889
        %v1090 = vpop.f32.mrb[0].mxu0
        %v1091 = vadd.f32 %v826, %v1090
        %v1092 = vpop.f32.mrb[0].mxu0
        %1093 = vmatprep.mubr.f32.mxu0 0.0
        %1094 = vmatmul.mubr.f32.gmra.mrb[0].mxu0 %v892
        %v1095 = vpop.f32.mrb[0].mxu0
        %v1096 = vadd.f32 %v826, %v1095
        %v1097 = vpop.f32.mrb[0].mxu0
        %1098 = vmatprep.mubr.f32.mxu0 0.0
        %1099 = vmatmul.mubr.f32.gmra.mrb[0].mxu0 %v895
        %v1100 = vpop.f32.mrb[0].mxu0
        %v1101 = vadd.f32 %v826, %v1100
        %v1102 = vpop.f32.mrb[0].mxu0
        %1103 = vmatprep.mubr.f32.mxu0 0.0
        %1104 = vmatmul.mubr.f32.gmra.mrb[0].mxu0 %v898
        %v1105 = vpop.f32.mrb[0].mxu0
        %v1106 = vadd.f32 %v826, %v1105
        %v1107 = vpop.f32.mrb[0].mxu0
        %1108 = vmatprep.mubr.f32.mxu0 0.0
        %1109 = vmatmul.mubr.f32.gmra.mrb[0].mxu0 %v901
        %v1110 = vpop.f32.mrb[0].mxu0
        %v1111 = vadd.f32 %v826, %v1110
        %v1112 = vpop.f32.mrb[0].mxu0
        %1113 = vmatprep.mubr.f32.mxu0 0.0
        %1114 = vmatmul.mubr.f32.gmra.mrb[0].mxu0 %v904
        %v1115 = vpop.f32.mrb[0].mxu0
        %v1116 = vadd.f32 %v826, %v1115
        %v1117 = vpop.f32.mrb[0].mxu0
        %1118 = vmatprep.mubr.f32.mxu0 0.0
        %1119 = vmatmul.mubr.f32.gmra.mrb[0].mxu0 %v907
        %v1120 = vpop.f32.mrb[0].mxu0
        %v1121 = vadd.f32 %v826, %v1120
        %v1122 = vpop.f32.mrb[0].mxu0
        %1123 = vmatprep.mubr.f32.mxu0 0.0
        %1124 = vmatmul.mubr.f32.gmra.mrb[0].mxu0 %v910
        %v1125 = vpop.f32.mrb[0].mxu0
        %v1126 = vadd.f32 %v826, %v1125
        %v1127 = vpop.f32.mrb[0].mxu0
        %1128 = vmatprep.mubr.f32.mxu0 0.0
        %1129 = vmatmul.mubr.f32.gmra.mrb[0].mxu0 %v913
        %v1130 = vpop.f32.mrb[0].mxu0
        %v1131 = vadd.f32 %v826, %v1130
        %v1132 = vpop.f32.mrb[0].mxu0
        %1133 = vmatprep.mubr.f32.mxu0 0.0
        %1134 = vmatmul.mubr.f32.gmra.mrb[0].mxu0 %v916
        %v1135 = vpop.f32.mrb[0].mxu0
        %v1136 = vadd.f32 %v826, %v1135
        %v1137 = vpop.f32.mrb[0].mxu0
        %1138 = vmatprep.mubr.f32.mxu0 0.0
        %1139 = vmatmul.mubr.f32.gmra.mrb[0].mxu0 %v919
        %v1140 = vpop.f32.mrb[0].mxu0
        %v1141 = vadd.f32 %v826, %v1140
        %v1142 = vpop.f32.mrb[0].mxu0
        %1143 = vmatprep.mubr.f32.mxu0 0.0
        %1144 = vmatmul.mubr.f32.gmra.mrb[0].mxu0 %v922
        %v1145 = vpop.f32.mrb[0].mxu0
        %v1146 = vadd.f32 %v826, %v1145
        %v1147 = vpop.f32.mrb[0].mxu0
        %1148 = vdwg.mxu0
        %v1149 = vld [vmem:[%s316] sm:$0xff]
        %v1150 = vld [vmem:[%s316 + $0x8] sm:$0xff]
        %v1151 = vld [vmem:[%s316 + $0x10] sm:$0xff]
        %v1152 = vld [vmem:[%s316 + $0x18] sm:$0xff]
        %v1153 = vld [vmem:[%s316 + $0x20] sm:$0xff]
        %v1154 = vld [vmem:[%s316 + $0x28] sm:$0xff]
        %v1155 = vld [vmem:[%s316 + $0x30] sm:$0xff]
        %v1156 = vld [vmem:[%s316 + $0x38] sm:$0xff]
        %v1157 = vld [vmem:[%s316 + $0x40] sm:$0xff]
        %v1158 = vld [vmem:[%s316 + $0x48] sm:$0xff]
        %v1159 = vld [vmem:[%s316 + $0x50] sm:$0xff]
        %v1160 = vld [vmem:[%s316 + $0x58] sm:$0xff]
        %v1161 = vld [vmem:[%s316 + $0x60] sm:$0xff]
        %v1162 = vld [vmem:[%s316 + $0x68] sm:$0xff]
        %v1163 = vld [vmem:[%s316 + $0x70] sm:$0xff]
        %v1164 = vld [vmem:[%s316 + $0x78] sm:$0xff]
        %v1165 = vld [vmem:[%s316 + $0x80] sm:$0xff]
        %v1166 = vld [vmem:[%s316 + $0x88] sm:$0xff]
        %v1167 = vld [vmem:[%s316 + $0x90] sm:$0xff]
        %v1168 = vld [vmem:[%s316 + $0x98] sm:$0xff]
        %v1169 = vld [vmem:[%s316 + $0xa0] sm:$0xff]
        %v1170 = vld [vmem:[%s316 + $0xa8] sm:$0xff]
        %v1171 = vld [vmem:[%s316 + $0xb0] sm:$0xff]
        %v1172 = vld [vmem:[%s316 + $0xb8] sm:$0xff]
        %v1173 = vld [vmem:[%s316 + $0xc0] sm:$0xff]
        %v1174 = vld [vmem:[%s316 + $0xc8] sm:$0xff]
        %v1175 = vld [vmem:[%s316 + $0xd0] sm:$0xff]
        %v1176 = vld [vmem:[%s316 + $0xd8] sm:$0xff]
        %v1177 = vld [vmem:[%s316 + $0xe0] sm:$0xff]
        %v1178 = vld [vmem:[%s316 + $0xe8] sm:$0xff]
        %v1179 = vld [vmem:[%s316 + $0xf0] sm:$0xff]
        %v1180 = vld [vmem:[%s316 + $0xf8] sm:$0xff]
        %v1181 = vadd.f32 %v991, %v1149
        %v1182 = vadd.f32 %v996, %v1150
        %v1183 = vadd.f32 %v1001, %v1151
        %v1184 = vadd.f32 %v1006, %v1152
        %v1185 = vadd.f32 %v1011, %v1153
        %v1186 = vadd.f32 %v1016, %v1154
        %v1187 = vadd.f32 %v1021, %v1155
        %v1188 = vadd.f32 %v1026, %v1156
        %v1189 = vadd.f32 %v1031, %v1157
        %v1190 = vadd.f32 %v1036, %v1158
        %v1191 = vadd.f32 %v1041, %v1159
        %v1192 = vadd.f32 %v1046, %v1160
        %v1193 = vadd.f32 %v1051, %v1161
        %v1194 = vadd.f32 %v1056, %v1162
        %v1195 = vadd.f32 %v1061, %v1163
        %v1196 = vadd.f32 %v1066, %v1164
        %v1197 = vadd.f32 %v1071, %v1165
        %v1198 = vadd.f32 %v1076, %v1166
        %v1199 = vadd.f32 %v1081, %v1167
        %v1200 = vadd.f32 %v1086, %v1168
        %v1201 = vadd.f32 %v1091, %v1169
        %v1202 = vadd.f32 %v1096, %v1170
        %v1203 = vadd.f32 %v1101, %v1171
        %v1204 = vadd.f32 %v1106, %v1172
        %v1205 = vadd.f32 %v1111, %v1173
        %v1206 = vadd.f32 %v1116, %v1174
        %v1207 = vadd.f32 %v1121, %v1175
        %v1208 = vadd.f32 %v1126, %v1176
        %v1209 = vadd.f32 %v1131, %v1177
        %v1210 = vadd.f32 %v1136, %v1178
        %v1211 = vadd.f32 %v1141, %v1179
        %v1212 = vadd.f32 %v1146, %v1180
        %v1213 = vadd.f32 %v1181, %v753
        %v1214 = vadd.f32 %v1182, %v754
        %v1215 = vadd.f32 %v1183, %v755
        %v1216 = vadd.f32 %v1184, %v756
        %v1217 = vadd.f32 %v1185, %v757
        %v1218 = vadd.f32 %v1186, %v758
        %v1219 = vadd.f32 %v1187, %v759
        %v1220 = vadd.f32 %v1188, %v760
        %v1221 = vadd.f32 %v1189, %v761
        %v1222 = vadd.f32 %v1190, %v762
        %v1223 = vadd.f32 %v1191, %v763
        %v1224 = vadd.f32 %v1192, %v764
        %v1225 = vadd.f32 %v1193, %v765
        %v1226 = vadd.f32 %v1194, %v766
        %v1227 = vadd.f32 %v1195, %v767
        %v1228 = vadd.f32 %v1196, %v768
        %v1229 = vadd.f32 %v1197, %v769
        %v1230 = vadd.f32 %v1198, %v770
        %v1231 = vadd.f32 %v1199, %v771
        %v1232 = vadd.f32 %v1200, %v772
        %v1233 = vadd.f32 %v1201, %v773
        %v1234 = vadd.f32 %v1202, %v774
        %v1235 = vadd.f32 %v1203, %v775
        %v1236 = vadd.f32 %v1204, %v776
        %v1237 = vadd.f32 %v1205, %v777
        %v1238 = vadd.f32 %v1206, %v778
        %v1239 = vadd.f32 %v1207, %v779
        %v1240 = vadd.f32 %v1208, %v780
        %v1241 = vadd.f32 %v1209, %v781
        %v1242 = vadd.f32 %v1210, %v782
        %v1243 = vadd.f32 %v1211, %v783
        %v1244 = vadd.f32 %v1212, %v784
        %1245 = vst.msk [vmem:[%s301] sm:$0xff] %vm360, %v1213
        %1246 = vst.msk [vmem:[%s301 + $0x8] sm:$0xff] %vm360, %v1214
        %1247 = vst.msk [vmem:[%s301 + $0x10] sm:$0xff] %vm360, %v1215
        %1248 = vst.msk [vmem:[%s301 + $0x18] sm:$0xff] %vm360, %v1216
        %1249 = vst.msk [vmem:[%s301 + $0x20] sm:$0xff] %vm360, %v1217
        %1250 = vst.msk [vmem:[%s301 + $0x28] sm:$0xff] %vm360, %v1218
        %1251 = vst.msk [vmem:[%s301 + $0x30] sm:$0xff] %vm360, %v1219
        %1252 = vst.msk [vmem:[%s301 + $0x38] sm:$0xff] %vm360, %v1220
        %1253 = vst.msk [vmem:[%s301 + $0x40] sm:$0xff] %vm360, %v1221
        %1254 = vst.msk [vmem:[%s301 + $0x48] sm:$0xff] %vm360, %v1222
        %1255 = vst.msk [vmem:[%s301 + $0x50] sm:$0xff] %vm360, %v1223
        %1256 = vst.msk [vmem:[%s301 + $0x58] sm:$0xff] %vm360, %v1224
        %1257 = vst.msk [vmem:[%s301 + $0x60] sm:$0xff] %vm360, %v1225
        %1258 = vst.msk [vmem:[%s301 + $0x68] sm:$0xff] %vm360, %v1226
        %1259 = vst.msk [vmem:[%s301 + $0x70] sm:$0xff] %vm360, %v1227
        %1260 = vst.msk [vmem:[%s301 + $0x78] sm:$0xff] %vm360, %v1228
        %1261 = vst.msk [vmem:[%s301 + $0x80] sm:$0xff] %vm360, %v1229
        %1262 = vst.msk [vmem:[%s301 + $0x88] sm:$0xff] %vm360, %v1230
        %1263 = vst.msk [vmem:[%s301 + $0x90] sm:$0xff] %vm360, %v1231
        %1264 = vst.msk [vmem:[%s301 + $0x98] sm:$0xff] %vm360, %v1232
        %1265 = vst.msk [vmem:[%s301 + $0xa0] sm:$0xff] %vm360, %v1233
        %1266 = vst.msk [vmem:[%s301 + $0xa8] sm:$0xff] %vm360, %v1234
        %1267 = vst.msk [vmem:[%s301 + $0xb0] sm:$0xff] %vm360, %v1235
        %1268 = vst.msk [vmem:[%s301 + $0xb8] sm:$0xff] %vm360, %v1236
        %1269 = vst.msk [vmem:[%s301 + $0xc0] sm:$0xff] %vm360, %v1237
        %1270 = vst.msk [vmem:[%s301 + $0xc8] sm:$0xff] %vm360, %v1238
        %1271 = vst.msk [vmem:[%s301 + $0xd0] sm:$0xff] %vm360, %v1239
        %1272 = vst.msk [vmem:[%s301 + $0xd8] sm:$0xff] %vm360, %v1240
        %1273 = vst.msk [vmem:[%s301 + $0xe0] sm:$0xff] %vm360, %v1241
        %1274 = vst.msk [vmem:[%s301 + $0xe8] sm:$0xff] %vm360, %v1242
        %1275 = vst.msk [vmem:[%s301 + $0xf0] sm:$0xff] %vm360, %v1243
        %1276 = vst.msk [vmem:[%s301 + $0xf8] sm:$0xff] %vm360, %v1244
        %s1277 = sand.u32 %s191, 1
        %s1278 = scalar_lea.sflag [#allocation3], %s1277
        %s1279 = sand.u32 %s191, 1
        %s1280 = smul.addr %s1279, 256
        %s1281 = scalar_lea.vmem [#allocation2], %s1280
        // Predicated region
        $region49: #{attention_forward.13} parent=47 // pred_check
          %p1282 = pneg %p201
        $region50: #{attention_forward.13} parent=47 // pred_check_branch
          %1284 = sbr.rel (%p1282) target = $region52
        $region51: #{attention_forward.13} parent=47 // pred_region
          %s1286 = ssub.s32 4096, 4096
          %1287 = vsyncadd %s1278, %s1286
          %s1288 = smul.addr %s21, 32
          %s1289 = smul.addr %s1288, 128
          %s1290 = scalar_lea.hbm %s7, %s1289
          %s1291 = sshll.u32 %s1281, 4
          %s1292 = int_to_ptr.vmem [resolvable:$true] %s1291
          %1297 = dma.vmem_to_hbm [thread:$0]  %s1292, 4096, %s1290, %s1278, 128, 128, 8
        $region52: #{attention_forward.13} parent=47 // pred_fallthru
          _
      $region48: #{attention_forward.13} parent=5 // pred_fallthru
        _
      %p1298 = scmp.le.s32.totalorder 2, %s16
      // Predicated region
      $region53: #{attention_forward.13} parent=5 // pred_check
        %p1299 = pneg %p1298
      $region54: #{attention_forward.13} parent=5 // pred_check_branch
        %1301 = sbr.rel (%p1299) target = $region56
      $region55: #{attention_forward.13} parent=5 // pred_region
        %s1302 = ssub.s32 %s16, 2
        // Predicated region
        $region57: #{attention_forward.13} parent=55 // pred_check
          %p1303 = pneg %p207
        $region58: #{attention_forward.13} parent=55 // pred_check_branch
          %1305 = sbr.rel (%p1303) target = $region60
        $region59: #{attention_forward.13} parent=55 // pred_region
          %s1306 = sand.u32 %s192, 1
          %s1307 = scalar_lea.sflag [#allocation3], %s1306
          %s1308 = sand.u32 %s192, 1
          %s1309 = smul.addr %s1308, 256
          %s1310 = scalar_lea.vmem [#allocation2], %s1309
          %1311 = dma.done %s1307, 4096
        $region60: #{attention_forward.13} parent=55 // pred_fallthru
          _
      $region56: #{attention_forward.13} parent=5 // pred_fallthru
        _
    $region6: #{attention_forward.13} parent=1 // loop_footer
      %s20 = sadd.s32 1, %s16
    $region7: #{attention_forward.13} parent=1 // loop_footer_branch
      %15 = sbr.rel target = $region3
    $region8: #{attention_forward.13} parent=1 // loop_exit
      _
    %1312 = vsyncpa [#allocation3], 1
    %s1313 = scalar_lea.sflag [#allocation3], 1
    %1314 = vsyncpa %s1313, 1

</llo_original>
